<compile_context>
chip_gen: v7x
topology: tpu7x:2x2x1
jax: 0.10.0
libtpu: 0.0.40
codegen_flags: <defaults>
</compile_context>

<pallas_src>
import jax
import jax.numpy as jnp
import numpy as np
from jax.experimental import pallas as pl
from jax.experimental.pallas import tpu as pltpu


# ----------------------------------------------------------------------------
# Fused kernel: BN1+ReLU -> 1x1 conv (BN2 scale folded) -> +bias -> ReLU
#               -> bf16 VMEM-staged bottleneck -> dense im2col slab
#               -> single 3x3-conv contraction.
# One grid step == one batch image (NHWC, spatially pre-padded by 1).
# ----------------------------------------------------------------------------
def dense_layer_kernel(xp_ref, s1_ref, b1_ref, w1_ref, b2_ref, w2_ref,
                       o_ref, bott_ref, slab_ref):
    _, Hp, Wp, C_in = xp_ref.shape
    H, W = Hp - 2, Wp - 2
    HW = H * W
    Mp = Hp * Wp
    C_bn = w1_ref.shape[1]
    K_slab = w2_ref.shape[0]
    G = w2_ref.shape[1]

    # ---- Stage 1: BN1 + ReLU + 1x1 conv (BN2 scale pre-folded into w1) --------
    # Elementwise math in f32 (VPU); MXU operands bf16, accumulation f32.
    x = xp_ref[...].reshape(Mp, C_in)                                # f32
    h = jnp.maximum(x * s1_ref[...] + b1_ref[...], 0.0)             # (Mp, C_in)
    bott = jnp.dot(h.astype(jnp.bfloat16), w1_ref[...],
                   preferred_element_type=jnp.float32)               # (Mp, C_bn)
    bott = jnp.maximum(bott + b2_ref[...], 0.0)
    bott = bott.reshape(Hp, Wp, C_bn)

    # conv2's padding=1 pads the *bottleneck*, so the 1-px border (computed from
    # the pre-padded input) must be exactly zero.  Two iotas, no div/mod by Wp.
    yy = jax.lax.broadcasted_iota(jnp.int32, (Hp, Wp, C_bn), 0)
    xx = jax.lax.broadcasted_iota(jnp.int32, (Hp, Wp, C_bn), 1)
    interior = (yy >= 1) & (yy <= H) & (xx >= 1) & (xx <= W)
    bott = jnp.where(interior, bott, 0.0)

    # Single bf16 cast, staged in VMEM: tap reads below become clean strided
    # bf16 loads instead of spill/relayout of a large f32 live value.
    bott_ref[...] = bott.astype(jnp.bfloat16)

    # ---- Stage 2: 3x3 conv as ONE im2col contraction with a DENSE K axis ------
    # Slab column (3*dy+dx)*C_bn + c  <->  w2 row (ky*3+kx)*C_bn + c.
    # Pack taps in groups so every slab store covers whole 128-lane tiles
    # (C_bn=32 -> 4 taps per 128-lane group, K_slab=384 instead of 9*128=1152).
    if C_bn < 128 and 128 % C_bn == 0:
        tpg = 128 // C_bn                       # taps per 128-lane group
    else:
        tpg = 1                                 # C_bn multiple of 128: store 1:1
    col = 0
    for k0 in range(0, 9, tpg):                 # statically unrolled
        group = []
        for k in range(k0, min(k0 + tpg, 9)):
            dy, dx = k // 3, k % 3
            tap = bott_ref[dy:dy + H, dx:dx + W, :].reshape(HW, C_bn)
            group.append(tap)
        pad_cols = (tpg - len(group)) * C_bn
        if pad_cols:                            # last group: zero-fill so w2's
            group.append(jnp.zeros((HW, pad_cols), jnp.bfloat16))  # zero rows
        val = group[0] if len(group) == 1 else jnp.concatenate(group, axis=-1)
        width = val.shape[-1]
        slab_ref[:, col:col + width] = val
        col += width
    if col < K_slab:                            # only if C_bn doesn't divide 128
        slab_ref[:, col:] = jnp.zeros((HW, K_slab - col), jnp.bfloat16)

    out = jnp.dot(slab_ref[...], w2_ref[...],
                  preferred_element_type=jnp.float32)                # (HW, G) f32
    # TODO(synk): lane-dense (H, W*G) output repack for configs with large W*G.
    o_ref[...] = out.reshape(1, H, W, G).astype(o_ref.dtype)


# ----------------------------------------------------------------------------
# Wrapper
# ----------------------------------------------------------------------------
def _fold_bn(gamma, beta, mean, var, eps):
    scale = gamma / jnp.sqrt(var + eps)
    shift = beta - mean * scale
    return scale, shift


@jax.jit
def dense_layer_forward(x_nchw, params):
    eps = 1e-5
    N, C_in, H, W = x_nchw.shape
    C_bn = params["w1"].shape[0]              # bn_size * growth_rate
    G = params["w2"].shape[0]                 # growth_rate
    K_real = 9 * C_bn
    K_slab = ((K_real + 127) // 128) * 128    # dense-packed im2col K, lane-tiled

    s1, b1 = _fold_bn(params["g1"], params["be1"], params["m1"], params["v1"], eps)
    s2, b2 = _fold_bn(params["g2"], params["be2"], params["m2"], params["v2"], eps)

    # conv1 (1x1) as a matmul with BN2's scale folded into its output channels.
    w1_mat = (params["w1"][:, :, 0, 0].T * s2[None, :]).astype(jnp.bfloat16)  # (C_in, C_bn)

    # conv2 OIHW -> (ky, kx, C, G) -> (9*C_bn, G), zero-padded rows to K_slab.
    w2_mat = jnp.transpose(params["w2"], (2, 3, 1, 0)).reshape(K_real, G)
    w2_mat = jnp.pad(w2_mat, ((0, K_slab - K_real), (0, 0))).astype(jnp.bfloat16)

    # NCHW -> NHWC and 1-px spatial pad of the *input* only (the bottleneck
    # intermediate never leaves VMEM).
    x_nhwc = jnp.transpose(x_nchw, (0, 2, 3, 1))
    xp = jnp.pad(x_nhwc, ((0, 0), (1, 1), (1, 1), (0, 0)))
    Hp, Wp = H + 2, W + 2

    new_nhwc = pl.pallas_call(
        dense_layer_kernel,
        out_shape=jax.ShapeDtypeStruct((N, H, W, G), x_nchw.dtype),
        grid_spec=pltpu.PrefetchScalarGridSpec(
            num_scalar_prefetch=0,
            grid=(N,),
            in_specs=[
                pl.BlockSpec((1, Hp, Wp, C_in), lambda n: (n, 0, 0, 0)),
                pl.BlockSpec((1, C_in), lambda n: (0, 0)),
                pl.BlockSpec((1, C_in), lambda n: (0, 0)),
                pl.BlockSpec((C_in, C_bn), lambda n: (0, 0)),
                pl.BlockSpec((1, C_bn), lambda n: (0, 0)),
                pl.BlockSpec((K_slab, G), lambda n: (0, 0)),
            ],
            out_specs=pl.BlockSpec((1, H, W, G), lambda n: (n, 0, 0, 0)),
            scratch_shapes=[
                pltpu.VMEM((Hp, Wp, C_bn), jnp.bfloat16),    # staged bottleneck
                pltpu.VMEM((H * W, K_slab), jnp.bfloat16),   # dense im2col slab
            ],
        ),
        compiler_params=pltpu.CompilerParams(
            dimension_semantics=("parallel",),        # megacore across batch
            # Per-step footprint is ~1 MiB; 32 MiB is safe on v5e/v6e/v7x.  When
            # row-halo tiling lands, derive this from the actual footprint.
            vmem_limit_bytes=32 * 1024 * 1024,
        ),
    )(xp, s1[None, :], b1[None, :], w1_mat, b2[None, :], w2_mat)

    # Back to NCHW and concatenate along channels (torch.cat([x, new], 1)).
    # TODO(synk): keep the whole block NHWC to avoid these transposes + concat copy.
    new_nchw = jnp.transpose(new_nhwc, (0, 3, 1, 2))
    return jnp.concatenate([x_nchw, new_nchw], axis=1)


# ----------------------------------------------------------------------------
# Pure-JAX reference (mirrors the PyTorch forward, inference-mode BN, f32).
# ----------------------------------------------------------------------------
def reference_forward(x, params, eps=1e-5):
    def bn(t, g, b, m, v):
        g, b, m, v = (a[None, :, None, None] for a in (g, b, m, v))
        return (t - m) / jnp.sqrt(v + eps) * g + b

    h = jax.nn.relu(bn(x, params["g1"], params["be1"], params["m1"], params["v1"]))
    h = jax.lax.conv_general_dilated(h, params["w1"], (1, 1), "VALID",
                                     dimension_numbers=("NCHW", "OIHW", "NCHW"))
    h = jax.nn.relu(bn(h, params["g2"], params["be2"], params["m2"], params["v2"]))
    h = jax.lax.conv_general_dilated(h, params["w2"], (1, 1), ((1, 1), (1, 1)),
                                     dimension_numbers=("NCHW", "OIHW", "NCHW"))
    return jnp.concatenate([x, h], axis=1)


if __name__ == "__main__":
    # DenseLayer(num_input_features=4, growth_rate=8, bn_size=4) on (2, 4, 16, 16).
    N, C_in, H, W = 2, 4, 16, 16
    growth_rate, bn_size = 8, 4
    C_bn = bn_size * growth_rate

    key = jax.random.PRNGKey(0)
    ks = jax.random.split(key, 11)

    params = {
        # bn1
        "g1": jax.random.uniform(ks[0], (C_in,), jnp.float32, 0.5, 1.5),
        "be1": 0.1 * jax.random.normal(ks[1], (C_in,), jnp.float32),
        "m1": 0.1 * jax.random.normal(ks[2], (C_in,), jnp.float32),
        "v1": jax.random.uniform(ks[3], (C_in,), jnp.float32, 0.5, 1.5),
        # conv1: (bn_size*growth, C_in, 1, 1), no bias
        "w1": 0.2 * jax.random.normal(ks[4], (C_bn, C_in, 1, 1), jnp.float32),
        # bn2
        "g2": jax.random.uniform(ks[5], (C_bn,), jnp.float32, 0.5, 1.5),
        "be2": 0.1 * jax.random.normal(ks[6], (C_bn,), jnp.float32),
        "m2": 0.1 * jax.random.normal(ks[7], (C_bn,), jnp.float32),
        "v2": jax.random.uniform(ks[8], (C_bn,), jnp.float32, 0.5, 1.5),
        # conv2: (growth, bn_size*growth, 3, 3), no bias
        "w2": 0.1 * jax.random.normal(ks[9], (growth_rate, C_bn, 3, 3), jnp.float32),
    }

    x = jax.random.normal(ks[10], (N, C_in, H, W), jnp.float32)

    out = jax.block_until_ready(dense_layer_forward(x, params))
    assert out.shape == (N, C_in + growth_rate, H, W), out.shape

    ref = jax.block_until_ready(reference_forward(x, params))
    # Tolerance reflects bf16 MXU operands (f32 accumulation) and the BN2 scale
    # folded into bf16 w1; genuine im2col/mask/packing bugs would be O(0.1).
    np.testing.assert_allclose(np.asarray(out), np.asarray(ref), rtol=5e-2, atol=5e-2)

    print("KERNEL_OK")
</pallas_src>

<mosaic_0001>
module attributes {stable_mosaic.version = 11 : i64} {
  func.func @dense_layer_kernel(%arg0: i32, %arg1: memref<1x18x18x4xf32, #tpu.memory_space<vmem>>, %arg2: memref<1x4xf32, #tpu.memory_space<vmem>>, %arg3: memref<1x4xf32, #tpu.memory_space<vmem>>, %arg4: memref<4x32xbf16, #tpu.memory_space<vmem>>, %arg5: memref<1x32xf32, #tpu.memory_space<vmem>>, %arg6: memref<384x8xbf16, #tpu.memory_space<vmem>>, %arg7: memref<1x16x16x8xf32, #tpu.memory_space<vmem>>, %arg8: memref<18x18x32xbf16, #tpu.memory_space<vmem>>, %arg9: memref<256x384xbf16, #tpu.memory_space<vmem>>) attributes {dimension_semantics = [#tpu.dimension_semantics<parallel>], iteration_bounds = array<i64: 2>, scalar_prefetch = 0 : i64, scratch_operands = 2 : i64, tpu.core_type = #tpu.core_type<tc>, window_params = [{transform_indices = @transform_0, window_bounds = array<i64: 1, 18, 18, 4>}, {pipeline_mode = #tpu.pipeline_mode<synchronous>, transform_indices = @transform_1, window_bounds = array<i64: 1, 4>}, {pipeline_mode = #tpu.pipeline_mode<synchronous>, transform_indices = @transform_2, window_bounds = array<i64: 1, 4>}, {pipeline_mode = #tpu.pipeline_mode<synchronous>, transform_indices = @transform_3, window_bounds = array<i64: 4, 32>}, {pipeline_mode = #tpu.pipeline_mode<synchronous>, transform_indices = @transform_4, window_bounds = array<i64: 1, 32>}, {pipeline_mode = #tpu.pipeline_mode<synchronous>, transform_indices = @transform_5, window_bounds = array<i64: 384, 8>}, {transform_indices = @transform_6, window_bounds = array<i64: 1, 16, 16, 8>}]} {
    %c0 = arith.constant 0 : index
    %c0_0 = arith.constant 0 : index
    %c0_1 = arith.constant 0 : index
    %c0_2 = arith.constant 0 : index
    %0 = vector.load %arg1[%c0, %c0_0, %c0_1, %c0_2] : memref<1x18x18x4xf32, #tpu.memory_space<vmem>>, vector<1x18x18x4xf32>
    %1 = vector.shape_cast %0 : vector<1x18x18x4xf32> to vector<324x4xf32>
    %c0_3 = arith.constant 0 : index
    %c0_4 = arith.constant 0 : index
    %2 = vector.load %arg2[%c0_3, %c0_4] : memref<1x4xf32, #tpu.memory_space<vmem>>, vector<1x4xf32>
    %3 = vector.broadcast %2 : vector<1x4xf32> to vector<324x4xf32>
    %4 = arith.mulf %1, %3 : vector<324x4xf32>
    %c0_5 = arith.constant 0 : index
    %c0_6 = arith.constant 0 : index
    %5 = vector.load %arg3[%c0_5, %c0_6] : memref<1x4xf32, #tpu.memory_space<vmem>>, vector<1x4xf32>
    %6 = vector.broadcast %5 : vector<1x4xf32> to vector<324x4xf32>
    %7 = arith.addf %4, %6 : vector<324x4xf32>
    %cst = arith.constant 0.000000e+00 : f32
    %8 = vector.broadcast %cst : f32 to vector<324x4xf32>
    %9 = arith.maximumf %7, %8 : vector<324x4xf32>
    %10 = arith.truncf %9 : vector<324x4xf32> to vector<324x4xbf16>
    %c0_7 = arith.constant 0 : index
    %c0_8 = arith.constant 0 : index
    %11 = vector.load %arg4[%c0_7, %c0_8] : memref<4x32xbf16, #tpu.memory_space<vmem>>, vector<4x32xbf16>
    %cst_9 = arith.constant dense<0.000000e+00> : vector<324x32xf32>
    %12 = tpu.matmul %10, %11, %cst_9 {dimension_numbers = #tpu.dot_dimension_numbers<[1], [0], [0], [1], [0, 0, 1, 1], [], []>} : vector<324x4xbf16>, vector<4x32xbf16>, vector<324x32xf32> -> vector<324x32xf32>
    %c0_10 = arith.constant 0 : index
    %c0_11 = arith.constant 0 : index
    %13 = vector.load %arg5[%c0_10, %c0_11] : memref<1x32xf32, #tpu.memory_space<vmem>>, vector<1x32xf32>
    %14 = vector.broadcast %13 : vector<1x32xf32> to vector<324x32xf32>
    %15 = arith.addf %12, %14 : vector<324x32xf32>
    %cst_12 = arith.constant 0.000000e+00 : f32
    %16 = vector.broadcast %cst_12 : f32 to vector<324x32xf32>
    %17 = arith.maximumf %15, %16 : vector<324x32xf32>
    %18 = vector.shape_cast %17 : vector<324x32xf32> to vector<18x18x32xf32>
    %19 = tpu.iota {dimensions = array<i32: 0>} : vector<18x18x32xi32>
    %20 = tpu.iota {dimensions = array<i32: 1>} : vector<18x18x32xi32>
    %c1_i32 = arith.constant 1 : i32
    %21 = vector.broadcast %c1_i32 : i32 to vector<18x18x32xi32>
    %22 = arith.cmpi sge, %19, %21 : vector<18x18x32xi32>
    %c16_i32 = arith.constant 16 : i32
    %23 = vector.broadcast %c16_i32 : i32 to vector<18x18x32xi32>
    %24 = arith.cmpi sle, %19, %23 : vector<18x18x32xi32>
    %25 = arith.andi %22, %24 : vector<18x18x32xi1>
    %c1_i32_13 = arith.constant 1 : i32
    %26 = vector.broadcast %c1_i32_13 : i32 to vector<18x18x32xi32>
    %27 = arith.cmpi sge, %20, %26 : vector<18x18x32xi32>
    %28 = arith.andi %25, %27 : vector<18x18x32xi1>
    %c16_i32_14 = arith.constant 16 : i32
    %29 = vector.broadcast %c16_i32_14 : i32 to vector<18x18x32xi32>
    %30 = arith.cmpi sle, %20, %29 : vector<18x18x32xi32>
    %31 = arith.andi %28, %30 : vector<18x18x32xi1>
    %cst_15 = arith.constant 0.000000e+00 : f32
    %32 = vector.broadcast %cst_15 : f32 to vector<18x18x32xf32>
    %33 = arith.select %31, %18, %32 : vector<18x18x32xi1>, vector<18x18x32xf32>
    %34 = arith.truncf %33 : vector<18x18x32xf32> to vector<18x18x32xbf16>
    %c0_16 = arith.constant 0 : index
    %c0_17 = arith.constant 0 : index
    %c0_18 = arith.constant 0 : index
    %35 = vector.load %arg8[%c0_16, %c0_17, %c0_18] : memref<18x18x32xbf16, #tpu.memory_space<vmem>>, vector<18x18x32xbf16>
    tpu.vector_store %arg8[%c0_16, %c0_17, %c0_18], %34 {strides = array<i32>} : memref<18x18x32xbf16, #tpu.memory_space<vmem>>, vector<18x18x32xbf16>,
    %c0_19 = arith.constant 0 : index
    %c0_20 = arith.constant 0 : index
    %c0_21 = arith.constant 0 : index
    %36 = vector.load %arg8[%c0_19, %c0_20, %c0_21] : memref<18x18x32xbf16, #tpu.memory_space<vmem>>, vector<16x16x32xbf16>
    %37 = vector.shape_cast %36 : vector<16x16x32xbf16> to vector<256x32xbf16>
    %c0_22 = arith.constant 0 : index
    %c1 = arith.constant 1 : index
    %c0_23 = arith.constant 0 : index
    %38 = vector.load %arg8[%c0_22, %c1, %c0_23] : memref<18x18x32xbf16, #tpu.memory_space<vmem>>, vector<16x16x32xbf16>
    %39 = vector.shape_cast %38 : vector<16x16x32xbf16> to vector<256x32xbf16>
    %c0_24 = arith.constant 0 : index
    %c2 = arith.constant 2 : index
    %c0_25 = arith.constant 0 : index
    %40 = vector.load %arg8[%c0_24, %c2, %c0_25] : memref<18x18x32xbf16, #tpu.memory_space<vmem>>, vector<16x16x32xbf16>
    %41 = vector.shape_cast %40 : vector<16x16x32xbf16> to vector<256x32xbf16>
    %c1_26 = arith.constant 1 : index
    %c0_27 = arith.constant 0 : index
    %c0_28 = arith.constant 0 : index
    %42 = vector.load %arg8[%c1_26, %c0_27, %c0_28] : memref<18x18x32xbf16, #tpu.memory_space<vmem>>, vector<16x16x32xbf16>
    %43 = vector.shape_cast %42 : vector<16x16x32xbf16> to vector<256x32xbf16>
    %44 = tpu.concatenate %37, %39, %41, %43 in 1 : vector<256x32xbf16>, vector<256x32xbf16>, vector<256x32xbf16>, vector<256x32xbf16> -> vector<256x128xbf16>
    %c0_29 = arith.constant 0 : index
    %c0_30 = arith.constant 0 : index
    %45 = vector.load %arg9[%c0_29, %c0_30] : memref<256x384xbf16, #tpu.memory_space<vmem>>, vector<256x128xbf16>
    tpu.vector_store %arg9[%c0_29, %c0_30], %44 {strides = array<i32>} : memref<256x384xbf16, #tpu.memory_space<vmem>>, vector<256x128xbf16>,
    %c1_31 = arith.constant 1 : index
    %c1_32 = arith.constant 1 : index
    %c0_33 = arith.constant 0 : index
    %46 = vector.load %arg8[%c1_31, %c1_32, %c0_33] : memref<18x18x32xbf16, #tpu.memory_space<vmem>>, vector<16x16x32xbf16>
    %47 = vector.shape_cast %46 : vector<16x16x32xbf16> to vector<256x32xbf16>
    %c1_34 = arith.constant 1 : index
    %c2_35 = arith.constant 2 : index
    %c0_36 = arith.constant 0 : index
    %48 = vector.load %arg8[%c1_34, %c2_35, %c0_36] : memref<18x18x32xbf16, #tpu.memory_space<vmem>>, vector<16x16x32xbf16>
    %49 = vector.shape_cast %48 : vector<16x16x32xbf16> to vector<256x32xbf16>
    %c2_37 = arith.constant 2 : index
    %c0_38 = arith.constant 0 : index
    %c0_39 = arith.constant 0 : index
    %50 = vector.load %arg8[%c2_37, %c0_38, %c0_39] : memref<18x18x32xbf16, #tpu.memory_space<vmem>>, vector<16x16x32xbf16>
    %51 = vector.shape_cast %50 : vector<16x16x32xbf16> to vector<256x32xbf16>
    %c2_40 = arith.constant 2 : index
    %c1_41 = arith.constant 1 : index
    %c0_42 = arith.constant 0 : index
    %52 = vector.load %arg8[%c2_40, %c1_41, %c0_42] : memref<18x18x32xbf16, #tpu.memory_space<vmem>>, vector<16x16x32xbf16>
    %53 = vector.shape_cast %52 : vector<16x16x32xbf16> to vector<256x32xbf16>
    %54 = tpu.concatenate %47, %49, %51, %53 in 1 : vector<256x32xbf16>, vector<256x32xbf16>, vector<256x32xbf16>, vector<256x32xbf16> -> vector<256x128xbf16>
    %c0_43 = arith.constant 0 : index
    %c128 = arith.constant 128 : index
    %55 = vector.load %arg9[%c0_43, %c128] : memref<256x384xbf16, #tpu.memory_space<vmem>>, vector<256x128xbf16>
    tpu.vector_store %arg9[%c0_43, %c128], %54 {strides = array<i32>} : memref<256x384xbf16, #tpu.memory_space<vmem>>, vector<256x128xbf16>,
    %c2_44 = arith.constant 2 : index
    %c2_45 = arith.constant 2 : index
    %c0_46 = arith.constant 0 : index
    %56 = vector.load %arg8[%c2_44, %c2_45, %c0_46] : memref<18x18x32xbf16, #tpu.memory_space<vmem>>, vector<16x16x32xbf16>
    %57 = vector.shape_cast %56 : vector<16x16x32xbf16> to vector<256x32xbf16>
    %cst_47 = arith.constant 0.000000e+00 : bf16
    %58 = vector.broadcast %cst_47 : bf16 to vector<256x96xbf16>
    %59 = tpu.concatenate %57, %58 in 1 : vector<256x32xbf16>, vector<256x96xbf16> -> vector<256x128xbf16>
    %c0_48 = arith.constant 0 : index
    %c256 = arith.constant 256 : index
    %60 = vector.load %arg9[%c0_48, %c256] : memref<256x384xbf16, #tpu.memory_space<vmem>>, vector<256x128xbf16>
    tpu.vector_store %arg9[%c0_48, %c256], %59 {strides = array<i32>} : memref<256x384xbf16, #tpu.memory_space<vmem>>, vector<256x128xbf16>,
    %c0_49 = arith.constant 0 : index
    %c0_50 = arith.constant 0 : index
    %61 = vector.load %arg9[%c0_49, %c0_50] : memref<256x384xbf16, #tpu.memory_space<vmem>>, vector<256x384xbf16>
    %c0_51 = arith.constant 0 : index
    %c0_52 = arith.constant 0 : index
    %62 = vector.load %arg6[%c0_51, %c0_52] : memref<384x8xbf16, #tpu.memory_space<vmem>>, vector<384x8xbf16>
    %cst_53 = arith.constant dense<0.000000e+00> : vector<256x8xf32>
    %63 = tpu.matmul %61, %62, %cst_53 {dimension_numbers = #tpu.dot_dimension_numbers<[1], [0], [0], [1], [0, 0, 1, 1], [], []>} : vector<256x384xbf16>, vector<384x8xbf16>, vector<256x8xf32> -> vector<256x8xf32>
    %64 = vector.shape_cast %63 : vector<256x8xf32> to vector<1x16x16x8xf32>
    %c0_54 = arith.constant 0 : index
    %c0_55 = arith.constant 0 : index
    %c0_56 = arith.constant 0 : index
    %c0_57 = arith.constant 0 : index
    %65 = vector.load %arg7[%c0_54, %c0_55, %c0_56, %c0_57] : memref<1x16x16x8xf32, #tpu.memory_space<vmem>>, vector<1x16x16x8xf32>
    tpu.vector_store %arg7[%c0_54, %c0_55, %c0_56, %c0_57], %64 {strides = array<i32>} : memref<1x16x16x8xf32, #tpu.memory_space<vmem>>, vector<1x16x16x8xf32>,
    return
  }
  func.func @transform_0(%arg0: i32) -> (i32, i32, i32, i32) {
    %c0_i32 = arith.constant 0 : i32
    %c0_i32_0 = arith.constant 0 : i32
    %c0_i32_1 = arith.constant 0 : i32
    %c0_i32_2 = arith.constant 0 : i32
    return %arg0, %c0_i32, %c0_i32_0, %c0_i32_1 : i32, i32, i32, i32
  }
  func.func @transform_1(%arg0: i32) -> (i32, i32) {
    %c0_i32 = arith.constant 0 : i32
    %c0_i32_0 = arith.constant 0 : i32
    %c0_i32_1 = arith.constant 0 : i32
    return %c0_i32, %c0_i32_0 : i32, i32
  }
  func.func @transform_2(%arg0: i32) -> (i32, i32) {
    %c0_i32 = arith.constant 0 : i32
    %c0_i32_0 = arith.constant 0 : i32
    %c0_i32_1 = arith.constant 0 : i32
    return %c0_i32, %c0_i32_0 : i32, i32
  }
  func.func @transform_3(%arg0: i32) -> (i32, i32) {
    %c0_i32 = arith.constant 0 : i32
    %c0_i32_0 = arith.constant 0 : i32
    %c0_i32_1 = arith.constant 0 : i32
    return %c0_i32, %c0_i32_0 : i32, i32
  }
  func.func @transform_4(%arg0: i32) -> (i32, i32) {
    %c0_i32 = arith.constant 0 : i32
    %c0_i32_0 = arith.constant 0 : i32
    %c0_i32_1 = arith.constant 0 : i32
    return %c0_i32, %c0_i32_0 : i32, i32
  }
  func.func @transform_5(%arg0: i32) -> (i32, i32) {
    %c0_i32 = arith.constant 0 : i32
    %c0_i32_0 = arith.constant 0 : i32
    %c0_i32_1 = arith.constant 0 : i32
    return %c0_i32, %c0_i32_0 : i32, i32
  }
  func.func @transform_6(%arg0: i32) -> (i32, i32, i32, i32) {
    %c0_i32 = arith.constant 0 : i32
    %c0_i32_0 = arith.constant 0 : i32
    %c0_i32_1 = arith.constant 0 : i32
    %c0_i32_2 = arith.constant 0 : i32
    return %arg0, %c0_i32, %c0_i32_0, %c0_i32_1 : i32, i32, i32, i32
  }
}

</mosaic_0001>

<llo_original>
// kernel: dense_layer_forward.1
$region0: #{dense_layer_forward.1}
  #allocation0 [shape = 'u32[]', space=smem, size = 0x4, offset = 0x4, fixed_abs, tag = 'smem constant byte address 0x4 - core index']
  #allocation1 [shape = 'u32[144,128]{1,0:T(1,128)}', space=vmem, size = 0x12000, scoped, tag = 'internal scratch']
  #allocation2 [shape = 'bf16[18,18,32]{2,1,0:T(8,128)(2,1)}', space=vmem, size = 0x1b000, scoped, tag = 'scratch operand']
  #allocation3 [shape = 'bf16[256,384]{1,0:T(16,128)(2,1)}', space=vmem, size = 0x30000, scoped, tag = 'scratch operand']
  %s0 = inlined_call_operand.vmem [shape: f32[2,18,18,4], index: 0, kind: input, shape index: {}]
  %s1 = inlined_call_operand.vmem [shape: f32[1,4], index: 1, kind: input, shape index: {}]
  %s2 = inlined_call_operand.vmem [shape: f32[1,4], index: 2, kind: input, shape index: {}]
  %s3 = inlined_call_operand.vmem [shape: bf16[4,32], index: 3, kind: input, shape index: {}]
  %s4 = inlined_call_operand.vmem [shape: f32[1,32], index: 4, kind: input, shape index: {}]
  %s5 = inlined_call_operand.vmem [shape: bf16[384,8], index: 5, kind: input, shape index: {}]
  %s6 = inlined_call_operand.vmem [shape: f32[2,16,16,8], index: 6, kind: output, shape index: {}]
  %s7 = sld [smem:[#allocation0]]
  $region57: #{dense_layer_forward.1} parent=0
    _
  %s9 = ssub.s32 1, %s7
  %s10 = scalar_select 0, %s9, %s7
  loop: start=0, step=1, limit=4
  $region2: #{dense_layer_forward.1} parent=0 // loop_pre_header
    _
  $region3: #{dense_layer_forward.1} parent=0 // loop_header
    %s12 = sphi 0, %s16
    %p13 = scmp.ge.s32.totalorder %s12, 4
    %s22 = sphi 0, %s24
    %s25 = sphi 0, %s22
    %s26 = sphi 0, %s25
    %s42 = sphi 0, %s26
    %s46 = sphi 0, %s46
    %s48 = sphi 0, %s46
    %s49 = sphi 0, %s48
    %s63 = sphi 0, %s49
    %s67 = sphi 0, %s67
    %s69 = sphi 0, %s67
    %s70 = sphi 0, %s69
    %s84 = sphi 0, %s70
    %s88 = sphi 0, %s88
    %s90 = sphi 0, %s88
    %s91 = sphi 0, %s90
    %s105 = sphi 0, %s91
    %s109 = sphi 0, %s109
    %s111 = sphi 0, %s109
    %s112 = sphi 0, %s111
    %s126 = sphi 0, %s112
    %s130 = sphi 0, %s130
    %s132 = sphi 0, %s130
    %s133 = sphi 0, %s132
    %s147 = sphi 0, %s133
    %s153 = sphi 0, %s155
    %s156 = sphi 0, %s153
    %s157 = sphi 0, %s156
    %s173 = sphi 0, %s157
  $region4: #{dense_layer_forward.1} parent=0 // loop_header_branch
    %15 = sbr.rel (%p13) target = $region8
  $region5: #{dense_layer_forward.1} parent=0 // loop_body
    %s17 = ssub.s32 %s12, 1
    %s18 = ssub.s32 %s12, 2
    %s19 = sadd.s32 %s12, 1
    %s20 = ssub.s32 %s12, %s19
    %p21 = scmp.eq.s32.totalorder %s20, 0
    %s23 = sadd.s32 %s22, 1
    %s24 = scalar_select %p21, %s22, %s23
    %p27 = pneg %p21
    %p28 = scmp.eq.s32.totalorder %s12, 1
    %p29 = por %p27, %p28
    %p30 = scmp.ne.s32.totalorder %s22, %s25
    %p31 = scmp.eq.s32.totalorder %s12, 0
    %p32 = por %p30, %p31
    %p33 = scmp.ne.s32.totalorder %s22, %s25
    %p34 = scmp.eq.s32.totalorder %s17, 1
    %p35 = por %p33, %p34
    %p36 = scmp.ne.s32.totalorder %s25, %s26
    %p37 = scmp.eq.s32.totalorder %s17, 0
    %p38 = por %p36, %p37
    %p39 = scmp.ne.s32.totalorder %s25, %s26
    %p40 = scmp.eq.s32.totalorder %s18, 1
    %p41 = por %p39, %p40
    %p43 = scmp.ne.s32.totalorder %s26, %s42
    %p44 = scmp.eq.s32.totalorder %s18, 0
    %p45 = por %p43, %p44
    %s47 = sadd.s32 %s46, 1
    %p50 = scmp.eq.s32.totalorder %s12, 1
    %p51 = scmp.ne.s32.totalorder %s46, %s48
    %p52 = scmp.eq.s32.totalorder %s12, 0
    %p53 = por %p51, %p52
    %p54 = scmp.ne.s32.totalorder %s46, %s48
    %p55 = scmp.eq.s32.totalorder %s17, 1
    %p56 = por %p54, %p55
    %p57 = scmp.ne.s32.totalorder %s48, %s49
    %p58 = scmp.eq.s32.totalorder %s17, 0
    %p59 = por %p57, %p58
    %p60 = scmp.ne.s32.totalorder %s48, %s49
    %p61 = scmp.eq.s32.totalorder %s18, 1
    %p62 = por %p60, %p61
    %p64 = scmp.ne.s32.totalorder %s49, %s63
    %p65 = scmp.eq.s32.totalorder %s18, 0
    %p66 = por %p64, %p65
    %s68 = sadd.s32 %s67, 1
    %p71 = scmp.eq.s32.totalorder %s12, 1
    %p72 = scmp.ne.s32.totalorder %s67, %s69
    %p73 = scmp.eq.s32.totalorder %s12, 0
    %p74 = por %p72, %p73
    %p75 = scmp.ne.s32.totalorder %s67, %s69
    %p76 = scmp.eq.s32.totalorder %s17, 1
    %p77 = por %p75, %p76
    %p78 = scmp.ne.s32.totalorder %s69, %s70
    %p79 = scmp.eq.s32.totalorder %s17, 0
    %p80 = por %p78, %p79
    %p81 = scmp.ne.s32.totalorder %s69, %s70
    %p82 = scmp.eq.s32.totalorder %s18, 1
    %p83 = por %p81, %p82
    %p85 = scmp.ne.s32.totalorder %s70, %s84
    %p86 = scmp.eq.s32.totalorder %s18, 0
    %p87 = por %p85, %p86
    %s89 = sadd.s32 %s88, 1
    %p92 = scmp.eq.s32.totalorder %s12, 1
    %p93 = scmp.ne.s32.totalorder %s88, %s90
    %p94 = scmp.eq.s32.totalorder %s12, 0
    %p95 = por %p93, %p94
    %p96 = scmp.ne.s32.totalorder %s88, %s90
    %p97 = scmp.eq.s32.totalorder %s17, 1
    %p98 = por %p96, %p97
    %p99 = scmp.ne.s32.totalorder %s90, %s91
    %p100 = scmp.eq.s32.totalorder %s17, 0
    %p101 = por %p99, %p100
    %p102 = scmp.ne.s32.totalorder %s90, %s91
    %p103 = scmp.eq.s32.totalorder %s18, 1
    %p104 = por %p102, %p103
    %p106 = scmp.ne.s32.totalorder %s91, %s105
    %p107 = scmp.eq.s32.totalorder %s18, 0
    %p108 = por %p106, %p107
    %s110 = sadd.s32 %s109, 1
    %p113 = scmp.eq.s32.totalorder %s12, 1
    %p114 = scmp.ne.s32.totalorder %s109, %s111
    %p115 = scmp.eq.s32.totalorder %s12, 0
    %p116 = por %p114, %p115
    %p117 = scmp.ne.s32.totalorder %s109, %s111
    %p118 = scmp.eq.s32.totalorder %s17, 1
    %p119 = por %p117, %p118
    %p120 = scmp.ne.s32.totalorder %s111, %s112
    %p121 = scmp.eq.s32.totalorder %s17, 0
    %p122 = por %p120, %p121
    %p123 = scmp.ne.s32.totalorder %s111, %s112
    %p124 = scmp.eq.s32.totalorder %s18, 1
    %p125 = por %p123, %p124
    %p127 = scmp.ne.s32.totalorder %s112, %s126
    %p128 = scmp.eq.s32.totalorder %s18, 0
    %p129 = por %p127, %p128
    %s131 = sadd.s32 %s130, 1
    %p134 = scmp.eq.s32.totalorder %s12, 1
    %p135 = scmp.ne.s32.totalorder %s130, %s132
    %p136 = scmp.eq.s32.totalorder %s12, 0
    %p137 = por %p135, %p136
    %p138 = scmp.ne.s32.totalorder %s130, %s132
    %p139 = scmp.eq.s32.totalorder %s17, 1
    %p140 = por %p138, %p139
    %p141 = scmp.ne.s32.totalorder %s132, %s133
    %p142 = scmp.eq.s32.totalorder %s17, 0
    %p143 = por %p141, %p142
    %p144 = scmp.ne.s32.totalorder %s132, %s133
    %p145 = scmp.eq.s32.totalorder %s18, 1
    %p146 = por %p144, %p145
    %p148 = scmp.ne.s32.totalorder %s133, %s147
    %p149 = scmp.eq.s32.totalorder %s18, 0
    %p150 = por %p148, %p149
    %s151 = ssub.s32 %s12, %s19
    %p152 = scmp.eq.s32.totalorder %s151, 0
    %s154 = sadd.s32 %s153, 1
    %s155 = scalar_select %p152, %s153, %s154
    %p158 = pneg %p152
    %p159 = scmp.eq.s32.totalorder %s12, 1
    %p160 = por %p158, %p159
    %p161 = scmp.ne.s32.totalorder %s153, %s156
    %p162 = scmp.eq.s32.totalorder %s12, 0
    %p163 = por %p161, %p162
    %p164 = scmp.ne.s32.totalorder %s153, %s156
    %p165 = scmp.eq.s32.totalorder %s17, 1
    %p166 = por %p164, %p165
    %p167 = scmp.ne.s32.totalorder %s156, %s157
    %p168 = scmp.eq.s32.totalorder %s17, 0
    %p169 = por %p167, %p168
    %p170 = scmp.ne.s32.totalorder %s156, %s157
    %p171 = scmp.eq.s32.totalorder %s18, 1
    %p172 = por %p170, %p171
    %p174 = scmp.ne.s32.totalorder %s157, %s173
    %p175 = scmp.eq.s32.totalorder %s18, 0
    %p176 = por %p174, %p175
    %p177 = scmp.le.s32.totalorder 1, %s12
    %p178 = scmp.lt.s32.totalorder %s12, 3
    %p179 = pnand %p177, %p178
    %p180 = pneg %p179
    // Predicated region
    $region9: #{dense_layer_forward.1} parent=5 // pred_check
      _
    $region10: #{dense_layer_forward.1} parent=5 // pred_check_branch
      %182 = sbr.rel (%p179) target = $region12
    $region11: #{dense_layer_forward.1} parent=5 // pred_region
      %s183 = ssub.s32 %s12, 1
      // Predicated region
      $region13: #{dense_layer_forward.1} parent=11 // pred_check
        %p184 = pneg %p59
      $region14: #{dense_layer_forward.1} parent=11 // pred_check_branch
        %186 = sbr.rel (%p184) target = $region16
      $region15: #{dense_layer_forward.1} parent=11 // pred_region
        _
      $region16: #{dense_layer_forward.1} parent=11 // pred_fallthru
        _
      // Predicated region
      $region17: #{dense_layer_forward.1} parent=11 // pred_check
        %p187 = pneg %p80
      $region18: #{dense_layer_forward.1} parent=11 // pred_check_branch
        %189 = sbr.rel (%p187) target = $region20
      $region19: #{dense_layer_forward.1} parent=11 // pred_region
        _
      $region20: #{dense_layer_forward.1} parent=11 // pred_fallthru
        _
      // Predicated region
      $region21: #{dense_layer_forward.1} parent=11 // pred_check
        %p190 = pneg %p101
      $region22: #{dense_layer_forward.1} parent=11 // pred_check_branch
        %192 = sbr.rel (%p190) target = $region24
      $region23: #{dense_layer_forward.1} parent=11 // pred_region
        _
      $region24: #{dense_layer_forward.1} parent=11 // pred_fallthru
        _
      // Predicated region
      $region25: #{dense_layer_forward.1} parent=11 // pred_check
        %p193 = pneg %p122
      $region26: #{dense_layer_forward.1} parent=11 // pred_check_branch
        %195 = sbr.rel (%p193) target = $region28
      $region27: #{dense_layer_forward.1} parent=11 // pred_region
        _
      $region28: #{dense_layer_forward.1} parent=11 // pred_fallthru
        _
      // Predicated region
      $region29: #{dense_layer_forward.1} parent=11 // pred_check
        %p196 = pneg %p143
      $region30: #{dense_layer_forward.1} parent=11 // pred_check_branch
        %198 = sbr.rel (%p196) target = $region32
      $region31: #{dense_layer_forward.1} parent=11 // pred_region
        _
      $region32: #{dense_layer_forward.1} parent=11 // pred_fallthru
        _
    $region12: #{dense_layer_forward.1} parent=5 // pred_fallthru
      _
    %p199 = scmp.lt.s32.totalorder %s12, 2
    // Predicated region
    $region33: #{dense_layer_forward.1} parent=5 // pred_check
      %p200 = pneg %p199
    $region34: #{dense_layer_forward.1} parent=5 // pred_check_branch
      %202 = sbr.rel (%p200) target = $region36
    $region35: #{dense_layer_forward.1} parent=5 // pred_region
      // Predicated region
      $region37: #{dense_layer_forward.1} parent=35 // pred_check
        %p203 = pneg %p32
      $region38: #{dense_layer_forward.1} parent=35 // pred_check_branch
        %205 = sbr.rel (%p203) target = $region40
      $region39: #{dense_layer_forward.1} parent=35 // pred_region
        %p206 = scmp.lt.s32.totalorder %s12, 1
        %s207 = scalar_select %p206, %s12, 1
        %s208 = smul.addr %s207, 54
        %s209 = smul.addr %s208, 8
        %s210 = scalar_lea.vmem %s0, %s209
      $region40: #{dense_layer_forward.1} parent=35 // pred_fallthru
        _
    $region36: #{dense_layer_forward.1} parent=5 // pred_fallthru
      _
    %p211 = scmp.le.s32.totalorder 1, %s12
    %p212 = scmp.lt.s32.totalorder %s12, 3
    %p213 = pnand %p211, %p212
    %p214 = pneg %p213
    // Predicated region
    $region41: #{dense_layer_forward.1} parent=5 // pred_check
      _
    $region42: #{dense_layer_forward.1} parent=5 // pred_check_branch
      %216 = sbr.rel (%p213) target = $region44
    $region43: #{dense_layer_forward.1} parent=5 // pred_region
      %s217 = ssub.s32 %s12, 1
      %p218 = scmp.lt.s32.totalorder %s17, 1
      %s219 = scalar_select %p218, %s17, 1
      %s220 = smul.addr %s219, 54
      %s221 = smul.addr %s220, 8
      %s222 = scalar_lea.vmem %s0, %s221
      %p223 = pneg %p38
      %p224 = pneg %p35
      %p225 = pneg %p59
      %p226 = pneg %p56
      %p227 = pneg %p80
      %p228 = pneg %p77
      %p229 = pneg %p101
      %p230 = pneg %p98
      %p231 = pneg %p122
      %p232 = pneg %p119
      %p233 = pneg %p143
      %p234 = pneg %p140
      %p235 = pneg %p169
      %p236 = pneg %p166
      %p237 = scmp.lt.s32.totalorder %s17, 1
      %s238 = scalar_select %p237, %s17, 1
      %s239 = smul.addr %s238, 32
      %s240 = smul.addr %s239, 8
      %s241 = scalar_lea.vmem %s6, %s240
      %p242 = scmp.lt.s32.totalorder %s17, 1
      %s243 = scalar_select %p242, %s17, 1
      %s244 = smul.addr %s243, 54
      %s245 = smul.addr %s244, 8
      %s246 = scalar_lea.vmem %s0, %s245
      %p247 = scmp.lt.s32.totalorder %s17, 1
      %s248 = scalar_select %p247, %s17, 1
      %s249 = smul.addr %s248, 32
      %s250 = smul.addr %s249, 8
      %s251 = scalar_lea.vmem %s6, %s250
      %v253 = vld [vmem:[%s246] sm:$0xff]
      %v254 = vld [vmem:[%s246 + $0x8] sm:$0xff]
      %v255 = vld [vmem:[%s246 + $0x10] sm:$0x3]
      %v256 = vld [vmem:[%s246 + $0x18] sm:$0xff]
      %v257 = vld [vmem:[%s246 + $0x20] sm:$0xff]
      %v258 = vld [vmem:[%s246 + $0x28] sm:$0x3]
      %v259 = vld [vmem:[%s246 + $0x30] sm:$0xff]
      %v260 = vld [vmem:[%s246 + $0x38] sm:$0xff]
      %v261 = vld [vmem:[%s246 + $0x40] sm:$0x3]
      %v262 = vld [vmem:[%s246 + $0x48] sm:$0xff]
      %v263 = vld [vmem:[%s246 + $0x50] sm:$0xff]
      %v264 = vld [vmem:[%s246 + $0x58] sm:$0x3]
      %v265 = vld [vmem:[%s246 + $0x60] sm:$0xff]
      %v266 = vld [vmem:[%s246 + $0x68] sm:$0xff]
      %v267 = vld [vmem:[%s246 + $0x70] sm:$0x3]
      %v268 = vld [vmem:[%s246 + $0x78] sm:$0xff]
      %v269 = vld [vmem:[%s246 + $0x80] sm:$0xff]
      %v270 = vld [vmem:[%s246 + $0x88] sm:$0x3]
      %v271 = vld [vmem:[%s246 + $0x90] sm:$0xff]
      %v272 = vld [vmem:[%s246 + $0x98] sm:$0xff]
      %v273 = vld [vmem:[%s246 + $0xa0] sm:$0x3]
      %v274 = vld [vmem:[%s246 + $0xa8] sm:$0xff]
      %v275 = vld [vmem:[%s246 + $0xb0] sm:$0xff]
      %v276 = vld [vmem:[%s246 + $0xb8] sm:$0x3]
      %v277 = vld [vmem:[%s246 + $0xc0] sm:$0xff]
      %v278 = vld [vmem:[%s246 + $0xc8] sm:$0xff]
      %v279 = vld [vmem:[%s246 + $0xd0] sm:$0x3]
      %v280 = vld [vmem:[%s246 + $0xd8] sm:$0xff]
      %v281 = vld [vmem:[%s246 + $0xe0] sm:$0xff]
      %v282 = vld [vmem:[%s246 + $0xe8] sm:$0x3]
      %v283 = vld [vmem:[%s246 + $0xf0] sm:$0xff]
      %v284 = vld [vmem:[%s246 + $0xf8] sm:$0xff]
      %v285 = vld [vmem:[%s246 + $0x100] sm:$0x3]
      %v286 = vld [vmem:[%s246 + $0x108] sm:$0xff]
      %v287 = vld [vmem:[%s246 + $0x110] sm:$0xff]
      %v288 = vld [vmem:[%s246 + $0x118] sm:$0x3]
      %v289 = vld [vmem:[%s246 + $0x120] sm:$0xff]
      %v290 = vld [vmem:[%s246 + $0x128] sm:$0xff]
      %v291 = vld [vmem:[%s246 + $0x130] sm:$0x3]
      %v292 = vld [vmem:[%s246 + $0x138] sm:$0xff]
      %v293 = vld [vmem:[%s246 + $0x140] sm:$0xff]
      %v294 = vld [vmem:[%s246 + $0x148] sm:$0x3]
      %v295 = vld [vmem:[%s246 + $0x150] sm:$0xff]
      %v296 = vld [vmem:[%s246 + $0x158] sm:$0xff]
      %v297 = vld [vmem:[%s246 + $0x160] sm:$0x3]
      %v298 = vld [vmem:[%s246 + $0x168] sm:$0xff]
      %v299 = vld [vmem:[%s246 + $0x170] sm:$0xff]
      %v300 = vld [vmem:[%s246 + $0x178] sm:$0x3]
      %v301 = vld [vmem:[%s246 + $0x180] sm:$0xff]
      %v302 = vld [vmem:[%s246 + $0x188] sm:$0xff]
      %v303 = vld [vmem:[%s246 + $0x190] sm:$0x3]
      %v304 = vld [vmem:[%s246 + $0x198] sm:$0xff]
      %v305 = vld [vmem:[%s246 + $0x1a0] sm:$0xff]
      %v306 = vld [vmem:[%s246 + $0x1a8] sm:$0x3]
      %v361 = vcombine.high %v253, %v253
      %v363 = vunpack.c.l.s4 1983009808
      %v364 = vunpack.c.0.s8 %v363
      %v365 = vlaneseq
      %v366 = vshrl.u32 %v365, 7
      %v367 = vsub.s32 %v364, %v366
      %v368 = vrot.slane %v253, %v367
      %v370 = vunpack.c.l.s4 1983009808
      %v371 = vunpack.c.0.s8 %v370
      %v372 = vlaneseq
      %v373 = vshrl.u32 %v372, 7
      %v374 = vsub.s32 %v371, %v373
      %v375 = vrot.slane %v361, %v374
      %v376 = vcombine.high %v368, %v368
      %v377 = vcombine.high %v375, %v375
      %v378 = vcombine.high %v254, %v254
      %v380 = vunpack.c.l.s4 1983009808
      %v381 = vunpack.c.0.s8 %v380
      %v382 = vlaneseq
      %v383 = vshrl.u32 %v382, 7
      %v384 = vsub.s32 %v381, %v383
      %v385 = vrot.slane %v254, %v384
      %v387 = vunpack.c.l.s4 1983009808
      %v388 = vunpack.c.0.s8 %v387
      %v389 = vlaneseq
      %v390 = vshrl.u32 %v389, 7
      %v391 = vsub.s32 %v388, %v390
      %v392 = vrot.slane %v378, %v391
      %v393 = vcombine.high %v385, %v385
      %v394 = vcombine.high %v392, %v392
      %v396 = vunpack.c.l.s4 1983009808
      %v397 = vunpack.c.0.s8 %v396
      %v398 = vlaneseq
      %v399 = vshrl.u32 %v398, 7
      %v400 = vsub.s32 %v397, %v399
      %v401 = vrot.slane %v255, %v400
      %v402 = vcombine.high %v256, %v256
      %v404 = vunpack.c.l.s4 1983009808
      %v405 = vunpack.c.0.s8 %v404
      %v406 = vlaneseq
      %v407 = vshrl.u32 %v406, 7
      %v408 = vsub.s32 %v405, %v407
      %v409 = vrot.slane %v256, %v408
      %v411 = vunpack.c.l.s4 1983009808
      %v412 = vunpack.c.0.s8 %v411
      %v413 = vlaneseq
      %v414 = vshrl.u32 %v413, 7
      %v415 = vsub.s32 %v412, %v414
      %v416 = vrot.slane %v402, %v415
      %v417 = vcombine.high %v409, %v409
      %v418 = vcombine.high %v416, %v416
      %v419 = vcombine.high %v257, %v257
      %v421 = vunpack.c.l.s4 1983009808
      %v422 = vunpack.c.0.s8 %v421
      %v423 = vlaneseq
      %v424 = vshrl.u32 %v423, 7
      %v425 = vsub.s32 %v422, %v424
      %v426 = vrot.slane %v257, %v425
      %v428 = vunpack.c.l.s4 1983009808
      %v429 = vunpack.c.0.s8 %v428
      %v430 = vlaneseq
      %v431 = vshrl.u32 %v430, 7
      %v432 = vsub.s32 %v429, %v431
      %v433 = vrot.slane %v419, %v432
      %v434 = vcombine.high %v426, %v426
      %v435 = vcombine.high %v433, %v433
      %v437 = vunpack.c.l.s4 1983009808
      %v438 = vunpack.c.0.s8 %v437
      %v439 = vlaneseq
      %v440 = vshrl.u32 %v439, 7
      %v441 = vsub.s32 %v438, %v440
      %v442 = vrot.slane %v258, %v441
      %v443 = vcombine.high %v259, %v259
      %v445 = vunpack.c.l.s4 1983009808
      %v446 = vunpack.c.0.s8 %v445
      %v447 = vlaneseq
      %v448 = vshrl.u32 %v447, 7
      %v449 = vsub.s32 %v446, %v448
      %v450 = vrot.slane %v259, %v449
      %v452 = vunpack.c.l.s4 1983009808
      %v453 = vunpack.c.0.s8 %v452
      %v454 = vlaneseq
      %v455 = vshrl.u32 %v454, 7
      %v456 = vsub.s32 %v453, %v455
      %v457 = vrot.slane %v443, %v456
      %v458 = vcombine.high %v450, %v450
      %v459 = vcombine.high %v457, %v457
      %v460 = vcombine.high %v260, %v260
      %v462 = vunpack.c.l.s4 1983009808
      %v463 = vunpack.c.0.s8 %v462
      %v464 = vlaneseq
      %v465 = vshrl.u32 %v464, 7
      %v466 = vsub.s32 %v463, %v465
      %v467 = vrot.slane %v260, %v466
      %v469 = vunpack.c.l.s4 1983009808
      %v470 = vunpack.c.0.s8 %v469
      %v471 = vlaneseq
      %v472 = vshrl.u32 %v471, 7
      %v473 = vsub.s32 %v470, %v472
      %v474 = vrot.slane %v460, %v473
      %v475 = vcombine.high %v467, %v467
      %v476 = vcombine.high %v474, %v474
      %v478 = vunpack.c.l.s4 1983009808
      %v479 = vunpack.c.0.s8 %v478
      %v480 = vlaneseq
      %v481 = vshrl.u32 %v480, 7
      %v482 = vsub.s32 %v479, %v481
      %v483 = vrot.slane %v261, %v482
      %v484 = vcombine.high %v262, %v262
      %v486 = vunpack.c.l.s4 1983009808
      %v487 = vunpack.c.0.s8 %v486
      %v488 = vlaneseq
      %v489 = vshrl.u32 %v488, 7
      %v490 = vsub.s32 %v487, %v489
      %v491 = vrot.slane %v262, %v490
      %v493 = vunpack.c.l.s4 1983009808
      %v494 = vunpack.c.0.s8 %v493
      %v495 = vlaneseq
      %v496 = vshrl.u32 %v495, 7
      %v497 = vsub.s32 %v494, %v496
      %v498 = vrot.slane %v484, %v497
      %v499 = vcombine.high %v491, %v491
      %v500 = vcombine.high %v498, %v498
      %v501 = vcombine.high %v263, %v263
      %v503 = vunpack.c.l.s4 1983009808
      %v504 = vunpack.c.0.s8 %v503
      %v505 = vlaneseq
      %v506 = vshrl.u32 %v505, 7
      %v507 = vsub.s32 %v504, %v506
      %v508 = vrot.slane %v263, %v507
      %v510 = vunpack.c.l.s4 1983009808
      %v511 = vunpack.c.0.s8 %v510
      %v512 = vlaneseq
      %v513 = vshrl.u32 %v512, 7
      %v514 = vsub.s32 %v511, %v513
      %v515 = vrot.slane %v501, %v514
      %v516 = vcombine.high %v508, %v508
      %v517 = vcombine.high %v515, %v515
      %v519 = vunpack.c.l.s4 1983009808
      %v520 = vunpack.c.0.s8 %v519
      %v521 = vlaneseq
      %v522 = vshrl.u32 %v521, 7
      %v523 = vsub.s32 %v520, %v522
      %v524 = vrot.slane %v264, %v523
      %v525 = vcombine.high %v265, %v265
      %v527 = vunpack.c.l.s4 1983009808
      %v528 = vunpack.c.0.s8 %v527
      %v529 = vlaneseq
      %v530 = vshrl.u32 %v529, 7
      %v531 = vsub.s32 %v528, %v530
      %v532 = vrot.slane %v265, %v531
      %v534 = vunpack.c.l.s4 1983009808
      %v535 = vunpack.c.0.s8 %v534
      %v536 = vlaneseq
      %v537 = vshrl.u32 %v536, 7
      %v538 = vsub.s32 %v535, %v537
      %v539 = vrot.slane %v525, %v538
      %v540 = vcombine.high %v532, %v532
      %v541 = vcombine.high %v539, %v539
      %v542 = vcombine.high %v266, %v266
      %v544 = vunpack.c.l.s4 1983009808
      %v545 = vunpack.c.0.s8 %v544
      %v546 = vlaneseq
      %v547 = vshrl.u32 %v546, 7
      %v548 = vsub.s32 %v545, %v547
      %v549 = vrot.slane %v266, %v548
      %v551 = vunpack.c.l.s4 1983009808
      %v552 = vunpack.c.0.s8 %v551
      %v553 = vlaneseq
      %v554 = vshrl.u32 %v553, 7
      %v555 = vsub.s32 %v552, %v554
      %v556 = vrot.slane %v542, %v555
      %v557 = vcombine.high %v549, %v549
      %v558 = vcombine.high %v556, %v556
      %v560 = vunpack.c.l.s4 1983009808
      %v561 = vunpack.c.0.s8 %v560
      %v562 = vlaneseq
      %v563 = vshrl.u32 %v562, 7
      %v564 = vsub.s32 %v561, %v563
      %v565 = vrot.slane %v267, %v564
      %v566 = vcombine.high %v268, %v268
      %v568 = vunpack.c.l.s4 1983009808
      %v569 = vunpack.c.0.s8 %v568
      %v570 = vlaneseq
      %v571 = vshrl.u32 %v570, 7
      %v572 = vsub.s32 %v569, %v571
      %v573 = vrot.slane %v268, %v572
      %v575 = vunpack.c.l.s4 1983009808
      %v576 = vunpack.c.0.s8 %v575
      %v577 = vlaneseq
      %v578 = vshrl.u32 %v577, 7
      %v579 = vsub.s32 %v576, %v578
      %v580 = vrot.slane %v566, %v579
      %v581 = vcombine.high %v573, %v573
      %v582 = vcombine.high %v580, %v580
      %v583 = vcombine.high %v269, %v269
      %v585 = vunpack.c.l.s4 1983009808
      %v586 = vunpack.c.0.s8 %v585
      %v587 = vlaneseq
      %v588 = vshrl.u32 %v587, 7
      %v589 = vsub.s32 %v586, %v588
      %v590 = vrot.slane %v269, %v589
      %v592 = vunpack.c.l.s4 1983009808
      %v593 = vunpack.c.0.s8 %v592
      %v594 = vlaneseq
      %v595 = vshrl.u32 %v594, 7
      %v596 = vsub.s32 %v593, %v595
      %v597 = vrot.slane %v583, %v596
      %v598 = vcombine.high %v590, %v590
      %v599 = vcombine.high %v597, %v597
      %v601 = vunpack.c.l.s4 1983009808
      %v602 = vunpack.c.0.s8 %v601
      %v603 = vlaneseq
      %v604 = vshrl.u32 %v603, 7
      %v605 = vsub.s32 %v602, %v604
      %v606 = vrot.slane %v270, %v605
      %v607 = vcombine.high %v271, %v271
      %v609 = vunpack.c.l.s4 1983009808
      %v610 = vunpack.c.0.s8 %v609
      %v611 = vlaneseq
      %v612 = vshrl.u32 %v611, 7
      %v613 = vsub.s32 %v610, %v612
      %v614 = vrot.slane %v271, %v613
      %v616 = vunpack.c.l.s4 1983009808
      %v617 = vunpack.c.0.s8 %v616
      %v618 = vlaneseq
      %v619 = vshrl.u32 %v618, 7
      %v620 = vsub.s32 %v617, %v619
      %v621 = vrot.slane %v607, %v620
      %v622 = vcombine.high %v614, %v614
      %v623 = vcombine.high %v621, %v621
      %v624 = vcombine.high %v272, %v272
      %v626 = vunpack.c.l.s4 1983009808
      %v627 = vunpack.c.0.s8 %v626
      %v628 = vlaneseq
      %v629 = vshrl.u32 %v628, 7
      %v630 = vsub.s32 %v627, %v629
      %v631 = vrot.slane %v272, %v630
      %v633 = vunpack.c.l.s4 1983009808
      %v634 = vunpack.c.0.s8 %v633
      %v635 = vlaneseq
      %v636 = vshrl.u32 %v635, 7
      %v637 = vsub.s32 %v634, %v636
      %v638 = vrot.slane %v624, %v637
      %v639 = vcombine.high %v631, %v631
      %v640 = vcombine.high %v638, %v638
      %v642 = vunpack.c.l.s4 1983009808
      %v643 = vunpack.c.0.s8 %v642
      %v644 = vlaneseq
      %v645 = vshrl.u32 %v644, 7
      %v646 = vsub.s32 %v643, %v645
      %v647 = vrot.slane %v273, %v646
      %v648 = vcombine.high %v274, %v274
      %v650 = vunpack.c.l.s4 1983009808
      %v651 = vunpack.c.0.s8 %v650
      %v652 = vlaneseq
      %v653 = vshrl.u32 %v652, 7
      %v654 = vsub.s32 %v651, %v653
      %v655 = vrot.slane %v274, %v654
      %v657 = vunpack.c.l.s4 1983009808
      %v658 = vunpack.c.0.s8 %v657
      %v659 = vlaneseq
      %v660 = vshrl.u32 %v659, 7
      %v661 = vsub.s32 %v658, %v660
      %v662 = vrot.slane %v648, %v661
      %v663 = vcombine.high %v655, %v655
      %v664 = vcombine.high %v662, %v662
      %v665 = vcombine.high %v275, %v275
      %v667 = vunpack.c.l.s4 1983009808
      %v668 = vunpack.c.0.s8 %v667
      %v669 = vlaneseq
      %v670 = vshrl.u32 %v669, 7
      %v671 = vsub.s32 %v668, %v670
      %v672 = vrot.slane %v275, %v671
      %v674 = vunpack.c.l.s4 1983009808
      %v675 = vunpack.c.0.s8 %v674
      %v676 = vlaneseq
      %v677 = vshrl.u32 %v676, 7
      %v678 = vsub.s32 %v675, %v677
      %v679 = vrot.slane %v665, %v678
      %v680 = vcombine.high %v672, %v672
      %v681 = vcombine.high %v679, %v679
      %v683 = vunpack.c.l.s4 1983009808
      %v684 = vunpack.c.0.s8 %v683
      %v685 = vlaneseq
      %v686 = vshrl.u32 %v685, 7
      %v687 = vsub.s32 %v684, %v686
      %v688 = vrot.slane %v276, %v687
      %v689 = vcombine.high %v277, %v277
      %v691 = vunpack.c.l.s4 1983009808
      %v692 = vunpack.c.0.s8 %v691
      %v693 = vlaneseq
      %v694 = vshrl.u32 %v693, 7
      %v695 = vsub.s32 %v692, %v694
      %v696 = vrot.slane %v277, %v695
      %v698 = vunpack.c.l.s4 1983009808
      %v699 = vunpack.c.0.s8 %v698
      %v700 = vlaneseq
      %v701 = vshrl.u32 %v700, 7
      %v702 = vsub.s32 %v699, %v701
      %v703 = vrot.slane %v689, %v702
      %v704 = vcombine.high %v696, %v696
      %v705 = vcombine.high %v703, %v703
      %v706 = vcombine.high %v278, %v278
      %v708 = vunpack.c.l.s4 1983009808
      %v709 = vunpack.c.0.s8 %v708
      %v710 = vlaneseq
      %v711 = vshrl.u32 %v710, 7
      %v712 = vsub.s32 %v709, %v711
      %v713 = vrot.slane %v278, %v712
      %v715 = vunpack.c.l.s4 1983009808
      %v716 = vunpack.c.0.s8 %v715
      %v717 = vlaneseq
      %v718 = vshrl.u32 %v717, 7
      %v719 = vsub.s32 %v716, %v718
      %v720 = vrot.slane %v706, %v719
      %v721 = vcombine.high %v713, %v713
      %v722 = vcombine.high %v720, %v720
      %v724 = vunpack.c.l.s4 1983009808
      %v725 = vunpack.c.0.s8 %v724
      %v726 = vlaneseq
      %v727 = vshrl.u32 %v726, 7
      %v728 = vsub.s32 %v725, %v727
      %v729 = vrot.slane %v279, %v728
      %v730 = vcombine.high %v280, %v280
      %v732 = vunpack.c.l.s4 1983009808
      %v733 = vunpack.c.0.s8 %v732
      %v734 = vlaneseq
      %v735 = vshrl.u32 %v734, 7
      %v736 = vsub.s32 %v733, %v735
      %v737 = vrot.slane %v280, %v736
      %v739 = vunpack.c.l.s4 1983009808
      %v740 = vunpack.c.0.s8 %v739
      %v741 = vlaneseq
      %v742 = vshrl.u32 %v741, 7
      %v743 = vsub.s32 %v740, %v742
      %v744 = vrot.slane %v730, %v743
      %v745 = vcombine.high %v737, %v737
      %v746 = vcombine.high %v744, %v744
      %v747 = vcombine.high %v281, %v281
      %v749 = vunpack.c.l.s4 1983009808
      %v750 = vunpack.c.0.s8 %v749
      %v751 = vlaneseq
      %v752 = vshrl.u32 %v751, 7
      %v753 = vsub.s32 %v750, %v752
      %v754 = vrot.slane %v281, %v753
      %v756 = vunpack.c.l.s4 1983009808
      %v757 = vunpack.c.0.s8 %v756
      %v758 = vlaneseq
      %v759 = vshrl.u32 %v758, 7
      %v760 = vsub.s32 %v757, %v759
      %v761 = vrot.slane %v747, %v760
      %v762 = vcombine.high %v754, %v754
      %v763 = vcombine.high %v761, %v761
      %v765 = vunpack.c.l.s4 1983009808
      %v766 = vunpack.c.0.s8 %v765
      %v767 = vlaneseq
      %v768 = vshrl.u32 %v767, 7
      %v769 = vsub.s32 %v766, %v768
      %v770 = vrot.slane %v282, %v769
      %v771 = vcombine.high %v283, %v283
      %v773 = vunpack.c.l.s4 1983009808
      %v774 = vunpack.c.0.s8 %v773
      %v775 = vlaneseq
      %v776 = vshrl.u32 %v775, 7
      %v777 = vsub.s32 %v774, %v776
      %v778 = vrot.slane %v283, %v777
      %v780 = vunpack.c.l.s4 1983009808
      %v781 = vunpack.c.0.s8 %v780
      %v782 = vlaneseq
      %v783 = vshrl.u32 %v782, 7
      %v784 = vsub.s32 %v781, %v783
      %v785 = vrot.slane %v771, %v784
      %v786 = vcombine.high %v778, %v778
      %v787 = vcombine.high %v785, %v785
      %v788 = vcombine.high %v284, %v284
      %v790 = vunpack.c.l.s4 1983009808
      %v791 = vunpack.c.0.s8 %v790
      %v792 = vlaneseq
      %v793 = vshrl.u32 %v792, 7
      %v794 = vsub.s32 %v791, %v793
      %v795 = vrot.slane %v284, %v794
      %v797 = vunpack.c.l.s4 1983009808
      %v798 = vunpack.c.0.s8 %v797
      %v799 = vlaneseq
      %v800 = vshrl.u32 %v799, 7
      %v801 = vsub.s32 %v798, %v800
      %v802 = vrot.slane %v788, %v801
      %v803 = vcombine.high %v795, %v795
      %v804 = vcombine.high %v802, %v802
      %v806 = vunpack.c.l.s4 1983009808
      %v807 = vunpack.c.0.s8 %v806
      %v808 = vlaneseq
      %v809 = vshrl.u32 %v808, 7
      %v810 = vsub.s32 %v807, %v809
      %v811 = vrot.slane %v285, %v810
      %v812 = vcombine.high %v286, %v286
      %v814 = vunpack.c.l.s4 1983009808
      %v815 = vunpack.c.0.s8 %v814
      %v816 = vlaneseq
      %v817 = vshrl.u32 %v816, 7
      %v818 = vsub.s32 %v815, %v817
      %v819 = vrot.slane %v286, %v818
      %v821 = vunpack.c.l.s4 1983009808
      %v822 = vunpack.c.0.s8 %v821
      %v823 = vlaneseq
      %v824 = vshrl.u32 %v823, 7
      %v825 = vsub.s32 %v822, %v824
      %v826 = vrot.slane %v812, %v825
      %v827 = vcombine.high %v819, %v819
      %v828 = vcombine.high %v826, %v826
      %v829 = vcombine.high %v287, %v287
      %v831 = vunpack.c.l.s4 1983009808
      %v832 = vunpack.c.0.s8 %v831
      %v833 = vlaneseq
      %v834 = vshrl.u32 %v833, 7
      %v835 = vsub.s32 %v832, %v834
      %v836 = vrot.slane %v287, %v835
      %v838 = vunpack.c.l.s4 1983009808
      %v839 = vunpack.c.0.s8 %v838
      %v840 = vlaneseq
      %v841 = vshrl.u32 %v840, 7
      %v842 = vsub.s32 %v839, %v841
      %v843 = vrot.slane %v829, %v842
      %v844 = vcombine.high %v836, %v836
      %v845 = vcombine.high %v843, %v843
      %v847 = vunpack.c.l.s4 1983009808
      %v848 = vunpack.c.0.s8 %v847
      %v849 = vlaneseq
      %v850 = vshrl.u32 %v849, 7
      %v851 = vsub.s32 %v848, %v850
      %v852 = vrot.slane %v288, %v851
      %v853 = vcombine.high %v289, %v289
      %v855 = vunpack.c.l.s4 1983009808
      %v856 = vunpack.c.0.s8 %v855
      %v857 = vlaneseq
      %v858 = vshrl.u32 %v857, 7
      %v859 = vsub.s32 %v856, %v858
      %v860 = vrot.slane %v289, %v859
      %v862 = vunpack.c.l.s4 1983009808
      %v863 = vunpack.c.0.s8 %v862
      %v864 = vlaneseq
      %v865 = vshrl.u32 %v864, 7
      %v866 = vsub.s32 %v863, %v865
      %v867 = vrot.slane %v853, %v866
      %v868 = vcombine.high %v860, %v860
      %v869 = vcombine.high %v867, %v867
      %v870 = vcombine.high %v290, %v290
      %v872 = vunpack.c.l.s4 1983009808
      %v873 = vunpack.c.0.s8 %v872
      %v874 = vlaneseq
      %v875 = vshrl.u32 %v874, 7
      %v876 = vsub.s32 %v873, %v875
      %v877 = vrot.slane %v290, %v876
      %v879 = vunpack.c.l.s4 1983009808
      %v880 = vunpack.c.0.s8 %v879
      %v881 = vlaneseq
      %v882 = vshrl.u32 %v881, 7
      %v883 = vsub.s32 %v880, %v882
      %v884 = vrot.slane %v870, %v883
      %v885 = vcombine.high %v877, %v877
      %v886 = vcombine.high %v884, %v884
      %v888 = vunpack.c.l.s4 1983009808
      %v889 = vunpack.c.0.s8 %v888
      %v890 = vlaneseq
      %v891 = vshrl.u32 %v890, 7
      %v892 = vsub.s32 %v889, %v891
      %v893 = vrot.slane %v291, %v892
      %v894 = vcombine.high %v292, %v292
      %v896 = vunpack.c.l.s4 1983009808
      %v897 = vunpack.c.0.s8 %v896
      %v898 = vlaneseq
      %v899 = vshrl.u32 %v898, 7
      %v900 = vsub.s32 %v897, %v899
      %v901 = vrot.slane %v292, %v900
      %v903 = vunpack.c.l.s4 1983009808
      %v904 = vunpack.c.0.s8 %v903
      %v905 = vlaneseq
      %v906 = vshrl.u32 %v905, 7
      %v907 = vsub.s32 %v904, %v906
      %v908 = vrot.slane %v894, %v907
      %v909 = vcombine.high %v901, %v901
      %v910 = vcombine.high %v908, %v908
      %v911 = vcombine.high %v293, %v293
      %v913 = vunpack.c.l.s4 1983009808
      %v914 = vunpack.c.0.s8 %v913
      %v915 = vlaneseq
      %v916 = vshrl.u32 %v915, 7
      %v917 = vsub.s32 %v914, %v916
      %v918 = vrot.slane %v293, %v917
      %v920 = vunpack.c.l.s4 1983009808
      %v921 = vunpack.c.0.s8 %v920
      %v922 = vlaneseq
      %v923 = vshrl.u32 %v922, 7
      %v924 = vsub.s32 %v921, %v923
      %v925 = vrot.slane %v911, %v924
      %v926 = vcombine.high %v918, %v918
      %v927 = vcombine.high %v925, %v925
      %v929 = vunpack.c.l.s4 1983009808
      %v930 = vunpack.c.0.s8 %v929
      %v931 = vlaneseq
      %v932 = vshrl.u32 %v931, 7
      %v933 = vsub.s32 %v930, %v932
      %v934 = vrot.slane %v294, %v933
      %v935 = vcombine.high %v295, %v295
      %v937 = vunpack.c.l.s4 1983009808
      %v938 = vunpack.c.0.s8 %v937
      %v939 = vlaneseq
      %v940 = vshrl.u32 %v939, 7
      %v941 = vsub.s32 %v938, %v940
      %v942 = vrot.slane %v295, %v941
      %v944 = vunpack.c.l.s4 1983009808
      %v945 = vunpack.c.0.s8 %v944
      %v946 = vlaneseq
      %v947 = vshrl.u32 %v946, 7
      %v948 = vsub.s32 %v945, %v947
      %v949 = vrot.slane %v935, %v948
      %v950 = vcombine.high %v942, %v942
      %v951 = vcombine.high %v949, %v949
      %v952 = vcombine.high %v296, %v296
      %v954 = vunpack.c.l.s4 1983009808
      %v955 = vunpack.c.0.s8 %v954
      %v956 = vlaneseq
      %v957 = vshrl.u32 %v956, 7
      %v958 = vsub.s32 %v955, %v957
      %v959 = vrot.slane %v296, %v958
      %v961 = vunpack.c.l.s4 1983009808
      %v962 = vunpack.c.0.s8 %v961
      %v963 = vlaneseq
      %v964 = vshrl.u32 %v963, 7
      %v965 = vsub.s32 %v962, %v964
      %v966 = vrot.slane %v952, %v965
      %v967 = vcombine.high %v959, %v959
      %v968 = vcombine.high %v966, %v966
      %v970 = vunpack.c.l.s4 1983009808
      %v971 = vunpack.c.0.s8 %v970
      %v972 = vlaneseq
      %v973 = vshrl.u32 %v972, 7
      %v974 = vsub.s32 %v971, %v973
      %v975 = vrot.slane %v297, %v974
      %v976 = vcombine.high %v298, %v298
      %v978 = vunpack.c.l.s4 1983009808
      %v979 = vunpack.c.0.s8 %v978
      %v980 = vlaneseq
      %v981 = vshrl.u32 %v980, 7
      %v982 = vsub.s32 %v979, %v981
      %v983 = vrot.slane %v298, %v982
      %v985 = vunpack.c.l.s4 1983009808
      %v986 = vunpack.c.0.s8 %v985
      %v987 = vlaneseq
      %v988 = vshrl.u32 %v987, 7
      %v989 = vsub.s32 %v986, %v988
      %v990 = vrot.slane %v976, %v989
      %v991 = vcombine.high %v983, %v983
      %v992 = vcombine.high %v990, %v990
      %v993 = vcombine.high %v299, %v299
      %v995 = vunpack.c.l.s4 1983009808
      %v996 = vunpack.c.0.s8 %v995
      %v997 = vlaneseq
      %v998 = vshrl.u32 %v997, 7
      %v999 = vsub.s32 %v996, %v998
      %v1000 = vrot.slane %v299, %v999
      %v1002 = vunpack.c.l.s4 1983009808
      %v1003 = vunpack.c.0.s8 %v1002
      %v1004 = vlaneseq
      %v1005 = vshrl.u32 %v1004, 7
      %v1006 = vsub.s32 %v1003, %v1005
      %v1007 = vrot.slane %v993, %v1006
      %v1008 = vcombine.high %v1000, %v1000
      %v1009 = vcombine.high %v1007, %v1007
      %v1011 = vunpack.c.l.s4 1983009808
      %v1012 = vunpack.c.0.s8 %v1011
      %v1013 = vlaneseq
      %v1014 = vshrl.u32 %v1013, 7
      %v1015 = vsub.s32 %v1012, %v1014
      %v1016 = vrot.slane %v300, %v1015
      %v1017 = vcombine.high %v301, %v301
      %v1019 = vunpack.c.l.s4 1983009808
      %v1020 = vunpack.c.0.s8 %v1019
      %v1021 = vlaneseq
      %v1022 = vshrl.u32 %v1021, 7
      %v1023 = vsub.s32 %v1020, %v1022
      %v1024 = vrot.slane %v301, %v1023
      %v1026 = vunpack.c.l.s4 1983009808
      %v1027 = vunpack.c.0.s8 %v1026
      %v1028 = vlaneseq
      %v1029 = vshrl.u32 %v1028, 7
      %v1030 = vsub.s32 %v1027, %v1029
      %v1031 = vrot.slane %v1017, %v1030
      %v1032 = vcombine.high %v1024, %v1024
      %v1033 = vcombine.high %v1031, %v1031
      %v1034 = vcombine.high %v302, %v302
      %v1036 = vunpack.c.l.s4 1983009808
      %v1037 = vunpack.c.0.s8 %v1036
      %v1038 = vlaneseq
      %v1039 = vshrl.u32 %v1038, 7
      %v1040 = vsub.s32 %v1037, %v1039
      %v1041 = vrot.slane %v302, %v1040
      %v1043 = vunpack.c.l.s4 1983009808
      %v1044 = vunpack.c.0.s8 %v1043
      %v1045 = vlaneseq
      %v1046 = vshrl.u32 %v1045, 7
      %v1047 = vsub.s32 %v1044, %v1046
      %v1048 = vrot.slane %v1034, %v1047
      %v1049 = vcombine.high %v1041, %v1041
      %v1050 = vcombine.high %v1048, %v1048
      %v1052 = vunpack.c.l.s4 1983009808
      %v1053 = vunpack.c.0.s8 %v1052
      %v1054 = vlaneseq
      %v1055 = vshrl.u32 %v1054, 7
      %v1056 = vsub.s32 %v1053, %v1055
      %v1057 = vrot.slane %v303, %v1056
      %v1058 = vcombine.high %v304, %v304
      %v1060 = vunpack.c.l.s4 1983009808
      %v1061 = vunpack.c.0.s8 %v1060
      %v1062 = vlaneseq
      %v1063 = vshrl.u32 %v1062, 7
      %v1064 = vsub.s32 %v1061, %v1063
      %v1065 = vrot.slane %v304, %v1064
      %v1067 = vunpack.c.l.s4 1983009808
      %v1068 = vunpack.c.0.s8 %v1067
      %v1069 = vlaneseq
      %v1070 = vshrl.u32 %v1069, 7
      %v1071 = vsub.s32 %v1068, %v1070
      %v1072 = vrot.slane %v1058, %v1071
      %v1073 = vcombine.high %v1065, %v1065
      %v1074 = vcombine.high %v1072, %v1072
      %v1075 = vcombine.high %v305, %v305
      %v1077 = vunpack.c.l.s4 1983009808
      %v1078 = vunpack.c.0.s8 %v1077
      %v1079 = vlaneseq
      %v1080 = vshrl.u32 %v1079, 7
      %v1081 = vsub.s32 %v1078, %v1080
      %v1082 = vrot.slane %v305, %v1081
      %v1084 = vunpack.c.l.s4 1983009808
      %v1085 = vunpack.c.0.s8 %v1084
      %v1086 = vlaneseq
      %v1087 = vshrl.u32 %v1086, 7
      %v1088 = vsub.s32 %v1085, %v1087
      %v1089 = vrot.slane %v1075, %v1088
      %v1090 = vcombine.high %v1082, %v1082
      %v1091 = vcombine.high %v1089, %v1089
      %v1093 = vunpack.c.l.s4 1983009808
      %v1094 = vunpack.c.0.s8 %v1093
      %v1095 = vlaneseq
      %v1096 = vshrl.u32 %v1095, 7
      %v1097 = vsub.s32 %v1094, %v1096
      %v1098 = vrot.slane %v306, %v1097
      %v1261 = vld [vmem:[%s1] sm:$0x1]
      %v1263 = vlaneseq
      %v1264 = vshrl.u32 %v1263, 7
      %v1265 = vsub.s32 0, %v1264
      %v1266 = vrot.slane %v1261, %v1265
      %v1267 = vcombine.high %v1266, %v1266
      %v1269 = vunpack.c.l.s4 1983009808
      %v1270 = vunpack.c.0.s8 %v1269
      %v1271 = vlaneseq
      %v1272 = vshrl.u32 %v1271, 7
      %v1273 = vsub.s32 %v1270, %v1272
      %v1274 = vrot.slane %v1266, %v1273
      %v1276 = vunpack.c.l.s4 1983009808
      %v1277 = vunpack.c.0.s8 %v1276
      %v1278 = vlaneseq
      %v1279 = vshrl.u32 %v1278, 7
      %v1280 = vsub.s32 %v1277, %v1279
      %v1281 = vrot.slane %v1267, %v1280
      %v1282 = vcombine.high %v1274, %v1274
      %v1283 = vcombine.high %v1281, %v1281
      %v1288 = vmul.f32 %v368, %v1274
      %v1289 = vmul.f32 %v376, %v1282
      %v1290 = vmul.f32 %v375, %v1281
      %v1291 = vmul.f32 %v377, %v1283
      %v1292 = vmul.f32 %v385, %v1274
      %v1293 = vmul.f32 %v393, %v1282
      %v1294 = vmul.f32 %v392, %v1281
      %v1295 = vmul.f32 %v394, %v1283
      %v1296 = vmul.f32 %v401, %v1274
      %v1297 = vmul.f32 %v409, %v1282
      %v1298 = vmul.f32 %v417, %v1281
      %v1299 = vmul.f32 %v416, %v1283
      %v1300 = vmul.f32 %v418, %v1274
      %v1301 = vmul.f32 %v426, %v1282
      %v1302 = vmul.f32 %v434, %v1281
      %v1303 = vmul.f32 %v433, %v1283
      %v1304 = vmul.f32 %v435, %v1274
      %v1305 = vmul.f32 %v442, %v1282
      %v1306 = vmul.f32 %v450, %v1281
      %v1307 = vmul.f32 %v458, %v1283
      %v1308 = vmul.f32 %v457, %v1274
      %v1309 = vmul.f32 %v459, %v1282
      %v1310 = vmul.f32 %v467, %v1281
      %v1311 = vmul.f32 %v475, %v1283
      %v1312 = vmul.f32 %v474, %v1274
      %v1313 = vmul.f32 %v476, %v1282
      %v1314 = vmul.f32 %v483, %v1281
      %v1315 = vmul.f32 %v491, %v1283
      %v1316 = vmul.f32 %v499, %v1274
      %v1317 = vmul.f32 %v498, %v1282
      %v1318 = vmul.f32 %v500, %v1281
      %v1319 = vmul.f32 %v508, %v1283
      %v1320 = vmul.f32 %v516, %v1274
      %v1321 = vmul.f32 %v515, %v1282
      %v1322 = vmul.f32 %v517, %v1281
      %v1323 = vmul.f32 %v524, %v1283
      %v1324 = vmul.f32 %v532, %v1274
      %v1325 = vmul.f32 %v540, %v1282
      %v1326 = vmul.f32 %v539, %v1281
      %v1327 = vmul.f32 %v541, %v1283
      %v1328 = vmul.f32 %v549, %v1274
      %v1329 = vmul.f32 %v557, %v1282
      %v1330 = vmul.f32 %v556, %v1281
      %v1331 = vmul.f32 %v558, %v1283
      %v1332 = vmul.f32 %v565, %v1274
      %v1333 = vmul.f32 %v573, %v1282
      %v1334 = vmul.f32 %v581, %v1281
      %v1335 = vmul.f32 %v580, %v1283
      %v1336 = vmul.f32 %v582, %v1274
      %v1337 = vmul.f32 %v590, %v1282
      %v1338 = vmul.f32 %v598, %v1281
      %v1339 = vmul.f32 %v597, %v1283
      %v1340 = vmul.f32 %v599, %v1274
      %v1341 = vmul.f32 %v606, %v1282
      %v1342 = vmul.f32 %v614, %v1281
      %v1343 = vmul.f32 %v622, %v1283
      %v1344 = vmul.f32 %v621, %v1274
      %v1345 = vmul.f32 %v623, %v1282
      %v1346 = vmul.f32 %v631, %v1281
      %v1347 = vmul.f32 %v639, %v1283
      %v1348 = vmul.f32 %v638, %v1274
      %v1349 = vmul.f32 %v640, %v1282
      %v1350 = vmul.f32 %v647, %v1281
      %v1351 = vmul.f32 %v655, %v1283
      %v1352 = vmul.f32 %v663, %v1274
      %v1353 = vmul.f32 %v662, %v1282
      %v1354 = vmul.f32 %v664, %v1281
      %v1355 = vmul.f32 %v672, %v1283
      %v1356 = vmul.f32 %v680, %v1274
      %v1357 = vmul.f32 %v679, %v1282
      %v1358 = vmul.f32 %v681, %v1281
      %v1359 = vmul.f32 %v688, %v1283
      %v1360 = vmul.f32 %v696, %v1274
      %v1361 = vmul.f32 %v704, %v1282
      %v1362 = vmul.f32 %v703, %v1281
      %v1363 = vmul.f32 %v705, %v1283
      %v1364 = vmul.f32 %v713, %v1274
      %v1365 = vmul.f32 %v721, %v1282
      %v1366 = vmul.f32 %v720, %v1281
      %v1367 = vmul.f32 %v722, %v1283
      %v1368 = vmul.f32 %v729, %v1274
      %v1369 = vmul.f32 %v737, %v1282
      %v1370 = vmul.f32 %v745, %v1281
      %v1371 = vmul.f32 %v744, %v1283
      %v1372 = vmul.f32 %v746, %v1274
      %v1373 = vmul.f32 %v754, %v1282
      %v1374 = vmul.f32 %v762, %v1281
      %v1375 = vmul.f32 %v761, %v1283
      %v1376 = vmul.f32 %v763, %v1274
      %v1377 = vmul.f32 %v770, %v1282
      %v1378 = vmul.f32 %v778, %v1281
      %v1379 = vmul.f32 %v786, %v1283
      %v1380 = vmul.f32 %v785, %v1274
      %v1381 = vmul.f32 %v787, %v1282
      %v1382 = vmul.f32 %v795, %v1281
      %v1383 = vmul.f32 %v803, %v1283
      %v1384 = vmul.f32 %v802, %v1274
      %v1385 = vmul.f32 %v804, %v1282
      %v1386 = vmul.f32 %v811, %v1281
      %v1387 = vmul.f32 %v819, %v1283
      %v1388 = vmul.f32 %v827, %v1274
      %v1389 = vmul.f32 %v826, %v1282
      %v1390 = vmul.f32 %v828, %v1281
      %v1391 = vmul.f32 %v836, %v1283
      %v1392 = vmul.f32 %v844, %v1274
      %v1393 = vmul.f32 %v843, %v1282
      %v1394 = vmul.f32 %v845, %v1281
      %v1395 = vmul.f32 %v852, %v1283
      %v1396 = vmul.f32 %v860, %v1274
      %v1397 = vmul.f32 %v868, %v1282
      %v1398 = vmul.f32 %v867, %v1281
      %v1399 = vmul.f32 %v869, %v1283
      %v1400 = vmul.f32 %v877, %v1274
      %v1401 = vmul.f32 %v885, %v1282
      %v1402 = vmul.f32 %v884, %v1281
      %v1403 = vmul.f32 %v886, %v1283
      %v1404 = vmul.f32 %v893, %v1274
      %v1405 = vmul.f32 %v901, %v1282
      %v1406 = vmul.f32 %v909, %v1281
      %v1407 = vmul.f32 %v908, %v1283
      %v1408 = vmul.f32 %v910, %v1274
      %v1409 = vmul.f32 %v918, %v1282
      %v1410 = vmul.f32 %v926, %v1281
      %v1411 = vmul.f32 %v925, %v1283
      %v1412 = vmul.f32 %v927, %v1274
      %v1413 = vmul.f32 %v934, %v1282
      %v1414 = vmul.f32 %v942, %v1281
      %v1415 = vmul.f32 %v950, %v1283
      %v1416 = vmul.f32 %v949, %v1274
      %v1417 = vmul.f32 %v951, %v1282
      %v1418 = vmul.f32 %v959, %v1281
      %v1419 = vmul.f32 %v967, %v1283
      %v1420 = vmul.f32 %v966, %v1274
      %v1421 = vmul.f32 %v968, %v1282
      %v1422 = vmul.f32 %v975, %v1281
      %v1423 = vmul.f32 %v983, %v1283
      %v1424 = vmul.f32 %v991, %v1274
      %v1425 = vmul.f32 %v990, %v1282
      %v1426 = vmul.f32 %v992, %v1281
      %v1427 = vmul.f32 %v1000, %v1283
      %v1428 = vmul.f32 %v1008, %v1274
      %v1429 = vmul.f32 %v1007, %v1282
      %v1430 = vmul.f32 %v1009, %v1281
      %v1431 = vmul.f32 %v1016, %v1283
      %v1432 = vmul.f32 %v1024, %v1274
      %v1433 = vmul.f32 %v1032, %v1282
      %v1434 = vmul.f32 %v1031, %v1281
      %v1435 = vmul.f32 %v1033, %v1283
      %v1436 = vmul.f32 %v1041, %v1274
      %v1437 = vmul.f32 %v1049, %v1282
      %v1438 = vmul.f32 %v1048, %v1281
      %v1439 = vmul.f32 %v1050, %v1283
      %v1440 = vmul.f32 %v1057, %v1274
      %v1441 = vmul.f32 %v1065, %v1282
      %v1442 = vmul.f32 %v1073, %v1281
      %v1443 = vmul.f32 %v1072, %v1283
      %v1444 = vmul.f32 %v1074, %v1274
      %v1445 = vmul.f32 %v1082, %v1282
      %v1446 = vmul.f32 %v1090, %v1281
      %v1447 = vmul.f32 %v1089, %v1283
      %v1448 = vmul.f32 %v1091, %v1274
      %v1449 = vmul.f32 %v1098, %v1282
      %v1450 = vld [vmem:[%s2] sm:$0x1]
      %v1452 = vlaneseq
      %v1453 = vshrl.u32 %v1452, 7
      %v1454 = vsub.s32 0, %v1453
      %v1455 = vrot.slane %v1450, %v1454
      %v1456 = vcombine.high %v1455, %v1455
      %v1458 = vunpack.c.l.s4 1983009808
      %v1459 = vunpack.c.0.s8 %v1458
      %v1460 = vlaneseq
      %v1461 = vshrl.u32 %v1460, 7
      %v1462 = vsub.s32 %v1459, %v1461
      %v1463 = vrot.slane %v1455, %v1462
      %v1465 = vunpack.c.l.s4 1983009808
      %v1466 = vunpack.c.0.s8 %v1465
      %v1467 = vlaneseq
      %v1468 = vshrl.u32 %v1467, 7
      %v1469 = vsub.s32 %v1466, %v1468
      %v1470 = vrot.slane %v1456, %v1469
      %v1471 = vcombine.high %v1463, %v1463
      %v1472 = vcombine.high %v1470, %v1470
      %v1477 = vadd.f32 %v1288, %v1463
      %v1478 = vadd.f32 %v1289, %v1471
      %v1479 = vadd.f32 %v1290, %v1470
      %v1480 = vadd.f32 %v1291, %v1472
      %v1481 = vadd.f32 %v1292, %v1463
      %v1482 = vadd.f32 %v1293, %v1471
      %v1483 = vadd.f32 %v1294, %v1470
      %v1484 = vadd.f32 %v1295, %v1472
      %v1485 = vadd.f32 %v1296, %v1463
      %v1486 = vadd.f32 %v1297, %v1471
      %v1487 = vadd.f32 %v1298, %v1470
      %v1488 = vadd.f32 %v1299, %v1472
      %v1489 = vadd.f32 %v1300, %v1463
      %v1490 = vadd.f32 %v1301, %v1471
      %v1491 = vadd.f32 %v1302, %v1470
      %v1492 = vadd.f32 %v1303, %v1472
      %v1493 = vadd.f32 %v1304, %v1463
      %v1494 = vadd.f32 %v1305, %v1471
      %v1495 = vadd.f32 %v1306, %v1470
      %v1496 = vadd.f32 %v1307, %v1472
      %v1497 = vadd.f32 %v1308, %v1463
      %v1498 = vadd.f32 %v1309, %v1471
      %v1499 = vadd.f32 %v1310, %v1470
      %v1500 = vadd.f32 %v1311, %v1472
      %v1501 = vadd.f32 %v1312, %v1463
      %v1502 = vadd.f32 %v1313, %v1471
      %v1503 = vadd.f32 %v1314, %v1470
      %v1504 = vadd.f32 %v1315, %v1472
      %v1505 = vadd.f32 %v1316, %v1463
      %v1506 = vadd.f32 %v1317, %v1471
      %v1507 = vadd.f32 %v1318, %v1470
      %v1508 = vadd.f32 %v1319, %v1472
      %v1509 = vadd.f32 %v1320, %v1463
      %v1510 = vadd.f32 %v1321, %v1471
      %v1511 = vadd.f32 %v1322, %v1470
      %v1512 = vadd.f32 %v1323, %v1472
      %v1513 = vadd.f32 %v1324, %v1463
      %v1514 = vadd.f32 %v1325, %v1471
      %v1515 = vadd.f32 %v1326, %v1470
      %v1516 = vadd.f32 %v1327, %v1472
      %v1517 = vadd.f32 %v1328, %v1463
      %v1518 = vadd.f32 %v1329, %v1471
      %v1519 = vadd.f32 %v1330, %v1470
      %v1520 = vadd.f32 %v1331, %v1472
      %v1521 = vadd.f32 %v1332, %v1463
      %v1522 = vadd.f32 %v1333, %v1471
      %v1523 = vadd.f32 %v1334, %v1470
      %v1524 = vadd.f32 %v1335, %v1472
      %v1525 = vadd.f32 %v1336, %v1463
      %v1526 = vadd.f32 %v1337, %v1471
      %v1527 = vadd.f32 %v1338, %v1470
      %v1528 = vadd.f32 %v1339, %v1472
      %v1529 = vadd.f32 %v1340, %v1463
      %v1530 = vadd.f32 %v1341, %v1471
      %v1531 = vadd.f32 %v1342, %v1470
      %v1532 = vadd.f32 %v1343, %v1472
      %v1533 = vadd.f32 %v1344, %v1463
      %v1534 = vadd.f32 %v1345, %v1471
      %v1535 = vadd.f32 %v1346, %v1470
      %v1536 = vadd.f32 %v1347, %v1472
      %v1537 = vadd.f32 %v1348, %v1463
      %v1538 = vadd.f32 %v1349, %v1471
      %v1539 = vadd.f32 %v1350, %v1470
      %v1540 = vadd.f32 %v1351, %v1472
      %v1541 = vadd.f32 %v1352, %v1463
      %v1542 = vadd.f32 %v1353, %v1471
      %v1543 = vadd.f32 %v1354, %v1470
      %v1544 = vadd.f32 %v1355, %v1472
      %v1545 = vadd.f32 %v1356, %v1463
      %v1546 = vadd.f32 %v1357, %v1471
      %v1547 = vadd.f32 %v1358, %v1470
      %v1548 = vadd.f32 %v1359, %v1472
      %v1549 = vadd.f32 %v1360, %v1463
      %v1550 = vadd.f32 %v1361, %v1471
      %v1551 = vadd.f32 %v1362, %v1470
      %v1552 = vadd.f32 %v1363, %v1472
      %v1553 = vadd.f32 %v1364, %v1463
      %v1554 = vadd.f32 %v1365, %v1471
      %v1555 = vadd.f32 %v1366, %v1470
      %v1556 = vadd.f32 %v1367, %v1472
      %v1557 = vadd.f32 %v1368, %v1463
      %v1558 = vadd.f32 %v1369, %v1471
      %v1559 = vadd.f32 %v1370, %v1470
      %v1560 = vadd.f32 %v1371, %v1472
      %v1561 = vadd.f32 %v1372, %v1463
      %v1562 = vadd.f32 %v1373, %v1471
      %v1563 = vadd.f32 %v1374, %v1470
      %v1564 = vadd.f32 %v1375, %v1472
      %v1565 = vadd.f32 %v1376, %v1463
      %v1566 = vadd.f32 %v1377, %v1471
      %v1567 = vadd.f32 %v1378, %v1470
      %v1568 = vadd.f32 %v1379, %v1472
      %v1569 = vadd.f32 %v1380, %v1463
      %v1570 = vadd.f32 %v1381, %v1471
      %v1571 = vadd.f32 %v1382, %v1470
      %v1572 = vadd.f32 %v1383, %v1472
      %v1573 = vadd.f32 %v1384, %v1463
      %v1574 = vadd.f32 %v1385, %v1471
      %v1575 = vadd.f32 %v1386, %v1470
      %v1576 = vadd.f32 %v1387, %v1472
      %v1577 = vadd.f32 %v1388, %v1463
      %v1578 = vadd.f32 %v1389, %v1471
      %v1579 = vadd.f32 %v1390, %v1470
      %v1580 = vadd.f32 %v1391, %v1472
      %v1581 = vadd.f32 %v1392, %v1463
      %v1582 = vadd.f32 %v1393, %v1471
      %v1583 = vadd.f32 %v1394, %v1470
      %v1584 = vadd.f32 %v1395, %v1472
      %v1585 = vadd.f32 %v1396, %v1463
      %v1586 = vadd.f32 %v1397, %v1471
      %v1587 = vadd.f32 %v1398, %v1470
      %v1588 = vadd.f32 %v1399, %v1472
      %v1589 = vadd.f32 %v1400, %v1463
      %v1590 = vadd.f32 %v1401, %v1471
      %v1591 = vadd.f32 %v1402, %v1470
      %v1592 = vadd.f32 %v1403, %v1472
      %v1593 = vadd.f32 %v1404, %v1463
      %v1594 = vadd.f32 %v1405, %v1471
      %v1595 = vadd.f32 %v1406, %v1470
      %v1596 = vadd.f32 %v1407, %v1472
      %v1597 = vadd.f32 %v1408, %v1463
      %v1598 = vadd.f32 %v1409, %v1471
      %v1599 = vadd.f32 %v1410, %v1470
      %v1600 = vadd.f32 %v1411, %v1472
      %v1601 = vadd.f32 %v1412, %v1463
      %v1602 = vadd.f32 %v1413, %v1471
      %v1603 = vadd.f32 %v1414, %v1470
      %v1604 = vadd.f32 %v1415, %v1472
      %v1605 = vadd.f32 %v1416, %v1463
      %v1606 = vadd.f32 %v1417, %v1471
      %v1607 = vadd.f32 %v1418, %v1470
      %v1608 = vadd.f32 %v1419, %v1472
      %v1609 = vadd.f32 %v1420, %v1463
      %v1610 = vadd.f32 %v1421, %v1471
      %v1611 = vadd.f32 %v1422, %v1470
      %v1612 = vadd.f32 %v1423, %v1472
      %v1613 = vadd.f32 %v1424, %v1463
      %v1614 = vadd.f32 %v1425, %v1471
      %v1615 = vadd.f32 %v1426, %v1470
      %v1616 = vadd.f32 %v1427, %v1472
      %v1617 = vadd.f32 %v1428, %v1463
      %v1618 = vadd.f32 %v1429, %v1471
      %v1619 = vadd.f32 %v1430, %v1470
      %v1620 = vadd.f32 %v1431, %v1472
      %v1621 = vadd.f32 %v1432, %v1463
      %v1622 = vadd.f32 %v1433, %v1471
      %v1623 = vadd.f32 %v1434, %v1470
      %v1624 = vadd.f32 %v1435, %v1472
      %v1625 = vadd.f32 %v1436, %v1463
      %v1626 = vadd.f32 %v1437, %v1471
      %v1627 = vadd.f32 %v1438, %v1470
      %v1628 = vadd.f32 %v1439, %v1472
      %v1629 = vadd.f32 %v1440, %v1463
      %v1630 = vadd.f32 %v1441, %v1471
      %v1631 = vadd.f32 %v1442, %v1470
      %v1632 = vadd.f32 %v1443, %v1472
      %v1633 = vadd.f32 %v1444, %v1463
      %v1634 = vadd.f32 %v1445, %v1471
      %v1635 = vadd.f32 %v1446, %v1470
      %v1636 = vadd.f32 %v1447, %v1472
      %v1637 = vadd.f32 %v1448, %v1463
      %v1638 = vadd.f32 %v1449, %v1471
      %v1639 = vmax.f32 %v1477, 0.0
      %v1640 = vmax.f32 %v1478, 0.0
      %v1641 = vmax.f32 %v1479, 0.0
      %v1642 = vmax.f32 %v1480, 0.0
      %v1643 = vmax.f32 %v1481, 0.0
      %v1644 = vmax.f32 %v1482, 0.0
      %v1645 = vmax.f32 %v1483, 0.0
      %v1646 = vmax.f32 %v1484, 0.0
      %v1647 = vmax.f32 %v1485, 0.0
      %v1648 = vmax.f32 %v1486, 0.0
      %v1649 = vmax.f32 %v1487, 0.0
      %v1650 = vmax.f32 %v1488, 0.0
      %v1651 = vmax.f32 %v1489, 0.0
      %v1652 = vmax.f32 %v1490, 0.0
      %v1653 = vmax.f32 %v1491, 0.0
      %v1654 = vmax.f32 %v1492, 0.0
      %v1655 = vmax.f32 %v1493, 0.0
      %v1656 = vmax.f32 %v1494, 0.0
      %v1657 = vmax.f32 %v1495, 0.0
      %v1658 = vmax.f32 %v1496, 0.0
      %v1659 = vmax.f32 %v1497, 0.0
      %v1660 = vmax.f32 %v1498, 0.0
      %v1661 = vmax.f32 %v1499, 0.0
      %v1662 = vmax.f32 %v1500, 0.0
      %v1663 = vmax.f32 %v1501, 0.0
      %v1664 = vmax.f32 %v1502, 0.0
      %v1665 = vmax.f32 %v1503, 0.0
      %v1666 = vmax.f32 %v1504, 0.0
      %v1667 = vmax.f32 %v1505, 0.0
      %v1668 = vmax.f32 %v1506, 0.0
      %v1669 = vmax.f32 %v1507, 0.0
      %v1670 = vmax.f32 %v1508, 0.0
      %v1671 = vmax.f32 %v1509, 0.0
      %v1672 = vmax.f32 %v1510, 0.0
      %v1673 = vmax.f32 %v1511, 0.0
      %v1674 = vmax.f32 %v1512, 0.0
      %v1675 = vmax.f32 %v1513, 0.0
      %v1676 = vmax.f32 %v1514, 0.0
      %v1677 = vmax.f32 %v1515, 0.0
      %v1678 = vmax.f32 %v1516, 0.0
      %v1679 = vmax.f32 %v1517, 0.0
      %v1680 = vmax.f32 %v1518, 0.0
      %v1681 = vmax.f32 %v1519, 0.0
      %v1682 = vmax.f32 %v1520, 0.0
      %v1683 = vmax.f32 %v1521, 0.0
      %v1684 = vmax.f32 %v1522, 0.0
      %v1685 = vmax.f32 %v1523, 0.0
      %v1686 = vmax.f32 %v1524, 0.0
      %v1687 = vmax.f32 %v1525, 0.0
      %v1688 = vmax.f32 %v1526, 0.0
      %v1689 = vmax.f32 %v1527, 0.0
      %v1690 = vmax.f32 %v1528, 0.0
      %v1691 = vmax.f32 %v1529, 0.0
      %v1692 = vmax.f32 %v1530, 0.0
      %v1693 = vmax.f32 %v1531, 0.0
      %v1694 = vmax.f32 %v1532, 0.0
      %v1695 = vmax.f32 %v1533, 0.0
      %v1696 = vmax.f32 %v1534, 0.0
      %v1697 = vmax.f32 %v1535, 0.0
      %v1698 = vmax.f32 %v1536, 0.0
      %v1699 = vmax.f32 %v1537, 0.0
      %v1700 = vmax.f32 %v1538, 0.0
      %v1701 = vmax.f32 %v1539, 0.0
      %v1702 = vmax.f32 %v1540, 0.0
      %v1703 = vmax.f32 %v1541, 0.0
      %v1704 = vmax.f32 %v1542, 0.0
      %v1705 = vmax.f32 %v1543, 0.0
      %v1706 = vmax.f32 %v1544, 0.0
      %v1707 = vmax.f32 %v1545, 0.0
      %v1708 = vmax.f32 %v1546, 0.0
      %v1709 = vmax.f32 %v1547, 0.0
      %v1710 = vmax.f32 %v1548, 0.0
      %v1711 = vmax.f32 %v1549, 0.0
      %v1712 = vmax.f32 %v1550, 0.0
      %v1713 = vmax.f32 %v1551, 0.0
      %v1714 = vmax.f32 %v1552, 0.0
      %v1715 = vmax.f32 %v1553, 0.0
      %v1716 = vmax.f32 %v1554, 0.0
      %v1717 = vmax.f32 %v1555, 0.0
      %v1718 = vmax.f32 %v1556, 0.0
      %v1719 = vmax.f32 %v1557, 0.0
      %v1720 = vmax.f32 %v1558, 0.0
      %v1721 = vmax.f32 %v1559, 0.0
      %v1722 = vmax.f32 %v1560, 0.0
      %v1723 = vmax.f32 %v1561, 0.0
      %v1724 = vmax.f32 %v1562, 0.0
      %v1725 = vmax.f32 %v1563, 0.0
      %v1726 = vmax.f32 %v1564, 0.0
      %v1727 = vmax.f32 %v1565, 0.0
      %v1728 = vmax.f32 %v1566, 0.0
      %v1729 = vmax.f32 %v1567, 0.0
      %v1730 = vmax.f32 %v1568, 0.0
      %v1731 = vmax.f32 %v1569, 0.0
      %v1732 = vmax.f32 %v1570, 0.0
      %v1733 = vmax.f32 %v1571, 0.0
      %v1734 = vmax.f32 %v1572, 0.0
      %v1735 = vmax.f32 %v1573, 0.0
      %v1736 = vmax.f32 %v1574, 0.0
      %v1737 = vmax.f32 %v1575, 0.0
      %v1738 = vmax.f32 %v1576, 0.0
      %v1739 = vmax.f32 %v1577, 0.0
      %v1740 = vmax.f32 %v1578, 0.0
      %v1741 = vmax.f32 %v1579, 0.0
      %v1742 = vmax.f32 %v1580, 0.0
      %v1743 = vmax.f32 %v1581, 0.0
      %v1744 = vmax.f32 %v1582, 0.0
      %v1745 = vmax.f32 %v1583, 0.0
      %v1746 = vmax.f32 %v1584, 0.0
      %v1747 = vmax.f32 %v1585, 0.0
      %v1748 = vmax.f32 %v1586, 0.0
      %v1749 = vmax.f32 %v1587, 0.0
      %v1750 = vmax.f32 %v1588, 0.0
      %v1751 = vmax.f32 %v1589, 0.0
      %v1752 = vmax.f32 %v1590, 0.0
      %v1753 = vmax.f32 %v1591, 0.0
      %v1754 = vmax.f32 %v1592, 0.0
      %v1755 = vmax.f32 %v1593, 0.0
      %v1756 = vmax.f32 %v1594, 0.0
      %v1757 = vmax.f32 %v1595, 0.0
      %v1758 = vmax.f32 %v1596, 0.0
      %v1759 = vmax.f32 %v1597, 0.0
      %v1760 = vmax.f32 %v1598, 0.0
      %v1761 = vmax.f32 %v1599, 0.0
      %v1762 = vmax.f32 %v1600, 0.0
      %v1763 = vmax.f32 %v1601, 0.0
      %v1764 = vmax.f32 %v1602, 0.0
      %v1765 = vmax.f32 %v1603, 0.0
      %v1766 = vmax.f32 %v1604, 0.0
      %v1767 = vmax.f32 %v1605, 0.0
      %v1768 = vmax.f32 %v1606, 0.0
      %v1769 = vmax.f32 %v1607, 0.0
      %v1770 = vmax.f32 %v1608, 0.0
      %v1771 = vmax.f32 %v1609, 0.0
      %v1772 = vmax.f32 %v1610, 0.0
      %v1773 = vmax.f32 %v1611, 0.0
      %v1774 = vmax.f32 %v1612, 0.0
      %v1775 = vmax.f32 %v1613, 0.0
      %v1776 = vmax.f32 %v1614, 0.0
      %v1777 = vmax.f32 %v1615, 0.0
      %v1778 = vmax.f32 %v1616, 0.0
      %v1779 = vmax.f32 %v1617, 0.0
      %v1780 = vmax.f32 %v1618, 0.0
      %v1781 = vmax.f32 %v1619, 0.0
      %v1782 = vmax.f32 %v1620, 0.0
      %v1783 = vmax.f32 %v1621, 0.0
      %v1784 = vmax.f32 %v1622, 0.0
      %v1785 = vmax.f32 %v1623, 0.0
      %v1786 = vmax.f32 %v1624, 0.0
      %v1787 = vmax.f32 %v1625, 0.0
      %v1788 = vmax.f32 %v1626, 0.0
      %v1789 = vmax.f32 %v1627, 0.0
      %v1790 = vmax.f32 %v1628, 0.0
      %v1791 = vmax.f32 %v1629, 0.0
      %v1792 = vmax.f32 %v1630, 0.0
      %v1793 = vmax.f32 %v1631, 0.0
      %v1794 = vmax.f32 %v1632, 0.0
      %v1795 = vmax.f32 %v1633, 0.0
      %v1796 = vmax.f32 %v1634, 0.0
      %v1797 = vmax.f32 %v1635, 0.0
      %v1798 = vmax.f32 %v1636, 0.0
      %v1799 = vmax.f32 %v1637, 0.0
      %v1800 = vmax.f32 %v1638, 0.0
      %v1963 = vcombine.low %v1639, %v1640
      %v1964 = vcombine.low %v1641, %v1642
      %v1966 = vunpack.c.l.s4 1983009808
      %v1967 = vunpack.c.0.s8 %v1966
      %v1968 = vlaneseq
      %v1969 = vshrl.u32 %v1968, 7
      %v1970 = vsub.s32 %v1967, %v1969
      %v1971 = vrot.slane %v1963, %v1970
      %v1973 = vunpack.c.l.s4 1983009808
      %v1974 = vunpack.c.0.s8 %v1973
      %v1975 = vlaneseq
      %v1976 = vshrl.u32 %v1975, 7
      %v1977 = vsub.s32 %v1974, %v1976
      %v1978 = vrot.slane %v1964, %v1977
      %v1979 = vcombine.low %v1971, %v1978
      %v1980 = vcombine.low %v1643, %v1644
      %v1981 = vcombine.low %v1645, %v1646
      %v1983 = vunpack.c.l.s4 1983009808
      %v1984 = vunpack.c.0.s8 %v1983
      %v1985 = vlaneseq
      %v1986 = vshrl.u32 %v1985, 7
      %v1987 = vsub.s32 %v1984, %v1986
      %v1988 = vrot.slane %v1980, %v1987
      %v1990 = vunpack.c.l.s4 1983009808
      %v1991 = vunpack.c.0.s8 %v1990
      %v1992 = vlaneseq
      %v1993 = vshrl.u32 %v1992, 7
      %v1994 = vsub.s32 %v1991, %v1993
      %v1995 = vrot.slane %v1981, %v1994
      %v1996 = vcombine.low %v1988, %v1995
      %v1997 = vcombine.low %v1647, %v1648
      %v1998 = vcombine.low %v1649, %v1650
      %v2000 = vunpack.c.l.s4 1983009808
      %v2001 = vunpack.c.0.s8 %v2000
      %v2002 = vlaneseq
      %v2003 = vshrl.u32 %v2002, 7
      %v2004 = vsub.s32 %v2001, %v2003
      %v2005 = vrot.slane %v1997, %v2004
      %v2007 = vunpack.c.l.s4 1983009808
      %v2008 = vunpack.c.0.s8 %v2007
      %v2009 = vlaneseq
      %v2010 = vshrl.u32 %v2009, 7
      %v2011 = vsub.s32 %v2008, %v2010
      %v2012 = vrot.slane %v1998, %v2011
      %v2013 = vcombine.low %v2005, %v2012
      %v2014 = vcombine.low %v1651, %v1652
      %v2015 = vcombine.low %v1653, %v1654
      %v2017 = vunpack.c.l.s4 1983009808
      %v2018 = vunpack.c.0.s8 %v2017
      %v2019 = vlaneseq
      %v2020 = vshrl.u32 %v2019, 7
      %v2021 = vsub.s32 %v2018, %v2020
      %v2022 = vrot.slane %v2014, %v2021
      %v2024 = vunpack.c.l.s4 1983009808
      %v2025 = vunpack.c.0.s8 %v2024
      %v2026 = vlaneseq
      %v2027 = vshrl.u32 %v2026, 7
      %v2028 = vsub.s32 %v2025, %v2027
      %v2029 = vrot.slane %v2015, %v2028
      %v2030 = vcombine.low %v2022, %v2029
      %v2031 = vcombine.low %v1655, %v1656
      %v2032 = vcombine.low %v1657, %v1658
      %v2034 = vunpack.c.l.s4 1983009808
      %v2035 = vunpack.c.0.s8 %v2034
      %v2036 = vlaneseq
      %v2037 = vshrl.u32 %v2036, 7
      %v2038 = vsub.s32 %v2035, %v2037
      %v2039 = vrot.slane %v2031, %v2038
      %v2041 = vunpack.c.l.s4 1983009808
      %v2042 = vunpack.c.0.s8 %v2041
      %v2043 = vlaneseq
      %v2044 = vshrl.u32 %v2043, 7
      %v2045 = vsub.s32 %v2042, %v2044
      %v2046 = vrot.slane %v2032, %v2045
      %v2047 = vcombine.low %v2039, %v2046
      %v2048 = vcombine.low %v1659, %v1660
      %v2049 = vcombine.low %v1661, %v1662
      %v2051 = vunpack.c.l.s4 1983009808
      %v2052 = vunpack.c.0.s8 %v2051
      %v2053 = vlaneseq
      %v2054 = vshrl.u32 %v2053, 7
      %v2055 = vsub.s32 %v2052, %v2054
      %v2056 = vrot.slane %v2048, %v2055
      %v2058 = vunpack.c.l.s4 1983009808
      %v2059 = vunpack.c.0.s8 %v2058
      %v2060 = vlaneseq
      %v2061 = vshrl.u32 %v2060, 7
      %v2062 = vsub.s32 %v2059, %v2061
      %v2063 = vrot.slane %v2049, %v2062
      %v2064 = vcombine.low %v2056, %v2063
      %v2065 = vcombine.low %v1663, %v1664
      %v2066 = vcombine.low %v1665, %v1666
      %v2068 = vunpack.c.l.s4 1983009808
      %v2069 = vunpack.c.0.s8 %v2068
      %v2070 = vlaneseq
      %v2071 = vshrl.u32 %v2070, 7
      %v2072 = vsub.s32 %v2069, %v2071
      %v2073 = vrot.slane %v2065, %v2072
      %v2075 = vunpack.c.l.s4 1983009808
      %v2076 = vunpack.c.0.s8 %v2075
      %v2077 = vlaneseq
      %v2078 = vshrl.u32 %v2077, 7
      %v2079 = vsub.s32 %v2076, %v2078
      %v2080 = vrot.slane %v2066, %v2079
      %v2081 = vcombine.low %v2073, %v2080
      %v2082 = vcombine.low %v1667, %v1668
      %v2083 = vcombine.low %v1669, %v1670
      %v2085 = vunpack.c.l.s4 1983009808
      %v2086 = vunpack.c.0.s8 %v2085
      %v2087 = vlaneseq
      %v2088 = vshrl.u32 %v2087, 7
      %v2089 = vsub.s32 %v2086, %v2088
      %v2090 = vrot.slane %v2082, %v2089
      %v2092 = vunpack.c.l.s4 1983009808
      %v2093 = vunpack.c.0.s8 %v2092
      %v2094 = vlaneseq
      %v2095 = vshrl.u32 %v2094, 7
      %v2096 = vsub.s32 %v2093, %v2095
      %v2097 = vrot.slane %v2083, %v2096
      %v2098 = vcombine.low %v2090, %v2097
      %v2099 = vcombine.low %v1671, %v1672
      %v2100 = vcombine.low %v1673, %v1674
      %v2102 = vunpack.c.l.s4 1983009808
      %v2103 = vunpack.c.0.s8 %v2102
      %v2104 = vlaneseq
      %v2105 = vshrl.u32 %v2104, 7
      %v2106 = vsub.s32 %v2103, %v2105
      %v2107 = vrot.slane %v2099, %v2106
      %v2109 = vunpack.c.l.s4 1983009808
      %v2110 = vunpack.c.0.s8 %v2109
      %v2111 = vlaneseq
      %v2112 = vshrl.u32 %v2111, 7
      %v2113 = vsub.s32 %v2110, %v2112
      %v2114 = vrot.slane %v2100, %v2113
      %v2115 = vcombine.low %v2107, %v2114
      %v2116 = vcombine.low %v1675, %v1676
      %v2117 = vcombine.low %v1677, %v1678
      %v2119 = vunpack.c.l.s4 1983009808
      %v2120 = vunpack.c.0.s8 %v2119
      %v2121 = vlaneseq
      %v2122 = vshrl.u32 %v2121, 7
      %v2123 = vsub.s32 %v2120, %v2122
      %v2124 = vrot.slane %v2116, %v2123
      %v2126 = vunpack.c.l.s4 1983009808
      %v2127 = vunpack.c.0.s8 %v2126
      %v2128 = vlaneseq
      %v2129 = vshrl.u32 %v2128, 7
      %v2130 = vsub.s32 %v2127, %v2129
      %v2131 = vrot.slane %v2117, %v2130
      %v2132 = vcombine.low %v2124, %v2131
      %v2133 = vcombine.low %v1679, %v1680
      %v2134 = vcombine.low %v1681, %v1682
      %v2136 = vunpack.c.l.s4 1983009808
      %v2137 = vunpack.c.0.s8 %v2136
      %v2138 = vlaneseq
      %v2139 = vshrl.u32 %v2138, 7
      %v2140 = vsub.s32 %v2137, %v2139
      %v2141 = vrot.slane %v2133, %v2140
      %v2143 = vunpack.c.l.s4 1983009808
      %v2144 = vunpack.c.0.s8 %v2143
      %v2145 = vlaneseq
      %v2146 = vshrl.u32 %v2145, 7
      %v2147 = vsub.s32 %v2144, %v2146
      %v2148 = vrot.slane %v2134, %v2147
      %v2149 = vcombine.low %v2141, %v2148
      %v2150 = vcombine.low %v1683, %v1684
      %v2151 = vcombine.low %v1685, %v1686
      %v2153 = vunpack.c.l.s4 1983009808
      %v2154 = vunpack.c.0.s8 %v2153
      %v2155 = vlaneseq
      %v2156 = vshrl.u32 %v2155, 7
      %v2157 = vsub.s32 %v2154, %v2156
      %v2158 = vrot.slane %v2150, %v2157
      %v2160 = vunpack.c.l.s4 1983009808
      %v2161 = vunpack.c.0.s8 %v2160
      %v2162 = vlaneseq
      %v2163 = vshrl.u32 %v2162, 7
      %v2164 = vsub.s32 %v2161, %v2163
      %v2165 = vrot.slane %v2151, %v2164
      %v2166 = vcombine.low %v2158, %v2165
      %v2167 = vcombine.low %v1687, %v1688
      %v2168 = vcombine.low %v1689, %v1690
      %v2170 = vunpack.c.l.s4 1983009808
      %v2171 = vunpack.c.0.s8 %v2170
      %v2172 = vlaneseq
      %v2173 = vshrl.u32 %v2172, 7
      %v2174 = vsub.s32 %v2171, %v2173
      %v2175 = vrot.slane %v2167, %v2174
      %v2177 = vunpack.c.l.s4 1983009808
      %v2178 = vunpack.c.0.s8 %v2177
      %v2179 = vlaneseq
      %v2180 = vshrl.u32 %v2179, 7
      %v2181 = vsub.s32 %v2178, %v2180
      %v2182 = vrot.slane %v2168, %v2181
      %v2183 = vcombine.low %v2175, %v2182
      %v2184 = vcombine.low %v1691, %v1692
      %v2185 = vcombine.low %v1693, %v1694
      %v2187 = vunpack.c.l.s4 1983009808
      %v2188 = vunpack.c.0.s8 %v2187
      %v2189 = vlaneseq
      %v2190 = vshrl.u32 %v2189, 7
      %v2191 = vsub.s32 %v2188, %v2190
      %v2192 = vrot.slane %v2184, %v2191
      %v2194 = vunpack.c.l.s4 1983009808
      %v2195 = vunpack.c.0.s8 %v2194
      %v2196 = vlaneseq
      %v2197 = vshrl.u32 %v2196, 7
      %v2198 = vsub.s32 %v2195, %v2197
      %v2199 = vrot.slane %v2185, %v2198
      %v2200 = vcombine.low %v2192, %v2199
      %v2201 = vcombine.low %v1695, %v1696
      %v2202 = vcombine.low %v1697, %v1698
      %v2204 = vunpack.c.l.s4 1983009808
      %v2205 = vunpack.c.0.s8 %v2204
      %v2206 = vlaneseq
      %v2207 = vshrl.u32 %v2206, 7
      %v2208 = vsub.s32 %v2205, %v2207
      %v2209 = vrot.slane %v2201, %v2208
      %v2211 = vunpack.c.l.s4 1983009808
      %v2212 = vunpack.c.0.s8 %v2211
      %v2213 = vlaneseq
      %v2214 = vshrl.u32 %v2213, 7
      %v2215 = vsub.s32 %v2212, %v2214
      %v2216 = vrot.slane %v2202, %v2215
      %v2217 = vcombine.low %v2209, %v2216
      %v2218 = vcombine.low %v1699, %v1700
      %v2219 = vcombine.low %v1701, %v1702
      %v2221 = vunpack.c.l.s4 1983009808
      %v2222 = vunpack.c.0.s8 %v2221
      %v2223 = vlaneseq
      %v2224 = vshrl.u32 %v2223, 7
      %v2225 = vsub.s32 %v2222, %v2224
      %v2226 = vrot.slane %v2218, %v2225
      %v2228 = vunpack.c.l.s4 1983009808
      %v2229 = vunpack.c.0.s8 %v2228
      %v2230 = vlaneseq
      %v2231 = vshrl.u32 %v2230, 7
      %v2232 = vsub.s32 %v2229, %v2231
      %v2233 = vrot.slane %v2219, %v2232
      %v2234 = vcombine.low %v2226, %v2233
      %v2235 = vcombine.low %v1703, %v1704
      %v2236 = vcombine.low %v1705, %v1706
      %v2238 = vunpack.c.l.s4 1983009808
      %v2239 = vunpack.c.0.s8 %v2238
      %v2240 = vlaneseq
      %v2241 = vshrl.u32 %v2240, 7
      %v2242 = vsub.s32 %v2239, %v2241
      %v2243 = vrot.slane %v2235, %v2242
      %v2245 = vunpack.c.l.s4 1983009808
      %v2246 = vunpack.c.0.s8 %v2245
      %v2247 = vlaneseq
      %v2248 = vshrl.u32 %v2247, 7
      %v2249 = vsub.s32 %v2246, %v2248
      %v2250 = vrot.slane %v2236, %v2249
      %v2251 = vcombine.low %v2243, %v2250
      %v2252 = vcombine.low %v1707, %v1708
      %v2253 = vcombine.low %v1709, %v1710
      %v2255 = vunpack.c.l.s4 1983009808
      %v2256 = vunpack.c.0.s8 %v2255
      %v2257 = vlaneseq
      %v2258 = vshrl.u32 %v2257, 7
      %v2259 = vsub.s32 %v2256, %v2258
      %v2260 = vrot.slane %v2252, %v2259
      %v2262 = vunpack.c.l.s4 1983009808
      %v2263 = vunpack.c.0.s8 %v2262
      %v2264 = vlaneseq
      %v2265 = vshrl.u32 %v2264, 7
      %v2266 = vsub.s32 %v2263, %v2265
      %v2267 = vrot.slane %v2253, %v2266
      %v2268 = vcombine.low %v2260, %v2267
      %v2269 = vcombine.low %v1711, %v1712
      %v2270 = vcombine.low %v1713, %v1714
      %v2272 = vunpack.c.l.s4 1983009808
      %v2273 = vunpack.c.0.s8 %v2272
      %v2274 = vlaneseq
      %v2275 = vshrl.u32 %v2274, 7
      %v2276 = vsub.s32 %v2273, %v2275
      %v2277 = vrot.slane %v2269, %v2276
      %v2279 = vunpack.c.l.s4 1983009808
      %v2280 = vunpack.c.0.s8 %v2279
      %v2281 = vlaneseq
      %v2282 = vshrl.u32 %v2281, 7
      %v2283 = vsub.s32 %v2280, %v2282
      %v2284 = vrot.slane %v2270, %v2283
      %v2285 = vcombine.low %v2277, %v2284
      %v2286 = vcombine.low %v1715, %v1716
      %v2287 = vcombine.low %v1717, %v1718
      %v2289 = vunpack.c.l.s4 1983009808
      %v2290 = vunpack.c.0.s8 %v2289
      %v2291 = vlaneseq
      %v2292 = vshrl.u32 %v2291, 7
      %v2293 = vsub.s32 %v2290, %v2292
      %v2294 = vrot.slane %v2286, %v2293
      %v2296 = vunpack.c.l.s4 1983009808
      %v2297 = vunpack.c.0.s8 %v2296
      %v2298 = vlaneseq
      %v2299 = vshrl.u32 %v2298, 7
      %v2300 = vsub.s32 %v2297, %v2299
      %v2301 = vrot.slane %v2287, %v2300
      %v2302 = vcombine.low %v2294, %v2301
      %v2303 = vcombine.low %v1719, %v1720
      %v2304 = vcombine.low %v1721, %v1722
      %v2306 = vunpack.c.l.s4 1983009808
      %v2307 = vunpack.c.0.s8 %v2306
      %v2308 = vlaneseq
      %v2309 = vshrl.u32 %v2308, 7
      %v2310 = vsub.s32 %v2307, %v2309
      %v2311 = vrot.slane %v2303, %v2310
      %v2313 = vunpack.c.l.s4 1983009808
      %v2314 = vunpack.c.0.s8 %v2313
      %v2315 = vlaneseq
      %v2316 = vshrl.u32 %v2315, 7
      %v2317 = vsub.s32 %v2314, %v2316
      %v2318 = vrot.slane %v2304, %v2317
      %v2319 = vcombine.low %v2311, %v2318
      %v2320 = vcombine.low %v1723, %v1724
      %v2321 = vcombine.low %v1725, %v1726
      %v2323 = vunpack.c.l.s4 1983009808
      %v2324 = vunpack.c.0.s8 %v2323
      %v2325 = vlaneseq
      %v2326 = vshrl.u32 %v2325, 7
      %v2327 = vsub.s32 %v2324, %v2326
      %v2328 = vrot.slane %v2320, %v2327
      %v2330 = vunpack.c.l.s4 1983009808
      %v2331 = vunpack.c.0.s8 %v2330
      %v2332 = vlaneseq
      %v2333 = vshrl.u32 %v2332, 7
      %v2334 = vsub.s32 %v2331, %v2333
      %v2335 = vrot.slane %v2321, %v2334
      %v2336 = vcombine.low %v2328, %v2335
      %v2337 = vcombine.low %v1727, %v1728
      %v2338 = vcombine.low %v1729, %v1730
      %v2340 = vunpack.c.l.s4 1983009808
      %v2341 = vunpack.c.0.s8 %v2340
      %v2342 = vlaneseq
      %v2343 = vshrl.u32 %v2342, 7
      %v2344 = vsub.s32 %v2341, %v2343
      %v2345 = vrot.slane %v2337, %v2344
      %v2347 = vunpack.c.l.s4 1983009808
      %v2348 = vunpack.c.0.s8 %v2347
      %v2349 = vlaneseq
      %v2350 = vshrl.u32 %v2349, 7
      %v2351 = vsub.s32 %v2348, %v2350
      %v2352 = vrot.slane %v2338, %v2351
      %v2353 = vcombine.low %v2345, %v2352
      %v2354 = vcombine.low %v1731, %v1732
      %v2355 = vcombine.low %v1733, %v1734
      %v2357 = vunpack.c.l.s4 1983009808
      %v2358 = vunpack.c.0.s8 %v2357
      %v2359 = vlaneseq
      %v2360 = vshrl.u32 %v2359, 7
      %v2361 = vsub.s32 %v2358, %v2360
      %v2362 = vrot.slane %v2354, %v2361
      %v2364 = vunpack.c.l.s4 1983009808
      %v2365 = vunpack.c.0.s8 %v2364
      %v2366 = vlaneseq
      %v2367 = vshrl.u32 %v2366, 7
      %v2368 = vsub.s32 %v2365, %v2367
      %v2369 = vrot.slane %v2355, %v2368
      %v2370 = vcombine.low %v2362, %v2369
      %v2371 = vcombine.low %v1735, %v1736
      %v2372 = vcombine.low %v1737, %v1738
      %v2374 = vunpack.c.l.s4 1983009808
      %v2375 = vunpack.c.0.s8 %v2374
      %v2376 = vlaneseq
      %v2377 = vshrl.u32 %v2376, 7
      %v2378 = vsub.s32 %v2375, %v2377
      %v2379 = vrot.slane %v2371, %v2378
      %v2381 = vunpack.c.l.s4 1983009808
      %v2382 = vunpack.c.0.s8 %v2381
      %v2383 = vlaneseq
      %v2384 = vshrl.u32 %v2383, 7
      %v2385 = vsub.s32 %v2382, %v2384
      %v2386 = vrot.slane %v2372, %v2385
      %v2387 = vcombine.low %v2379, %v2386
      %v2388 = vcombine.low %v1739, %v1740
      %v2389 = vcombine.low %v1741, %v1742
      %v2391 = vunpack.c.l.s4 1983009808
      %v2392 = vunpack.c.0.s8 %v2391
      %v2393 = vlaneseq
      %v2394 = vshrl.u32 %v2393, 7
      %v2395 = vsub.s32 %v2392, %v2394
      %v2396 = vrot.slane %v2388, %v2395
      %v2398 = vunpack.c.l.s4 1983009808
      %v2399 = vunpack.c.0.s8 %v2398
      %v2400 = vlaneseq
      %v2401 = vshrl.u32 %v2400, 7
      %v2402 = vsub.s32 %v2399, %v2401
      %v2403 = vrot.slane %v2389, %v2402
      %v2404 = vcombine.low %v2396, %v2403
      %v2405 = vcombine.low %v1743, %v1744
      %v2406 = vcombine.low %v1745, %v1746
      %v2408 = vunpack.c.l.s4 1983009808
      %v2409 = vunpack.c.0.s8 %v2408
      %v2410 = vlaneseq
      %v2411 = vshrl.u32 %v2410, 7
      %v2412 = vsub.s32 %v2409, %v2411
      %v2413 = vrot.slane %v2405, %v2412
      %v2415 = vunpack.c.l.s4 1983009808
      %v2416 = vunpack.c.0.s8 %v2415
      %v2417 = vlaneseq
      %v2418 = vshrl.u32 %v2417, 7
      %v2419 = vsub.s32 %v2416, %v2418
      %v2420 = vrot.slane %v2406, %v2419
      %v2421 = vcombine.low %v2413, %v2420
      %v2422 = vcombine.low %v1747, %v1748
      %v2423 = vcombine.low %v1749, %v1750
      %v2425 = vunpack.c.l.s4 1983009808
      %v2426 = vunpack.c.0.s8 %v2425
      %v2427 = vlaneseq
      %v2428 = vshrl.u32 %v2427, 7
      %v2429 = vsub.s32 %v2426, %v2428
      %v2430 = vrot.slane %v2422, %v2429
      %v2432 = vunpack.c.l.s4 1983009808
      %v2433 = vunpack.c.0.s8 %v2432
      %v2434 = vlaneseq
      %v2435 = vshrl.u32 %v2434, 7
      %v2436 = vsub.s32 %v2433, %v2435
      %v2437 = vrot.slane %v2423, %v2436
      %v2438 = vcombine.low %v2430, %v2437
      %v2439 = vcombine.low %v1751, %v1752
      %v2440 = vcombine.low %v1753, %v1754
      %v2442 = vunpack.c.l.s4 1983009808
      %v2443 = vunpack.c.0.s8 %v2442
      %v2444 = vlaneseq
      %v2445 = vshrl.u32 %v2444, 7
      %v2446 = vsub.s32 %v2443, %v2445
      %v2447 = vrot.slane %v2439, %v2446
      %v2449 = vunpack.c.l.s4 1983009808
      %v2450 = vunpack.c.0.s8 %v2449
      %v2451 = vlaneseq
      %v2452 = vshrl.u32 %v2451, 7
      %v2453 = vsub.s32 %v2450, %v2452
      %v2454 = vrot.slane %v2440, %v2453
      %v2455 = vcombine.low %v2447, %v2454
      %v2456 = vcombine.low %v1755, %v1756
      %v2457 = vcombine.low %v1757, %v1758
      %v2459 = vunpack.c.l.s4 1983009808
      %v2460 = vunpack.c.0.s8 %v2459
      %v2461 = vlaneseq
      %v2462 = vshrl.u32 %v2461, 7
      %v2463 = vsub.s32 %v2460, %v2462
      %v2464 = vrot.slane %v2456, %v2463
      %v2466 = vunpack.c.l.s4 1983009808
      %v2467 = vunpack.c.0.s8 %v2466
      %v2468 = vlaneseq
      %v2469 = vshrl.u32 %v2468, 7
      %v2470 = vsub.s32 %v2467, %v2469
      %v2471 = vrot.slane %v2457, %v2470
      %v2472 = vcombine.low %v2464, %v2471
      %v2473 = vcombine.low %v1759, %v1760
      %v2474 = vcombine.low %v1761, %v1762
      %v2476 = vunpack.c.l.s4 1983009808
      %v2477 = vunpack.c.0.s8 %v2476
      %v2478 = vlaneseq
      %v2479 = vshrl.u32 %v2478, 7
      %v2480 = vsub.s32 %v2477, %v2479
      %v2481 = vrot.slane %v2473, %v2480
      %v2483 = vunpack.c.l.s4 1983009808
      %v2484 = vunpack.c.0.s8 %v2483
      %v2485 = vlaneseq
      %v2486 = vshrl.u32 %v2485, 7
      %v2487 = vsub.s32 %v2484, %v2486
      %v2488 = vrot.slane %v2474, %v2487
      %v2489 = vcombine.low %v2481, %v2488
      %v2490 = vcombine.low %v1763, %v1764
      %v2491 = vcombine.low %v1765, %v1766
      %v2493 = vunpack.c.l.s4 1983009808
      %v2494 = vunpack.c.0.s8 %v2493
      %v2495 = vlaneseq
      %v2496 = vshrl.u32 %v2495, 7
      %v2497 = vsub.s32 %v2494, %v2496
      %v2498 = vrot.slane %v2490, %v2497
      %v2500 = vunpack.c.l.s4 1983009808
      %v2501 = vunpack.c.0.s8 %v2500
      %v2502 = vlaneseq
      %v2503 = vshrl.u32 %v2502, 7
      %v2504 = vsub.s32 %v2501, %v2503
      %v2505 = vrot.slane %v2491, %v2504
      %v2506 = vcombine.low %v2498, %v2505
      %v2507 = vcombine.low %v1767, %v1768
      %v2508 = vcombine.low %v1769, %v1770
      %v2510 = vunpack.c.l.s4 1983009808
      %v2511 = vunpack.c.0.s8 %v2510
      %v2512 = vlaneseq
      %v2513 = vshrl.u32 %v2512, 7
      %v2514 = vsub.s32 %v2511, %v2513
      %v2515 = vrot.slane %v2507, %v2514
      %v2517 = vunpack.c.l.s4 1983009808
      %v2518 = vunpack.c.0.s8 %v2517
      %v2519 = vlaneseq
      %v2520 = vshrl.u32 %v2519, 7
      %v2521 = vsub.s32 %v2518, %v2520
      %v2522 = vrot.slane %v2508, %v2521
      %v2523 = vcombine.low %v2515, %v2522
      %v2524 = vcombine.low %v1771, %v1772
      %v2525 = vcombine.low %v1773, %v1774
      %v2527 = vunpack.c.l.s4 1983009808
      %v2528 = vunpack.c.0.s8 %v2527
      %v2529 = vlaneseq
      %v2530 = vshrl.u32 %v2529, 7
      %v2531 = vsub.s32 %v2528, %v2530
      %v2532 = vrot.slane %v2524, %v2531
      %v2534 = vunpack.c.l.s4 1983009808
      %v2535 = vunpack.c.0.s8 %v2534
      %v2536 = vlaneseq
      %v2537 = vshrl.u32 %v2536, 7
      %v2538 = vsub.s32 %v2535, %v2537
      %v2539 = vrot.slane %v2525, %v2538
      %v2540 = vcombine.low %v2532, %v2539
      %v2541 = vcombine.low %v1775, %v1776
      %v2542 = vcombine.low %v1777, %v1778
      %v2544 = vunpack.c.l.s4 1983009808
      %v2545 = vunpack.c.0.s8 %v2544
      %v2546 = vlaneseq
      %v2547 = vshrl.u32 %v2546, 7
      %v2548 = vsub.s32 %v2545, %v2547
      %v2549 = vrot.slane %v2541, %v2548
      %v2551 = vunpack.c.l.s4 1983009808
      %v2552 = vunpack.c.0.s8 %v2551
      %v2553 = vlaneseq
      %v2554 = vshrl.u32 %v2553, 7
      %v2555 = vsub.s32 %v2552, %v2554
      %v2556 = vrot.slane %v2542, %v2555
      %v2557 = vcombine.low %v2549, %v2556
      %v2558 = vcombine.low %v1779, %v1780
      %v2559 = vcombine.low %v1781, %v1782
      %v2561 = vunpack.c.l.s4 1983009808
      %v2562 = vunpack.c.0.s8 %v2561
      %v2563 = vlaneseq
      %v2564 = vshrl.u32 %v2563, 7
      %v2565 = vsub.s32 %v2562, %v2564
      %v2566 = vrot.slane %v2558, %v2565
      %v2568 = vunpack.c.l.s4 1983009808
      %v2569 = vunpack.c.0.s8 %v2568
      %v2570 = vlaneseq
      %v2571 = vshrl.u32 %v2570, 7
      %v2572 = vsub.s32 %v2569, %v2571
      %v2573 = vrot.slane %v2559, %v2572
      %v2574 = vcombine.low %v2566, %v2573
      %v2575 = vcombine.low %v1783, %v1784
      %v2576 = vcombine.low %v1785, %v1786
      %v2578 = vunpack.c.l.s4 1983009808
      %v2579 = vunpack.c.0.s8 %v2578
      %v2580 = vlaneseq
      %v2581 = vshrl.u32 %v2580, 7
      %v2582 = vsub.s32 %v2579, %v2581
      %v2583 = vrot.slane %v2575, %v2582
      %v2585 = vunpack.c.l.s4 1983009808
      %v2586 = vunpack.c.0.s8 %v2585
      %v2587 = vlaneseq
      %v2588 = vshrl.u32 %v2587, 7
      %v2589 = vsub.s32 %v2586, %v2588
      %v2590 = vrot.slane %v2576, %v2589
      %v2591 = vcombine.low %v2583, %v2590
      %v2592 = vcombine.low %v1787, %v1788
      %v2593 = vcombine.low %v1789, %v1790
      %v2595 = vunpack.c.l.s4 1983009808
      %v2596 = vunpack.c.0.s8 %v2595
      %v2597 = vlaneseq
      %v2598 = vshrl.u32 %v2597, 7
      %v2599 = vsub.s32 %v2596, %v2598
      %v2600 = vrot.slane %v2592, %v2599
      %v2602 = vunpack.c.l.s4 1983009808
      %v2603 = vunpack.c.0.s8 %v2602
      %v2604 = vlaneseq
      %v2605 = vshrl.u32 %v2604, 7
      %v2606 = vsub.s32 %v2603, %v2605
      %v2607 = vrot.slane %v2593, %v2606
      %v2608 = vcombine.low %v2600, %v2607
      %v2609 = vcombine.low %v1791, %v1792
      %v2610 = vcombine.low %v1793, %v1794
      %v2612 = vunpack.c.l.s4 1983009808
      %v2613 = vunpack.c.0.s8 %v2612
      %v2614 = vlaneseq
      %v2615 = vshrl.u32 %v2614, 7
      %v2616 = vsub.s32 %v2613, %v2615
      %v2617 = vrot.slane %v2609, %v2616
      %v2619 = vunpack.c.l.s4 1983009808
      %v2620 = vunpack.c.0.s8 %v2619
      %v2621 = vlaneseq
      %v2622 = vshrl.u32 %v2621, 7
      %v2623 = vsub.s32 %v2620, %v2622
      %v2624 = vrot.slane %v2610, %v2623
      %v2625 = vcombine.low %v2617, %v2624
      %v2626 = vcombine.low %v1795, %v1796
      %v2627 = vcombine.low %v1797, %v1798
      %v2629 = vunpack.c.l.s4 1983009808
      %v2630 = vunpack.c.0.s8 %v2629
      %v2631 = vlaneseq
      %v2632 = vshrl.u32 %v2631, 7
      %v2633 = vsub.s32 %v2630, %v2632
      %v2634 = vrot.slane %v2626, %v2633
      %v2636 = vunpack.c.l.s4 1983009808
      %v2637 = vunpack.c.0.s8 %v2636
      %v2638 = vlaneseq
      %v2639 = vshrl.u32 %v2638, 7
      %v2640 = vsub.s32 %v2637, %v2639
      %v2641 = vrot.slane %v2627, %v2640
      %v2642 = vcombine.low %v2634, %v2641
      %v2643 = vcombine.low %v1799, %v1800
      %v2645 = vunpack.c.l.s4 1983009808
      %v2646 = vunpack.c.0.s8 %v2645
      %v2647 = vlaneseq
      %v2648 = vshrl.u32 %v2647, 7
      %v2649 = vsub.s32 %v2646, %v2648
      %v2650 = vrot.slane %v2643, %v2649
      %v2692 = vpack.c.bf16 %v1996, %v1979
      %v2693 = vpack.c.bf16 %v2030, %v2013
      %v2694 = vpack.c.bf16 %v2064, %v2047
      %v2695 = vpack.c.bf16 %v2098, %v2081
      %v2696 = vpack.c.bf16 %v2132, %v2115
      %v2697 = vpack.c.bf16 %v2166, %v2149
      %v2698 = vpack.c.bf16 %v2200, %v2183
      %v2699 = vpack.c.bf16 %v2234, %v2217
      %v2700 = vpack.c.bf16 %v2268, %v2251
      %v2701 = vpack.c.bf16 %v2302, %v2285
      %v2702 = vpack.c.bf16 %v2336, %v2319
      %v2703 = vpack.c.bf16 %v2370, %v2353
      %v2704 = vpack.c.bf16 %v2404, %v2387
      %v2705 = vpack.c.bf16 %v2438, %v2421
      %v2706 = vpack.c.bf16 %v2472, %v2455
      %v2707 = vpack.c.bf16 %v2506, %v2489
      %v2708 = vpack.c.bf16 %v2540, %v2523
      %v2709 = vpack.c.bf16 %v2574, %v2557
      %v2710 = vpack.c.bf16 %v2608, %v2591
      %v2711 = vpack.c.bf16 %v2642, %v2625
      %v2712 = vpack.c.bf16 %v2650, %v2650
      %v2713 = vld [vmem:[%s3] sm:$0x3]
      %v2714 = vld [vmem:[%s4] sm:$0x1]
      %v2716 = vlaneseq
      %v2717 = vshrl.u32 %v2716, 7
      %v2718 = vsub.s32 0, %v2717
      %v2719 = vrot.slane %v2714, %v2718
      %vm2721 = vcmask 31744
      %v2723 = vsel %vm2721, %v2692, 0
      %v2726 = vsel %vm2721, %v2693, 0
      %v2729 = vsel %vm2721, %v2694, 0
      %v2732 = vsel %vm2721, %v2695, 0
      %v2735 = vsel %vm2721, %v2696, 0
      %v2738 = vsel %vm2721, %v2697, 0
      %v2741 = vsel %vm2721, %v2698, 0
      %v2744 = vsel %vm2721, %v2699, 0
      %v2747 = vsel %vm2721, %v2700, 0
      %v2750 = vsel %vm2721, %v2701, 0
      %v2753 = vsel %vm2721, %v2702, 0
      %v2756 = vsel %vm2721, %v2703, 0
      %v2759 = vsel %vm2721, %v2704, 0
      %v2762 = vsel %vm2721, %v2705, 0
      %v2765 = vsel %vm2721, %v2706, 0
      %v2768 = vsel %vm2721, %v2707, 0
      %v2771 = vsel %vm2721, %v2708, 0
      %v2774 = vsel %vm2721, %v2709, 0
      %v2777 = vsel %vm2721, %v2710, 0
      %v2780 = vsel %vm2721, %v2711, 0
      %v2783 = vsel %vm2721, %v2712, 0
      %vm2785 = vcmask 1041408
      %v2787 = vsel %vm2785, %v2713, 0
      %2789 = vmatprep.subr.bf16.mxu0 0
      %2790 = vmatpush1.bf16.msra.mxu0 %v2787
      %2791 = vmatprep.subr.bf16.mxu0 0
      %2792 = vmatpush1.bf16.msra.mxu0 0
      %2793 = vmatprep.subr.bf16.mxu0 0
      %2794 = vmatpush1.bf16.msra.mxu0 0
      %2795 = vmatprep.subr.bf16.mxu0 0
      %2796 = vmatpush1.bf16.msra.mxu0 0
      %2797 = vmatprep.subr.bf16.mxu0 0
      %2798 = vmatpush1.bf16.msra.mxu0 0
      %2799 = vmatprep.subr.bf16.mxu0 0
      %2800 = vmatpush1.bf16.msra.mxu0 0
      %2801 = vmatprep.subr.bf16.mxu0 0
      %2802 = vmatpush1.bf16.msra.mxu0 0
      %2803 = vmatprep.subr.bf16.mxu0 0
      %2804 = vmatpush1.bf16.msra.mxu0 0
      %2805 = vmatprep.subr.bf16.mxu0 0
      %2806 = vmatpush1.bf16.msra.mxu0 0
      %2807 = vmatprep.subr.bf16.mxu0 0
      %2808 = vmatpush1.bf16.msra.mxu0 0
      %2809 = vmatprep.subr.bf16.mxu0 0
      %2810 = vmatpush1.bf16.msra.mxu0 0
      %2811 = vmatprep.subr.bf16.mxu0 0
      %2812 = vmatpush1.bf16.msra.mxu0 0
      %2813 = vmatprep.subr.bf16.mxu0 0
      %2814 = vmatpush1.bf16.msra.mxu0 0
      %2815 = vmatprep.subr.bf16.mxu0 0
      %2816 = vmatpush1.bf16.msra.mxu0 0
      %2817 = vmatprep.subr.bf16.mxu0 0
      %2818 = vmatpush1.bf16.msra.mxu0 0
      %2819 = vmatprep.subr.bf16.mxu0 0
      %2820 = vmatpush1.bf16.msra.mxu0 0
      %2821 = vmatprep.mubr.bf16.mxu0 0
      %2822 = vmatmul.mubr.bf16.gmra.mrb[0].mxu0 %v2723
      %v2823 = vpop.f32.mrb[0].mxu0
      %v2824 = vadd.f32 %v2719, %v2823
      %v2825 = vpop.f32.mrb[0].mxu0
      %v2826 = vpop.f32.mrb[0].mxu0
      %v2827 = vadd.f32 %v2719, %v2826
      %v2828 = vpop.f32.mrb[0].mxu0
      %2829 = vmatprep.mubr.bf16.mxu0 0
      %2830 = vmatmul.mubr.bf16.gmra.mrb[0].mxu0 %v2726
      %v2831 = vpop.f32.mrb[0].mxu0
      %v2832 = vadd.f32 %v2719, %v2831
      %v2833 = vpop.f32.mrb[0].mxu0
      %v2834 = vpop.f32.mrb[0].mxu0
      %v2835 = vadd.f32 %v2719, %v2834
      %v2836 = vpop.f32.mrb[0].mxu0
      %2837 = vmatprep.mubr.bf16.mxu0 0
      %2838 = vmatmul.mubr.bf16.gmra.mrb[0].mxu0 %v2729
      %v2839 = vpop.f32.mrb[0].mxu0
      %v2840 = vadd.f32 %v2719, %v2839
      %v2841 = vpop.f32.mrb[0].mxu0
      %v2842 = vpop.f32.mrb[0].mxu0
      %v2843 = vadd.f32 %v2719, %v2842
      %v2844 = vpop.f32.mrb[0].mxu0
      %2845 = vmatprep.mubr.bf16.mxu0 0
      %2846 = vmatmul.mubr.bf16.gmra.mrb[0].mxu0 %v2732
      %v2847 = vpop.f32.mrb[0].mxu0
      %v2848 = vadd.f32 %v2719, %v2847
      %v2849 = vpop.f32.mrb[0].mxu0
      %v2850 = vpop.f32.mrb[0].mxu0
      %v2851 = vadd.f32 %v2719, %v2850
      %v2852 = vpop.f32.mrb[0].mxu0
      %2853 = vmatprep.mubr.bf16.mxu0 0
      %2854 = vmatmul.mubr.bf16.gmra.mrb[0].mxu0 %v2735
      %v2855 = vpop.f32.mrb[0].mxu0
      %v2856 = vadd.f32 %v2719, %v2855
      %v2857 = vpop.f32.mrb[0].mxu0
      %v2858 = vpop.f32.mrb[0].mxu0
      %v2859 = vadd.f32 %v2719, %v2858
      %v2860 = vpop.f32.mrb[0].mxu0
      %2861 = vmatprep.mubr.bf16.mxu0 0
      %2862 = vmatmul.mubr.bf16.gmra.mrb[0].mxu0 %v2738
      %v2863 = vpop.f32.mrb[0].mxu0
      %v2864 = vadd.f32 %v2719, %v2863
      %v2865 = vpop.f32.mrb[0].mxu0
      %v2866 = vpop.f32.mrb[0].mxu0
      %v2867 = vadd.f32 %v2719, %v2866
      %v2868 = vpop.f32.mrb[0].mxu0
      %2869 = vmatprep.mubr.bf16.mxu0 0
      %2870 = vmatmul.mubr.bf16.gmra.mrb[0].mxu0 %v2741
      %v2871 = vpop.f32.mrb[0].mxu0
      %v2872 = vadd.f32 %v2719, %v2871
      %v2873 = vpop.f32.mrb[0].mxu0
      %v2874 = vpop.f32.mrb[0].mxu0
      %v2875 = vadd.f32 %v2719, %v2874
      %v2876 = vpop.f32.mrb[0].mxu0
      %2877 = vmatprep.mubr.bf16.mxu0 0
      %2878 = vmatmul.mubr.bf16.gmra.mrb[0].mxu0 %v2744
      %v2879 = vpop.f32.mrb[0].mxu0
      %v2880 = vadd.f32 %v2719, %v2879
      %v2881 = vpop.f32.mrb[0].mxu0
      %v2882 = vpop.f32.mrb[0].mxu0
      %v2883 = vadd.f32 %v2719, %v2882
      %v2884 = vpop.f32.mrb[0].mxu0
      %2885 = vmatprep.mubr.bf16.mxu0 0
      %2886 = vmatmul.mubr.bf16.gmra.mrb[0].mxu0 %v2747
      %v2887 = vpop.f32.mrb[0].mxu0
      %v2888 = vadd.f32 %v2719, %v2887
      %v2889 = vpop.f32.mrb[0].mxu0
      %v2890 = vpop.f32.mrb[0].mxu0
      %v2891 = vadd.f32 %v2719, %v2890
      %v2892 = vpop.f32.mrb[0].mxu0
      %2893 = vmatprep.mubr.bf16.mxu0 0
      %2894 = vmatmul.mubr.bf16.gmra.mrb[0].mxu0 %v2750
      %v2895 = vpop.f32.mrb[0].mxu0
      %v2896 = vadd.f32 %v2719, %v2895
      %v2897 = vpop.f32.mrb[0].mxu0
      %v2898 = vpop.f32.mrb[0].mxu0
      %v2899 = vadd.f32 %v2719, %v2898
      %v2900 = vpop.f32.mrb[0].mxu0
      %2901 = vmatprep.mubr.bf16.mxu0 0
      %2902 = vmatmul.mubr.bf16.gmra.mrb[0].mxu0 %v2753
      %v2903 = vpop.f32.mrb[0].mxu0
      %v2904 = vadd.f32 %v2719, %v2903
      %v2905 = vpop.f32.mrb[0].mxu0
      %v2906 = vpop.f32.mrb[0].mxu0
      %v2907 = vadd.f32 %v2719, %v2906
      %v2908 = vpop.f32.mrb[0].mxu0
      %2909 = vmatprep.mubr.bf16.mxu0 0
      %2910 = vmatmul.mubr.bf16.gmra.mrb[0].mxu0 %v2756
      %v2911 = vpop.f32.mrb[0].mxu0
      %v2912 = vadd.f32 %v2719, %v2911
      %v2913 = vpop.f32.mrb[0].mxu0
      %v2914 = vpop.f32.mrb[0].mxu0
      %v2915 = vadd.f32 %v2719, %v2914
      %v2916 = vpop.f32.mrb[0].mxu0
      %2917 = vmatprep.mubr.bf16.mxu0 0
      %2918 = vmatmul.mubr.bf16.gmra.mrb[0].mxu0 %v2759
      %v2919 = vpop.f32.mrb[0].mxu0
      %v2920 = vadd.f32 %v2719, %v2919
      %v2921 = vpop.f32.mrb[0].mxu0
      %v2922 = vpop.f32.mrb[0].mxu0
      %v2923 = vadd.f32 %v2719, %v2922
      %v2924 = vpop.f32.mrb[0].mxu0
      %2925 = vmatprep.mubr.bf16.mxu0 0
      %2926 = vmatmul.mubr.bf16.gmra.mrb[0].mxu0 %v2762
      %v2927 = vpop.f32.mrb[0].mxu0
      %v2928 = vadd.f32 %v2719, %v2927
      %v2929 = vpop.f32.mrb[0].mxu0
      %v2930 = vpop.f32.mrb[0].mxu0
      %v2931 = vadd.f32 %v2719, %v2930
      %v2932 = vpop.f32.mrb[0].mxu0
      %2933 = vmatprep.mubr.bf16.mxu0 0
      %2934 = vmatmul.mubr.bf16.gmra.mrb[0].mxu0 %v2765
      %v2935 = vpop.f32.mrb[0].mxu0
      %v2936 = vadd.f32 %v2719, %v2935
      %v2937 = vpop.f32.mrb[0].mxu0
      %v2938 = vpop.f32.mrb[0].mxu0
      %v2939 = vadd.f32 %v2719, %v2938
      %v2940 = vpop.f32.mrb[0].mxu0
      %2941 = vmatprep.mubr.bf16.mxu0 0
      %2942 = vmatmul.mubr.bf16.gmra.mrb[0].mxu0 %v2768
      %v2943 = vpop.f32.mrb[0].mxu0
      %v2944 = vadd.f32 %v2719, %v2943
      %v2945 = vpop.f32.mrb[0].mxu0
      %v2946 = vpop.f32.mrb[0].mxu0
      %v2947 = vadd.f32 %v2719, %v2946
      %v2948 = vpop.f32.mrb[0].mxu0
      %2949 = vmatprep.mubr.bf16.mxu0 0
      %2950 = vmatmul.mubr.bf16.gmra.mrb[0].mxu0 %v2771
      %v2951 = vpop.f32.mrb[0].mxu0
      %v2952 = vadd.f32 %v2719, %v2951
      %v2953 = vpop.f32.mrb[0].mxu0
      %v2954 = vpop.f32.mrb[0].mxu0
      %v2955 = vadd.f32 %v2719, %v2954
      %v2956 = vpop.f32.mrb[0].mxu0
      %2957 = vmatprep.mubr.bf16.mxu0 0
      %2958 = vmatmul.mubr.bf16.gmra.mrb[0].mxu0 %v2774
      %v2959 = vpop.f32.mrb[0].mxu0
      %v2960 = vadd.f32 %v2719, %v2959
      %v2961 = vpop.f32.mrb[0].mxu0
      %v2962 = vpop.f32.mrb[0].mxu0
      %v2963 = vadd.f32 %v2719, %v2962
      %v2964 = vpop.f32.mrb[0].mxu0
      %2965 = vmatprep.mubr.bf16.mxu0 0
      %2966 = vmatmul.mubr.bf16.gmra.mrb[0].mxu0 %v2777
      %v2967 = vpop.f32.mrb[0].mxu0
      %v2968 = vadd.f32 %v2719, %v2967
      %v2969 = vpop.f32.mrb[0].mxu0
      %v2970 = vpop.f32.mrb[0].mxu0
      %v2971 = vadd.f32 %v2719, %v2970
      %v2972 = vpop.f32.mrb[0].mxu0
      %2973 = vmatprep.mubr.bf16.mxu0 0
      %2974 = vmatmul.mubr.bf16.gmra.mrb[0].mxu0 %v2780
      %v2975 = vpop.f32.mrb[0].mxu0
      %v2976 = vadd.f32 %v2719, %v2975
      %v2977 = vpop.f32.mrb[0].mxu0
      %v2978 = vpop.f32.mrb[0].mxu0
      %v2979 = vadd.f32 %v2719, %v2978
      %v2980 = vpop.f32.mrb[0].mxu0
      %2981 = vmatprep.mubr.bf16.mxu0 0
      %2982 = vmatmul.mubr.bf16.gmra.mrb[0].mxu0 %v2783
      %v2983 = vpop.f32.mrb[0].mxu0
      %v2984 = vadd.f32 %v2719, %v2983
      %v2985 = vpop.f32.mrb[0].mxu0
      %v2986 = vpop.f32.mrb[0].mxu0
      %v2987 = vpop.f32.mrb[0].mxu0
      %2988 = vdwg.mxu0
      %v2989 = vmax.f32 %v2824, 0.0
      %v2990 = vmax.f32 %v2827, 0.0
      %v2991 = vmax.f32 %v2832, 0.0
      %v2992 = vmax.f32 %v2835, 0.0
      %v2993 = vmax.f32 %v2840, 0.0
      %v2994 = vmax.f32 %v2843, 0.0
      %v2995 = vmax.f32 %v2848, 0.0
      %v2996 = vmax.f32 %v2851, 0.0
      %v2997 = vmax.f32 %v2856, 0.0
      %v2998 = vmax.f32 %v2859, 0.0
      %v2999 = vmax.f32 %v2864, 0.0
      %v3000 = vmax.f32 %v2867, 0.0
      %v3001 = vmax.f32 %v2872, 0.0
      %v3002 = vmax.f32 %v2875, 0.0
      %v3003 = vmax.f32 %v2880, 0.0
      %v3004 = vmax.f32 %v2883, 0.0
      %v3005 = vmax.f32 %v2888, 0.0
      %v3006 = vmax.f32 %v2891, 0.0
      %v3007 = vmax.f32 %v2896, 0.0
      %v3008 = vmax.f32 %v2899, 0.0
      %v3009 = vmax.f32 %v2904, 0.0
      %v3010 = vmax.f32 %v2907, 0.0
      %v3011 = vmax.f32 %v2912, 0.0
      %v3012 = vmax.f32 %v2915, 0.0
      %v3013 = vmax.f32 %v2920, 0.0
      %v3014 = vmax.f32 %v2923, 0.0
      %v3015 = vmax.f32 %v2928, 0.0
      %v3016 = vmax.f32 %v2931, 0.0
      %v3017 = vmax.f32 %v2936, 0.0
      %v3018 = vmax.f32 %v2939, 0.0
      %v3019 = vmax.f32 %v2944, 0.0
      %v3020 = vmax.f32 %v2947, 0.0
      %v3021 = vmax.f32 %v2952, 0.0
      %v3022 = vmax.f32 %v2955, 0.0
      %v3023 = vmax.f32 %v2960, 0.0
      %v3024 = vmax.f32 %v2963, 0.0
      %v3025 = vmax.f32 %v2968, 0.0
      %v3026 = vmax.f32 %v2971, 0.0
      %v3027 = vmax.f32 %v2976, 0.0
      %v3028 = vmax.f32 %v2979, 0.0
      %v3029 = vmax.f32 %v2984, 0.0
      %v3071 = vcombine.high %v2989, %v2989
      %v3073 = vunpack.c.l.s4 1983009808
      %v3074 = vunpack.c.0.s8 %v3073
      %v3075 = vlaneseq
      %v3076 = vshrl.u32 %v3075, 7
      %v3077 = vsub.s32 %v3074, %v3076
      %v3078 = vrot.slane %v2989, %v3077
      %v3080 = vunpack.c.l.s4 1983009808
      %v3081 = vunpack.c.0.s8 %v3080
      %v3082 = vlaneseq
      %v3083 = vshrl.u32 %v3082, 7
      %v3084 = vsub.s32 %v3081, %v3083
      %v3085 = vrot.slane %v3071, %v3084
      %v3086 = vcombine.high %v3078, %v3078
      %v3087 = vcombine.high %v3085, %v3085
      %v3088 = vcombine.high %v2990, %v2990
      %v3090 = vunpack.c.l.s4 1983009808
      %v3091 = vunpack.c.0.s8 %v3090
      %v3092 = vlaneseq
      %v3093 = vshrl.u32 %v3092, 7
      %v3094 = vsub.s32 %v3091, %v3093
      %v3095 = vrot.slane %v2990, %v3094
      %v3097 = vunpack.c.l.s4 1983009808
      %v3098 = vunpack.c.0.s8 %v3097
      %v3099 = vlaneseq
      %v3100 = vshrl.u32 %v3099, 7
      %v3101 = vsub.s32 %v3098, %v3100
      %v3102 = vrot.slane %v3088, %v3101
      %v3103 = vcombine.high %v3095, %v3095
      %v3104 = vcombine.high %v3102, %v3102
      %v3105 = vcombine.high %v2991, %v2991
      %v3107 = vunpack.c.l.s4 1983009808
      %v3108 = vunpack.c.0.s8 %v3107
      %v3109 = vlaneseq
      %v3110 = vshrl.u32 %v3109, 7
      %v3111 = vsub.s32 %v3108, %v3110
      %v3112 = vrot.slane %v2991, %v3111
      %v3114 = vunpack.c.l.s4 1983009808
      %v3115 = vunpack.c.0.s8 %v3114
      %v3116 = vlaneseq
      %v3117 = vshrl.u32 %v3116, 7
      %v3118 = vsub.s32 %v3115, %v3117
      %v3119 = vrot.slane %v3105, %v3118
      %v3120 = vcombine.high %v3112, %v3112
      %v3121 = vcombine.high %v3119, %v3119
      %v3122 = vcombine.high %v2992, %v2992
      %v3124 = vunpack.c.l.s4 1983009808
      %v3125 = vunpack.c.0.s8 %v3124
      %v3126 = vlaneseq
      %v3127 = vshrl.u32 %v3126, 7
      %v3128 = vsub.s32 %v3125, %v3127
      %v3129 = vrot.slane %v2992, %v3128
      %v3131 = vunpack.c.l.s4 1983009808
      %v3132 = vunpack.c.0.s8 %v3131
      %v3133 = vlaneseq
      %v3134 = vshrl.u32 %v3133, 7
      %v3135 = vsub.s32 %v3132, %v3134
      %v3136 = vrot.slane %v3122, %v3135
      %v3137 = vcombine.high %v3129, %v3129
      %v3138 = vcombine.high %v3136, %v3136
      %v3139 = vcombine.high %v2993, %v2993
      %v3141 = vunpack.c.l.s4 1983009808
      %v3142 = vunpack.c.0.s8 %v3141
      %v3143 = vlaneseq
      %v3144 = vshrl.u32 %v3143, 7
      %v3145 = vsub.s32 %v3142, %v3144
      %v3146 = vrot.slane %v2993, %v3145
      %v3148 = vunpack.c.l.s4 1983009808
      %v3149 = vunpack.c.0.s8 %v3148
      %v3150 = vlaneseq
      %v3151 = vshrl.u32 %v3150, 7
      %v3152 = vsub.s32 %v3149, %v3151
      %v3153 = vrot.slane %v3139, %v3152
      %v3154 = vcombine.high %v3146, %v3146
      %v3155 = vcombine.high %v3153, %v3153
      %v3156 = vcombine.high %v2994, %v2994
      %v3158 = vunpack.c.l.s4 1983009808
      %v3159 = vunpack.c.0.s8 %v3158
      %v3160 = vlaneseq
      %v3161 = vshrl.u32 %v3160, 7
      %v3162 = vsub.s32 %v3159, %v3161
      %v3163 = vrot.slane %v2994, %v3162
      %v3165 = vunpack.c.l.s4 1983009808
      %v3166 = vunpack.c.0.s8 %v3165
      %v3167 = vlaneseq
      %v3168 = vshrl.u32 %v3167, 7
      %v3169 = vsub.s32 %v3166, %v3168
      %v3170 = vrot.slane %v3156, %v3169
      %v3171 = vcombine.high %v3163, %v3163
      %v3172 = vcombine.high %v3170, %v3170
      %v3173 = vcombine.high %v2995, %v2995
      %v3175 = vunpack.c.l.s4 1983009808
      %v3176 = vunpack.c.0.s8 %v3175
      %v3177 = vlaneseq
      %v3178 = vshrl.u32 %v3177, 7
      %v3179 = vsub.s32 %v3176, %v3178
      %v3180 = vrot.slane %v2995, %v3179
      %v3182 = vunpack.c.l.s4 1983009808
      %v3183 = vunpack.c.0.s8 %v3182
      %v3184 = vlaneseq
      %v3185 = vshrl.u32 %v3184, 7
      %v3186 = vsub.s32 %v3183, %v3185
      %v3187 = vrot.slane %v3173, %v3186
      %v3188 = vcombine.high %v3180, %v3180
      %v3189 = vcombine.high %v3187, %v3187
      %v3190 = vcombine.high %v2996, %v2996
      %v3192 = vunpack.c.l.s4 1983009808
      %v3193 = vunpack.c.0.s8 %v3192
      %v3194 = vlaneseq
      %v3195 = vshrl.u32 %v3194, 7
      %v3196 = vsub.s32 %v3193, %v3195
      %v3197 = vrot.slane %v2996, %v3196
      %v3199 = vunpack.c.l.s4 1983009808
      %v3200 = vunpack.c.0.s8 %v3199
      %v3201 = vlaneseq
      %v3202 = vshrl.u32 %v3201, 7
      %v3203 = vsub.s32 %v3200, %v3202
      %v3204 = vrot.slane %v3190, %v3203
      %v3205 = vcombine.high %v3197, %v3197
      %v3206 = vcombine.high %v3204, %v3204
      %v3207 = vcombine.high %v2997, %v2997
      %v3209 = vunpack.c.l.s4 1983009808
      %v3210 = vunpack.c.0.s8 %v3209
      %v3211 = vlaneseq
      %v3212 = vshrl.u32 %v3211, 7
      %v3213 = vsub.s32 %v3210, %v3212
      %v3214 = vrot.slane %v2997, %v3213
      %v3216 = vunpack.c.l.s4 1983009808
      %v3217 = vunpack.c.0.s8 %v3216
      %v3218 = vlaneseq
      %v3219 = vshrl.u32 %v3218, 7
      %v3220 = vsub.s32 %v3217, %v3219
      %v3221 = vrot.slane %v3207, %v3220
      %v3222 = vcombine.high %v3214, %v3214
      %v3223 = vcombine.high %v3221, %v3221
      %v3224 = vcombine.high %v2998, %v2998
      %v3226 = vunpack.c.l.s4 1983009808
      %v3227 = vunpack.c.0.s8 %v3226
      %v3228 = vlaneseq
      %v3229 = vshrl.u32 %v3228, 7
      %v3230 = vsub.s32 %v3227, %v3229
      %v3231 = vrot.slane %v2998, %v3230
      %v3233 = vunpack.c.l.s4 1983009808
      %v3234 = vunpack.c.0.s8 %v3233
      %v3235 = vlaneseq
      %v3236 = vshrl.u32 %v3235, 7
      %v3237 = vsub.s32 %v3234, %v3236
      %v3238 = vrot.slane %v3224, %v3237
      %v3239 = vcombine.high %v3231, %v3231
      %v3240 = vcombine.high %v3238, %v3238
      %v3241 = vcombine.high %v2999, %v2999
      %v3243 = vunpack.c.l.s4 1983009808
      %v3244 = vunpack.c.0.s8 %v3243
      %v3245 = vlaneseq
      %v3246 = vshrl.u32 %v3245, 7
      %v3247 = vsub.s32 %v3244, %v3246
      %v3248 = vrot.slane %v2999, %v3247
      %v3250 = vunpack.c.l.s4 1983009808
      %v3251 = vunpack.c.0.s8 %v3250
      %v3252 = vlaneseq
      %v3253 = vshrl.u32 %v3252, 7
      %v3254 = vsub.s32 %v3251, %v3253
      %v3255 = vrot.slane %v3241, %v3254
      %v3256 = vcombine.high %v3248, %v3248
      %v3257 = vcombine.high %v3255, %v3255
      %v3258 = vcombine.high %v3000, %v3000
      %v3260 = vunpack.c.l.s4 1983009808
      %v3261 = vunpack.c.0.s8 %v3260
      %v3262 = vlaneseq
      %v3263 = vshrl.u32 %v3262, 7
      %v3264 = vsub.s32 %v3261, %v3263
      %v3265 = vrot.slane %v3000, %v3264
      %v3267 = vunpack.c.l.s4 1983009808
      %v3268 = vunpack.c.0.s8 %v3267
      %v3269 = vlaneseq
      %v3270 = vshrl.u32 %v3269, 7
      %v3271 = vsub.s32 %v3268, %v3270
      %v3272 = vrot.slane %v3258, %v3271
      %v3273 = vcombine.high %v3265, %v3265
      %v3274 = vcombine.high %v3272, %v3272
      %v3275 = vcombine.high %v3001, %v3001
      %v3277 = vunpack.c.l.s4 1983009808
      %v3278 = vunpack.c.0.s8 %v3277
      %v3279 = vlaneseq
      %v3280 = vshrl.u32 %v3279, 7
      %v3281 = vsub.s32 %v3278, %v3280
      %v3282 = vrot.slane %v3001, %v3281
      %v3284 = vunpack.c.l.s4 1983009808
      %v3285 = vunpack.c.0.s8 %v3284
      %v3286 = vlaneseq
      %v3287 = vshrl.u32 %v3286, 7
      %v3288 = vsub.s32 %v3285, %v3287
      %v3289 = vrot.slane %v3275, %v3288
      %v3290 = vcombine.high %v3282, %v3282
      %v3291 = vcombine.high %v3289, %v3289
      %v3292 = vcombine.high %v3002, %v3002
      %v3294 = vunpack.c.l.s4 1983009808
      %v3295 = vunpack.c.0.s8 %v3294
      %v3296 = vlaneseq
      %v3297 = vshrl.u32 %v3296, 7
      %v3298 = vsub.s32 %v3295, %v3297
      %v3299 = vrot.slane %v3002, %v3298
      %v3301 = vunpack.c.l.s4 1983009808
      %v3302 = vunpack.c.0.s8 %v3301
      %v3303 = vlaneseq
      %v3304 = vshrl.u32 %v3303, 7
      %v3305 = vsub.s32 %v3302, %v3304
      %v3306 = vrot.slane %v3292, %v3305
      %v3307 = vcombine.high %v3299, %v3299
      %v3308 = vcombine.high %v3306, %v3306
      %v3309 = vcombine.high %v3003, %v3003
      %v3311 = vunpack.c.l.s4 1983009808
      %v3312 = vunpack.c.0.s8 %v3311
      %v3313 = vlaneseq
      %v3314 = vshrl.u32 %v3313, 7
      %v3315 = vsub.s32 %v3312, %v3314
      %v3316 = vrot.slane %v3003, %v3315
      %v3318 = vunpack.c.l.s4 1983009808
      %v3319 = vunpack.c.0.s8 %v3318
      %v3320 = vlaneseq
      %v3321 = vshrl.u32 %v3320, 7
      %v3322 = vsub.s32 %v3319, %v3321
      %v3323 = vrot.slane %v3309, %v3322
      %v3324 = vcombine.high %v3316, %v3316
      %v3325 = vcombine.high %v3323, %v3323
      %v3326 = vcombine.high %v3004, %v3004
      %v3328 = vunpack.c.l.s4 1983009808
      %v3329 = vunpack.c.0.s8 %v3328
      %v3330 = vlaneseq
      %v3331 = vshrl.u32 %v3330, 7
      %v3332 = vsub.s32 %v3329, %v3331
      %v3333 = vrot.slane %v3004, %v3332
      %v3335 = vunpack.c.l.s4 1983009808
      %v3336 = vunpack.c.0.s8 %v3335
      %v3337 = vlaneseq
      %v3338 = vshrl.u32 %v3337, 7
      %v3339 = vsub.s32 %v3336, %v3338
      %v3340 = vrot.slane %v3326, %v3339
      %v3341 = vcombine.high %v3333, %v3333
      %v3342 = vcombine.high %v3340, %v3340
      %v3343 = vcombine.high %v3005, %v3005
      %v3345 = vunpack.c.l.s4 1983009808
      %v3346 = vunpack.c.0.s8 %v3345
      %v3347 = vlaneseq
      %v3348 = vshrl.u32 %v3347, 7
      %v3349 = vsub.s32 %v3346, %v3348
      %v3350 = vrot.slane %v3005, %v3349
      %v3352 = vunpack.c.l.s4 1983009808
      %v3353 = vunpack.c.0.s8 %v3352
      %v3354 = vlaneseq
      %v3355 = vshrl.u32 %v3354, 7
      %v3356 = vsub.s32 %v3353, %v3355
      %v3357 = vrot.slane %v3343, %v3356
      %v3358 = vcombine.high %v3350, %v3350
      %v3359 = vcombine.high %v3357, %v3357
      %v3360 = vcombine.high %v3006, %v3006
      %v3362 = vunpack.c.l.s4 1983009808
      %v3363 = vunpack.c.0.s8 %v3362
      %v3364 = vlaneseq
      %v3365 = vshrl.u32 %v3364, 7
      %v3366 = vsub.s32 %v3363, %v3365
      %v3367 = vrot.slane %v3006, %v3366
      %v3369 = vunpack.c.l.s4 1983009808
      %v3370 = vunpack.c.0.s8 %v3369
      %v3371 = vlaneseq
      %v3372 = vshrl.u32 %v3371, 7
      %v3373 = vsub.s32 %v3370, %v3372
      %v3374 = vrot.slane %v3360, %v3373
      %v3375 = vcombine.high %v3367, %v3367
      %v3376 = vcombine.high %v3374, %v3374
      %v3377 = vcombine.high %v3007, %v3007
      %v3379 = vunpack.c.l.s4 1983009808
      %v3380 = vunpack.c.0.s8 %v3379
      %v3381 = vlaneseq
      %v3382 = vshrl.u32 %v3381, 7
      %v3383 = vsub.s32 %v3380, %v3382
      %v3384 = vrot.slane %v3007, %v3383
      %v3386 = vunpack.c.l.s4 1983009808
      %v3387 = vunpack.c.0.s8 %v3386
      %v3388 = vlaneseq
      %v3389 = vshrl.u32 %v3388, 7
      %v3390 = vsub.s32 %v3387, %v3389
      %v3391 = vrot.slane %v3377, %v3390
      %v3392 = vcombine.high %v3384, %v3384
      %v3393 = vcombine.high %v3391, %v3391
      %v3394 = vcombine.high %v3008, %v3008
      %v3396 = vunpack.c.l.s4 1983009808
      %v3397 = vunpack.c.0.s8 %v3396
      %v3398 = vlaneseq
      %v3399 = vshrl.u32 %v3398, 7
      %v3400 = vsub.s32 %v3397, %v3399
      %v3401 = vrot.slane %v3008, %v3400
      %v3403 = vunpack.c.l.s4 1983009808
      %v3404 = vunpack.c.0.s8 %v3403
      %v3405 = vlaneseq
      %v3406 = vshrl.u32 %v3405, 7
      %v3407 = vsub.s32 %v3404, %v3406
      %v3408 = vrot.slane %v3394, %v3407
      %v3409 = vcombine.high %v3401, %v3401
      %v3410 = vcombine.high %v3408, %v3408
      %v3411 = vcombine.high %v3009, %v3009
      %v3413 = vunpack.c.l.s4 1983009808
      %v3414 = vunpack.c.0.s8 %v3413
      %v3415 = vlaneseq
      %v3416 = vshrl.u32 %v3415, 7
      %v3417 = vsub.s32 %v3414, %v3416
      %v3418 = vrot.slane %v3009, %v3417
      %v3420 = vunpack.c.l.s4 1983009808
      %v3421 = vunpack.c.0.s8 %v3420
      %v3422 = vlaneseq
      %v3423 = vshrl.u32 %v3422, 7
      %v3424 = vsub.s32 %v3421, %v3423
      %v3425 = vrot.slane %v3411, %v3424
      %v3426 = vcombine.high %v3418, %v3418
      %v3427 = vcombine.high %v3425, %v3425
      %v3428 = vcombine.high %v3010, %v3010
      %v3430 = vunpack.c.l.s4 1983009808
      %v3431 = vunpack.c.0.s8 %v3430
      %v3432 = vlaneseq
      %v3433 = vshrl.u32 %v3432, 7
      %v3434 = vsub.s32 %v3431, %v3433
      %v3435 = vrot.slane %v3010, %v3434
      %v3437 = vunpack.c.l.s4 1983009808
      %v3438 = vunpack.c.0.s8 %v3437
      %v3439 = vlaneseq
      %v3440 = vshrl.u32 %v3439, 7
      %v3441 = vsub.s32 %v3438, %v3440
      %v3442 = vrot.slane %v3428, %v3441
      %v3443 = vcombine.high %v3435, %v3435
      %v3444 = vcombine.high %v3442, %v3442
      %v3445 = vcombine.high %v3011, %v3011
      %v3447 = vunpack.c.l.s4 1983009808
      %v3448 = vunpack.c.0.s8 %v3447
      %v3449 = vlaneseq
      %v3450 = vshrl.u32 %v3449, 7
      %v3451 = vsub.s32 %v3448, %v3450
      %v3452 = vrot.slane %v3011, %v3451
      %v3454 = vunpack.c.l.s4 1983009808
      %v3455 = vunpack.c.0.s8 %v3454
      %v3456 = vlaneseq
      %v3457 = vshrl.u32 %v3456, 7
      %v3458 = vsub.s32 %v3455, %v3457
      %v3459 = vrot.slane %v3445, %v3458
      %v3460 = vcombine.high %v3452, %v3452
      %v3461 = vcombine.high %v3459, %v3459
      %v3462 = vcombine.high %v3012, %v3012
      %v3464 = vunpack.c.l.s4 1983009808
      %v3465 = vunpack.c.0.s8 %v3464
      %v3466 = vlaneseq
      %v3467 = vshrl.u32 %v3466, 7
      %v3468 = vsub.s32 %v3465, %v3467
      %v3469 = vrot.slane %v3012, %v3468
      %v3471 = vunpack.c.l.s4 1983009808
      %v3472 = vunpack.c.0.s8 %v3471
      %v3473 = vlaneseq
      %v3474 = vshrl.u32 %v3473, 7
      %v3475 = vsub.s32 %v3472, %v3474
      %v3476 = vrot.slane %v3462, %v3475
      %v3477 = vcombine.high %v3469, %v3469
      %v3478 = vcombine.high %v3476, %v3476
      %v3479 = vcombine.high %v3013, %v3013
      %v3481 = vunpack.c.l.s4 1983009808
      %v3482 = vunpack.c.0.s8 %v3481
      %v3483 = vlaneseq
      %v3484 = vshrl.u32 %v3483, 7
      %v3485 = vsub.s32 %v3482, %v3484
      %v3486 = vrot.slane %v3013, %v3485
      %v3488 = vunpack.c.l.s4 1983009808
      %v3489 = vunpack.c.0.s8 %v3488
      %v3490 = vlaneseq
      %v3491 = vshrl.u32 %v3490, 7
      %v3492 = vsub.s32 %v3489, %v3491
      %v3493 = vrot.slane %v3479, %v3492
      %v3494 = vcombine.high %v3486, %v3486
      %v3495 = vcombine.high %v3493, %v3493
      %v3496 = vcombine.high %v3014, %v3014
      %v3498 = vunpack.c.l.s4 1983009808
      %v3499 = vunpack.c.0.s8 %v3498
      %v3500 = vlaneseq
      %v3501 = vshrl.u32 %v3500, 7
      %v3502 = vsub.s32 %v3499, %v3501
      %v3503 = vrot.slane %v3014, %v3502
      %v3505 = vunpack.c.l.s4 1983009808
      %v3506 = vunpack.c.0.s8 %v3505
      %v3507 = vlaneseq
      %v3508 = vshrl.u32 %v3507, 7
      %v3509 = vsub.s32 %v3506, %v3508
      %v3510 = vrot.slane %v3496, %v3509
      %v3511 = vcombine.high %v3503, %v3503
      %v3512 = vcombine.high %v3510, %v3510
      %v3513 = vcombine.high %v3015, %v3015
      %v3515 = vunpack.c.l.s4 1983009808
      %v3516 = vunpack.c.0.s8 %v3515
      %v3517 = vlaneseq
      %v3518 = vshrl.u32 %v3517, 7
      %v3519 = vsub.s32 %v3516, %v3518
      %v3520 = vrot.slane %v3015, %v3519
      %v3522 = vunpack.c.l.s4 1983009808
      %v3523 = vunpack.c.0.s8 %v3522
      %v3524 = vlaneseq
      %v3525 = vshrl.u32 %v3524, 7
      %v3526 = vsub.s32 %v3523, %v3525
      %v3527 = vrot.slane %v3513, %v3526
      %v3528 = vcombine.high %v3520, %v3520
      %v3529 = vcombine.high %v3527, %v3527
      %v3530 = vcombine.high %v3016, %v3016
      %v3532 = vunpack.c.l.s4 1983009808
      %v3533 = vunpack.c.0.s8 %v3532
      %v3534 = vlaneseq
      %v3535 = vshrl.u32 %v3534, 7
      %v3536 = vsub.s32 %v3533, %v3535
      %v3537 = vrot.slane %v3016, %v3536
      %v3539 = vunpack.c.l.s4 1983009808
      %v3540 = vunpack.c.0.s8 %v3539
      %v3541 = vlaneseq
      %v3542 = vshrl.u32 %v3541, 7
      %v3543 = vsub.s32 %v3540, %v3542
      %v3544 = vrot.slane %v3530, %v3543
      %v3545 = vcombine.high %v3537, %v3537
      %v3546 = vcombine.high %v3544, %v3544
      %v3547 = vcombine.high %v3017, %v3017
      %v3549 = vunpack.c.l.s4 1983009808
      %v3550 = vunpack.c.0.s8 %v3549
      %v3551 = vlaneseq
      %v3552 = vshrl.u32 %v3551, 7
      %v3553 = vsub.s32 %v3550, %v3552
      %v3554 = vrot.slane %v3017, %v3553
      %v3556 = vunpack.c.l.s4 1983009808
      %v3557 = vunpack.c.0.s8 %v3556
      %v3558 = vlaneseq
      %v3559 = vshrl.u32 %v3558, 7
      %v3560 = vsub.s32 %v3557, %v3559
      %v3561 = vrot.slane %v3547, %v3560
      %v3562 = vcombine.high %v3554, %v3554
      %v3563 = vcombine.high %v3561, %v3561
      %v3564 = vcombine.high %v3018, %v3018
      %v3566 = vunpack.c.l.s4 1983009808
      %v3567 = vunpack.c.0.s8 %v3566
      %v3568 = vlaneseq
      %v3569 = vshrl.u32 %v3568, 7
      %v3570 = vsub.s32 %v3567, %v3569
      %v3571 = vrot.slane %v3018, %v3570
      %v3573 = vunpack.c.l.s4 1983009808
      %v3574 = vunpack.c.0.s8 %v3573
      %v3575 = vlaneseq
      %v3576 = vshrl.u32 %v3575, 7
      %v3577 = vsub.s32 %v3574, %v3576
      %v3578 = vrot.slane %v3564, %v3577
      %v3579 = vcombine.high %v3571, %v3571
      %v3580 = vcombine.high %v3578, %v3578
      %v3581 = vcombine.high %v3019, %v3019
      %v3583 = vunpack.c.l.s4 1983009808
      %v3584 = vunpack.c.0.s8 %v3583
      %v3585 = vlaneseq
      %v3586 = vshrl.u32 %v3585, 7
      %v3587 = vsub.s32 %v3584, %v3586
      %v3588 = vrot.slane %v3019, %v3587
      %v3590 = vunpack.c.l.s4 1983009808
      %v3591 = vunpack.c.0.s8 %v3590
      %v3592 = vlaneseq
      %v3593 = vshrl.u32 %v3592, 7
      %v3594 = vsub.s32 %v3591, %v3593
      %v3595 = vrot.slane %v3581, %v3594
      %v3596 = vcombine.high %v3588, %v3588
      %v3597 = vcombine.high %v3595, %v3595
      %v3598 = vcombine.high %v3020, %v3020
      %v3600 = vunpack.c.l.s4 1983009808
      %v3601 = vunpack.c.0.s8 %v3600
      %v3602 = vlaneseq
      %v3603 = vshrl.u32 %v3602, 7
      %v3604 = vsub.s32 %v3601, %v3603
      %v3605 = vrot.slane %v3020, %v3604
      %v3607 = vunpack.c.l.s4 1983009808
      %v3608 = vunpack.c.0.s8 %v3607
      %v3609 = vlaneseq
      %v3610 = vshrl.u32 %v3609, 7
      %v3611 = vsub.s32 %v3608, %v3610
      %v3612 = vrot.slane %v3598, %v3611
      %v3613 = vcombine.high %v3605, %v3605
      %v3614 = vcombine.high %v3612, %v3612
      %v3615 = vcombine.high %v3021, %v3021
      %v3617 = vunpack.c.l.s4 1983009808
      %v3618 = vunpack.c.0.s8 %v3617
      %v3619 = vlaneseq
      %v3620 = vshrl.u32 %v3619, 7
      %v3621 = vsub.s32 %v3618, %v3620
      %v3622 = vrot.slane %v3021, %v3621
      %v3624 = vunpack.c.l.s4 1983009808
      %v3625 = vunpack.c.0.s8 %v3624
      %v3626 = vlaneseq
      %v3627 = vshrl.u32 %v3626, 7
      %v3628 = vsub.s32 %v3625, %v3627
      %v3629 = vrot.slane %v3615, %v3628
      %v3630 = vcombine.high %v3622, %v3622
      %v3631 = vcombine.high %v3629, %v3629
      %v3632 = vcombine.high %v3022, %v3022
      %v3634 = vunpack.c.l.s4 1983009808
      %v3635 = vunpack.c.0.s8 %v3634
      %v3636 = vlaneseq
      %v3637 = vshrl.u32 %v3636, 7
      %v3638 = vsub.s32 %v3635, %v3637
      %v3639 = vrot.slane %v3022, %v3638
      %v3641 = vunpack.c.l.s4 1983009808
      %v3642 = vunpack.c.0.s8 %v3641
      %v3643 = vlaneseq
      %v3644 = vshrl.u32 %v3643, 7
      %v3645 = vsub.s32 %v3642, %v3644
      %v3646 = vrot.slane %v3632, %v3645
      %v3647 = vcombine.high %v3639, %v3639
      %v3648 = vcombine.high %v3646, %v3646
      %v3649 = vcombine.high %v3023, %v3023
      %v3651 = vunpack.c.l.s4 1983009808
      %v3652 = vunpack.c.0.s8 %v3651
      %v3653 = vlaneseq
      %v3654 = vshrl.u32 %v3653, 7
      %v3655 = vsub.s32 %v3652, %v3654
      %v3656 = vrot.slane %v3023, %v3655
      %v3658 = vunpack.c.l.s4 1983009808
      %v3659 = vunpack.c.0.s8 %v3658
      %v3660 = vlaneseq
      %v3661 = vshrl.u32 %v3660, 7
      %v3662 = vsub.s32 %v3659, %v3661
      %v3663 = vrot.slane %v3649, %v3662
      %v3664 = vcombine.high %v3656, %v3656
      %v3665 = vcombine.high %v3663, %v3663
      %v3666 = vcombine.high %v3024, %v3024
      %v3668 = vunpack.c.l.s4 1983009808
      %v3669 = vunpack.c.0.s8 %v3668
      %v3670 = vlaneseq
      %v3671 = vshrl.u32 %v3670, 7
      %v3672 = vsub.s32 %v3669, %v3671
      %v3673 = vrot.slane %v3024, %v3672
      %v3675 = vunpack.c.l.s4 1983009808
      %v3676 = vunpack.c.0.s8 %v3675
      %v3677 = vlaneseq
      %v3678 = vshrl.u32 %v3677, 7
      %v3679 = vsub.s32 %v3676, %v3678
      %v3680 = vrot.slane %v3666, %v3679
      %v3681 = vcombine.high %v3673, %v3673
      %v3682 = vcombine.high %v3680, %v3680
      %v3683 = vcombine.high %v3025, %v3025
      %v3685 = vunpack.c.l.s4 1983009808
      %v3686 = vunpack.c.0.s8 %v3685
      %v3687 = vlaneseq
      %v3688 = vshrl.u32 %v3687, 7
      %v3689 = vsub.s32 %v3686, %v3688
      %v3690 = vrot.slane %v3025, %v3689
      %v3692 = vunpack.c.l.s4 1983009808
      %v3693 = vunpack.c.0.s8 %v3692
      %v3694 = vlaneseq
      %v3695 = vshrl.u32 %v3694, 7
      %v3696 = vsub.s32 %v3693, %v3695
      %v3697 = vrot.slane %v3683, %v3696
      %v3698 = vcombine.high %v3690, %v3690
      %v3699 = vcombine.high %v3697, %v3697
      %v3700 = vcombine.high %v3026, %v3026
      %v3702 = vunpack.c.l.s4 1983009808
      %v3703 = vunpack.c.0.s8 %v3702
      %v3704 = vlaneseq
      %v3705 = vshrl.u32 %v3704, 7
      %v3706 = vsub.s32 %v3703, %v3705
      %v3707 = vrot.slane %v3026, %v3706
      %v3709 = vunpack.c.l.s4 1983009808
      %v3710 = vunpack.c.0.s8 %v3709
      %v3711 = vlaneseq
      %v3712 = vshrl.u32 %v3711, 7
      %v3713 = vsub.s32 %v3710, %v3712
      %v3714 = vrot.slane %v3700, %v3713
      %v3715 = vcombine.high %v3707, %v3707
      %v3716 = vcombine.high %v3714, %v3714
      %v3717 = vcombine.high %v3027, %v3027
      %v3719 = vunpack.c.l.s4 1983009808
      %v3720 = vunpack.c.0.s8 %v3719
      %v3721 = vlaneseq
      %v3722 = vshrl.u32 %v3721, 7
      %v3723 = vsub.s32 %v3720, %v3722
      %v3724 = vrot.slane %v3027, %v3723
      %v3726 = vunpack.c.l.s4 1983009808
      %v3727 = vunpack.c.0.s8 %v3726
      %v3728 = vlaneseq
      %v3729 = vshrl.u32 %v3728, 7
      %v3730 = vsub.s32 %v3727, %v3729
      %v3731 = vrot.slane %v3717, %v3730
      %v3732 = vcombine.high %v3724, %v3724
      %v3733 = vcombine.high %v3731, %v3731
      %v3734 = vcombine.high %v3028, %v3028
      %v3736 = vunpack.c.l.s4 1983009808
      %v3737 = vunpack.c.0.s8 %v3736
      %v3738 = vlaneseq
      %v3739 = vshrl.u32 %v3738, 7
      %v3740 = vsub.s32 %v3737, %v3739
      %v3741 = vrot.slane %v3028, %v3740
      %v3743 = vunpack.c.l.s4 1983009808
      %v3744 = vunpack.c.0.s8 %v3743
      %v3745 = vlaneseq
      %v3746 = vshrl.u32 %v3745, 7
      %v3747 = vsub.s32 %v3744, %v3746
      %v3748 = vrot.slane %v3734, %v3747
      %v3749 = vcombine.high %v3741, %v3741
      %v3750 = vcombine.high %v3748, %v3748
      %v3752 = vunpack.c.l.s4 1983009808
      %v3753 = vunpack.c.0.s8 %v3752
      %v3754 = vlaneseq
      %v3755 = vshrl.u32 %v3754, 7
      %v3756 = vsub.s32 %v3753, %v3755
      %v3757 = vrot.slane %v3029, %v3756
      %v3758 = vcombine.high %v3757, %v3757
      %v3759 = vlaneseq
      %v3760 = vshrl.u32 %v3759, 7
      %v3761 = vadd.s32 %v3760, 8
      %v3762 = vadd.s32 %v3760, 16
      %vm3763 = vcmp.ge.s32.totalorder %v3760, 1
      %vm3764 = vcmp.ge.s32.totalorder %v3761, 1
      %vm3765 = vcmp.ge.s32.totalorder %v3762, 1
      %vm3766 = vmand 0, %vm3763
      %vm3767 = vmand 0, %vm3764
      %vm3768 = vmand 0, %vm3765
      %vm3769 = vmand 1, %vm3763
      %vm3770 = vmand 1, %vm3764
      %vm3771 = vmand 1, %vm3765
      %vm3772 = vcmp.le.s32.totalorder %v3760, 16
      %vm3773 = vcmp.le.s32.totalorder %v3761, 16
      %vm3774 = vcmp.le.s32.totalorder %v3762, 16
      %vm3775 = vmand %vm3766, %vm3772
      %vm3776 = vmand %vm3767, %vm3773
      %vm3777 = vmand %vm3768, %vm3774
      %vm3778 = vmand %vm3769, %vm3772
      %vm3779 = vmand %vm3770, %vm3773
      %vm3780 = vmand %vm3771, %vm3774
      %v3781 = vcombine.low %v3078, %v3086
      %v3782 = vcombine.low %v3085, %v3087
      %v3784 = vunpack.c.l.s4 1983009808
      %v3785 = vunpack.c.0.s8 %v3784
      %v3786 = vlaneseq
      %v3787 = vshrl.u32 %v3786, 7
      %v3788 = vsub.s32 %v3785, %v3787
      %v3789 = vrot.slane %v3781, %v3788
      %v3791 = vunpack.c.l.s4 1983009808
      %v3792 = vunpack.c.0.s8 %v3791
      %v3793 = vlaneseq
      %v3794 = vshrl.u32 %v3793, 7
      %v3795 = vsub.s32 %v3792, %v3794
      %v3796 = vrot.slane %v3782, %v3795
      %v3797 = vcombine.low %v3789, %v3796
      %v3798 = vcombine.low %v3095, %v3103
      %v3799 = vcombine.low %v3102, %v3104
      %v3801 = vunpack.c.l.s4 1983009808
      %v3802 = vunpack.c.0.s8 %v3801
      %v3803 = vlaneseq
      %v3804 = vshrl.u32 %v3803, 7
      %v3805 = vsub.s32 %v3802, %v3804
      %v3806 = vrot.slane %v3798, %v3805
      %v3808 = vunpack.c.l.s4 1983009808
      %v3809 = vunpack.c.0.s8 %v3808
      %v3810 = vlaneseq
      %v3811 = vshrl.u32 %v3810, 7
      %v3812 = vsub.s32 %v3809, %v3811
      %v3813 = vrot.slane %v3799, %v3812
      %v3814 = vcombine.low %v3806, %v3813
      %v3816 = vunpack.c.l.s4 1983009808
      %v3817 = vunpack.c.0.s8 %v3816
      %v3818 = vlaneseq
      %v3819 = vshrl.u32 %v3818, 7
      %v3820 = vsub.s32 %v3817, %v3819
      %v3821 = vrot.slane %v3112, %v3820
      %v3822 = vcombine.low %v3120, %v3119
      %v3823 = vcombine.low %v3121, %v3129
      %v3825 = vunpack.c.l.s4 1983009808
      %v3826 = vunpack.c.0.s8 %v3825
      %v3827 = vlaneseq
      %v3828 = vshrl.u32 %v3827, 7
      %v3829 = vsub.s32 %v3826, %v3828
      %v3830 = vrot.slane %v3822, %v3829
      %v3832 = vunpack.c.l.s4 1983009808
      %v3833 = vunpack.c.0.s8 %v3832
      %v3834 = vlaneseq
      %v3835 = vshrl.u32 %v3834, 7
      %v3836 = vsub.s32 %v3833, %v3835
      %v3837 = vrot.slane %v3823, %v3836
      %v3838 = vcombine.low %v3830, %v3837
      %v3839 = vcombine.low %v3137, %v3136
      %v3840 = vcombine.low %v3138, %v3146
      %v3842 = vunpack.c.l.s4 1983009808
      %v3843 = vunpack.c.0.s8 %v3842
      %v3844 = vlaneseq
      %v3845 = vshrl.u32 %v3844, 7
      %v3846 = vsub.s32 %v3843, %v3845
      %v3847 = vrot.slane %v3839, %v3846
      %v3849 = vunpack.c.l.s4 1983009808
      %v3850 = vunpack.c.0.s8 %v3849
      %v3851 = vlaneseq
      %v3852 = vshrl.u32 %v3851, 7
      %v3853 = vsub.s32 %v3850, %v3852
      %v3854 = vrot.slane %v3840, %v3853
      %v3855 = vcombine.low %v3847, %v3854
      %v3857 = vunpack.c.l.s4 1983009808
      %v3858 = vunpack.c.0.s8 %v3857
      %v3859 = vlaneseq
      %v3860 = vshrl.u32 %v3859, 7
      %v3861 = vsub.s32 %v3858, %v3860
      %v3862 = vrot.slane %v3154, %v3861
      %v3863 = vcombine.low %v3153, %v3155
      %v3864 = vcombine.low %v3163, %v3171
      %v3866 = vunpack.c.l.s4 1983009808
      %v3867 = vunpack.c.0.s8 %v3866
      %v3868 = vlaneseq
      %v3869 = vshrl.u32 %v3868, 7
      %v3870 = vsub.s32 %v3867, %v3869
      %v3871 = vrot.slane %v3863, %v3870
      %v3873 = vunpack.c.l.s4 1983009808
      %v3874 = vunpack.c.0.s8 %v3873
      %v3875 = vlaneseq
      %v3876 = vshrl.u32 %v3875, 7
      %v3877 = vsub.s32 %v3874, %v3876
      %v3878 = vrot.slane %v3864, %v3877
      %v3879 = vcombine.low %v3871, %v3878
      %v3880 = vcombine.low %v3170, %v3172
      %v3881 = vcombine.low %v3180, %v3188
      %v3883 = vunpack.c.l.s4 1983009808
      %v3884 = vunpack.c.0.s8 %v3883
      %v3885 = vlaneseq
      %v3886 = vshrl.u32 %v3885, 7
      %v3887 = vsub.s32 %v3884, %v3886
      %v3888 = vrot.slane %v3880, %v3887
      %v3890 = vunpack.c.l.s4 1983009808
      %v3891 = vunpack.c.0.s8 %v3890
      %v3892 = vlaneseq
      %v3893 = vshrl.u32 %v3892, 7
      %v3894 = vsub.s32 %v3891, %v3893
      %v3895 = vrot.slane %v3881, %v3894
      %v3896 = vcombine.low %v3888, %v3895
      %v3898 = vunpack.c.l.s4 1983009808
      %v3899 = vunpack.c.0.s8 %v3898
      %v3900 = vlaneseq
      %v3901 = vshrl.u32 %v3900, 7
      %v3902 = vsub.s32 %v3899, %v3901
      %v3903 = vrot.slane %v3187, %v3902
      %v3904 = vcombine.low %v3189, %v3197
      %v3905 = vcombine.low %v3205, %v3204
      %v3907 = vunpack.c.l.s4 1983009808
      %v3908 = vunpack.c.0.s8 %v3907
      %v3909 = vlaneseq
      %v3910 = vshrl.u32 %v3909, 7
      %v3911 = vsub.s32 %v3908, %v3910
      %v3912 = vrot.slane %v3904, %v3911
      %v3914 = vunpack.c.l.s4 1983009808
      %v3915 = vunpack.c.0.s8 %v3914
      %v3916 = vlaneseq
      %v3917 = vshrl.u32 %v3916, 7
      %v3918 = vsub.s32 %v3915, %v3917
      %v3919 = vrot.slane %v3905, %v3918
      %v3920 = vcombine.low %v3912, %v3919
      %v3921 = vcombine.low %v3206, %v3214
      %v3922 = vcombine.low %v3222, %v3221
      %v3924 = vunpack.c.l.s4 1983009808
      %v3925 = vunpack.c.0.s8 %v3924
      %v3926 = vlaneseq
      %v3927 = vshrl.u32 %v3926, 7
      %v3928 = vsub.s32 %v3925, %v3927
      %v3929 = vrot.slane %v3921, %v3928
      %v3931 = vunpack.c.l.s4 1983009808
      %v3932 = vunpack.c.0.s8 %v3931
      %v3933 = vlaneseq
      %v3934 = vshrl.u32 %v3933, 7
      %v3935 = vsub.s32 %v3932, %v3934
      %v3936 = vrot.slane %v3922, %v3935
      %v3937 = vcombine.low %v3929, %v3936
      %v3939 = vunpack.c.l.s4 1983009808
      %v3940 = vunpack.c.0.s8 %v3939
      %v3941 = vlaneseq
      %v3942 = vshrl.u32 %v3941, 7
      %v3943 = vsub.s32 %v3940, %v3942
      %v3944 = vrot.slane %v3223, %v3943
      %v3945 = vcombine.low %v3231, %v3239
      %v3946 = vcombine.low %v3238, %v3240
      %v3948 = vunpack.c.l.s4 1983009808
      %v3949 = vunpack.c.0.s8 %v3948
      %v3950 = vlaneseq
      %v3951 = vshrl.u32 %v3950, 7
      %v3952 = vsub.s32 %v3949, %v3951
      %v3953 = vrot.slane %v3945, %v3952
      %v3955 = vunpack.c.l.s4 1983009808
      %v3956 = vunpack.c.0.s8 %v3955
      %v3957 = vlaneseq
      %v3958 = vshrl.u32 %v3957, 7
      %v3959 = vsub.s32 %v3956, %v3958
      %v3960 = vrot.slane %v3946, %v3959
      %v3961 = vcombine.low %v3953, %v3960
      %v3962 = vcombine.low %v3248, %v3256
      %v3963 = vcombine.low %v3255, %v3257
      %v3965 = vunpack.c.l.s4 1983009808
      %v3966 = vunpack.c.0.s8 %v3965
      %v3967 = vlaneseq
      %v3968 = vshrl.u32 %v3967, 7
      %v3969 = vsub.s32 %v3966, %v3968
      %v3970 = vrot.slane %v3962, %v3969
      %v3972 = vunpack.c.l.s4 1983009808
      %v3973 = vunpack.c.0.s8 %v3972
      %v3974 = vlaneseq
      %v3975 = vshrl.u32 %v3974, 7
      %v3976 = vsub.s32 %v3973, %v3975
      %v3977 = vrot.slane %v3963, %v3976
      %v3978 = vcombine.low %v3970, %v3977
      %v3980 = vunpack.c.l.s4 1983009808
      %v3981 = vunpack.c.0.s8 %v3980
      %v3982 = vlaneseq
      %v3983 = vshrl.u32 %v3982, 7
      %v3984 = vsub.s32 %v3981, %v3983
      %v3985 = vrot.slane %v3265, %v3984
      %v3986 = vcombine.low %v3273, %v3272
      %v3987 = vcombine.low %v3274, %v3282
      %v3989 = vunpack.c.l.s4 1983009808
      %v3990 = vunpack.c.0.s8 %v3989
      %v3991 = vlaneseq
      %v3992 = vshrl.u32 %v3991, 7
      %v3993 = vsub.s32 %v3990, %v3992
      %v3994 = vrot.slane %v3986, %v3993
      %v3996 = vunpack.c.l.s4 1983009808
      %v3997 = vunpack.c.0.s8 %v3996
      %v3998 = vlaneseq
      %v3999 = vshrl.u32 %v3998, 7
      %v4000 = vsub.s32 %v3997, %v3999
      %v4001 = vrot.slane %v3987, %v4000
      %v4002 = vcombine.low %v3994, %v4001
      %v4003 = vcombine.low %v3290, %v3289
      %v4004 = vcombine.low %v3291, %v3299
      %v4006 = vunpack.c.l.s4 1983009808
      %v4007 = vunpack.c.0.s8 %v4006
      %v4008 = vlaneseq
      %v4009 = vshrl.u32 %v4008, 7
      %v4010 = vsub.s32 %v4007, %v4009
      %v4011 = vrot.slane %v4003, %v4010
      %v4013 = vunpack.c.l.s4 1983009808
      %v4014 = vunpack.c.0.s8 %v4013
      %v4015 = vlaneseq
      %v4016 = vshrl.u32 %v4015, 7
      %v4017 = vsub.s32 %v4014, %v4016
      %v4018 = vrot.slane %v4004, %v4017
      %v4019 = vcombine.low %v4011, %v4018
      %v4021 = vunpack.c.l.s4 1983009808
      %v4022 = vunpack.c.0.s8 %v4021
      %v4023 = vlaneseq
      %v4024 = vshrl.u32 %v4023, 7
      %v4025 = vsub.s32 %v4022, %v4024
      %v4026 = vrot.slane %v3307, %v4025
      %v4027 = vcombine.low %v3306, %v3308
      %v4028 = vcombine.low %v3316, %v3324
      %v4030 = vunpack.c.l.s4 1983009808
      %v4031 = vunpack.c.0.s8 %v4030
      %v4032 = vlaneseq
      %v4033 = vshrl.u32 %v4032, 7
      %v4034 = vsub.s32 %v4031, %v4033
      %v4035 = vrot.slane %v4027, %v4034
      %v4037 = vunpack.c.l.s4 1983009808
      %v4038 = vunpack.c.0.s8 %v4037
      %v4039 = vlaneseq
      %v4040 = vshrl.u32 %v4039, 7
      %v4041 = vsub.s32 %v4038, %v4040
      %v4042 = vrot.slane %v4028, %v4041
      %v4043 = vcombine.low %v4035, %v4042
      %v4044 = vcombine.low %v3323, %v3325
      %v4045 = vcombine.low %v3333, %v3341
      %v4047 = vunpack.c.l.s4 1983009808
      %v4048 = vunpack.c.0.s8 %v4047
      %v4049 = vlaneseq
      %v4050 = vshrl.u32 %v4049, 7
      %v4051 = vsub.s32 %v4048, %v4050
      %v4052 = vrot.slane %v4044, %v4051
      %v4054 = vunpack.c.l.s4 1983009808
      %v4055 = vunpack.c.0.s8 %v4054
      %v4056 = vlaneseq
      %v4057 = vshrl.u32 %v4056, 7
      %v4058 = vsub.s32 %v4055, %v4057
      %v4059 = vrot.slane %v4045, %v4058
      %v4060 = vcombine.low %v4052, %v4059
      %v4062 = vunpack.c.l.s4 1983009808
      %v4063 = vunpack.c.0.s8 %v4062
      %v4064 = vlaneseq
      %v4065 = vshrl.u32 %v4064, 7
      %v4066 = vsub.s32 %v4063, %v4065
      %v4067 = vrot.slane %v3340, %v4066
      %v4068 = vcombine.low %v3342, %v3350
      %v4069 = vcombine.low %v3358, %v3357
      %v4071 = vunpack.c.l.s4 1983009808
      %v4072 = vunpack.c.0.s8 %v4071
      %v4073 = vlaneseq
      %v4074 = vshrl.u32 %v4073, 7
      %v4075 = vsub.s32 %v4072, %v4074
      %v4076 = vrot.slane %v4068, %v4075
      %v4078 = vunpack.c.l.s4 1983009808
      %v4079 = vunpack.c.0.s8 %v4078
      %v4080 = vlaneseq
      %v4081 = vshrl.u32 %v4080, 7
      %v4082 = vsub.s32 %v4079, %v4081
      %v4083 = vrot.slane %v4069, %v4082
      %v4084 = vcombine.low %v4076, %v4083
      %v4085 = vcombine.low %v3359, %v3367
      %v4086 = vcombine.low %v3375, %v3374
      %v4088 = vunpack.c.l.s4 1983009808
      %v4089 = vunpack.c.0.s8 %v4088
      %v4090 = vlaneseq
      %v4091 = vshrl.u32 %v4090, 7
      %v4092 = vsub.s32 %v4089, %v4091
      %v4093 = vrot.slane %v4085, %v4092
      %v4095 = vunpack.c.l.s4 1983009808
      %v4096 = vunpack.c.0.s8 %v4095
      %v4097 = vlaneseq
      %v4098 = vshrl.u32 %v4097, 7
      %v4099 = vsub.s32 %v4096, %v4098
      %v4100 = vrot.slane %v4086, %v4099
      %v4101 = vcombine.low %v4093, %v4100
      %v4103 = vunpack.c.l.s4 1983009808
      %v4104 = vunpack.c.0.s8 %v4103
      %v4105 = vlaneseq
      %v4106 = vshrl.u32 %v4105, 7
      %v4107 = vsub.s32 %v4104, %v4106
      %v4108 = vrot.slane %v3376, %v4107
      %v4109 = vcombine.low %v3384, %v3392
      %v4110 = vcombine.low %v3391, %v3393
      %v4112 = vunpack.c.l.s4 1983009808
      %v4113 = vunpack.c.0.s8 %v4112
      %v4114 = vlaneseq
      %v4115 = vshrl.u32 %v4114, 7
      %v4116 = vsub.s32 %v4113, %v4115
      %v4117 = vrot.slane %v4109, %v4116
      %v4119 = vunpack.c.l.s4 1983009808
      %v4120 = vunpack.c.0.s8 %v4119
      %v4121 = vlaneseq
      %v4122 = vshrl.u32 %v4121, 7
      %v4123 = vsub.s32 %v4120, %v4122
      %v4124 = vrot.slane %v4110, %v4123
      %v4125 = vcombine.low %v4117, %v4124
      %v4126 = vcombine.low %v3401, %v3409
      %v4127 = vcombine.low %v3408, %v3410
      %v4129 = vunpack.c.l.s4 1983009808
      %v4130 = vunpack.c.0.s8 %v4129
      %v4131 = vlaneseq
      %v4132 = vshrl.u32 %v4131, 7
      %v4133 = vsub.s32 %v4130, %v4132
      %v4134 = vrot.slane %v4126, %v4133
      %v4136 = vunpack.c.l.s4 1983009808
      %v4137 = vunpack.c.0.s8 %v4136
      %v4138 = vlaneseq
      %v4139 = vshrl.u32 %v4138, 7
      %v4140 = vsub.s32 %v4137, %v4139
      %v4141 = vrot.slane %v4127, %v4140
      %v4142 = vcombine.low %v4134, %v4141
      %v4144 = vunpack.c.l.s4 1983009808
      %v4145 = vunpack.c.0.s8 %v4144
      %v4146 = vlaneseq
      %v4147 = vshrl.u32 %v4146, 7
      %v4148 = vsub.s32 %v4145, %v4147
      %v4149 = vrot.slane %v3418, %v4148
      %v4150 = vcombine.low %v3426, %v3425
      %v4151 = vcombine.low %v3427, %v3435
      %v4153 = vunpack.c.l.s4 1983009808
      %v4154 = vunpack.c.0.s8 %v4153
      %v4155 = vlaneseq
      %v4156 = vshrl.u32 %v4155, 7
      %v4157 = vsub.s32 %v4154, %v4156
      %v4158 = vrot.slane %v4150, %v4157
      %v4160 = vunpack.c.l.s4 1983009808
      %v4161 = vunpack.c.0.s8 %v4160
      %v4162 = vlaneseq
      %v4163 = vshrl.u32 %v4162, 7
      %v4164 = vsub.s32 %v4161, %v4163
      %v4165 = vrot.slane %v4151, %v4164
      %v4166 = vcombine.low %v4158, %v4165
      %v4167 = vcombine.low %v3443, %v3442
      %v4168 = vcombine.low %v3444, %v3452
      %v4170 = vunpack.c.l.s4 1983009808
      %v4171 = vunpack.c.0.s8 %v4170
      %v4172 = vlaneseq
      %v4173 = vshrl.u32 %v4172, 7
      %v4174 = vsub.s32 %v4171, %v4173
      %v4175 = vrot.slane %v4167, %v4174
      %v4177 = vunpack.c.l.s4 1983009808
      %v4178 = vunpack.c.0.s8 %v4177
      %v4179 = vlaneseq
      %v4180 = vshrl.u32 %v4179, 7
      %v4181 = vsub.s32 %v4178, %v4180
      %v4182 = vrot.slane %v4168, %v4181
      %v4183 = vcombine.low %v4175, %v4182
      %v4185 = vunpack.c.l.s4 1983009808
      %v4186 = vunpack.c.0.s8 %v4185
      %v4187 = vlaneseq
      %v4188 = vshrl.u32 %v4187, 7
      %v4189 = vsub.s32 %v4186, %v4188
      %v4190 = vrot.slane %v3460, %v4189
      %v4191 = vcombine.low %v3459, %v3461
      %v4192 = vcombine.low %v3469, %v3477
      %v4194 = vunpack.c.l.s4 1983009808
      %v4195 = vunpack.c.0.s8 %v4194
      %v4196 = vlaneseq
      %v4197 = vshrl.u32 %v4196, 7
      %v4198 = vsub.s32 %v4195, %v4197
      %v4199 = vrot.slane %v4191, %v4198
      %v4201 = vunpack.c.l.s4 1983009808
      %v4202 = vunpack.c.0.s8 %v4201
      %v4203 = vlaneseq
      %v4204 = vshrl.u32 %v4203, 7
      %v4205 = vsub.s32 %v4202, %v4204
      %v4206 = vrot.slane %v4192, %v4205
      %v4207 = vcombine.low %v4199, %v4206
      %v4208 = vcombine.low %v3476, %v3478
      %v4209 = vcombine.low %v3486, %v3494
      %v4211 = vunpack.c.l.s4 1983009808
      %v4212 = vunpack.c.0.s8 %v4211
      %v4213 = vlaneseq
      %v4214 = vshrl.u32 %v4213, 7
      %v4215 = vsub.s32 %v4212, %v4214
      %v4216 = vrot.slane %v4208, %v4215
      %v4218 = vunpack.c.l.s4 1983009808
      %v4219 = vunpack.c.0.s8 %v4218
      %v4220 = vlaneseq
      %v4221 = vshrl.u32 %v4220, 7
      %v4222 = vsub.s32 %v4219, %v4221
      %v4223 = vrot.slane %v4209, %v4222
      %v4224 = vcombine.low %v4216, %v4223
      %v4226 = vunpack.c.l.s4 1983009808
      %v4227 = vunpack.c.0.s8 %v4226
      %v4228 = vlaneseq
      %v4229 = vshrl.u32 %v4228, 7
      %v4230 = vsub.s32 %v4227, %v4229
      %v4231 = vrot.slane %v3493, %v4230
      %v4232 = vcombine.low %v3495, %v3503
      %v4233 = vcombine.low %v3511, %v3510
      %v4235 = vunpack.c.l.s4 1983009808
      %v4236 = vunpack.c.0.s8 %v4235
      %v4237 = vlaneseq
      %v4238 = vshrl.u32 %v4237, 7
      %v4239 = vsub.s32 %v4236, %v4238
      %v4240 = vrot.slane %v4232, %v4239
      %v4242 = vunpack.c.l.s4 1983009808
      %v4243 = vunpack.c.0.s8 %v4242
      %v4244 = vlaneseq
      %v4245 = vshrl.u32 %v4244, 7
      %v4246 = vsub.s32 %v4243, %v4245
      %v4247 = vrot.slane %v4233, %v4246
      %v4248 = vcombine.low %v4240, %v4247
      %v4249 = vcombine.low %v3512, %v3520
      %v4250 = vcombine.low %v3528, %v3527
      %v4252 = vunpack.c.l.s4 1983009808
      %v4253 = vunpack.c.0.s8 %v4252
      %v4254 = vlaneseq
      %v4255 = vshrl.u32 %v4254, 7
      %v4256 = vsub.s32 %v4253, %v4255
      %v4257 = vrot.slane %v4249, %v4256
      %v4259 = vunpack.c.l.s4 1983009808
      %v4260 = vunpack.c.0.s8 %v4259
      %v4261 = vlaneseq
      %v4262 = vshrl.u32 %v4261, 7
      %v4263 = vsub.s32 %v4260, %v4262
      %v4264 = vrot.slane %v4250, %v4263
      %v4265 = vcombine.low %v4257, %v4264
      %v4267 = vunpack.c.l.s4 1983009808
      %v4268 = vunpack.c.0.s8 %v4267
      %v4269 = vlaneseq
      %v4270 = vshrl.u32 %v4269, 7
      %v4271 = vsub.s32 %v4268, %v4270
      %v4272 = vrot.slane %v3529, %v4271
      %v4273 = vcombine.low %v3537, %v3545
      %v4274 = vcombine.low %v3544, %v3546
      %v4276 = vunpack.c.l.s4 1983009808
      %v4277 = vunpack.c.0.s8 %v4276
      %v4278 = vlaneseq
      %v4279 = vshrl.u32 %v4278, 7
      %v4280 = vsub.s32 %v4277, %v4279
      %v4281 = vrot.slane %v4273, %v4280
      %v4283 = vunpack.c.l.s4 1983009808
      %v4284 = vunpack.c.0.s8 %v4283
      %v4285 = vlaneseq
      %v4286 = vshrl.u32 %v4285, 7
      %v4287 = vsub.s32 %v4284, %v4286
      %v4288 = vrot.slane %v4274, %v4287
      %v4289 = vcombine.low %v4281, %v4288
      %v4290 = vcombine.low %v3554, %v3562
      %v4291 = vcombine.low %v3561, %v3563
      %v4293 = vunpack.c.l.s4 1983009808
      %v4294 = vunpack.c.0.s8 %v4293
      %v4295 = vlaneseq
      %v4296 = vshrl.u32 %v4295, 7
      %v4297 = vsub.s32 %v4294, %v4296
      %v4298 = vrot.slane %v4290, %v4297
      %v4300 = vunpack.c.l.s4 1983009808
      %v4301 = vunpack.c.0.s8 %v4300
      %v4302 = vlaneseq
      %v4303 = vshrl.u32 %v4302, 7
      %v4304 = vsub.s32 %v4301, %v4303
      %v4305 = vrot.slane %v4291, %v4304
      %v4306 = vcombine.low %v4298, %v4305
      %v4308 = vunpack.c.l.s4 1983009808
      %v4309 = vunpack.c.0.s8 %v4308
      %v4310 = vlaneseq
      %v4311 = vshrl.u32 %v4310, 7
      %v4312 = vsub.s32 %v4309, %v4311
      %v4313 = vrot.slane %v3571, %v4312
      %v4314 = vcombine.low %v3579, %v3578
      %v4315 = vcombine.low %v3580, %v3588
      %v4317 = vunpack.c.l.s4 1983009808
      %v4318 = vunpack.c.0.s8 %v4317
      %v4319 = vlaneseq
      %v4320 = vshrl.u32 %v4319, 7
      %v4321 = vsub.s32 %v4318, %v4320
      %v4322 = vrot.slane %v4314, %v4321
      %v4324 = vunpack.c.l.s4 1983009808
      %v4325 = vunpack.c.0.s8 %v4324
      %v4326 = vlaneseq
      %v4327 = vshrl.u32 %v4326, 7
      %v4328 = vsub.s32 %v4325, %v4327
      %v4329 = vrot.slane %v4315, %v4328
      %v4330 = vcombine.low %v4322, %v4329
      %v4331 = vcombine.low %v3596, %v3595
      %v4332 = vcombine.low %v3597, %v3605
      %v4334 = vunpack.c.l.s4 1983009808
      %v4335 = vunpack.c.0.s8 %v4334
      %v4336 = vlaneseq
      %v4337 = vshrl.u32 %v4336, 7
      %v4338 = vsub.s32 %v4335, %v4337
      %v4339 = vrot.slane %v4331, %v4338
      %v4341 = vunpack.c.l.s4 1983009808
      %v4342 = vunpack.c.0.s8 %v4341
      %v4343 = vlaneseq
      %v4344 = vshrl.u32 %v4343, 7
      %v4345 = vsub.s32 %v4342, %v4344
      %v4346 = vrot.slane %v4332, %v4345
      %v4347 = vcombine.low %v4339, %v4346
      %v4349 = vunpack.c.l.s4 1983009808
      %v4350 = vunpack.c.0.s8 %v4349
      %v4351 = vlaneseq
      %v4352 = vshrl.u32 %v4351, 7
      %v4353 = vsub.s32 %v4350, %v4352
      %v4354 = vrot.slane %v3613, %v4353
      %v4355 = vcombine.low %v3612, %v3614
      %v4356 = vcombine.low %v3622, %v3630
      %v4358 = vunpack.c.l.s4 1983009808
      %v4359 = vunpack.c.0.s8 %v4358
      %v4360 = vlaneseq
      %v4361 = vshrl.u32 %v4360, 7
      %v4362 = vsub.s32 %v4359, %v4361
      %v4363 = vrot.slane %v4355, %v4362
      %v4365 = vunpack.c.l.s4 1983009808
      %v4366 = vunpack.c.0.s8 %v4365
      %v4367 = vlaneseq
      %v4368 = vshrl.u32 %v4367, 7
      %v4369 = vsub.s32 %v4366, %v4368
      %v4370 = vrot.slane %v4356, %v4369
      %v4371 = vcombine.low %v4363, %v4370
      %v4372 = vcombine.low %v3629, %v3631
      %v4373 = vcombine.low %v3639, %v3647
      %v4375 = vunpack.c.l.s4 1983009808
      %v4376 = vunpack.c.0.s8 %v4375
      %v4377 = vlaneseq
      %v4378 = vshrl.u32 %v4377, 7
      %v4379 = vsub.s32 %v4376, %v4378
      %v4380 = vrot.slane %v4372, %v4379
      %v4382 = vunpack.c.l.s4 1983009808
      %v4383 = vunpack.c.0.s8 %v4382
      %v4384 = vlaneseq
      %v4385 = vshrl.u32 %v4384, 7
      %v4386 = vsub.s32 %v4383, %v4385
      %v4387 = vrot.slane %v4373, %v4386
      %v4388 = vcombine.low %v4380, %v4387
      %v4390 = vunpack.c.l.s4 1983009808
      %v4391 = vunpack.c.0.s8 %v4390
      %v4392 = vlaneseq
      %v4393 = vshrl.u32 %v4392, 7
      %v4394 = vsub.s32 %v4391, %v4393
      %v4395 = vrot.slane %v3646, %v4394
      %v4396 = vcombine.low %v3648, %v3656
      %v4397 = vcombine.low %v3664, %v3663
      %v4399 = vunpack.c.l.s4 1983009808
      %v4400 = vunpack.c.0.s8 %v4399
      %v4401 = vlaneseq
      %v4402 = vshrl.u32 %v4401, 7
      %v4403 = vsub.s32 %v4400, %v4402
      %v4404 = vrot.slane %v4396, %v4403
      %v4406 = vunpack.c.l.s4 1983009808
      %v4407 = vunpack.c.0.s8 %v4406
      %v4408 = vlaneseq
      %v4409 = vshrl.u32 %v4408, 7
      %v4410 = vsub.s32 %v4407, %v4409
      %v4411 = vrot.slane %v4397, %v4410
      %v4412 = vcombine.low %v4404, %v4411
      %v4413 = vcombine.low %v3665, %v3673
      %v4414 = vcombine.low %v3681, %v3680
      %v4416 = vunpack.c.l.s4 1983009808
      %v4417 = vunpack.c.0.s8 %v4416
      %v4418 = vlaneseq
      %v4419 = vshrl.u32 %v4418, 7
      %v4420 = vsub.s32 %v4417, %v4419
      %v4421 = vrot.slane %v4413, %v4420
      %v4423 = vunpack.c.l.s4 1983009808
      %v4424 = vunpack.c.0.s8 %v4423
      %v4425 = vlaneseq
      %v4426 = vshrl.u32 %v4425, 7
      %v4427 = vsub.s32 %v4424, %v4426
      %v4428 = vrot.slane %v4414, %v4427
      %v4429 = vcombine.low %v4421, %v4428
      %v4431 = vunpack.c.l.s4 1983009808
      %v4432 = vunpack.c.0.s8 %v4431
      %v4433 = vlaneseq
      %v4434 = vshrl.u32 %v4433, 7
      %v4435 = vsub.s32 %v4432, %v4434
      %v4436 = vrot.slane %v3682, %v4435
      %v4437 = vcombine.low %v3690, %v3698
      %v4438 = vcombine.low %v3697, %v3699
      %v4440 = vunpack.c.l.s4 1983009808
      %v4441 = vunpack.c.0.s8 %v4440
      %v4442 = vlaneseq
      %v4443 = vshrl.u32 %v4442, 7
      %v4444 = vsub.s32 %v4441, %v4443
      %v4445 = vrot.slane %v4437, %v4444
      %v4447 = vunpack.c.l.s4 1983009808
      %v4448 = vunpack.c.0.s8 %v4447
      %v4449 = vlaneseq
      %v4450 = vshrl.u32 %v4449, 7
      %v4451 = vsub.s32 %v4448, %v4450
      %v4452 = vrot.slane %v4438, %v4451
      %v4453 = vcombine.low %v4445, %v4452
      %v4454 = vcombine.low %v3707, %v3715
      %v4455 = vcombine.low %v3714, %v3716
      %v4457 = vunpack.c.l.s4 1983009808
      %v4458 = vunpack.c.0.s8 %v4457
      %v4459 = vlaneseq
      %v4460 = vshrl.u32 %v4459, 7
      %v4461 = vsub.s32 %v4458, %v4460
      %v4462 = vrot.slane %v4454, %v4461
      %v4464 = vunpack.c.l.s4 1983009808
      %v4465 = vunpack.c.0.s8 %v4464
      %v4466 = vlaneseq
      %v4467 = vshrl.u32 %v4466, 7
      %v4468 = vsub.s32 %v4465, %v4467
      %v4469 = vrot.slane %v4455, %v4468
      %v4470 = vcombine.low %v4462, %v4469
      %v4472 = vunpack.c.l.s4 1983009808
      %v4473 = vunpack.c.0.s8 %v4472
      %v4474 = vlaneseq
      %v4475 = vshrl.u32 %v4474, 7
      %v4476 = vsub.s32 %v4473, %v4475
      %v4477 = vrot.slane %v3724, %v4476
      %v4478 = vcombine.low %v3732, %v3731
      %v4479 = vcombine.low %v3733, %v3741
      %v4481 = vunpack.c.l.s4 1983009808
      %v4482 = vunpack.c.0.s8 %v4481
      %v4483 = vlaneseq
      %v4484 = vshrl.u32 %v4483, 7
      %v4485 = vsub.s32 %v4482, %v4484
      %v4486 = vrot.slane %v4478, %v4485
      %v4488 = vunpack.c.l.s4 1983009808
      %v4489 = vunpack.c.0.s8 %v4488
      %v4490 = vlaneseq
      %v4491 = vshrl.u32 %v4490, 7
      %v4492 = vsub.s32 %v4489, %v4491
      %v4493 = vrot.slane %v4479, %v4492
      %v4494 = vcombine.low %v4486, %v4493
      %v4495 = vcombine.low %v3749, %v3748
      %v4496 = vcombine.low %v3750, %v3757
      %v4498 = vunpack.c.l.s4 1983009808
      %v4499 = vunpack.c.0.s8 %v4498
      %v4500 = vlaneseq
      %v4501 = vshrl.u32 %v4500, 7
      %v4502 = vsub.s32 %v4499, %v4501
      %v4503 = vrot.slane %v4495, %v4502
      %v4505 = vunpack.c.l.s4 1983009808
      %v4506 = vunpack.c.0.s8 %v4505
      %v4507 = vlaneseq
      %v4508 = vshrl.u32 %v4507, 7
      %v4509 = vsub.s32 %v4506, %v4508
      %v4510 = vrot.slane %v4496, %v4509
      %v4511 = vcombine.low %v4503, %v4510
      %v4513 = vunpack.c.l.s4 1983009808
      %v4514 = vunpack.c.0.s8 %v4513
      %v4515 = vlaneseq
      %v4516 = vshrl.u32 %v4515, 7
      %v4517 = vsub.s32 %v4514, %v4516
      %v4518 = vrot.slane %v3758, %v4517
      %v4573 = vsel %vm3775, %v3797, 0.0
      %v4574 = vsel %vm3776, %v3814, 0.0
      %v4575 = vsel %vm3777, %v3821, 0.0
      %v4576 = vsel %vm3778, %v3838, 0.0
      %v4577 = vsel %vm3779, %v3855, 0.0
      %v4578 = vsel %vm3780, %v3862, 0.0
      %v4579 = vsel %vm3778, %v3879, 0.0
      %v4580 = vsel %vm3779, %v3896, 0.0
      %v4581 = vsel %vm3780, %v3903, 0.0
      %v4582 = vsel %vm3778, %v3920, 0.0
      %v4583 = vsel %vm3779, %v3937, 0.0
      %v4584 = vsel %vm3780, %v3944, 0.0
      %v4585 = vsel %vm3778, %v3961, 0.0
      %v4586 = vsel %vm3779, %v3978, 0.0
      %v4587 = vsel %vm3780, %v3985, 0.0
      %v4588 = vsel %vm3778, %v4002, 0.0
      %v4589 = vsel %vm3779, %v4019, 0.0
      %v4590 = vsel %vm3780, %v4026, 0.0
      %v4591 = vsel %vm3778, %v4043, 0.0
      %v4592 = vsel %vm3779, %v4060, 0.0
      %v4593 = vsel %vm3780, %v4067, 0.0
      %v4594 = vsel %vm3778, %v4084, 0.0
      %v4595 = vsel %vm3779, %v4101, 0.0
      %v4596 = vsel %vm3780, %v4108, 0.0
      %v4597 = vsel %vm3778, %v4125, 0.0
      %v4598 = vsel %vm3779, %v4142, 0.0
      %v4599 = vsel %vm3780, %v4149, 0.0
      %v4600 = vsel %vm3778, %v4166, 0.0
      %v4601 = vsel %vm3779, %v4183, 0.0
      %v4602 = vsel %vm3780, %v4190, 0.0
      %v4603 = vsel %vm3778, %v4207, 0.0
      %v4604 = vsel %vm3779, %v4224, 0.0
      %v4605 = vsel %vm3780, %v4231, 0.0
      %v4606 = vsel %vm3778, %v4248, 0.0
      %v4607 = vsel %vm3779, %v4265, 0.0
      %v4608 = vsel %vm3780, %v4272, 0.0
      %v4609 = vsel %vm3778, %v4289, 0.0
      %v4610 = vsel %vm3779, %v4306, 0.0
      %v4611 = vsel %vm3780, %v4313, 0.0
      %v4612 = vsel %vm3778, %v4330, 0.0
      %v4613 = vsel %vm3779, %v4347, 0.0
      %v4614 = vsel %vm3780, %v4354, 0.0
      %v4615 = vsel %vm3778, %v4371, 0.0
      %v4616 = vsel %vm3779, %v4388, 0.0
      %v4617 = vsel %vm3780, %v4395, 0.0
      %v4618 = vsel %vm3778, %v4412, 0.0
      %v4619 = vsel %vm3779, %v4429, 0.0
      %v4620 = vsel %vm3780, %v4436, 0.0
      %v4621 = vsel %vm3778, %v4453, 0.0
      %v4622 = vsel %vm3779, %v4470, 0.0
      %v4623 = vsel %vm3780, %v4477, 0.0
      %v4624 = vsel %vm3775, %v4494, 0.0
      %v4625 = vsel %vm3776, %v4511, 0.0
      %v4626 = vsel %vm3777, %v4518, 0.0
      %v4627 = vpack.c.bf16 %v4574, %v4573
      %v4628 = vpack.c.bf16 %v4575, %v4575
      %v4629 = vpack.c.bf16 %v4577, %v4576
      %v4630 = vpack.c.bf16 %v4578, %v4578
      %v4631 = vpack.c.bf16 %v4580, %v4579
      %v4632 = vpack.c.bf16 %v4581, %v4581
      %v4633 = vpack.c.bf16 %v4583, %v4582
      %v4634 = vpack.c.bf16 %v4584, %v4584
      %v4635 = vpack.c.bf16 %v4586, %v4585
      %v4636 = vpack.c.bf16 %v4587, %v4587
      %v4637 = vpack.c.bf16 %v4589, %v4588
      %v4638 = vpack.c.bf16 %v4590, %v4590
      %v4639 = vpack.c.bf16 %v4592, %v4591
      %v4640 = vpack.c.bf16 %v4593, %v4593
      %v4641 = vpack.c.bf16 %v4595, %v4594
      %v4642 = vpack.c.bf16 %v4596, %v4596
      %v4643 = vpack.c.bf16 %v4598, %v4597
      %v4644 = vpack.c.bf16 %v4599, %v4599
      %v4645 = vpack.c.bf16 %v4601, %v4600
      %v4646 = vpack.c.bf16 %v4602, %v4602
      %v4647 = vpack.c.bf16 %v4604, %v4603
      %v4648 = vpack.c.bf16 %v4605, %v4605
      %v4649 = vpack.c.bf16 %v4607, %v4606
      %v4650 = vpack.c.bf16 %v4608, %v4608
      %v4651 = vpack.c.bf16 %v4610, %v4609
      %v4652 = vpack.c.bf16 %v4611, %v4611
      %v4653 = vpack.c.bf16 %v4613, %v4612
      %v4654 = vpack.c.bf16 %v4614, %v4614
      %v4655 = vpack.c.bf16 %v4616, %v4615
      %v4656 = vpack.c.bf16 %v4617, %v4617
      %v4657 = vpack.c.bf16 %v4619, %v4618
      %v4658 = vpack.c.bf16 %v4620, %v4620
      %v4659 = vpack.c.bf16 %v4622, %v4621
      %v4660 = vpack.c.bf16 %v4623, %v4623
      %v4661 = vpack.c.bf16 %v4625, %v4624
      %v4662 = vpack.c.bf16 %v4626, %v4626
      %v4699 = vunpack.c.l.b16 %v4627
      %v4700 = vunpack.c.h.b16 %v4627
      %v4701 = vunpack.c.l.b16 %v4628
      %v4702 = vunpack.c.l.b16 %v4629
      %v4703 = vunpack.c.h.b16 %v4629
      %v4704 = vunpack.c.l.b16 %v4630
      %v4705 = vunpack.c.l.b16 %v4631
      %v4706 = vunpack.c.h.b16 %v4631
      %v4707 = vunpack.c.l.b16 %v4632
      %v4708 = vunpack.c.l.b16 %v4633
      %v4709 = vunpack.c.h.b16 %v4633
      %v4710 = vunpack.c.l.b16 %v4634
      %v4711 = vunpack.c.l.b16 %v4635
      %v4712 = vunpack.c.h.b16 %v4635
      %v4713 = vunpack.c.l.b16 %v4636
      %v4714 = vunpack.c.l.b16 %v4637
      %v4715 = vunpack.c.h.b16 %v4637
      %v4716 = vunpack.c.l.b16 %v4638
      %v4717 = vunpack.c.l.b16 %v4639
      %v4718 = vunpack.c.h.b16 %v4639
      %v4719 = vunpack.c.l.b16 %v4640
      %v4720 = vunpack.c.l.b16 %v4641
      %v4721 = vunpack.c.h.b16 %v4641
      %v4722 = vunpack.c.l.b16 %v4642
      %v4723 = vunpack.c.l.b16 %v4643
      %v4724 = vunpack.c.h.b16 %v4643
      %v4725 = vunpack.c.l.b16 %v4644
      %v4726 = vunpack.c.l.b16 %v4645
      %v4727 = vunpack.c.h.b16 %v4645
      %v4728 = vunpack.c.l.b16 %v4646
      %v4729 = vunpack.c.l.b16 %v4647
      %v4730 = vunpack.c.h.b16 %v4647
      %v4731 = vunpack.c.l.b16 %v4648
      %v4732 = vunpack.c.l.b16 %v4649
      %v4733 = vunpack.c.h.b16 %v4649
      %v4734 = vunpack.c.l.b16 %v4650
      %v4735 = vunpack.c.l.b16 %v4651
      %v4736 = vunpack.c.h.b16 %v4651
      %v4737 = vunpack.c.l.b16 %v4652
      %v4738 = vunpack.c.l.b16 %v4653
      %v4739 = vunpack.c.h.b16 %v4653
      %v4740 = vunpack.c.l.b16 %v4654
      %v4741 = vunpack.c.l.b16 %v4655
      %v4742 = vunpack.c.h.b16 %v4655
      %v4743 = vunpack.c.l.b16 %v4656
      %v4744 = vunpack.c.l.b16 %v4657
      %v4745 = vunpack.c.h.b16 %v4657
      %v4746 = vunpack.c.l.b16 %v4658
      %v4747 = vunpack.c.l.b16 %v4659
      %v4748 = vunpack.c.h.b16 %v4659
      %v4749 = vunpack.c.l.b16 %v4660
      %v4750 = vunpack.c.l.b16 %v4661
      %v4751 = vunpack.c.h.b16 %v4661
      %v4752 = vunpack.c.l.b16 %v4662
      %v4753 = vpack.c.b16 %v4699, %v4699
      %v4754 = vpack.c.b16 %v4700, %v4700
      %v4755 = vpack.c.b16 %v4701, %v4701
      %v4756 = vpack.c.b16 %v4702, %v4702
      %v4757 = vpack.c.b16 %v4703, %v4703
      %v4758 = vpack.c.b16 %v4704, %v4704
      %v4759 = vpack.c.b16 %v4705, %v4705
      %v4760 = vpack.c.b16 %v4706, %v4706
      %v4761 = vpack.c.b16 %v4707, %v4707
      %v4762 = vpack.c.b16 %v4708, %v4708
      %v4763 = vpack.c.b16 %v4709, %v4709
      %v4764 = vpack.c.b16 %v4710, %v4710
      %v4765 = vpack.c.b16 %v4711, %v4711
      %v4766 = vpack.c.b16 %v4712, %v4712
      %v4767 = vpack.c.b16 %v4713, %v4713
      %v4768 = vpack.c.b16 %v4714, %v4714
      %v4769 = vpack.c.b16 %v4715, %v4715
      %v4770 = vpack.c.b16 %v4716, %v4716
      %v4771 = vpack.c.b16 %v4717, %v4717
      %v4772 = vpack.c.b16 %v4718, %v4718
      %v4773 = vpack.c.b16 %v4719, %v4719
      %v4774 = vpack.c.b16 %v4720, %v4720
      %v4775 = vpack.c.b16 %v4721, %v4721
      %v4776 = vpack.c.b16 %v4722, %v4722
      %v4777 = vpack.c.b16 %v4723, %v4723
      %v4778 = vpack.c.b16 %v4724, %v4724
      %v4779 = vpack.c.b16 %v4725, %v4725
      %v4780 = vpack.c.b16 %v4726, %v4726
      %v4781 = vpack.c.b16 %v4727, %v4727
      %v4782 = vpack.c.b16 %v4728, %v4728
      %v4783 = vpack.c.b16 %v4729, %v4729
      %v4784 = vpack.c.b16 %v4730, %v4730
      %v4785 = vpack.c.b16 %v4731, %v4731
      %v4786 = vpack.c.b16 %v4732, %v4732
      %v4787 = vpack.c.b16 %v4733, %v4733
      %v4788 = vpack.c.b16 %v4734, %v4734
      %v4789 = vpack.c.b16 %v4735, %v4735
      %v4790 = vpack.c.b16 %v4736, %v4736
      %v4791 = vpack.c.b16 %v4737, %v4737
      %v4792 = vpack.c.b16 %v4738, %v4738
      %v4793 = vpack.c.b16 %v4739, %v4739
      %v4794 = vpack.c.b16 %v4740, %v4740
      %v4795 = vpack.c.b16 %v4741, %v4741
      %v4796 = vpack.c.b16 %v4742, %v4742
      %v4797 = vpack.c.b16 %v4743, %v4743
      %v4798 = vpack.c.b16 %v4744, %v4744
      %v4799 = vpack.c.b16 %v4745, %v4745
      %v4800 = vpack.c.b16 %v4746, %v4746
      %v4801 = vpack.c.b16 %v4747, %v4747
      %v4802 = vpack.c.b16 %v4748, %v4748
      %v4803 = vpack.c.b16 %v4749, %v4749
      %v4804 = vpack.c.b16 %v4750, %v4750
      %v4805 = vpack.c.b16 %v4751, %v4751
      %v4806 = vpack.c.b16 %v4752, %v4752
      %vm4861 = vcmask 257024
      %4862 = vst.msk [vmem:[#allocation2] sm:$0xf] %vm4861, %v4753
      %4863 = vst.msk [vmem:[#allocation2 + $0x4] sm:$0xf] %vm4861, %v4754
      %vm4864 = vcmask 253952
      %4865 = vst.msk [vmem:[#allocation2 + $0x8] sm:$0x1] %vm4864, %v4755
      %4866 = vst.msk [vmem:[#allocation2 + $0xc] sm:$0xf] %vm4861, %v4756
      %4867 = vst.msk [vmem:[#allocation2 + $0x10] sm:$0xf] %vm4861, %v4757
      %4868 = vst.msk [vmem:[#allocation2 + $0x14] sm:$0x1] %vm4864, %v4758
      %4869 = vst.msk [vmem:[#allocation2 + $0x18] sm:$0xf] %vm4861, %v4759
      %4870 = vst.msk [vmem:[#allocation2 + $0x1c] sm:$0xf] %vm4861, %v4760
      %4871 = vst.msk [vmem:[#allocation2 + $0x20] sm:$0x1] %vm4864, %v4761
      %4872 = vst.msk [vmem:[#allocation2 + $0x24] sm:$0xf] %vm4861, %v4762
      %4873 = vst.msk [vmem:[#allocation2 + $0x28] sm:$0xf] %vm4861, %v4763
      %4874 = vst.msk [vmem:[#allocation2 + $0x2c] sm:$0x1] %vm4864, %v4764
      %4875 = vst.msk [vmem:[#allocation2 + $0x30] sm:$0xf] %vm4861, %v4765
      %4876 = vst.msk [vmem:[#allocation2 + $0x34] sm:$0xf] %vm4861, %v4766
      %4877 = vst.msk [vmem:[#allocation2 + $0x38] sm:$0x1] %vm4864, %v4767
      %4878 = vst.msk [vmem:[#allocation2 + $0x3c] sm:$0xf] %vm4861, %v4768
      %4879 = vst.msk [vmem:[#allocation2 + $0x40] sm:$0xf] %vm4861, %v4769
      %4880 = vst.msk [vmem:[#allocation2 + $0x44] sm:$0x1] %vm4864, %v4770
      %4881 = vst.msk [vmem:[#allocation2 + $0x48] sm:$0xf] %vm4861, %v4771
      %4882 = vst.msk [vmem:[#allocation2 + $0x4c] sm:$0xf] %vm4861, %v4772
      %4883 = vst.msk [vmem:[#allocation2 + $0x50] sm:$0x1] %vm4864, %v4773
      %4884 = vst.msk [vmem:[#allocation2 + $0x54] sm:$0xf] %vm4861, %v4774
      %4885 = vst.msk [vmem:[#allocation2 + $0x58] sm:$0xf] %vm4861, %v4775
      %4886 = vst.msk [vmem:[#allocation2 + $0x5c] sm:$0x1] %vm4864, %v4776
      %4887 = vst.msk [vmem:[#allocation2 + $0x60] sm:$0xf] %vm4861, %v4777
      %4888 = vst.msk [vmem:[#allocation2 + $0x64] sm:$0xf] %vm4861, %v4778
      %4889 = vst.msk [vmem:[#allocation2 + $0x68] sm:$0x1] %vm4864, %v4779
      %4890 = vst.msk [vmem:[#allocation2 + $0x6c] sm:$0xf] %vm4861, %v4780
      %4891 = vst.msk [vmem:[#allocation2 + $0x70] sm:$0xf] %vm4861, %v4781
      %4892 = vst.msk [vmem:[#allocation2 + $0x74] sm:$0x1] %vm4864, %v4782
      %4893 = vst.msk [vmem:[#allocation2 + $0x78] sm:$0xf] %vm4861, %v4783
      %4894 = vst.msk [vmem:[#allocation2 + $0x7c] sm:$0xf] %vm4861, %v4784
      %4895 = vst.msk [vmem:[#allocation2 + $0x80] sm:$0x1] %vm4864, %v4785
      %4896 = vst.msk [vmem:[#allocation2 + $0x84] sm:$0xf] %vm4861, %v4786
      %4897 = vst.msk [vmem:[#allocation2 + $0x88] sm:$0xf] %vm4861, %v4787
      %4898 = vst.msk [vmem:[#allocation2 + $0x8c] sm:$0x1] %vm4864, %v4788
      %4899 = vst.msk [vmem:[#allocation2 + $0x90] sm:$0xf] %vm4861, %v4789
      %4900 = vst.msk [vmem:[#allocation2 + $0x94] sm:$0xf] %vm4861, %v4790
      %4901 = vst.msk [vmem:[#allocation2 + $0x98] sm:$0x1] %vm4864, %v4791
      %4902 = vst.msk [vmem:[#allocation2 + $0x9c] sm:$0xf] %vm4861, %v4792
      %4903 = vst.msk [vmem:[#allocation2 + $0xa0] sm:$0xf] %vm4861, %v4793
      %4904 = vst.msk [vmem:[#allocation2 + $0xa4] sm:$0x1] %vm4864, %v4794
      %4905 = vst.msk [vmem:[#allocation2 + $0xa8] sm:$0xf] %vm4861, %v4795
      %4906 = vst.msk [vmem:[#allocation2 + $0xac] sm:$0xf] %vm4861, %v4796
      %4907 = vst.msk [vmem:[#allocation2 + $0xb0] sm:$0x1] %vm4864, %v4797
      %4908 = vst.msk [vmem:[#allocation2 + $0xb4] sm:$0xf] %vm4861, %v4798
      %4909 = vst.msk [vmem:[#allocation2 + $0xb8] sm:$0xf] %vm4861, %v4799
      %4910 = vst.msk [vmem:[#allocation2 + $0xbc] sm:$0x1] %vm4864, %v4800
      %4911 = vst.msk [vmem:[#allocation2 + $0xc0] sm:$0xf] %vm4861, %v4801
      %4912 = vst.msk [vmem:[#allocation2 + $0xc4] sm:$0xf] %vm4861, %v4802
      %4913 = vst.msk [vmem:[#allocation2 + $0xc8] sm:$0x1] %vm4864, %v4803
      %4914 = vst.msk [vmem:[#allocation2 + $0xcc] sm:$0xf] %vm4861, %v4804
      %4915 = vst.msk [vmem:[#allocation2 + $0xd0] sm:$0xf] %vm4861, %v4805
      %4916 = vst.msk [vmem:[#allocation2 + $0xd4] sm:$0x1] %vm4864, %v4806
      %v4917 = vld [vmem:[#allocation2] sm:$0xf]
      %v4918 = vld [vmem:[#allocation2 + $0x4] sm:$0xf]
      %v4919 = vld [vmem:[#allocation2 + $0xc] sm:$0xf]
      %v4920 = vld [vmem:[#allocation2 + $0x10] sm:$0xf]
      %v4921 = vld [vmem:[#allocation2 + $0x18] sm:$0xf]
      %v4922 = vld [vmem:[#allocation2 + $0x1c] sm:$0xf]
      %v4923 = vld [vmem:[#allocation2 + $0x24] sm:$0xf]
      %v4924 = vld [vmem:[#allocation2 + $0x28] sm:$0xf]
      %v4925 = vld [vmem:[#allocation2 + $0x30] sm:$0xf]
      %v4926 = vld [vmem:[#allocation2 + $0x34] sm:$0xf]
      %v4927 = vld [vmem:[#allocation2 + $0x3c] sm:$0xf]
      %v4928 = vld [vmem:[#allocation2 + $0x40] sm:$0xf]
      %v4929 = vld [vmem:[#allocation2 + $0x48] sm:$0xf]
      %v4930 = vld [vmem:[#allocation2 + $0x4c] sm:$0xf]
      %v4931 = vld [vmem:[#allocation2 + $0x54] sm:$0xf]
      %v4932 = vld [vmem:[#allocation2 + $0x58] sm:$0xf]
      %v4933 = vld [vmem:[#allocation2 + $0x60] sm:$0xf]
      %v4934 = vld [vmem:[#allocation2 + $0x64] sm:$0xf]
      %v4935 = vld [vmem:[#allocation2 + $0x6c] sm:$0xf]
      %v4936 = vld [vmem:[#allocation2 + $0x70] sm:$0xf]
      %v4937 = vld [vmem:[#allocation2 + $0x78] sm:$0xf]
      %v4938 = vld [vmem:[#allocation2 + $0x7c] sm:$0xf]
      %v4939 = vld [vmem:[#allocation2 + $0x84] sm:$0xf]
      %v4940 = vld [vmem:[#allocation2 + $0x88] sm:$0xf]
      %v4941 = vld [vmem:[#allocation2 + $0x90] sm:$0xf]
      %v4942 = vld [vmem:[#allocation2 + $0x94] sm:$0xf]
      %v4943 = vld [vmem:[#allocation2 + $0x9c] sm:$0xf]
      %v4944 = vld [vmem:[#allocation2 + $0xa0] sm:$0xf]
      %v4945 = vld [vmem:[#allocation2 + $0xa8] sm:$0xf]
      %v4946 = vld [vmem:[#allocation2 + $0xac] sm:$0xf]
      %v4947 = vld [vmem:[#allocation2 + $0xb4] sm:$0xf]
      %v4948 = vld [vmem:[#allocation2 + $0xb8] sm:$0xf]
      %v4949 = vld [vmem:[#allocation2 + $0x8] sm:$0x1]
      %v4950 = vld [vmem:[#allocation2 + $0x14] sm:$0x1]
      %v4951 = vld [vmem:[#allocation2 + $0x20] sm:$0x1]
      %v4952 = vld [vmem:[#allocation2 + $0x2c] sm:$0x1]
      %v4953 = vld [vmem:[#allocation2 + $0x38] sm:$0x1]
      %v4954 = vld [vmem:[#allocation2 + $0x44] sm:$0x1]
      %v4955 = vld [vmem:[#allocation2 + $0x50] sm:$0x1]
      %v4956 = vld [vmem:[#allocation2 + $0x5c] sm:$0x1]
      %v4957 = vld [vmem:[#allocation2 + $0x68] sm:$0x1]
      %v4958 = vld [vmem:[#allocation2 + $0x74] sm:$0x1]
      %v4959 = vld [vmem:[#allocation2 + $0x80] sm:$0x1]
      %v4960 = vld [vmem:[#allocation2 + $0x8c] sm:$0x1]
      %v4961 = vld [vmem:[#allocation2 + $0x98] sm:$0x1]
      %v4962 = vld [vmem:[#allocation2 + $0xa4] sm:$0x1]
      %v4963 = vld [vmem:[#allocation2 + $0xb0] sm:$0x1]
      %v4964 = vld [vmem:[#allocation2 + $0xbc] sm:$0x1]
      %vm4965 = vsmask.f32 3328
      %vm4966 = vsmask.f32 7440
      %vm4967 = vmor %vm4965, %vm4966
      %v4969 = vshrl.u32 %v4917, 16
      %v4971 = vrot.slane %v4969, 4
      %v4972 = vshll.u32 %v4917, 16
      %v4974 = vrot.slane %v4972, 5
      %v4975 = vor.u32 %v4971, %v4974
      %v4976 = vrot.slane %v4975, 4
      %v4978 = vshll.u32 %v4918, 16
      %v4980 = vrot.slane %v4978, 5
      %v4981 = vsel %vm4967, %v4976, %v4980
      %v4982 = vshrl.u32 %v4918, 16
      %v4984 = vrot.slane %v4982, 4
      %v4985 = vor.u32 %v4984, %v4980
      %v4986 = vrot.slane %v4985, 4
      %v4988 = vshll.u32 %v4949, 16
      %v4990 = vrot.slane %v4988, 5
      %v4991 = vsel %vm4967, %v4986, %v4990
      %v4993 = vshrl.u32 %v4919, 16
      %v4995 = vrot.slane %v4993, 4
      %v4996 = vshll.u32 %v4919, 16
      %v4998 = vrot.slane %v4996, 5
      %v4999 = vor.u32 %v4995, %v4998
      %v5000 = vrot.slane %v4999, 4
      %v5002 = vshll.u32 %v4920, 16
      %v5004 = vrot.slane %v5002, 5
      %v5005 = vsel %vm4967, %v5000, %v5004
      %v5006 = vshrl.u32 %v4920, 16
      %v5008 = vrot.slane %v5006, 4
      %v5009 = vor.u32 %v5008, %v5004
      %v5010 = vrot.slane %v5009, 4
      %v5012 = vshll.u32 %v4950, 16
      %v5014 = vrot.slane %v5012, 5
      %v5015 = vsel %vm4967, %v5010, %v5014
      %v5017 = vshrl.u32 %v4921, 16
      %v5019 = vrot.slane %v5017, 4
      %v5020 = vshll.u32 %v4921, 16
      %v5022 = vrot.slane %v5020, 5
      %v5023 = vor.u32 %v5019, %v5022
      %v5024 = vrot.slane %v5023, 4
      %v5026 = vshll.u32 %v4922, 16
      %v5028 = vrot.slane %v5026, 5
      %v5029 = vsel %vm4967, %v5024, %v5028
      %v5030 = vshrl.u32 %v4922, 16
      %v5032 = vrot.slane %v5030, 4
      %v5033 = vor.u32 %v5032, %v5028
      %v5034 = vrot.slane %v5033, 4
      %v5036 = vshll.u32 %v4951, 16
      %v5038 = vrot.slane %v5036, 5
      %v5039 = vsel %vm4967, %v5034, %v5038
      %v5041 = vshrl.u32 %v4923, 16
      %v5043 = vrot.slane %v5041, 4
      %v5044 = vshll.u32 %v4923, 16
      %v5046 = vrot.slane %v5044, 5
      %v5047 = vor.u32 %v5043, %v5046
      %v5048 = vrot.slane %v5047, 4
      %v5050 = vshll.u32 %v4924, 16
      %v5052 = vrot.slane %v5050, 5
      %v5053 = vsel %vm4967, %v5048, %v5052
      %v5054 = vshrl.u32 %v4924, 16
      %v5056 = vrot.slane %v5054, 4
      %v5057 = vor.u32 %v5056, %v5052
      %v5058 = vrot.slane %v5057, 4
      %v5060 = vshll.u32 %v4952, 16
      %v5062 = vrot.slane %v5060, 5
      %v5063 = vsel %vm4967, %v5058, %v5062
      %v5065 = vshrl.u32 %v4925, 16
      %v5067 = vrot.slane %v5065, 4
      %v5068 = vshll.u32 %v4925, 16
      %v5070 = vrot.slane %v5068, 5
      %v5071 = vor.u32 %v5067, %v5070
      %v5072 = vrot.slane %v5071, 4
      %v5074 = vshll.u32 %v4926, 16
      %v5076 = vrot.slane %v5074, 5
      %v5077 = vsel %vm4967, %v5072, %v5076
      %v5078 = vshrl.u32 %v4926, 16
      %v5080 = vrot.slane %v5078, 4
      %v5081 = vor.u32 %v5080, %v5076
      %v5082 = vrot.slane %v5081, 4
      %v5084 = vshll.u32 %v4953, 16
      %v5086 = vrot.slane %v5084, 5
      %v5087 = vsel %vm4967, %v5082, %v5086
      %v5089 = vshrl.u32 %v4927, 16
      %v5091 = vrot.slane %v5089, 4
      %v5092 = vshll.u32 %v4927, 16
      %v5094 = vrot.slane %v5092, 5
      %v5095 = vor.u32 %v5091, %v5094
      %v5096 = vrot.slane %v5095, 4
      %v5098 = vshll.u32 %v4928, 16
      %v5100 = vrot.slane %v5098, 5
      %v5101 = vsel %vm4967, %v5096, %v5100
      %v5102 = vshrl.u32 %v4928, 16
      %v5104 = vrot.slane %v5102, 4
      %v5105 = vor.u32 %v5104, %v5100
      %v5106 = vrot.slane %v5105, 4
      %v5108 = vshll.u32 %v4954, 16
      %v5110 = vrot.slane %v5108, 5
      %v5111 = vsel %vm4967, %v5106, %v5110
      %v5113 = vshrl.u32 %v4929, 16
      %v5115 = vrot.slane %v5113, 4
      %v5116 = vshll.u32 %v4929, 16
      %v5118 = vrot.slane %v5116, 5
      %v5119 = vor.u32 %v5115, %v5118
      %v5120 = vrot.slane %v5119, 4
      %v5122 = vshll.u32 %v4930, 16
      %v5124 = vrot.slane %v5122, 5
      %v5125 = vsel %vm4967, %v5120, %v5124
      %v5126 = vshrl.u32 %v4930, 16
      %v5128 = vrot.slane %v5126, 4
      %v5129 = vor.u32 %v5128, %v5124
      %v5130 = vrot.slane %v5129, 4
      %v5132 = vshll.u32 %v4955, 16
      %v5134 = vrot.slane %v5132, 5
      %v5135 = vsel %vm4967, %v5130, %v5134
      %v5137 = vshrl.u32 %v4931, 16
      %v5139 = vrot.slane %v5137, 4
      %v5140 = vshll.u32 %v4931, 16
      %v5142 = vrot.slane %v5140, 5
      %v5143 = vor.u32 %v5139, %v5142
      %v5144 = vrot.slane %v5143, 4
      %v5146 = vshll.u32 %v4932, 16
      %v5148 = vrot.slane %v5146, 5
      %v5149 = vsel %vm4967, %v5144, %v5148
      %v5150 = vshrl.u32 %v4932, 16
      %v5152 = vrot.slane %v5150, 4
      %v5153 = vor.u32 %v5152, %v5148
      %v5154 = vrot.slane %v5153, 4
      %v5156 = vshll.u32 %v4956, 16
      %v5158 = vrot.slane %v5156, 5
      %v5159 = vsel %vm4967, %v5154, %v5158
      %v5161 = vshrl.u32 %v4933, 16
      %v5163 = vrot.slane %v5161, 4
      %v5164 = vshll.u32 %v4933, 16
      %v5166 = vrot.slane %v5164, 5
      %v5167 = vor.u32 %v5163, %v5166
      %v5168 = vrot.slane %v5167, 4
      %v5170 = vshll.u32 %v4934, 16
      %v5172 = vrot.slane %v5170, 5
      %v5173 = vsel %vm4967, %v5168, %v5172
      %v5174 = vshrl.u32 %v4934, 16
      %v5176 = vrot.slane %v5174, 4
      %v5177 = vor.u32 %v5176, %v5172
      %v5178 = vrot.slane %v5177, 4
      %v5180 = vshll.u32 %v4957, 16
      %v5182 = vrot.slane %v5180, 5
      %v5183 = vsel %vm4967, %v5178, %v5182
      %v5185 = vshrl.u32 %v4935, 16
      %v5187 = vrot.slane %v5185, 4
      %v5188 = vshll.u32 %v4935, 16
      %v5190 = vrot.slane %v5188, 5
      %v5191 = vor.u32 %v5187, %v5190
      %v5192 = vrot.slane %v5191, 4
      %v5194 = vshll.u32 %v4936, 16
      %v5196 = vrot.slane %v5194, 5
      %v5197 = vsel %vm4967, %v5192, %v5196
      %v5198 = vshrl.u32 %v4936, 16
      %v5200 = vrot.slane %v5198, 4
      %v5201 = vor.u32 %v5200, %v5196
      %v5202 = vrot.slane %v5201, 4
      %v5204 = vshll.u32 %v4958, 16
      %v5206 = vrot.slane %v5204, 5
      %v5207 = vsel %vm4967, %v5202, %v5206
      %v5209 = vshrl.u32 %v4937, 16
      %v5211 = vrot.slane %v5209, 4
      %v5212 = vshll.u32 %v4937, 16
      %v5214 = vrot.slane %v5212, 5
      %v5215 = vor.u32 %v5211, %v5214
      %v5216 = vrot.slane %v5215, 4
      %v5218 = vshll.u32 %v4938, 16
      %v5220 = vrot.slane %v5218, 5
      %v5221 = vsel %vm4967, %v5216, %v5220
      %v5222 = vshrl.u32 %v4938, 16
      %v5224 = vrot.slane %v5222, 4
      %v5225 = vor.u32 %v5224, %v5220
      %v5226 = vrot.slane %v5225, 4
      %v5228 = vshll.u32 %v4959, 16
      %v5230 = vrot.slane %v5228, 5
      %v5231 = vsel %vm4967, %v5226, %v5230
      %v5233 = vshrl.u32 %v4939, 16
      %v5235 = vrot.slane %v5233, 4
      %v5236 = vshll.u32 %v4939, 16
      %v5238 = vrot.slane %v5236, 5
      %v5239 = vor.u32 %v5235, %v5238
      %v5240 = vrot.slane %v5239, 4
      %v5242 = vshll.u32 %v4940, 16
      %v5244 = vrot.slane %v5242, 5
      %v5245 = vsel %vm4967, %v5240, %v5244
      %v5246 = vshrl.u32 %v4940, 16
      %v5248 = vrot.slane %v5246, 4
      %v5249 = vor.u32 %v5248, %v5244
      %v5250 = vrot.slane %v5249, 4
      %v5252 = vshll.u32 %v4960, 16
      %v5254 = vrot.slane %v5252, 5
      %v5255 = vsel %vm4967, %v5250, %v5254
      %v5257 = vshrl.u32 %v4941, 16
      %v5259 = vrot.slane %v5257, 4
      %v5260 = vshll.u32 %v4941, 16
      %v5262 = vrot.slane %v5260, 5
      %v5263 = vor.u32 %v5259, %v5262
      %v5264 = vrot.slane %v5263, 4
      %v5266 = vshll.u32 %v4942, 16
      %v5268 = vrot.slane %v5266, 5
      %v5269 = vsel %vm4967, %v5264, %v5268
      %v5270 = vshrl.u32 %v4942, 16
      %v5272 = vrot.slane %v5270, 4
      %v5273 = vor.u32 %v5272, %v5268
      %v5274 = vrot.slane %v5273, 4
      %v5276 = vshll.u32 %v4961, 16
      %v5278 = vrot.slane %v5276, 5
      %v5279 = vsel %vm4967, %v5274, %v5278
      %v5281 = vshrl.u32 %v4943, 16
      %v5283 = vrot.slane %v5281, 4
      %v5284 = vshll.u32 %v4943, 16
      %v5286 = vrot.slane %v5284, 5
      %v5287 = vor.u32 %v5283, %v5286
      %v5288 = vrot.slane %v5287, 4
      %v5290 = vshll.u32 %v4944, 16
      %v5292 = vrot.slane %v5290, 5
      %v5293 = vsel %vm4967, %v5288, %v5292
      %v5294 = vshrl.u32 %v4944, 16
      %v5296 = vrot.slane %v5294, 4
      %v5297 = vor.u32 %v5296, %v5292
      %v5298 = vrot.slane %v5297, 4
      %v5300 = vshll.u32 %v4962, 16
      %v5302 = vrot.slane %v5300, 5
      %v5303 = vsel %vm4967, %v5298, %v5302
      %v5305 = vshrl.u32 %v4945, 16
      %v5307 = vrot.slane %v5305, 4
      %v5308 = vshll.u32 %v4945, 16
      %v5310 = vrot.slane %v5308, 5
      %v5311 = vor.u32 %v5307, %v5310
      %v5312 = vrot.slane %v5311, 4
      %v5314 = vshll.u32 %v4946, 16
      %v5316 = vrot.slane %v5314, 5
      %v5317 = vsel %vm4967, %v5312, %v5316
      %v5318 = vshrl.u32 %v4946, 16
      %v5320 = vrot.slane %v5318, 4
      %v5321 = vor.u32 %v5320, %v5316
      %v5322 = vrot.slane %v5321, 4
      %v5324 = vshll.u32 %v4963, 16
      %v5326 = vrot.slane %v5324, 5
      %v5327 = vsel %vm4967, %v5322, %v5326
      %v5329 = vshrl.u32 %v4947, 16
      %v5331 = vrot.slane %v5329, 4
      %v5332 = vshll.u32 %v4947, 16
      %v5334 = vrot.slane %v5332, 5
      %v5335 = vor.u32 %v5331, %v5334
      %v5336 = vrot.slane %v5335, 4
      %v5338 = vshll.u32 %v4948, 16
      %v5340 = vrot.slane %v5338, 5
      %v5341 = vsel %vm4967, %v5336, %v5340
      %v5342 = vshrl.u32 %v4948, 16
      %v5344 = vrot.slane %v5342, 4
      %v5345 = vor.u32 %v5344, %v5340
      %v5346 = vrot.slane %v5345, 4
      %v5348 = vshll.u32 %v4964, 16
      %v5350 = vrot.slane %v5348, 5
      %v5351 = vsel %vm4967, %v5346, %v5350
      %v5352 = vld [vmem:[#allocation2] sm:$0xe]
      %v5353 = vld [vmem:[#allocation2 + $0xc] sm:$0xe]
      %v5354 = vld [vmem:[#allocation2 + $0x18] sm:$0xe]
      %v5355 = vld [vmem:[#allocation2 + $0x24] sm:$0xe]
      %v5356 = vld [vmem:[#allocation2 + $0x30] sm:$0xe]
      %v5357 = vld [vmem:[#allocation2 + $0x3c] sm:$0xe]
      %v5358 = vld [vmem:[#allocation2 + $0x48] sm:$0xe]
      %v5359 = vld [vmem:[#allocation2 + $0x54] sm:$0xe]
      %v5360 = vld [vmem:[#allocation2 + $0x60] sm:$0xe]
      %v5361 = vld [vmem:[#allocation2 + $0x6c] sm:$0xe]
      %v5362 = vld [vmem:[#allocation2 + $0x78] sm:$0xe]
      %v5363 = vld [vmem:[#allocation2 + $0x84] sm:$0xe]
      %v5364 = vld [vmem:[#allocation2 + $0x90] sm:$0xe]
      %v5365 = vld [vmem:[#allocation2 + $0x9c] sm:$0xe]
      %v5366 = vld [vmem:[#allocation2 + $0xa8] sm:$0xe]
      %v5367 = vld [vmem:[#allocation2 + $0xb4] sm:$0xe]
      %vm5416 = vcmask 1042432
      %vm5417 = vcmask 1046532
      %vm5418 = vmor %vm5416, %vm5417
      %v5419 = vrot.slane %v5352, 5
      %v5420 = vrot.slane %v5419, 4
      %v5421 = vrot.slane %v4918, 5
      %v5422 = vsel %vm5418, %v5420, %v5421
      %v5423 = vrot.slane %v5421, 4
      %v5424 = vrot.slane %v4949, 5
      %v5425 = vsel %vm5418, %v5423, %v5424
      %v5426 = vrot.slane %v5353, 5
      %v5427 = vrot.slane %v5426, 4
      %v5428 = vrot.slane %v4920, 5
      %v5429 = vsel %vm5418, %v5427, %v5428
      %v5430 = vrot.slane %v5428, 4
      %v5431 = vrot.slane %v4950, 5
      %v5432 = vsel %vm5418, %v5430, %v5431
      %v5433 = vrot.slane %v5354, 5
      %v5434 = vrot.slane %v5433, 4
      %v5435 = vrot.slane %v4922, 5
      %v5436 = vsel %vm5418, %v5434, %v5435
      %v5437 = vrot.slane %v5435, 4
      %v5438 = vrot.slane %v4951, 5
      %v5439 = vsel %vm5418, %v5437, %v5438
      %v5440 = vrot.slane %v5355, 5
      %v5441 = vrot.slane %v5440, 4
      %v5442 = vrot.slane %v4924, 5
      %v5443 = vsel %vm5418, %v5441, %v5442
      %v5444 = vrot.slane %v5442, 4
      %v5445 = vrot.slane %v4952, 5
      %v5446 = vsel %vm5418, %v5444, %v5445
      %v5447 = vrot.slane %v5356, 5
      %v5448 = vrot.slane %v5447, 4
      %v5449 = vrot.slane %v4926, 5
      %v5450 = vsel %vm5418, %v5448, %v5449
      %v5451 = vrot.slane %v5449, 4
      %v5452 = vrot.slane %v4953, 5
      %v5453 = vsel %vm5418, %v5451, %v5452
      %v5454 = vrot.slane %v5357, 5
      %v5455 = vrot.slane %v5454, 4
      %v5456 = vrot.slane %v4928, 5
      %v5457 = vsel %vm5418, %v5455, %v5456
      %v5458 = vrot.slane %v5456, 4
      %v5459 = vrot.slane %v4954, 5
      %v5460 = vsel %vm5418, %v5458, %v5459
      %v5461 = vrot.slane %v5358, 5
      %v5462 = vrot.slane %v5461, 4
      %v5463 = vrot.slane %v4930, 5
      %v5464 = vsel %vm5418, %v5462, %v5463
      %v5465 = vrot.slane %v5463, 4
      %v5466 = vrot.slane %v4955, 5
      %v5467 = vsel %vm5418, %v5465, %v5466
      %v5468 = vrot.slane %v5359, 5
      %v5469 = vrot.slane %v5468, 4
      %v5470 = vrot.slane %v4932, 5
      %v5471 = vsel %vm5418, %v5469, %v5470
      %v5472 = vrot.slane %v5470, 4
      %v5473 = vrot.slane %v4956, 5
      %v5474 = vsel %vm5418, %v5472, %v5473
      %v5475 = vrot.slane %v5360, 5
      %v5476 = vrot.slane %v5475, 4
      %v5477 = vrot.slane %v4934, 5
      %v5478 = vsel %vm5418, %v5476, %v5477
      %v5479 = vrot.slane %v5477, 4
      %v5480 = vrot.slane %v4957, 5
      %v5481 = vsel %vm5418, %v5479, %v5480
      %v5482 = vrot.slane %v5361, 5
      %v5483 = vrot.slane %v5482, 4
      %v5484 = vrot.slane %v4936, 5
      %v5485 = vsel %vm5418, %v5483, %v5484
      %v5486 = vrot.slane %v5484, 4
      %v5487 = vrot.slane %v4958, 5
      %v5488 = vsel %vm5418, %v5486, %v5487
      %v5489 = vrot.slane %v5362, 5
      %v5490 = vrot.slane %v5489, 4
      %v5491 = vrot.slane %v4938, 5
      %v5492 = vsel %vm5418, %v5490, %v5491
      %v5493 = vrot.slane %v5491, 4
      %v5494 = vrot.slane %v4959, 5
      %v5495 = vsel %vm5418, %v5493, %v5494
      %v5496 = vrot.slane %v5363, 5
      %v5497 = vrot.slane %v5496, 4
      %v5498 = vrot.slane %v4940, 5
      %v5499 = vsel %vm5418, %v5497, %v5498
      %v5500 = vrot.slane %v5498, 4
      %v5501 = vrot.slane %v4960, 5
      %v5502 = vsel %vm5418, %v5500, %v5501
      %v5503 = vrot.slane %v5364, 5
      %v5504 = vrot.slane %v5503, 4
      %v5505 = vrot.slane %v4942, 5
      %v5506 = vsel %vm5418, %v5504, %v5505
      %v5507 = vrot.slane %v5505, 4
      %v5508 = vrot.slane %v4961, 5
      %v5509 = vsel %vm5418, %v5507, %v5508
      %v5510 = vrot.slane %v5365, 5
      %v5511 = vrot.slane %v5510, 4
      %v5512 = vrot.slane %v4944, 5
      %v5513 = vsel %vm5418, %v5511, %v5512
      %v5514 = vrot.slane %v5512, 4
      %v5515 = vrot.slane %v4962, 5
      %v5516 = vsel %vm5418, %v5514, %v5515
      %v5517 = vrot.slane %v5366, 5
      %v5518 = vrot.slane %v5517, 4
      %v5519 = vrot.slane %v4946, 5
      %v5520 = vsel %vm5418, %v5518, %v5519
      %v5521 = vrot.slane %v5519, 4
      %v5522 = vrot.slane %v4963, 5
      %v5523 = vsel %vm5418, %v5521, %v5522
      %v5524 = vrot.slane %v5367, 5
      %v5525 = vrot.slane %v5524, 4
      %v5526 = vrot.slane %v4948, 5
      %v5527 = vsel %vm5418, %v5525, %v5526
      %v5528 = vrot.slane %v5526, 4
      %v5529 = vrot.slane %v4964, 5
      %v5530 = vsel %vm5418, %v5528, %v5529
      %s5531 = scalar_lea.vmem [#allocation2], 12
      %v5532 = vld [vmem:[%s5531] sm:$0xf]
      %v5533 = vld [vmem:[%s5531 + $0x4] sm:$0xf]
      %v5534 = vld [vmem:[%s5531 + $0xc] sm:$0xf]
      %v5535 = vld [vmem:[%s5531 + $0x10] sm:$0xf]
      %v5536 = vld [vmem:[%s5531 + $0x18] sm:$0xf]
      %v5537 = vld [vmem:[%s5531 + $0x1c] sm:$0xf]
      %v5538 = vld [vmem:[%s5531 + $0x24] sm:$0xf]
      %v5539 = vld [vmem:[%s5531 + $0x28] sm:$0xf]
      %v5540 = vld [vmem:[%s5531 + $0x30] sm:$0xf]
      %v5541 = vld [vmem:[%s5531 + $0x34] sm:$0xf]
      %v5542 = vld [vmem:[%s5531 + $0x3c] sm:$0xf]
      %v5543 = vld [vmem:[%s5531 + $0x40] sm:$0xf]
      %v5544 = vld [vmem:[%s5531 + $0x48] sm:$0xf]
      %v5545 = vld [vmem:[%s5531 + $0x4c] sm:$0xf]
      %v5546 = vld [vmem:[%s5531 + $0x54] sm:$0xf]
      %v5547 = vld [vmem:[%s5531 + $0x58] sm:$0xf]
      %v5548 = vld [vmem:[%s5531 + $0x60] sm:$0xf]
      %v5549 = vld [vmem:[%s5531 + $0x64] sm:$0xf]
      %v5550 = vld [vmem:[%s5531 + $0x6c] sm:$0xf]
      %v5551 = vld [vmem:[%s5531 + $0x70] sm:$0xf]
      %v5552 = vld [vmem:[%s5531 + $0x78] sm:$0xf]
      %v5553 = vld [vmem:[%s5531 + $0x7c] sm:$0xf]
      %v5554 = vld [vmem:[%s5531 + $0x84] sm:$0xf]
      %v5555 = vld [vmem:[%s5531 + $0x88] sm:$0xf]
      %v5556 = vld [vmem:[%s5531 + $0x90] sm:$0xf]
      %v5557 = vld [vmem:[%s5531 + $0x94] sm:$0xf]
      %v5558 = vld [vmem:[%s5531 + $0x9c] sm:$0xf]
      %v5559 = vld [vmem:[%s5531 + $0xa0] sm:$0xf]
      %v5560 = vld [vmem:[%s5531 + $0xa8] sm:$0xf]
      %v5561 = vld [vmem:[%s5531 + $0xac] sm:$0xf]
      %v5562 = vld [vmem:[%s5531 + $0xb4] sm:$0xf]
      %v5563 = vld [vmem:[%s5531 + $0xb8] sm:$0xf]
      %v5580 = vunpack.c.l.b16 %v4917
      %v5581 = vunpack.c.l.b16 %v4918
      %v5582 = vunpack.c.l.b16 %v4919
      %v5583 = vunpack.c.l.b16 %v4920
      %v5584 = vunpack.c.l.b16 %v4921
      %v5585 = vunpack.c.l.b16 %v4922
      %v5586 = vunpack.c.l.b16 %v4923
      %v5587 = vunpack.c.l.b16 %v4924
      %v5588 = vunpack.c.l.b16 %v4925
      %v5589 = vunpack.c.l.b16 %v4926
      %v5590 = vunpack.c.l.b16 %v4927
      %v5591 = vunpack.c.l.b16 %v4928
      %v5592 = vunpack.c.l.b16 %v4929
      %v5593 = vunpack.c.l.b16 %v4930
      %v5594 = vunpack.c.l.b16 %v4931
      %v5595 = vunpack.c.l.b16 %v4932
      %v5596 = vunpack.c.l.b16 %v4933
      %v5597 = vunpack.c.l.b16 %v4934
      %v5598 = vunpack.c.l.b16 %v4935
      %v5599 = vunpack.c.l.b16 %v4936
      %v5600 = vunpack.c.l.b16 %v4937
      %v5601 = vunpack.c.l.b16 %v4938
      %v5602 = vunpack.c.l.b16 %v4939
      %v5603 = vunpack.c.l.b16 %v4940
      %v5604 = vunpack.c.l.b16 %v4941
      %v5605 = vunpack.c.l.b16 %v4942
      %v5606 = vunpack.c.l.b16 %v4943
      %v5607 = vunpack.c.l.b16 %v4944
      %v5608 = vunpack.c.l.b16 %v4945
      %v5609 = vunpack.c.l.b16 %v4946
      %v5610 = vunpack.c.l.b16 %v4947
      %v5611 = vunpack.c.l.b16 %v4948
      %v5612 = vpack.c.b16 %v5581, %v5580
      %v5613 = vpack.c.b16 %v5583, %v5582
      %v5614 = vpack.c.b16 %v5585, %v5584
      %v5615 = vpack.c.b16 %v5587, %v5586
      %v5616 = vpack.c.b16 %v5589, %v5588
      %v5617 = vpack.c.b16 %v5591, %v5590
      %v5618 = vpack.c.b16 %v5593, %v5592
      %v5619 = vpack.c.b16 %v5595, %v5594
      %v5620 = vpack.c.b16 %v5597, %v5596
      %v5621 = vpack.c.b16 %v5599, %v5598
      %v5622 = vpack.c.b16 %v5601, %v5600
      %v5623 = vpack.c.b16 %v5603, %v5602
      %v5624 = vpack.c.b16 %v5605, %v5604
      %v5625 = vpack.c.b16 %v5607, %v5606
      %v5626 = vpack.c.b16 %v5609, %v5608
      %v5627 = vpack.c.b16 %v5611, %v5610
      %v5628 = vunpack.c.l.b16 %v4981
      %v5629 = vunpack.c.l.b16 %v4991
      %v5630 = vunpack.c.l.b16 %v5005
      %v5631 = vunpack.c.l.b16 %v5015
      %v5632 = vunpack.c.l.b16 %v5029
      %v5633 = vunpack.c.l.b16 %v5039
      %v5634 = vunpack.c.l.b16 %v5053
      %v5635 = vunpack.c.l.b16 %v5063
      %v5636 = vunpack.c.l.b16 %v5077
      %v5637 = vunpack.c.l.b16 %v5087
      %v5638 = vunpack.c.l.b16 %v5101
      %v5639 = vunpack.c.l.b16 %v5111
      %v5640 = vunpack.c.l.b16 %v5125
      %v5641 = vunpack.c.l.b16 %v5135
      %v5642 = vunpack.c.l.b16 %v5149
      %v5643 = vunpack.c.l.b16 %v5159
      %v5644 = vunpack.c.l.b16 %v5173
      %v5645 = vunpack.c.l.b16 %v5183
      %v5646 = vunpack.c.l.b16 %v5197
      %v5647 = vunpack.c.l.b16 %v5207
      %v5648 = vunpack.c.l.b16 %v5221
      %v5649 = vunpack.c.l.b16 %v5231
      %v5650 = vunpack.c.l.b16 %v5245
      %v5651 = vunpack.c.l.b16 %v5255
      %v5652 = vunpack.c.l.b16 %v5269
      %v5653 = vunpack.c.l.b16 %v5279
      %v5654 = vunpack.c.l.b16 %v5293
      %v5655 = vunpack.c.l.b16 %v5303
      %v5656 = vunpack.c.l.b16 %v5317
      %v5657 = vunpack.c.l.b16 %v5327
      %v5658 = vunpack.c.l.b16 %v5341
      %v5659 = vunpack.c.l.b16 %v5351
      %v5660 = vpack.c.b16 %v5629, %v5628
      %v5661 = vpack.c.b16 %v5631, %v5630
      %v5662 = vpack.c.b16 %v5633, %v5632
      %v5663 = vpack.c.b16 %v5635, %v5634
      %v5664 = vpack.c.b16 %v5637, %v5636
      %v5665 = vpack.c.b16 %v5639, %v5638
      %v5666 = vpack.c.b16 %v5641, %v5640
      %v5667 = vpack.c.b16 %v5643, %v5642
      %v5668 = vpack.c.b16 %v5645, %v5644
      %v5669 = vpack.c.b16 %v5647, %v5646
      %v5670 = vpack.c.b16 %v5649, %v5648
      %v5671 = vpack.c.b16 %v5651, %v5650
      %v5672 = vpack.c.b16 %v5653, %v5652
      %v5673 = vpack.c.b16 %v5655, %v5654
      %v5674 = vpack.c.b16 %v5657, %v5656
      %v5675 = vpack.c.b16 %v5659, %v5658
      %5676 = vrot.lane.b32.xlu0 %v5660, 32
      %v5677 = vpop.permute.xlu0 %5676
      %5678 = vrot.lane.b32.xlu0 %v5661, 32
      %v5679 = vpop.permute.xlu0 %5678
      %5680 = vrot.lane.b32.xlu0 %v5662, 32
      %v5681 = vpop.permute.xlu0 %5680
      %5682 = vrot.lane.b32.xlu0 %v5663, 32
      %v5683 = vpop.permute.xlu0 %5682
      %5684 = vrot.lane.b32.xlu0 %v5664, 32
      %v5685 = vpop.permute.xlu0 %5684
      %5686 = vrot.lane.b32.xlu0 %v5665, 32
      %v5687 = vpop.permute.xlu0 %5686
      %5688 = vrot.lane.b32.xlu0 %v5666, 32
      %v5689 = vpop.permute.xlu0 %5688
      %5690 = vrot.lane.b32.xlu0 %v5667, 32
      %v5691 = vpop.permute.xlu0 %5690
      %5692 = vrot.lane.b32.xlu0 %v5668, 32
      %v5693 = vpop.permute.xlu0 %5692
      %5694 = vrot.lane.b32.xlu0 %v5669, 32
      %v5695 = vpop.permute.xlu0 %5694
      %5696 = vrot.lane.b32.xlu0 %v5670, 32
      %v5697 = vpop.permute.xlu0 %5696
      %5698 = vrot.lane.b32.xlu0 %v5671, 32
      %v5699 = vpop.permute.xlu0 %5698
      %5700 = vrot.lane.b32.xlu0 %v5672, 32
      %v5701 = vpop.permute.xlu0 %5700
      %5702 = vrot.lane.b32.xlu0 %v5673, 32
      %v5703 = vpop.permute.xlu0 %5702
      %5704 = vrot.lane.b32.xlu0 %v5674, 32
      %v5705 = vpop.permute.xlu0 %5704
      %5706 = vrot.lane.b32.xlu0 %v5675, 32
      %v5707 = vpop.permute.xlu0 %5706
      %v5708 = vunpack.c.l.b16 %v5422
      %v5709 = vunpack.c.l.b16 %v5425
      %v5710 = vunpack.c.l.b16 %v5429
      %v5711 = vunpack.c.l.b16 %v5432
      %v5712 = vunpack.c.l.b16 %v5436
      %v5713 = vunpack.c.l.b16 %v5439
      %v5714 = vunpack.c.l.b16 %v5443
      %v5715 = vunpack.c.l.b16 %v5446
      %v5716 = vunpack.c.l.b16 %v5450
      %v5717 = vunpack.c.l.b16 %v5453
      %v5718 = vunpack.c.l.b16 %v5457
      %v5719 = vunpack.c.l.b16 %v5460
      %v5720 = vunpack.c.l.b16 %v5464
      %v5721 = vunpack.c.l.b16 %v5467
      %v5722 = vunpack.c.l.b16 %v5471
      %v5723 = vunpack.c.l.b16 %v5474
      %v5724 = vunpack.c.l.b16 %v5478
      %v5725 = vunpack.c.l.b16 %v5481
      %v5726 = vunpack.c.l.b16 %v5485
      %v5727 = vunpack.c.l.b16 %v5488
      %v5728 = vunpack.c.l.b16 %v5492
      %v5729 = vunpack.c.l.b16 %v5495
      %v5730 = vunpack.c.l.b16 %v5499
      %v5731 = vunpack.c.l.b16 %v5502
      %v5732 = vunpack.c.l.b16 %v5506
      %v5733 = vunpack.c.l.b16 %v5509
      %v5734 = vunpack.c.l.b16 %v5513
      %v5735 = vunpack.c.l.b16 %v5516
      %v5736 = vunpack.c.l.b16 %v5520
      %v5737 = vunpack.c.l.b16 %v5523
      %v5738 = vunpack.c.l.b16 %v5527
      %v5739 = vunpack.c.l.b16 %v5530
      %v5740 = vpack.c.b16 %v5709, %v5708
      %v5741 = vpack.c.b16 %v5711, %v5710
      %v5742 = vpack.c.b16 %v5713, %v5712
      %v5743 = vpack.c.b16 %v5715, %v5714
      %v5744 = vpack.c.b16 %v5717, %v5716
      %v5745 = vpack.c.b16 %v5719, %v5718
      %v5746 = vpack.c.b16 %v5721, %v5720
      %v5747 = vpack.c.b16 %v5723, %v5722
      %v5748 = vpack.c.b16 %v5725, %v5724
      %v5749 = vpack.c.b16 %v5727, %v5726
      %v5750 = vpack.c.b16 %v5729, %v5728
      %v5751 = vpack.c.b16 %v5731, %v5730
      %v5752 = vpack.c.b16 %v5733, %v5732
      %v5753 = vpack.c.b16 %v5735, %v5734
      %v5754 = vpack.c.b16 %v5737, %v5736
      %v5755 = vpack.c.b16 %v5739, %v5738
      %5756 = vrot.lane.b32.xlu0 %v5740, 64
      %v5757 = vpop.permute.xlu0 %5756
      %5758 = vrot.lane.b32.xlu0 %v5741, 64
      %v5759 = vpop.permute.xlu0 %5758
      %5760 = vrot.lane.b32.xlu0 %v5742, 64
      %v5761 = vpop.permute.xlu0 %5760
      %5762 = vrot.lane.b32.xlu0 %v5743, 64
      %v5763 = vpop.permute.xlu0 %5762
      %5764 = vrot.lane.b32.xlu0 %v5744, 64
      %v5765 = vpop.permute.xlu0 %5764
      %5766 = vrot.lane.b32.xlu0 %v5745, 64
      %v5767 = vpop.permute.xlu0 %5766
      %5768 = vrot.lane.b32.xlu0 %v5746, 64
      %v5769 = vpop.permute.xlu0 %5768
      %5770 = vrot.lane.b32.xlu0 %v5747, 64
      %v5771 = vpop.permute.xlu0 %5770
      %5772 = vrot.lane.b32.xlu0 %v5748, 64
      %v5773 = vpop.permute.xlu0 %5772
      %5774 = vrot.lane.b32.xlu0 %v5749, 64
      %v5775 = vpop.permute.xlu0 %5774
      %5776 = vrot.lane.b32.xlu0 %v5750, 64
      %v5777 = vpop.permute.xlu0 %5776
      %5778 = vrot.lane.b32.xlu0 %v5751, 64
      %v5779 = vpop.permute.xlu0 %5778
      %5780 = vrot.lane.b32.xlu0 %v5752, 64
      %v5781 = vpop.permute.xlu0 %5780
      %5782 = vrot.lane.b32.xlu0 %v5753, 64
      %v5783 = vpop.permute.xlu0 %5782
      %5784 = vrot.lane.b32.xlu0 %v5754, 64
      %v5785 = vpop.permute.xlu0 %5784
      %5786 = vrot.lane.b32.xlu0 %v5755, 64
      %v5787 = vpop.permute.xlu0 %5786
      %v5820 = vunpack.c.l.b16 %v5532
      %v5821 = vunpack.c.l.b16 %v5533
      %v5822 = vunpack.c.l.b16 %v5534
      %v5823 = vunpack.c.l.b16 %v5535
      %v5824 = vunpack.c.l.b16 %v5536
      %v5825 = vunpack.c.l.b16 %v5537
      %v5826 = vunpack.c.l.b16 %v5538
      %v5827 = vunpack.c.l.b16 %v5539
      %v5828 = vunpack.c.l.b16 %v5540
      %v5829 = vunpack.c.l.b16 %v5541
      %v5830 = vunpack.c.l.b16 %v5542
      %v5831 = vunpack.c.l.b16 %v5543
      %v5832 = vunpack.c.l.b16 %v5544
      %v5833 = vunpack.c.l.b16 %v5545
      %v5834 = vunpack.c.l.b16 %v5546
      %v5835 = vunpack.c.l.b16 %v5547
      %v5836 = vunpack.c.l.b16 %v5548
      %v5837 = vunpack.c.l.b16 %v5549
      %v5838 = vunpack.c.l.b16 %v5550
      %v5839 = vunpack.c.l.b16 %v5551
      %v5840 = vunpack.c.l.b16 %v5552
      %v5841 = vunpack.c.l.b16 %v5553
      %v5842 = vunpack.c.l.b16 %v5554
      %v5843 = vunpack.c.l.b16 %v5555
      %v5844 = vunpack.c.l.b16 %v5556
      %v5845 = vunpack.c.l.b16 %v5557
      %v5846 = vunpack.c.l.b16 %v5558
      %v5847 = vunpack.c.l.b16 %v5559
      %v5848 = vunpack.c.l.b16 %v5560
      %v5849 = vunpack.c.l.b16 %v5561
      %v5850 = vunpack.c.l.b16 %v5562
      %v5851 = vunpack.c.l.b16 %v5563
      %v5852 = vpack.c.b16 %v5821, %v5820
      %v5853 = vpack.c.b16 %v5823, %v5822
      %v5854 = vpack.c.b16 %v5825, %v5824
      %v5855 = vpack.c.b16 %v5827, %v5826
      %v5856 = vpack.c.b16 %v5829, %v5828
      %v5857 = vpack.c.b16 %v5831, %v5830
      %v5858 = vpack.c.b16 %v5833, %v5832
      %v5859 = vpack.c.b16 %v5835, %v5834
      %v5860 = vpack.c.b16 %v5837, %v5836
      %v5861 = vpack.c.b16 %v5839, %v5838
      %v5862 = vpack.c.b16 %v5841, %v5840
      %v5863 = vpack.c.b16 %v5843, %v5842
      %v5864 = vpack.c.b16 %v5845, %v5844
      %v5865 = vpack.c.b16 %v5847, %v5846
      %v5866 = vpack.c.b16 %v5849, %v5848
      %v5867 = vpack.c.b16 %v5851, %v5850
      %5868 = vrot.lane.b32.xlu0 %v5852, 96
      %v5869 = vpop.permute.xlu0 %5868
      %5870 = vrot.lane.b32.xlu0 %v5853, 96
      %v5871 = vpop.permute.xlu0 %5870
      %5872 = vrot.lane.b32.xlu0 %v5854, 96
      %v5873 = vpop.permute.xlu0 %5872
      %5874 = vrot.lane.b32.xlu0 %v5855, 96
      %v5875 = vpop.permute.xlu0 %5874
      %5876 = vrot.lane.b32.xlu0 %v5856, 96
      %v5877 = vpop.permute.xlu0 %5876
      %5878 = vrot.lane.b32.xlu0 %v5857, 96
      %v5879 = vpop.permute.xlu0 %5878
      %5880 = vrot.lane.b32.xlu0 %v5858, 96
      %v5881 = vpop.permute.xlu0 %5880
      %5882 = vrot.lane.b32.xlu0 %v5859, 96
      %v5883 = vpop.permute.xlu0 %5882
      %5884 = vrot.lane.b32.xlu0 %v5860, 96
      %v5885 = vpop.permute.xlu0 %5884
      %5886 = vrot.lane.b32.xlu0 %v5861, 96
      %v5887 = vpop.permute.xlu0 %5886
      %5888 = vrot.lane.b32.xlu0 %v5862, 96
      %v5889 = vpop.permute.xlu0 %5888
      %5890 = vrot.lane.b32.xlu0 %v5863, 96
      %v5891 = vpop.permute.xlu0 %5890
      %5892 = vrot.lane.b32.xlu0 %v5864, 96
      %v5893 = vpop.permute.xlu0 %5892
      %5894 = vrot.lane.b32.xlu0 %v5865, 96
      %v5895 = vpop.permute.xlu0 %5894
      %5896 = vrot.lane.b32.xlu0 %v5866, 96
      %v5897 = vpop.permute.xlu0 %5896
      %5898 = vrot.lane.b32.xlu0 %v5867, 96
      %v5899 = vpop.permute.xlu0 %5898
      %vm5900 = vcmask 261120
      %v5903 = vsel %vm5900, %v5612, %v5677
      %v5906 = vsel %vm5900, %v5613, %v5679
      %v5909 = vsel %vm5900, %v5614, %v5681
      %v5912 = vsel %vm5900, %v5615, %v5683
      %v5915 = vsel %vm5900, %v5616, %v5685
      %v5918 = vsel %vm5900, %v5617, %v5687
      %v5921 = vsel %vm5900, %v5618, %v5689
      %v5924 = vsel %vm5900, %v5619, %v5691
      %v5927 = vsel %vm5900, %v5620, %v5693
      %v5930 = vsel %vm5900, %v5621, %v5695
      %v5933 = vsel %vm5900, %v5622, %v5697
      %v5936 = vsel %vm5900, %v5623, %v5699
      %v5939 = vsel %vm5900, %v5624, %v5701
      %v5942 = vsel %vm5900, %v5625, %v5703
      %v5945 = vsel %vm5900, %v5626, %v5705
      %v5948 = vsel %vm5900, %v5627, %v5707
      %vm5949 = vcmask 523264
      %v5951 = vsel %vm5949, %v5903, %v5757
      %v5953 = vsel %vm5949, %v5906, %v5759
      %v5955 = vsel %vm5949, %v5909, %v5761
      %v5957 = vsel %vm5949, %v5912, %v5763
      %v5959 = vsel %vm5949, %v5915, %v5765
      %v5961 = vsel %vm5949, %v5918, %v5767
      %v5963 = vsel %vm5949, %v5921, %v5769
      %v5965 = vsel %vm5949, %v5924, %v5771
      %v5967 = vsel %vm5949, %v5927, %v5773
      %v5969 = vsel %vm5949, %v5930, %v5775
      %v5971 = vsel %vm5949, %v5933, %v5777
      %v5973 = vsel %vm5949, %v5936, %v5779
      %v5975 = vsel %vm5949, %v5939, %v5781
      %v5977 = vsel %vm5949, %v5942, %v5783
      %v5979 = vsel %vm5949, %v5945, %v5785
      %v5981 = vsel %vm5949, %v5948, %v5787
      %vm5982 = vcmask 785408
      %v5984 = vsel %vm5982, %v5951, %v5869
      %v5987 = vsel %vm5982, %v5953, %v5871
      %v5990 = vsel %vm5982, %v5955, %v5873
      %v5993 = vsel %vm5982, %v5957, %v5875
      %v5996 = vsel %vm5982, %v5959, %v5877
      %v5999 = vsel %vm5982, %v5961, %v5879
      %v6002 = vsel %vm5982, %v5963, %v5881
      %v6005 = vsel %vm5982, %v5965, %v5883
      %v6008 = vsel %vm5982, %v5967, %v5885
      %v6011 = vsel %vm5982, %v5969, %v5887
      %v6014 = vsel %vm5982, %v5971, %v5889
      %v6017 = vsel %vm5982, %v5973, %v5891
      %v6020 = vsel %vm5982, %v5975, %v5893
      %v6023 = vsel %vm5982, %v5977, %v5895
      %v6026 = vsel %vm5982, %v5979, %v5897
      %v6029 = vsel %vm5982, %v5981, %v5899
      %6031 = vst [vmem:[#allocation3] sm:$0xff] %v5984
      %6032 = vst [vmem:[#allocation3 + $0x18] sm:$0xff] %v5987
      %6033 = vst [vmem:[#allocation3 + $0x30] sm:$0xff] %v5990
      %6034 = vst [vmem:[#allocation3 + $0x48] sm:$0xff] %v5993
      %6035 = vst [vmem:[#allocation3 + $0x60] sm:$0xff] %v5996
      %6036 = vst [vmem:[#allocation3 + $0x78] sm:$0xff] %v5999
      %6037 = vst [vmem:[#allocation3 + $0x90] sm:$0xff] %v6002
      %6038 = vst [vmem:[#allocation3 + $0xa8] sm:$0xff] %v6005
      %6039 = vst [vmem:[#allocation3 + $0xc0] sm:$0xff] %v6008
      %6040 = vst [vmem:[#allocation3 + $0xd8] sm:$0xff] %v6011
      %6041 = vst [vmem:[#allocation3 + $0xf0] sm:$0xff] %v6014
      %6042 = vst [vmem:[#allocation3 + $0x108] sm:$0xff] %v6017
      %6043 = vst [vmem:[#allocation3 + $0x120] sm:$0xff] %v6020
      %6044 = vst [vmem:[#allocation3 + $0x138] sm:$0xff] %v6023
      %6045 = vst [vmem:[#allocation3 + $0x150] sm:$0xff] %v6026
      %6046 = vst [vmem:[#allocation3 + $0x168] sm:$0xff] %v6029
      %v6047 = vld [vmem:[%s5531] sm:$0xf]
      %v6048 = vld [vmem:[%s5531 + $0x4] sm:$0xf]
      %v6049 = vld [vmem:[%s5531 + $0x8] sm:$0x1]
      %v6050 = vld [vmem:[%s5531 + $0xc] sm:$0xf]
      %v6051 = vld [vmem:[%s5531 + $0x10] sm:$0xf]
      %v6052 = vld [vmem:[%s5531 + $0x14] sm:$0x1]
      %v6053 = vld [vmem:[%s5531 + $0x18] sm:$0xf]
      %v6054 = vld [vmem:[%s5531 + $0x1c] sm:$0xf]
      %v6055 = vld [vmem:[%s5531 + $0x20] sm:$0x1]
      %v6056 = vld [vmem:[%s5531 + $0x24] sm:$0xf]
      %v6057 = vld [vmem:[%s5531 + $0x28] sm:$0xf]
      %v6058 = vld [vmem:[%s5531 + $0x2c] sm:$0x1]
      %v6059 = vld [vmem:[%s5531 + $0x30] sm:$0xf]
      %v6060 = vld [vmem:[%s5531 + $0x34] sm:$0xf]
      %v6061 = vld [vmem:[%s5531 + $0x38] sm:$0x1]
      %v6062 = vld [vmem:[%s5531 + $0x3c] sm:$0xf]
      %v6063 = vld [vmem:[%s5531 + $0x40] sm:$0xf]
      %v6064 = vld [vmem:[%s5531 + $0x44] sm:$0x1]
      %v6065 = vld [vmem:[%s5531 + $0x48] sm:$0xf]
      %v6066 = vld [vmem:[%s5531 + $0x4c] sm:$0xf]
      %v6067 = vld [vmem:[%s5531 + $0x50] sm:$0x1]
      %v6068 = vld [vmem:[%s5531 + $0x54] sm:$0xf]
      %v6069 = vld [vmem:[%s5531 + $0x58] sm:$0xf]
      %v6070 = vld [vmem:[%s5531 + $0x5c] sm:$0x1]
      %v6071 = vld [vmem:[%s5531 + $0x60] sm:$0xf]
      %v6072 = vld [vmem:[%s5531 + $0x64] sm:$0xf]
      %v6073 = vld [vmem:[%s5531 + $0x68] sm:$0x1]
      %v6074 = vld [vmem:[%s5531 + $0x6c] sm:$0xf]
      %v6075 = vld [vmem:[%s5531 + $0x70] sm:$0xf]
      %v6076 = vld [vmem:[%s5531 + $0x74] sm:$0x1]
      %v6077 = vld [vmem:[%s5531 + $0x78] sm:$0xf]
      %v6078 = vld [vmem:[%s5531 + $0x7c] sm:$0xf]
      %v6079 = vld [vmem:[%s5531 + $0x80] sm:$0x1]
      %v6080 = vld [vmem:[%s5531 + $0x84] sm:$0xf]
      %v6081 = vld [vmem:[%s5531 + $0x88] sm:$0xf]
      %v6082 = vld [vmem:[%s5531 + $0x8c] sm:$0x1]
      %v6083 = vld [vmem:[%s5531 + $0x90] sm:$0xf]
      %v6084 = vld [vmem:[%s5531 + $0x94] sm:$0xf]
      %v6085 = vld [vmem:[%s5531 + $0x98] sm:$0x1]
      %v6086 = vld [vmem:[%s5531 + $0x9c] sm:$0xf]
      %v6087 = vld [vmem:[%s5531 + $0xa0] sm:$0xf]
      %v6088 = vld [vmem:[%s5531 + $0xa4] sm:$0x1]
      %v6089 = vld [vmem:[%s5531 + $0xa8] sm:$0xf]
      %v6090 = vld [vmem:[%s5531 + $0xac] sm:$0xf]
      %v6091 = vld [vmem:[%s5531 + $0xb0] sm:$0x1]
      %v6092 = vld [vmem:[%s5531 + $0xb4] sm:$0xf]
      %v6093 = vld [vmem:[%s5531 + $0xb8] sm:$0xf]
      %v6094 = vld [vmem:[%s5531 + $0xbc] sm:$0x1]
      %v6096 = vshrl.u32 %v6047, 16
      %v6098 = vrot.slane %v6096, 4
      %v6099 = vshll.u32 %v6047, 16
      %v6101 = vrot.slane %v6099, 5
      %v6102 = vor.u32 %v6098, %v6101
      %v6103 = vrot.slane %v6102, 4
      %v6105 = vshll.u32 %v6048, 16
      %v6107 = vrot.slane %v6105, 5
      %v6108 = vsel %vm4967, %v6103, %v6107
      %v6109 = vshrl.u32 %v6048, 16
      %v6111 = vrot.slane %v6109, 4
      %v6112 = vor.u32 %v6111, %v6107
      %v6113 = vrot.slane %v6112, 4
      %v6115 = vshll.u32 %v6049, 16
      %v6117 = vrot.slane %v6115, 5
      %v6118 = vsel %vm4967, %v6113, %v6117
      %v6120 = vshrl.u32 %v6050, 16
      %v6122 = vrot.slane %v6120, 4
      %v6123 = vshll.u32 %v6050, 16
      %v6125 = vrot.slane %v6123, 5
      %v6126 = vor.u32 %v6122, %v6125
      %v6127 = vrot.slane %v6126, 4
      %v6129 = vshll.u32 %v6051, 16
      %v6131 = vrot.slane %v6129, 5
      %v6132 = vsel %vm4967, %v6127, %v6131
      %v6133 = vshrl.u32 %v6051, 16
      %v6135 = vrot.slane %v6133, 4
      %v6136 = vor.u32 %v6135, %v6131
      %v6137 = vrot.slane %v6136, 4
      %v6139 = vshll.u32 %v6052, 16
      %v6141 = vrot.slane %v6139, 5
      %v6142 = vsel %vm4967, %v6137, %v6141
      %v6144 = vshrl.u32 %v6053, 16
      %v6146 = vrot.slane %v6144, 4
      %v6147 = vshll.u32 %v6053, 16
      %v6149 = vrot.slane %v6147, 5
      %v6150 = vor.u32 %v6146, %v6149
      %v6151 = vrot.slane %v6150, 4
      %v6153 = vshll.u32 %v6054, 16
      %v6155 = vrot.slane %v6153, 5
      %v6156 = vsel %vm4967, %v6151, %v6155
      %v6157 = vshrl.u32 %v6054, 16
      %v6159 = vrot.slane %v6157, 4
      %v6160 = vor.u32 %v6159, %v6155
      %v6161 = vrot.slane %v6160, 4
      %v6163 = vshll.u32 %v6055, 16
      %v6165 = vrot.slane %v6163, 5
      %v6166 = vsel %vm4967, %v6161, %v6165
      %v6168 = vshrl.u32 %v6056, 16
      %v6170 = vrot.slane %v6168, 4
      %v6171 = vshll.u32 %v6056, 16
      %v6173 = vrot.slane %v6171, 5
      %v6174 = vor.u32 %v6170, %v6173
      %v6175 = vrot.slane %v6174, 4
      %v6177 = vshll.u32 %v6057, 16
      %v6179 = vrot.slane %v6177, 5
      %v6180 = vsel %vm4967, %v6175, %v6179
      %v6181 = vshrl.u32 %v6057, 16
      %v6183 = vrot.slane %v6181, 4
      %v6184 = vor.u32 %v6183, %v6179
      %v6185 = vrot.slane %v6184, 4
      %v6187 = vshll.u32 %v6058, 16
      %v6189 = vrot.slane %v6187, 5
      %v6190 = vsel %vm4967, %v6185, %v6189
      %v6192 = vshrl.u32 %v6059, 16
      %v6194 = vrot.slane %v6192, 4
      %v6195 = vshll.u32 %v6059, 16
      %v6197 = vrot.slane %v6195, 5
      %v6198 = vor.u32 %v6194, %v6197
      %v6199 = vrot.slane %v6198, 4
      %v6201 = vshll.u32 %v6060, 16
      %v6203 = vrot.slane %v6201, 5
      %v6204 = vsel %vm4967, %v6199, %v6203
      %v6205 = vshrl.u32 %v6060, 16
      %v6207 = vrot.slane %v6205, 4
      %v6208 = vor.u32 %v6207, %v6203
      %v6209 = vrot.slane %v6208, 4
      %v6211 = vshll.u32 %v6061, 16
      %v6213 = vrot.slane %v6211, 5
      %v6214 = vsel %vm4967, %v6209, %v6213
      %v6216 = vshrl.u32 %v6062, 16
      %v6218 = vrot.slane %v6216, 4
      %v6219 = vshll.u32 %v6062, 16
      %v6221 = vrot.slane %v6219, 5
      %v6222 = vor.u32 %v6218, %v6221
      %v6223 = vrot.slane %v6222, 4
      %v6225 = vshll.u32 %v6063, 16
      %v6227 = vrot.slane %v6225, 5
      %v6228 = vsel %vm4967, %v6223, %v6227
      %v6229 = vshrl.u32 %v6063, 16
      %v6231 = vrot.slane %v6229, 4
      %v6232 = vor.u32 %v6231, %v6227
      %v6233 = vrot.slane %v6232, 4
      %v6235 = vshll.u32 %v6064, 16
      %v6237 = vrot.slane %v6235, 5
      %v6238 = vsel %vm4967, %v6233, %v6237
      %v6240 = vshrl.u32 %v6065, 16
      %v6242 = vrot.slane %v6240, 4
      %v6243 = vshll.u32 %v6065, 16
      %v6245 = vrot.slane %v6243, 5
      %v6246 = vor.u32 %v6242, %v6245
      %v6247 = vrot.slane %v6246, 4
      %v6249 = vshll.u32 %v6066, 16
      %v6251 = vrot.slane %v6249, 5
      %v6252 = vsel %vm4967, %v6247, %v6251
      %v6253 = vshrl.u32 %v6066, 16
      %v6255 = vrot.slane %v6253, 4
      %v6256 = vor.u32 %v6255, %v6251
      %v6257 = vrot.slane %v6256, 4
      %v6259 = vshll.u32 %v6067, 16
      %v6261 = vrot.slane %v6259, 5
      %v6262 = vsel %vm4967, %v6257, %v6261
      %v6264 = vshrl.u32 %v6068, 16
      %v6266 = vrot.slane %v6264, 4
      %v6267 = vshll.u32 %v6068, 16
      %v6269 = vrot.slane %v6267, 5
      %v6270 = vor.u32 %v6266, %v6269
      %v6271 = vrot.slane %v6270, 4
      %v6273 = vshll.u32 %v6069, 16
      %v6275 = vrot.slane %v6273, 5
      %v6276 = vsel %vm4967, %v6271, %v6275
      %v6277 = vshrl.u32 %v6069, 16
      %v6279 = vrot.slane %v6277, 4
      %v6280 = vor.u32 %v6279, %v6275
      %v6281 = vrot.slane %v6280, 4
      %v6283 = vshll.u32 %v6070, 16
      %v6285 = vrot.slane %v6283, 5
      %v6286 = vsel %vm4967, %v6281, %v6285
      %v6288 = vshrl.u32 %v6071, 16
      %v6290 = vrot.slane %v6288, 4
      %v6291 = vshll.u32 %v6071, 16
      %v6293 = vrot.slane %v6291, 5
      %v6294 = vor.u32 %v6290, %v6293
      %v6295 = vrot.slane %v6294, 4
      %v6297 = vshll.u32 %v6072, 16
      %v6299 = vrot.slane %v6297, 5
      %v6300 = vsel %vm4967, %v6295, %v6299
      %v6301 = vshrl.u32 %v6072, 16
      %v6303 = vrot.slane %v6301, 4
      %v6304 = vor.u32 %v6303, %v6299
      %v6305 = vrot.slane %v6304, 4
      %v6307 = vshll.u32 %v6073, 16
      %v6309 = vrot.slane %v6307, 5
      %v6310 = vsel %vm4967, %v6305, %v6309
      %v6312 = vshrl.u32 %v6074, 16
      %v6314 = vrot.slane %v6312, 4
      %v6315 = vshll.u32 %v6074, 16
      %v6317 = vrot.slane %v6315, 5
      %v6318 = vor.u32 %v6314, %v6317
      %v6319 = vrot.slane %v6318, 4
      %v6321 = vshll.u32 %v6075, 16
      %v6323 = vrot.slane %v6321, 5
      %v6324 = vsel %vm4967, %v6319, %v6323
      %v6325 = vshrl.u32 %v6075, 16
      %v6327 = vrot.slane %v6325, 4
      %v6328 = vor.u32 %v6327, %v6323
      %v6329 = vrot.slane %v6328, 4
      %v6331 = vshll.u32 %v6076, 16
      %v6333 = vrot.slane %v6331, 5
      %v6334 = vsel %vm4967, %v6329, %v6333
      %v6336 = vshrl.u32 %v6077, 16
      %v6338 = vrot.slane %v6336, 4
      %v6339 = vshll.u32 %v6077, 16
      %v6341 = vrot.slane %v6339, 5
      %v6342 = vor.u32 %v6338, %v6341
      %v6343 = vrot.slane %v6342, 4
      %v6345 = vshll.u32 %v6078, 16
      %v6347 = vrot.slane %v6345, 5
      %v6348 = vsel %vm4967, %v6343, %v6347
      %v6349 = vshrl.u32 %v6078, 16
      %v6351 = vrot.slane %v6349, 4
      %v6352 = vor.u32 %v6351, %v6347
      %v6353 = vrot.slane %v6352, 4
      %v6355 = vshll.u32 %v6079, 16
      %v6357 = vrot.slane %v6355, 5
      %v6358 = vsel %vm4967, %v6353, %v6357
      %v6360 = vshrl.u32 %v6080, 16
      %v6362 = vrot.slane %v6360, 4
      %v6363 = vshll.u32 %v6080, 16
      %v6365 = vrot.slane %v6363, 5
      %v6366 = vor.u32 %v6362, %v6365
      %v6367 = vrot.slane %v6366, 4
      %v6369 = vshll.u32 %v6081, 16
      %v6371 = vrot.slane %v6369, 5
      %v6372 = vsel %vm4967, %v6367, %v6371
      %v6373 = vshrl.u32 %v6081, 16
      %v6375 = vrot.slane %v6373, 4
      %v6376 = vor.u32 %v6375, %v6371
      %v6377 = vrot.slane %v6376, 4
      %v6379 = vshll.u32 %v6082, 16
      %v6381 = vrot.slane %v6379, 5
      %v6382 = vsel %vm4967, %v6377, %v6381
      %v6384 = vshrl.u32 %v6083, 16
      %v6386 = vrot.slane %v6384, 4
      %v6387 = vshll.u32 %v6083, 16
      %v6389 = vrot.slane %v6387, 5
      %v6390 = vor.u32 %v6386, %v6389
      %v6391 = vrot.slane %v6390, 4
      %v6393 = vshll.u32 %v6084, 16
      %v6395 = vrot.slane %v6393, 5
      %v6396 = vsel %vm4967, %v6391, %v6395
      %v6397 = vshrl.u32 %v6084, 16
      %v6399 = vrot.slane %v6397, 4
      %v6400 = vor.u32 %v6399, %v6395
      %v6401 = vrot.slane %v6400, 4
      %v6403 = vshll.u32 %v6085, 16
      %v6405 = vrot.slane %v6403, 5
      %v6406 = vsel %vm4967, %v6401, %v6405
      %v6408 = vshrl.u32 %v6086, 16
      %v6410 = vrot.slane %v6408, 4
      %v6411 = vshll.u32 %v6086, 16
      %v6413 = vrot.slane %v6411, 5
      %v6414 = vor.u32 %v6410, %v6413
      %v6415 = vrot.slane %v6414, 4
      %v6417 = vshll.u32 %v6087, 16
      %v6419 = vrot.slane %v6417, 5
      %v6420 = vsel %vm4967, %v6415, %v6419
      %v6421 = vshrl.u32 %v6087, 16
      %v6423 = vrot.slane %v6421, 4
      %v6424 = vor.u32 %v6423, %v6419
      %v6425 = vrot.slane %v6424, 4
      %v6427 = vshll.u32 %v6088, 16
      %v6429 = vrot.slane %v6427, 5
      %v6430 = vsel %vm4967, %v6425, %v6429
      %v6432 = vshrl.u32 %v6089, 16
      %v6434 = vrot.slane %v6432, 4
      %v6435 = vshll.u32 %v6089, 16
      %v6437 = vrot.slane %v6435, 5
      %v6438 = vor.u32 %v6434, %v6437
      %v6439 = vrot.slane %v6438, 4
      %v6441 = vshll.u32 %v6090, 16
      %v6443 = vrot.slane %v6441, 5
      %v6444 = vsel %vm4967, %v6439, %v6443
      %v6445 = vshrl.u32 %v6090, 16
      %v6447 = vrot.slane %v6445, 4
      %v6448 = vor.u32 %v6447, %v6443
      %v6449 = vrot.slane %v6448, 4
      %v6451 = vshll.u32 %v6091, 16
      %v6453 = vrot.slane %v6451, 5
      %v6454 = vsel %vm4967, %v6449, %v6453
      %v6456 = vshrl.u32 %v6092, 16
      %v6458 = vrot.slane %v6456, 4
      %v6459 = vshll.u32 %v6092, 16
      %v6461 = vrot.slane %v6459, 5
      %v6462 = vor.u32 %v6458, %v6461
      %v6463 = vrot.slane %v6462, 4
      %v6465 = vshll.u32 %v6093, 16
      %v6467 = vrot.slane %v6465, 5
      %v6468 = vsel %vm4967, %v6463, %v6467
      %v6469 = vshrl.u32 %v6093, 16
      %v6471 = vrot.slane %v6469, 4
      %v6472 = vor.u32 %v6471, %v6467
      %v6473 = vrot.slane %v6472, 4
      %v6475 = vshll.u32 %v6094, 16
      %v6477 = vrot.slane %v6475, 5
      %v6478 = vsel %vm4967, %v6473, %v6477
      %v6479 = vld [vmem:[%s5531] sm:$0xe]
      %v6480 = vld [vmem:[%s5531 + $0xc] sm:$0xe]
      %v6481 = vld [vmem:[%s5531 + $0x18] sm:$0xe]
      %v6482 = vld [vmem:[%s5531 + $0x24] sm:$0xe]
      %v6483 = vld [vmem:[%s5531 + $0x30] sm:$0xe]
      %v6484 = vld [vmem:[%s5531 + $0x3c] sm:$0xe]
      %v6485 = vld [vmem:[%s5531 + $0x48] sm:$0xe]
      %v6486 = vld [vmem:[%s5531 + $0x54] sm:$0xe]
      %v6487 = vld [vmem:[%s5531 + $0x60] sm:$0xe]
      %v6488 = vld [vmem:[%s5531 + $0x6c] sm:$0xe]
      %v6489 = vld [vmem:[%s5531 + $0x78] sm:$0xe]
      %v6490 = vld [vmem:[%s5531 + $0x84] sm:$0xe]
      %v6491 = vld [vmem:[%s5531 + $0x90] sm:$0xe]
      %v6492 = vld [vmem:[%s5531 + $0x9c] sm:$0xe]
      %v6493 = vld [vmem:[%s5531 + $0xa8] sm:$0xe]
      %v6494 = vld [vmem:[%s5531 + $0xb4] sm:$0xe]
      %v6543 = vrot.slane %v6479, 5
      %v6544 = vrot.slane %v6543, 4
      %v6545 = vrot.slane %v6048, 5
      %v6546 = vsel %vm5418, %v6544, %v6545
      %v6547 = vrot.slane %v6545, 4
      %v6548 = vrot.slane %v6049, 5
      %v6549 = vsel %vm5418, %v6547, %v6548
      %v6550 = vrot.slane %v6480, 5
      %v6551 = vrot.slane %v6550, 4
      %v6552 = vrot.slane %v6051, 5
      %v6553 = vsel %vm5418, %v6551, %v6552
      %v6554 = vrot.slane %v6552, 4
      %v6555 = vrot.slane %v6052, 5
      %v6556 = vsel %vm5418, %v6554, %v6555
      %v6557 = vrot.slane %v6481, 5
      %v6558 = vrot.slane %v6557, 4
      %v6559 = vrot.slane %v6054, 5
      %v6560 = vsel %vm5418, %v6558, %v6559
      %v6561 = vrot.slane %v6559, 4
      %v6562 = vrot.slane %v6055, 5
      %v6563 = vsel %vm5418, %v6561, %v6562
      %v6564 = vrot.slane %v6482, 5
      %v6565 = vrot.slane %v6564, 4
      %v6566 = vrot.slane %v6057, 5
      %v6567 = vsel %vm5418, %v6565, %v6566
      %v6568 = vrot.slane %v6566, 4
      %v6569 = vrot.slane %v6058, 5
      %v6570 = vsel %vm5418, %v6568, %v6569
      %v6571 = vrot.slane %v6483, 5
      %v6572 = vrot.slane %v6571, 4
      %v6573 = vrot.slane %v6060, 5
      %v6574 = vsel %vm5418, %v6572, %v6573
      %v6575 = vrot.slane %v6573, 4
      %v6576 = vrot.slane %v6061, 5
      %v6577 = vsel %vm5418, %v6575, %v6576
      %v6578 = vrot.slane %v6484, 5
      %v6579 = vrot.slane %v6578, 4
      %v6580 = vrot.slane %v6063, 5
      %v6581 = vsel %vm5418, %v6579, %v6580
      %v6582 = vrot.slane %v6580, 4
      %v6583 = vrot.slane %v6064, 5
      %v6584 = vsel %vm5418, %v6582, %v6583
      %v6585 = vrot.slane %v6485, 5
      %v6586 = vrot.slane %v6585, 4
      %v6587 = vrot.slane %v6066, 5
      %v6588 = vsel %vm5418, %v6586, %v6587
      %v6589 = vrot.slane %v6587, 4
      %v6590 = vrot.slane %v6067, 5
      %v6591 = vsel %vm5418, %v6589, %v6590
      %v6592 = vrot.slane %v6486, 5
      %v6593 = vrot.slane %v6592, 4
      %v6594 = vrot.slane %v6069, 5
      %v6595 = vsel %vm5418, %v6593, %v6594
      %v6596 = vrot.slane %v6594, 4
      %v6597 = vrot.slane %v6070, 5
      %v6598 = vsel %vm5418, %v6596, %v6597
      %v6599 = vrot.slane %v6487, 5
      %v6600 = vrot.slane %v6599, 4
      %v6601 = vrot.slane %v6072, 5
      %v6602 = vsel %vm5418, %v6600, %v6601
      %v6603 = vrot.slane %v6601, 4
      %v6604 = vrot.slane %v6073, 5
      %v6605 = vsel %vm5418, %v6603, %v6604
      %v6606 = vrot.slane %v6488, 5
      %v6607 = vrot.slane %v6606, 4
      %v6608 = vrot.slane %v6075, 5
      %v6609 = vsel %vm5418, %v6607, %v6608
      %v6610 = vrot.slane %v6608, 4
      %v6611 = vrot.slane %v6076, 5
      %v6612 = vsel %vm5418, %v6610, %v6611
      %v6613 = vrot.slane %v6489, 5
      %v6614 = vrot.slane %v6613, 4
      %v6615 = vrot.slane %v6078, 5
      %v6616 = vsel %vm5418, %v6614, %v6615
      %v6617 = vrot.slane %v6615, 4
      %v6618 = vrot.slane %v6079, 5
      %v6619 = vsel %vm5418, %v6617, %v6618
      %v6620 = vrot.slane %v6490, 5
      %v6621 = vrot.slane %v6620, 4
      %v6622 = vrot.slane %v6081, 5
      %v6623 = vsel %vm5418, %v6621, %v6622
      %v6624 = vrot.slane %v6622, 4
      %v6625 = vrot.slane %v6082, 5
      %v6626 = vsel %vm5418, %v6624, %v6625
      %v6627 = vrot.slane %v6491, 5
      %v6628 = vrot.slane %v6627, 4
      %v6629 = vrot.slane %v6084, 5
      %v6630 = vsel %vm5418, %v6628, %v6629
      %v6631 = vrot.slane %v6629, 4
      %v6632 = vrot.slane %v6085, 5
      %v6633 = vsel %vm5418, %v6631, %v6632
      %v6634 = vrot.slane %v6492, 5
      %v6635 = vrot.slane %v6634, 4
      %v6636 = vrot.slane %v6087, 5
      %v6637 = vsel %vm5418, %v6635, %v6636
      %v6638 = vrot.slane %v6636, 4
      %v6639 = vrot.slane %v6088, 5
      %v6640 = vsel %vm5418, %v6638, %v6639
      %v6641 = vrot.slane %v6493, 5
      %v6642 = vrot.slane %v6641, 4
      %v6643 = vrot.slane %v6090, 5
      %v6644 = vsel %vm5418, %v6642, %v6643
      %v6645 = vrot.slane %v6643, 4
      %v6646 = vrot.slane %v6091, 5
      %v6647 = vsel %vm5418, %v6645, %v6646
      %v6648 = vrot.slane %v6494, 5
      %v6649 = vrot.slane %v6648, 4
      %v6650 = vrot.slane %v6093, 5
      %v6651 = vsel %vm5418, %v6649, %v6650
      %v6652 = vrot.slane %v6650, 4
      %v6653 = vrot.slane %v6094, 5
      %v6654 = vsel %vm5418, %v6652, %v6653
      %s6655 = scalar_lea.vmem [#allocation2], 24
      %v6656 = vld [vmem:[%s6655] sm:$0xf]
      %v6657 = vld [vmem:[%s6655 + $0x4] sm:$0xf]
      %v6658 = vld [vmem:[%s6655 + $0xc] sm:$0xf]
      %v6659 = vld [vmem:[%s6655 + $0x10] sm:$0xf]
      %v6660 = vld [vmem:[%s6655 + $0x18] sm:$0xf]
      %v6661 = vld [vmem:[%s6655 + $0x1c] sm:$0xf]
      %v6662 = vld [vmem:[%s6655 + $0x24] sm:$0xf]
      %v6663 = vld [vmem:[%s6655 + $0x28] sm:$0xf]
      %v6664 = vld [vmem:[%s6655 + $0x30] sm:$0xf]
      %v6665 = vld [vmem:[%s6655 + $0x34] sm:$0xf]
      %v6666 = vld [vmem:[%s6655 + $0x3c] sm:$0xf]
      %v6667 = vld [vmem:[%s6655 + $0x40] sm:$0xf]
      %v6668 = vld [vmem:[%s6655 + $0x48] sm:$0xf]
      %v6669 = vld [vmem:[%s6655 + $0x4c] sm:$0xf]
      %v6670 = vld [vmem:[%s6655 + $0x54] sm:$0xf]
      %v6671 = vld [vmem:[%s6655 + $0x58] sm:$0xf]
      %v6672 = vld [vmem:[%s6655 + $0x60] sm:$0xf]
      %v6673 = vld [vmem:[%s6655 + $0x64] sm:$0xf]
      %v6674 = vld [vmem:[%s6655 + $0x6c] sm:$0xf]
      %v6675 = vld [vmem:[%s6655 + $0x70] sm:$0xf]
      %v6676 = vld [vmem:[%s6655 + $0x78] sm:$0xf]
      %v6677 = vld [vmem:[%s6655 + $0x7c] sm:$0xf]
      %v6678 = vld [vmem:[%s6655 + $0x84] sm:$0xf]
      %v6679 = vld [vmem:[%s6655 + $0x88] sm:$0xf]
      %v6680 = vld [vmem:[%s6655 + $0x90] sm:$0xf]
      %v6681 = vld [vmem:[%s6655 + $0x94] sm:$0xf]
      %v6682 = vld [vmem:[%s6655 + $0x9c] sm:$0xf]
      %v6683 = vld [vmem:[%s6655 + $0xa0] sm:$0xf]
      %v6684 = vld [vmem:[%s6655 + $0xa8] sm:$0xf]
      %v6685 = vld [vmem:[%s6655 + $0xac] sm:$0xf]
      %v6686 = vld [vmem:[%s6655 + $0xb4] sm:$0xf]
      %v6687 = vld [vmem:[%s6655 + $0xb8] sm:$0xf]
      %v6688 = vld [vmem:[%s6655 + $0x8] sm:$0x1]
      %v6689 = vld [vmem:[%s6655 + $0x14] sm:$0x1]
      %v6690 = vld [vmem:[%s6655 + $0x20] sm:$0x1]
      %v6691 = vld [vmem:[%s6655 + $0x2c] sm:$0x1]
      %v6692 = vld [vmem:[%s6655 + $0x38] sm:$0x1]
      %v6693 = vld [vmem:[%s6655 + $0x44] sm:$0x1]
      %v6694 = vld [vmem:[%s6655 + $0x50] sm:$0x1]
      %v6695 = vld [vmem:[%s6655 + $0x5c] sm:$0x1]
      %v6696 = vld [vmem:[%s6655 + $0x68] sm:$0x1]
      %v6697 = vld [vmem:[%s6655 + $0x74] sm:$0x1]
      %v6698 = vld [vmem:[%s6655 + $0x80] sm:$0x1]
      %v6699 = vld [vmem:[%s6655 + $0x8c] sm:$0x1]
      %v6700 = vld [vmem:[%s6655 + $0x98] sm:$0x1]
      %v6701 = vld [vmem:[%s6655 + $0xa4] sm:$0x1]
      %v6702 = vld [vmem:[%s6655 + $0xb0] sm:$0x1]
      %v6703 = vld [vmem:[%s6655 + $0xbc] sm:$0x1]
      %v6705 = vshrl.u32 %v6656, 16
      %v6707 = vrot.slane %v6705, 4
      %v6708 = vshll.u32 %v6656, 16
      %v6710 = vrot.slane %v6708, 5
      %v6711 = vor.u32 %v6707, %v6710
      %v6712 = vrot.slane %v6711, 4
      %v6714 = vshll.u32 %v6657, 16
      %v6716 = vrot.slane %v6714, 5
      %v6717 = vsel %vm4967, %v6712, %v6716
      %v6718 = vshrl.u32 %v6657, 16
      %v6720 = vrot.slane %v6718, 4
      %v6721 = vor.u32 %v6720, %v6716
      %v6722 = vrot.slane %v6721, 4
      %v6724 = vshll.u32 %v6688, 16
      %v6726 = vrot.slane %v6724, 5
      %v6727 = vsel %vm4967, %v6722, %v6726
      %v6729 = vshrl.u32 %v6658, 16
      %v6731 = vrot.slane %v6729, 4
      %v6732 = vshll.u32 %v6658, 16
      %v6734 = vrot.slane %v6732, 5
      %v6735 = vor.u32 %v6731, %v6734
      %v6736 = vrot.slane %v6735, 4
      %v6738 = vshll.u32 %v6659, 16
      %v6740 = vrot.slane %v6738, 5
      %v6741 = vsel %vm4967, %v6736, %v6740
      %v6742 = vshrl.u32 %v6659, 16
      %v6744 = vrot.slane %v6742, 4
      %v6745 = vor.u32 %v6744, %v6740
      %v6746 = vrot.slane %v6745, 4
      %v6748 = vshll.u32 %v6689, 16
      %v6750 = vrot.slane %v6748, 5
      %v6751 = vsel %vm4967, %v6746, %v6750
      %v6753 = vshrl.u32 %v6660, 16
      %v6755 = vrot.slane %v6753, 4
      %v6756 = vshll.u32 %v6660, 16
      %v6758 = vrot.slane %v6756, 5
      %v6759 = vor.u32 %v6755, %v6758
      %v6760 = vrot.slane %v6759, 4
      %v6762 = vshll.u32 %v6661, 16
      %v6764 = vrot.slane %v6762, 5
      %v6765 = vsel %vm4967, %v6760, %v6764
      %v6766 = vshrl.u32 %v6661, 16
      %v6768 = vrot.slane %v6766, 4
      %v6769 = vor.u32 %v6768, %v6764
      %v6770 = vrot.slane %v6769, 4
      %v6772 = vshll.u32 %v6690, 16
      %v6774 = vrot.slane %v6772, 5
      %v6775 = vsel %vm4967, %v6770, %v6774
      %v6777 = vshrl.u32 %v6662, 16
      %v6779 = vrot.slane %v6777, 4
      %v6780 = vshll.u32 %v6662, 16
      %v6782 = vrot.slane %v6780, 5
      %v6783 = vor.u32 %v6779, %v6782
      %v6784 = vrot.slane %v6783, 4
      %v6786 = vshll.u32 %v6663, 16
      %v6788 = vrot.slane %v6786, 5
      %v6789 = vsel %vm4967, %v6784, %v6788
      %v6790 = vshrl.u32 %v6663, 16
      %v6792 = vrot.slane %v6790, 4
      %v6793 = vor.u32 %v6792, %v6788
      %v6794 = vrot.slane %v6793, 4
      %v6796 = vshll.u32 %v6691, 16
      %v6798 = vrot.slane %v6796, 5
      %v6799 = vsel %vm4967, %v6794, %v6798
      %v6801 = vshrl.u32 %v6664, 16
      %v6803 = vrot.slane %v6801, 4
      %v6804 = vshll.u32 %v6664, 16
      %v6806 = vrot.slane %v6804, 5
      %v6807 = vor.u32 %v6803, %v6806
      %v6808 = vrot.slane %v6807, 4
      %v6810 = vshll.u32 %v6665, 16
      %v6812 = vrot.slane %v6810, 5
      %v6813 = vsel %vm4967, %v6808, %v6812
      %v6814 = vshrl.u32 %v6665, 16
      %v6816 = vrot.slane %v6814, 4
      %v6817 = vor.u32 %v6816, %v6812
      %v6818 = vrot.slane %v6817, 4
      %v6820 = vshll.u32 %v6692, 16
      %v6822 = vrot.slane %v6820, 5
      %v6823 = vsel %vm4967, %v6818, %v6822
      %v6825 = vshrl.u32 %v6666, 16
      %v6827 = vrot.slane %v6825, 4
      %v6828 = vshll.u32 %v6666, 16
      %v6830 = vrot.slane %v6828, 5
      %v6831 = vor.u32 %v6827, %v6830
      %v6832 = vrot.slane %v6831, 4
      %v6834 = vshll.u32 %v6667, 16
      %v6836 = vrot.slane %v6834, 5
      %v6837 = vsel %vm4967, %v6832, %v6836
      %v6838 = vshrl.u32 %v6667, 16
      %v6840 = vrot.slane %v6838, 4
      %v6841 = vor.u32 %v6840, %v6836
      %v6842 = vrot.slane %v6841, 4
      %v6844 = vshll.u32 %v6693, 16
      %v6846 = vrot.slane %v6844, 5
      %v6847 = vsel %vm4967, %v6842, %v6846
      %v6849 = vshrl.u32 %v6668, 16
      %v6851 = vrot.slane %v6849, 4
      %v6852 = vshll.u32 %v6668, 16
      %v6854 = vrot.slane %v6852, 5
      %v6855 = vor.u32 %v6851, %v6854
      %v6856 = vrot.slane %v6855, 4
      %v6858 = vshll.u32 %v6669, 16
      %v6860 = vrot.slane %v6858, 5
      %v6861 = vsel %vm4967, %v6856, %v6860
      %v6862 = vshrl.u32 %v6669, 16
      %v6864 = vrot.slane %v6862, 4
      %v6865 = vor.u32 %v6864, %v6860
      %v6866 = vrot.slane %v6865, 4
      %v6868 = vshll.u32 %v6694, 16
      %v6870 = vrot.slane %v6868, 5
      %v6871 = vsel %vm4967, %v6866, %v6870
      %v6873 = vshrl.u32 %v6670, 16
      %v6875 = vrot.slane %v6873, 4
      %v6876 = vshll.u32 %v6670, 16
      %v6878 = vrot.slane %v6876, 5
      %v6879 = vor.u32 %v6875, %v6878
      %v6880 = vrot.slane %v6879, 4
      %v6882 = vshll.u32 %v6671, 16
      %v6884 = vrot.slane %v6882, 5
      %v6885 = vsel %vm4967, %v6880, %v6884
      %v6886 = vshrl.u32 %v6671, 16
      %v6888 = vrot.slane %v6886, 4
      %v6889 = vor.u32 %v6888, %v6884
      %v6890 = vrot.slane %v6889, 4
      %v6892 = vshll.u32 %v6695, 16
      %v6894 = vrot.slane %v6892, 5
      %v6895 = vsel %vm4967, %v6890, %v6894
      %v6897 = vshrl.u32 %v6672, 16
      %v6899 = vrot.slane %v6897, 4
      %v6900 = vshll.u32 %v6672, 16
      %v6902 = vrot.slane %v6900, 5
      %v6903 = vor.u32 %v6899, %v6902
      %v6904 = vrot.slane %v6903, 4
      %v6906 = vshll.u32 %v6673, 16
      %v6908 = vrot.slane %v6906, 5
      %v6909 = vsel %vm4967, %v6904, %v6908
      %v6910 = vshrl.u32 %v6673, 16
      %v6912 = vrot.slane %v6910, 4
      %v6913 = vor.u32 %v6912, %v6908
      %v6914 = vrot.slane %v6913, 4
      %v6916 = vshll.u32 %v6696, 16
      %v6918 = vrot.slane %v6916, 5
      %v6919 = vsel %vm4967, %v6914, %v6918
      %v6921 = vshrl.u32 %v6674, 16
      %v6923 = vrot.slane %v6921, 4
      %v6924 = vshll.u32 %v6674, 16
      %v6926 = vrot.slane %v6924, 5
      %v6927 = vor.u32 %v6923, %v6926
      %v6928 = vrot.slane %v6927, 4
      %v6930 = vshll.u32 %v6675, 16
      %v6932 = vrot.slane %v6930, 5
      %v6933 = vsel %vm4967, %v6928, %v6932
      %v6934 = vshrl.u32 %v6675, 16
      %v6936 = vrot.slane %v6934, 4
      %v6937 = vor.u32 %v6936, %v6932
      %v6938 = vrot.slane %v6937, 4
      %v6940 = vshll.u32 %v6697, 16
      %v6942 = vrot.slane %v6940, 5
      %v6943 = vsel %vm4967, %v6938, %v6942
      %v6945 = vshrl.u32 %v6676, 16
      %v6947 = vrot.slane %v6945, 4
      %v6948 = vshll.u32 %v6676, 16
      %v6950 = vrot.slane %v6948, 5
      %v6951 = vor.u32 %v6947, %v6950
      %v6952 = vrot.slane %v6951, 4
      %v6954 = vshll.u32 %v6677, 16
      %v6956 = vrot.slane %v6954, 5
      %v6957 = vsel %vm4967, %v6952, %v6956
      %v6958 = vshrl.u32 %v6677, 16
      %v6960 = vrot.slane %v6958, 4
      %v6961 = vor.u32 %v6960, %v6956
      %v6962 = vrot.slane %v6961, 4
      %v6964 = vshll.u32 %v6698, 16
      %v6966 = vrot.slane %v6964, 5
      %v6967 = vsel %vm4967, %v6962, %v6966
      %v6969 = vshrl.u32 %v6678, 16
      %v6971 = vrot.slane %v6969, 4
      %v6972 = vshll.u32 %v6678, 16
      %v6974 = vrot.slane %v6972, 5
      %v6975 = vor.u32 %v6971, %v6974
      %v6976 = vrot.slane %v6975, 4
      %v6978 = vshll.u32 %v6679, 16
      %v6980 = vrot.slane %v6978, 5
      %v6981 = vsel %vm4967, %v6976, %v6980
      %v6982 = vshrl.u32 %v6679, 16
      %v6984 = vrot.slane %v6982, 4
      %v6985 = vor.u32 %v6984, %v6980
      %v6986 = vrot.slane %v6985, 4
      %v6988 = vshll.u32 %v6699, 16
      %v6990 = vrot.slane %v6988, 5
      %v6991 = vsel %vm4967, %v6986, %v6990
      %v6993 = vshrl.u32 %v6680, 16
      %v6995 = vrot.slane %v6993, 4
      %v6996 = vshll.u32 %v6680, 16
      %v6998 = vrot.slane %v6996, 5
      %v6999 = vor.u32 %v6995, %v6998
      %v7000 = vrot.slane %v6999, 4
      %v7002 = vshll.u32 %v6681, 16
      %v7004 = vrot.slane %v7002, 5
      %v7005 = vsel %vm4967, %v7000, %v7004
      %v7006 = vshrl.u32 %v6681, 16
      %v7008 = vrot.slane %v7006, 4
      %v7009 = vor.u32 %v7008, %v7004
      %v7010 = vrot.slane %v7009, 4
      %v7012 = vshll.u32 %v6700, 16
      %v7014 = vrot.slane %v7012, 5
      %v7015 = vsel %vm4967, %v7010, %v7014
      %v7017 = vshrl.u32 %v6682, 16
      %v7019 = vrot.slane %v7017, 4
      %v7020 = vshll.u32 %v6682, 16
      %v7022 = vrot.slane %v7020, 5
      %v7023 = vor.u32 %v7019, %v7022
      %v7024 = vrot.slane %v7023, 4
      %v7026 = vshll.u32 %v6683, 16
      %v7028 = vrot.slane %v7026, 5
      %v7029 = vsel %vm4967, %v7024, %v7028
      %v7030 = vshrl.u32 %v6683, 16
      %v7032 = vrot.slane %v7030, 4
      %v7033 = vor.u32 %v7032, %v7028
      %v7034 = vrot.slane %v7033, 4
      %v7036 = vshll.u32 %v6701, 16
      %v7038 = vrot.slane %v7036, 5
      %v7039 = vsel %vm4967, %v7034, %v7038
      %v7041 = vshrl.u32 %v6684, 16
      %v7043 = vrot.slane %v7041, 4
      %v7044 = vshll.u32 %v6684, 16
      %v7046 = vrot.slane %v7044, 5
      %v7047 = vor.u32 %v7043, %v7046
      %v7048 = vrot.slane %v7047, 4
      %v7050 = vshll.u32 %v6685, 16
      %v7052 = vrot.slane %v7050, 5
      %v7053 = vsel %vm4967, %v7048, %v7052
      %v7054 = vshrl.u32 %v6685, 16
      %v7056 = vrot.slane %v7054, 4
      %v7057 = vor.u32 %v7056, %v7052
      %v7058 = vrot.slane %v7057, 4
      %v7060 = vshll.u32 %v6702, 16
      %v7062 = vrot.slane %v7060, 5
      %v7063 = vsel %vm4967, %v7058, %v7062
      %v7065 = vshrl.u32 %v6686, 16
      %v7067 = vrot.slane %v7065, 4
      %v7068 = vshll.u32 %v6686, 16
      %v7070 = vrot.slane %v7068, 5
      %v7071 = vor.u32 %v7067, %v7070
      %v7072 = vrot.slane %v7071, 4
      %v7074 = vshll.u32 %v6687, 16
      %v7076 = vrot.slane %v7074, 5
      %v7077 = vsel %vm4967, %v7072, %v7076
      %v7078 = vshrl.u32 %v6687, 16
      %v7080 = vrot.slane %v7078, 4
      %v7081 = vor.u32 %v7080, %v7076
      %v7082 = vrot.slane %v7081, 4
      %v7084 = vshll.u32 %v6703, 16
      %v7086 = vrot.slane %v7084, 5
      %v7087 = vsel %vm4967, %v7082, %v7086
      %v7088 = vunpack.c.l.b16 %v6108
      %v7089 = vunpack.c.l.b16 %v6118
      %v7090 = vunpack.c.l.b16 %v6132
      %v7091 = vunpack.c.l.b16 %v6142
      %v7092 = vunpack.c.l.b16 %v6156
      %v7093 = vunpack.c.l.b16 %v6166
      %v7094 = vunpack.c.l.b16 %v6180
      %v7095 = vunpack.c.l.b16 %v6190
      %v7096 = vunpack.c.l.b16 %v6204
      %v7097 = vunpack.c.l.b16 %v6214
      %v7098 = vunpack.c.l.b16 %v6228
      %v7099 = vunpack.c.l.b16 %v6238
      %v7100 = vunpack.c.l.b16 %v6252
      %v7101 = vunpack.c.l.b16 %v6262
      %v7102 = vunpack.c.l.b16 %v6276
      %v7103 = vunpack.c.l.b16 %v6286
      %v7104 = vunpack.c.l.b16 %v6300
      %v7105 = vunpack.c.l.b16 %v6310
      %v7106 = vunpack.c.l.b16 %v6324
      %v7107 = vunpack.c.l.b16 %v6334
      %v7108 = vunpack.c.l.b16 %v6348
      %v7109 = vunpack.c.l.b16 %v6358
      %v7110 = vunpack.c.l.b16 %v6372
      %v7111 = vunpack.c.l.b16 %v6382
      %v7112 = vunpack.c.l.b16 %v6396
      %v7113 = vunpack.c.l.b16 %v6406
      %v7114 = vunpack.c.l.b16 %v6420
      %v7115 = vunpack.c.l.b16 %v6430
      %v7116 = vunpack.c.l.b16 %v6444
      %v7117 = vunpack.c.l.b16 %v6454
      %v7118 = vunpack.c.l.b16 %v6468
      %v7119 = vunpack.c.l.b16 %v6478
      %v7120 = vpack.c.b16 %v7089, %v7088
      %v7121 = vpack.c.b16 %v7091, %v7090
      %v7122 = vpack.c.b16 %v7093, %v7092
      %v7123 = vpack.c.b16 %v7095, %v7094
      %v7124 = vpack.c.b16 %v7097, %v7096
      %v7125 = vpack.c.b16 %v7099, %v7098
      %v7126 = vpack.c.b16 %v7101, %v7100
      %v7127 = vpack.c.b16 %v7103, %v7102
      %v7128 = vpack.c.b16 %v7105, %v7104
      %v7129 = vpack.c.b16 %v7107, %v7106
      %v7130 = vpack.c.b16 %v7109, %v7108
      %v7131 = vpack.c.b16 %v7111, %v7110
      %v7132 = vpack.c.b16 %v7113, %v7112
      %v7133 = vpack.c.b16 %v7115, %v7114
      %v7134 = vpack.c.b16 %v7117, %v7116
      %v7135 = vpack.c.b16 %v7119, %v7118
      %v7136 = vunpack.c.l.b16 %v6546
      %v7137 = vunpack.c.l.b16 %v6549
      %v7138 = vunpack.c.l.b16 %v6553
      %v7139 = vunpack.c.l.b16 %v6556
      %v7140 = vunpack.c.l.b16 %v6560
      %v7141 = vunpack.c.l.b16 %v6563
      %v7142 = vunpack.c.l.b16 %v6567
      %v7143 = vunpack.c.l.b16 %v6570
      %v7144 = vunpack.c.l.b16 %v6574
      %v7145 = vunpack.c.l.b16 %v6577
      %v7146 = vunpack.c.l.b16 %v6581
      %v7147 = vunpack.c.l.b16 %v6584
      %v7148 = vunpack.c.l.b16 %v6588
      %v7149 = vunpack.c.l.b16 %v6591
      %v7150 = vunpack.c.l.b16 %v6595
      %v7151 = vunpack.c.l.b16 %v6598
      %v7152 = vunpack.c.l.b16 %v6602
      %v7153 = vunpack.c.l.b16 %v6605
      %v7154 = vunpack.c.l.b16 %v6609
      %v7155 = vunpack.c.l.b16 %v6612
      %v7156 = vunpack.c.l.b16 %v6616
      %v7157 = vunpack.c.l.b16 %v6619
      %v7158 = vunpack.c.l.b16 %v6623
      %v7159 = vunpack.c.l.b16 %v6626
      %v7160 = vunpack.c.l.b16 %v6630
      %v7161 = vunpack.c.l.b16 %v6633
      %v7162 = vunpack.c.l.b16 %v6637
      %v7163 = vunpack.c.l.b16 %v6640
      %v7164 = vunpack.c.l.b16 %v6644
      %v7165 = vunpack.c.l.b16 %v6647
      %v7166 = vunpack.c.l.b16 %v6651
      %v7167 = vunpack.c.l.b16 %v6654
      %v7168 = vpack.c.b16 %v7137, %v7136
      %v7169 = vpack.c.b16 %v7139, %v7138
      %v7170 = vpack.c.b16 %v7141, %v7140
      %v7171 = vpack.c.b16 %v7143, %v7142
      %v7172 = vpack.c.b16 %v7145, %v7144
      %v7173 = vpack.c.b16 %v7147, %v7146
      %v7174 = vpack.c.b16 %v7149, %v7148
      %v7175 = vpack.c.b16 %v7151, %v7150
      %v7176 = vpack.c.b16 %v7153, %v7152
      %v7177 = vpack.c.b16 %v7155, %v7154
      %v7178 = vpack.c.b16 %v7157, %v7156
      %v7179 = vpack.c.b16 %v7159, %v7158
      %v7180 = vpack.c.b16 %v7161, %v7160
      %v7181 = vpack.c.b16 %v7163, %v7162
      %v7182 = vpack.c.b16 %v7165, %v7164
      %v7183 = vpack.c.b16 %v7167, %v7166
      %7184 = vrot.lane.b32.xlu0 %v7168, 32
      %v7185 = vpop.permute.xlu0 %7184
      %7186 = vrot.lane.b32.xlu0 %v7169, 32
      %v7187 = vpop.permute.xlu0 %7186
      %7188 = vrot.lane.b32.xlu0 %v7170, 32
      %v7189 = vpop.permute.xlu0 %7188
      %7190 = vrot.lane.b32.xlu0 %v7171, 32
      %v7191 = vpop.permute.xlu0 %7190
      %7192 = vrot.lane.b32.xlu0 %v7172, 32
      %v7193 = vpop.permute.xlu0 %7192
      %7194 = vrot.lane.b32.xlu0 %v7173, 32
      %v7195 = vpop.permute.xlu0 %7194
      %7196 = vrot.lane.b32.xlu0 %v7174, 32
      %v7197 = vpop.permute.xlu0 %7196
      %7198 = vrot.lane.b32.xlu0 %v7175, 32
      %v7199 = vpop.permute.xlu0 %7198
      %7200 = vrot.lane.b32.xlu0 %v7176, 32
      %v7201 = vpop.permute.xlu0 %7200
      %7202 = vrot.lane.b32.xlu0 %v7177, 32
      %v7203 = vpop.permute.xlu0 %7202
      %7204 = vrot.lane.b32.xlu0 %v7178, 32
      %v7205 = vpop.permute.xlu0 %7204
      %7206 = vrot.lane.b32.xlu0 %v7179, 32
      %v7207 = vpop.permute.xlu0 %7206
      %7208 = vrot.lane.b32.xlu0 %v7180, 32
      %v7209 = vpop.permute.xlu0 %7208
      %7210 = vrot.lane.b32.xlu0 %v7181, 32
      %v7211 = vpop.permute.xlu0 %7210
      %7212 = vrot.lane.b32.xlu0 %v7182, 32
      %v7213 = vpop.permute.xlu0 %7212
      %7214 = vrot.lane.b32.xlu0 %v7183, 32
      %v7215 = vpop.permute.xlu0 %7214
      %v7248 = vunpack.c.l.b16 %v6656
      %v7249 = vunpack.c.l.b16 %v6657
      %v7250 = vunpack.c.l.b16 %v6658
      %v7251 = vunpack.c.l.b16 %v6659
      %v7252 = vunpack.c.l.b16 %v6660
      %v7253 = vunpack.c.l.b16 %v6661
      %v7254 = vunpack.c.l.b16 %v6662
      %v7255 = vunpack.c.l.b16 %v6663
      %v7256 = vunpack.c.l.b16 %v6664
      %v7257 = vunpack.c.l.b16 %v6665
      %v7258 = vunpack.c.l.b16 %v6666
      %v7259 = vunpack.c.l.b16 %v6667
      %v7260 = vunpack.c.l.b16 %v6668
      %v7261 = vunpack.c.l.b16 %v6669
      %v7262 = vunpack.c.l.b16 %v6670
      %v7263 = vunpack.c.l.b16 %v6671
      %v7264 = vunpack.c.l.b16 %v6672
      %v7265 = vunpack.c.l.b16 %v6673
      %v7266 = vunpack.c.l.b16 %v6674
      %v7267 = vunpack.c.l.b16 %v6675
      %v7268 = vunpack.c.l.b16 %v6676
      %v7269 = vunpack.c.l.b16 %v6677
      %v7270 = vunpack.c.l.b16 %v6678
      %v7271 = vunpack.c.l.b16 %v6679
      %v7272 = vunpack.c.l.b16 %v6680
      %v7273 = vunpack.c.l.b16 %v6681
      %v7274 = vunpack.c.l.b16 %v6682
      %v7275 = vunpack.c.l.b16 %v6683
      %v7276 = vunpack.c.l.b16 %v6684
      %v7277 = vunpack.c.l.b16 %v6685
      %v7278 = vunpack.c.l.b16 %v6686
      %v7279 = vunpack.c.l.b16 %v6687
      %v7280 = vpack.c.b16 %v7249, %v7248
      %v7281 = vpack.c.b16 %v7251, %v7250
      %v7282 = vpack.c.b16 %v7253, %v7252
      %v7283 = vpack.c.b16 %v7255, %v7254
      %v7284 = vpack.c.b16 %v7257, %v7256
      %v7285 = vpack.c.b16 %v7259, %v7258
      %v7286 = vpack.c.b16 %v7261, %v7260
      %v7287 = vpack.c.b16 %v7263, %v7262
      %v7288 = vpack.c.b16 %v7265, %v7264
      %v7289 = vpack.c.b16 %v7267, %v7266
      %v7290 = vpack.c.b16 %v7269, %v7268
      %v7291 = vpack.c.b16 %v7271, %v7270
      %v7292 = vpack.c.b16 %v7273, %v7272
      %v7293 = vpack.c.b16 %v7275, %v7274
      %v7294 = vpack.c.b16 %v7277, %v7276
      %v7295 = vpack.c.b16 %v7279, %v7278
      %7296 = vrot.lane.b32.xlu0 %v7280, 64
      %v7297 = vpop.permute.xlu0 %7296
      %7298 = vrot.lane.b32.xlu0 %v7281, 64
      %v7299 = vpop.permute.xlu0 %7298
      %7300 = vrot.lane.b32.xlu0 %v7282, 64
      %v7301 = vpop.permute.xlu0 %7300
      %7302 = vrot.lane.b32.xlu0 %v7283, 64
      %v7303 = vpop.permute.xlu0 %7302
      %7304 = vrot.lane.b32.xlu0 %v7284, 64
      %v7305 = vpop.permute.xlu0 %7304
      %7306 = vrot.lane.b32.xlu0 %v7285, 64
      %v7307 = vpop.permute.xlu0 %7306
      %7308 = vrot.lane.b32.xlu0 %v7286, 64
      %v7309 = vpop.permute.xlu0 %7308
      %7310 = vrot.lane.b32.xlu0 %v7287, 64
      %v7311 = vpop.permute.xlu0 %7310
      %7312 = vrot.lane.b32.xlu0 %v7288, 64
      %v7313 = vpop.permute.xlu0 %7312
      %7314 = vrot.lane.b32.xlu0 %v7289, 64
      %v7315 = vpop.permute.xlu0 %7314
      %7316 = vrot.lane.b32.xlu0 %v7290, 64
      %v7317 = vpop.permute.xlu0 %7316
      %7318 = vrot.lane.b32.xlu0 %v7291, 64
      %v7319 = vpop.permute.xlu0 %7318
      %7320 = vrot.lane.b32.xlu0 %v7292, 64
      %v7321 = vpop.permute.xlu0 %7320
      %7322 = vrot.lane.b32.xlu0 %v7293, 64
      %v7323 = vpop.permute.xlu0 %7322
      %7324 = vrot.lane.b32.xlu0 %v7294, 64
      %v7325 = vpop.permute.xlu0 %7324
      %7326 = vrot.lane.b32.xlu0 %v7295, 64
      %v7327 = vpop.permute.xlu0 %7326
      %v7328 = vunpack.c.l.b16 %v6717
      %v7329 = vunpack.c.l.b16 %v6727
      %v7330 = vunpack.c.l.b16 %v6741
      %v7331 = vunpack.c.l.b16 %v6751
      %v7332 = vunpack.c.l.b16 %v6765
      %v7333 = vunpack.c.l.b16 %v6775
      %v7334 = vunpack.c.l.b16 %v6789
      %v7335 = vunpack.c.l.b16 %v6799
      %v7336 = vunpack.c.l.b16 %v6813
      %v7337 = vunpack.c.l.b16 %v6823
      %v7338 = vunpack.c.l.b16 %v6837
      %v7339 = vunpack.c.l.b16 %v6847
      %v7340 = vunpack.c.l.b16 %v6861
      %v7341 = vunpack.c.l.b16 %v6871
      %v7342 = vunpack.c.l.b16 %v6885
      %v7343 = vunpack.c.l.b16 %v6895
      %v7344 = vunpack.c.l.b16 %v6909
      %v7345 = vunpack.c.l.b16 %v6919
      %v7346 = vunpack.c.l.b16 %v6933
      %v7347 = vunpack.c.l.b16 %v6943
      %v7348 = vunpack.c.l.b16 %v6957
      %v7349 = vunpack.c.l.b16 %v6967
      %v7350 = vunpack.c.l.b16 %v6981
      %v7351 = vunpack.c.l.b16 %v6991
      %v7352 = vunpack.c.l.b16 %v7005
      %v7353 = vunpack.c.l.b16 %v7015
      %v7354 = vunpack.c.l.b16 %v7029
      %v7355 = vunpack.c.l.b16 %v7039
      %v7356 = vunpack.c.l.b16 %v7053
      %v7357 = vunpack.c.l.b16 %v7063
      %v7358 = vunpack.c.l.b16 %v7077
      %v7359 = vunpack.c.l.b16 %v7087
      %v7360 = vpack.c.b16 %v7329, %v7328
      %v7361 = vpack.c.b16 %v7331, %v7330
      %v7362 = vpack.c.b16 %v7333, %v7332
      %v7363 = vpack.c.b16 %v7335, %v7334
      %v7364 = vpack.c.b16 %v7337, %v7336
      %v7365 = vpack.c.b16 %v7339, %v7338
      %v7366 = vpack.c.b16 %v7341, %v7340
      %v7367 = vpack.c.b16 %v7343, %v7342
      %v7368 = vpack.c.b16 %v7345, %v7344
      %v7369 = vpack.c.b16 %v7347, %v7346
      %v7370 = vpack.c.b16 %v7349, %v7348
      %v7371 = vpack.c.b16 %v7351, %v7350
      %v7372 = vpack.c.b16 %v7353, %v7352
      %v7373 = vpack.c.b16 %v7355, %v7354
      %v7374 = vpack.c.b16 %v7357, %v7356
      %v7375 = vpack.c.b16 %v7359, %v7358
      %7376 = vrot.lane.b32.xlu0 %v7360, 96
      %v7377 = vpop.permute.xlu0 %7376
      %7378 = vrot.lane.b32.xlu0 %v7361, 96
      %v7379 = vpop.permute.xlu0 %7378
      %7380 = vrot.lane.b32.xlu0 %v7362, 96
      %v7381 = vpop.permute.xlu0 %7380
      %7382 = vrot.lane.b32.xlu0 %v7363, 96
      %v7383 = vpop.permute.xlu0 %7382
      %7384 = vrot.lane.b32.xlu0 %v7364, 96
      %v7385 = vpop.permute.xlu0 %7384
      %7386 = vrot.lane.b32.xlu0 %v7365, 96
      %v7387 = vpop.permute.xlu0 %7386
      %7388 = vrot.lane.b32.xlu0 %v7366, 96
      %v7389 = vpop.permute.xlu0 %7388
      %7390 = vrot.lane.b32.xlu0 %v7367, 96
      %v7391 = vpop.permute.xlu0 %7390
      %7392 = vrot.lane.b32.xlu0 %v7368, 96
      %v7393 = vpop.permute.xlu0 %7392
      %7394 = vrot.lane.b32.xlu0 %v7369, 96
      %v7395 = vpop.permute.xlu0 %7394
      %7396 = vrot.lane.b32.xlu0 %v7370, 96
      %v7397 = vpop.permute.xlu0 %7396
      %7398 = vrot.lane.b32.xlu0 %v7371, 96
      %v7399 = vpop.permute.xlu0 %7398
      %7400 = vrot.lane.b32.xlu0 %v7372, 96
      %v7401 = vpop.permute.xlu0 %7400
      %7402 = vrot.lane.b32.xlu0 %v7373, 96
      %v7403 = vpop.permute.xlu0 %7402
      %7404 = vrot.lane.b32.xlu0 %v7374, 96
      %v7405 = vpop.permute.xlu0 %7404
      %7406 = vrot.lane.b32.xlu0 %v7375, 96
      %v7407 = vpop.permute.xlu0 %7406
      %v7410 = vsel %vm5900, %v7120, %v7185
      %v7413 = vsel %vm5900, %v7121, %v7187
      %v7416 = vsel %vm5900, %v7122, %v7189
      %v7419 = vsel %vm5900, %v7123, %v7191
      %v7422 = vsel %vm5900, %v7124, %v7193
      %v7425 = vsel %vm5900, %v7125, %v7195
      %v7428 = vsel %vm5900, %v7126, %v7197
      %v7431 = vsel %vm5900, %v7127, %v7199
      %v7434 = vsel %vm5900, %v7128, %v7201
      %v7437 = vsel %vm5900, %v7129, %v7203
      %v7440 = vsel %vm5900, %v7130, %v7205
      %v7443 = vsel %vm5900, %v7131, %v7207
      %v7446 = vsel %vm5900, %v7132, %v7209
      %v7449 = vsel %vm5900, %v7133, %v7211
      %v7452 = vsel %vm5900, %v7134, %v7213
      %v7455 = vsel %vm5900, %v7135, %v7215
      %v7457 = vsel %vm5949, %v7410, %v7297
      %v7459 = vsel %vm5949, %v7413, %v7299
      %v7461 = vsel %vm5949, %v7416, %v7301
      %v7463 = vsel %vm5949, %v7419, %v7303
      %v7465 = vsel %vm5949, %v7422, %v7305
      %v7467 = vsel %vm5949, %v7425, %v7307
      %v7469 = vsel %vm5949, %v7428, %v7309
      %v7471 = vsel %vm5949, %v7431, %v7311
      %v7473 = vsel %vm5949, %v7434, %v7313
      %v7475 = vsel %vm5949, %v7437, %v7315
      %v7477 = vsel %vm5949, %v7440, %v7317
      %v7479 = vsel %vm5949, %v7443, %v7319
      %v7481 = vsel %vm5949, %v7446, %v7321
      %v7483 = vsel %vm5949, %v7449, %v7323
      %v7485 = vsel %vm5949, %v7452, %v7325
      %v7487 = vsel %vm5949, %v7455, %v7327
      %v7489 = vsel %vm5982, %v7457, %v7377
      %v7492 = vsel %vm5982, %v7459, %v7379
      %v7495 = vsel %vm5982, %v7461, %v7381
      %v7498 = vsel %vm5982, %v7463, %v7383
      %v7501 = vsel %vm5982, %v7465, %v7385
      %v7504 = vsel %vm5982, %v7467, %v7387
      %v7507 = vsel %vm5982, %v7469, %v7389
      %v7510 = vsel %vm5982, %v7471, %v7391
      %v7513 = vsel %vm5982, %v7473, %v7393
      %v7516 = vsel %vm5982, %v7475, %v7395
      %v7519 = vsel %vm5982, %v7477, %v7397
      %v7522 = vsel %vm5982, %v7479, %v7399
      %v7525 = vsel %vm5982, %v7481, %v7401
      %v7528 = vsel %vm5982, %v7483, %v7403
      %v7531 = vsel %vm5982, %v7485, %v7405
      %v7534 = vsel %vm5982, %v7487, %v7407
      %7536 = vst [vmem:[#allocation3 + $0x8] sm:$0xff] %v7489
      %7537 = vst [vmem:[#allocation3 + $0x20] sm:$0xff] %v7492
      %7538 = vst [vmem:[#allocation3 + $0x38] sm:$0xff] %v7495
      %7539 = vst [vmem:[#allocation3 + $0x50] sm:$0xff] %v7498
      %7540 = vst [vmem:[#allocation3 + $0x68] sm:$0xff] %v7501
      %7541 = vst [vmem:[#allocation3 + $0x80] sm:$0xff] %v7504
      %7542 = vst [vmem:[#allocation3 + $0x98] sm:$0xff] %v7507
      %7543 = vst [vmem:[#allocation3 + $0xb0] sm:$0xff] %v7510
      %7544 = vst [vmem:[#allocation3 + $0xc8] sm:$0xff] %v7513
      %7545 = vst [vmem:[#allocation3 + $0xe0] sm:$0xff] %v7516
      %7546 = vst [vmem:[#allocation3 + $0xf8] sm:$0xff] %v7519
      %7547 = vst [vmem:[#allocation3 + $0x110] sm:$0xff] %v7522
      %7548 = vst [vmem:[#allocation3 + $0x128] sm:$0xff] %v7525
      %7549 = vst [vmem:[#allocation3 + $0x140] sm:$0xff] %v7528
      %7550 = vst [vmem:[#allocation3 + $0x158] sm:$0xff] %v7531
      %7551 = vst [vmem:[#allocation3 + $0x170] sm:$0xff] %v7534
      %v7552 = vld [vmem:[%s6655] sm:$0xe]
      %v7553 = vld [vmem:[%s6655 + $0x4] sm:$0xf]
      %v7554 = vld [vmem:[%s6655 + $0x8] sm:$0x1]
      %v7555 = vld [vmem:[%s6655 + $0xc] sm:$0xe]
      %v7556 = vld [vmem:[%s6655 + $0x10] sm:$0xf]
      %v7557 = vld [vmem:[%s6655 + $0x14] sm:$0x1]
      %v7558 = vld [vmem:[%s6655 + $0x18] sm:$0xe]
      %v7559 = vld [vmem:[%s6655 + $0x1c] sm:$0xf]
      %v7560 = vld [vmem:[%s6655 + $0x20] sm:$0x1]
      %v7561 = vld [vmem:[%s6655 + $0x24] sm:$0xe]
      %v7562 = vld [vmem:[%s6655 + $0x28] sm:$0xf]
      %v7563 = vld [vmem:[%s6655 + $0x2c] sm:$0x1]
      %v7564 = vld [vmem:[%s6655 + $0x30] sm:$0xe]
      %v7565 = vld [vmem:[%s6655 + $0x34] sm:$0xf]
      %v7566 = vld [vmem:[%s6655 + $0x38] sm:$0x1]
      %v7567 = vld [vmem:[%s6655 + $0x3c] sm:$0xe]
      %v7568 = vld [vmem:[%s6655 + $0x40] sm:$0xf]
      %v7569 = vld [vmem:[%s6655 + $0x44] sm:$0x1]
      %v7570 = vld [vmem:[%s6655 + $0x48] sm:$0xe]
      %v7571 = vld [vmem:[%s6655 + $0x4c] sm:$0xf]
      %v7572 = vld [vmem:[%s6655 + $0x50] sm:$0x1]
      %v7573 = vld [vmem:[%s6655 + $0x54] sm:$0xe]
      %v7574 = vld [vmem:[%s6655 + $0x58] sm:$0xf]
      %v7575 = vld [vmem:[%s6655 + $0x5c] sm:$0x1]
      %v7576 = vld [vmem:[%s6655 + $0x60] sm:$0xe]
      %v7577 = vld [vmem:[%s6655 + $0x64] sm:$0xf]
      %v7578 = vld [vmem:[%s6655 + $0x68] sm:$0x1]
      %v7579 = vld [vmem:[%s6655 + $0x6c] sm:$0xe]
      %v7580 = vld [vmem:[%s6655 + $0x70] sm:$0xf]
      %v7581 = vld [vmem:[%s6655 + $0x74] sm:$0x1]
      %v7582 = vld [vmem:[%s6655 + $0x78] sm:$0xe]
      %v7583 = vld [vmem:[%s6655 + $0x7c] sm:$0xf]
      %v7584 = vld [vmem:[%s6655 + $0x80] sm:$0x1]
      %v7585 = vld [vmem:[%s6655 + $0x84] sm:$0xe]
      %v7586 = vld [vmem:[%s6655 + $0x88] sm:$0xf]
      %v7587 = vld [vmem:[%s6655 + $0x8c] sm:$0x1]
      %v7588 = vld [vmem:[%s6655 + $0x90] sm:$0xe]
      %v7589 = vld [vmem:[%s6655 + $0x94] sm:$0xf]
      %v7590 = vld [vmem:[%s6655 + $0x98] sm:$0x1]
      %v7591 = vld [vmem:[%s6655 + $0x9c] sm:$0xe]
      %v7592 = vld [vmem:[%s6655 + $0xa0] sm:$0xf]
      %v7593 = vld [vmem:[%s6655 + $0xa4] sm:$0x1]
      %v7594 = vld [vmem:[%s6655 + $0xa8] sm:$0xe]
      %v7595 = vld [vmem:[%s6655 + $0xac] sm:$0xf]
      %v7596 = vld [vmem:[%s6655 + $0xb0] sm:$0x1]
      %v7597 = vld [vmem:[%s6655 + $0xb4] sm:$0xe]
      %v7598 = vld [vmem:[%s6655 + $0xb8] sm:$0xf]
      %v7599 = vld [vmem:[%s6655 + $0xbc] sm:$0x1]
      %v7648 = vrot.slane %v7552, 5
      %v7649 = vrot.slane %v7648, 4
      %v7650 = vrot.slane %v7553, 5
      %v7651 = vsel %vm5418, %v7649, %v7650
      %v7652 = vrot.slane %v7650, 4
      %v7653 = vrot.slane %v7554, 5
      %v7654 = vsel %vm5418, %v7652, %v7653
      %v7655 = vrot.slane %v7555, 5
      %v7656 = vrot.slane %v7655, 4
      %v7657 = vrot.slane %v7556, 5
      %v7658 = vsel %vm5418, %v7656, %v7657
      %v7659 = vrot.slane %v7657, 4
      %v7660 = vrot.slane %v7557, 5
      %v7661 = vsel %vm5418, %v7659, %v7660
      %v7662 = vrot.slane %v7558, 5
      %v7663 = vrot.slane %v7662, 4
      %v7664 = vrot.slane %v7559, 5
      %v7665 = vsel %vm5418, %v7663, %v7664
      %v7666 = vrot.slane %v7664, 4
      %v7667 = vrot.slane %v7560, 5
      %v7668 = vsel %vm5418, %v7666, %v7667
      %v7669 = vrot.slane %v7561, 5
      %v7670 = vrot.slane %v7669, 4
      %v7671 = vrot.slane %v7562, 5
      %v7672 = vsel %vm5418, %v7670, %v7671
      %v7673 = vrot.slane %v7671, 4
      %v7674 = vrot.slane %v7563, 5
      %v7675 = vsel %vm5418, %v7673, %v7674
      %v7676 = vrot.slane %v7564, 5
      %v7677 = vrot.slane %v7676, 4
      %v7678 = vrot.slane %v7565, 5
      %v7679 = vsel %vm5418, %v7677, %v7678
      %v7680 = vrot.slane %v7678, 4
      %v7681 = vrot.slane %v7566, 5
      %v7682 = vsel %vm5418, %v7680, %v7681
      %v7683 = vrot.slane %v7567, 5
      %v7684 = vrot.slane %v7683, 4
      %v7685 = vrot.slane %v7568, 5
      %v7686 = vsel %vm5418, %v7684, %v7685
      %v7687 = vrot.slane %v7685, 4
      %v7688 = vrot.slane %v7569, 5
      %v7689 = vsel %vm5418, %v7687, %v7688
      %v7690 = vrot.slane %v7570, 5
      %v7691 = vrot.slane %v7690, 4
      %v7692 = vrot.slane %v7571, 5
      %v7693 = vsel %vm5418, %v7691, %v7692
      %v7694 = vrot.slane %v7692, 4
      %v7695 = vrot.slane %v7572, 5
      %v7696 = vsel %vm5418, %v7694, %v7695
      %v7697 = vrot.slane %v7573, 5
      %v7698 = vrot.slane %v7697, 4
      %v7699 = vrot.slane %v7574, 5
      %v7700 = vsel %vm5418, %v7698, %v7699
      %v7701 = vrot.slane %v7699, 4
      %v7702 = vrot.slane %v7575, 5
      %v7703 = vsel %vm5418, %v7701, %v7702
      %v7704 = vrot.slane %v7576, 5
      %v7705 = vrot.slane %v7704, 4
      %v7706 = vrot.slane %v7577, 5
      %v7707 = vsel %vm5418, %v7705, %v7706
      %v7708 = vrot.slane %v7706, 4
      %v7709 = vrot.slane %v7578, 5
      %v7710 = vsel %vm5418, %v7708, %v7709
      %v7711 = vrot.slane %v7579, 5
      %v7712 = vrot.slane %v7711, 4
      %v7713 = vrot.slane %v7580, 5
      %v7714 = vsel %vm5418, %v7712, %v7713
      %v7715 = vrot.slane %v7713, 4
      %v7716 = vrot.slane %v7581, 5
      %v7717 = vsel %vm5418, %v7715, %v7716
      %v7718 = vrot.slane %v7582, 5
      %v7719 = vrot.slane %v7718, 4
      %v7720 = vrot.slane %v7583, 5
      %v7721 = vsel %vm5418, %v7719, %v7720
      %v7722 = vrot.slane %v7720, 4
      %v7723 = vrot.slane %v7584, 5
      %v7724 = vsel %vm5418, %v7722, %v7723
      %v7725 = vrot.slane %v7585, 5
      %v7726 = vrot.slane %v7725, 4
      %v7727 = vrot.slane %v7586, 5
      %v7728 = vsel %vm5418, %v7726, %v7727
      %v7729 = vrot.slane %v7727, 4
      %v7730 = vrot.slane %v7587, 5
      %v7731 = vsel %vm5418, %v7729, %v7730
      %v7732 = vrot.slane %v7588, 5
      %v7733 = vrot.slane %v7732, 4
      %v7734 = vrot.slane %v7589, 5
      %v7735 = vsel %vm5418, %v7733, %v7734
      %v7736 = vrot.slane %v7734, 4
      %v7737 = vrot.slane %v7590, 5
      %v7738 = vsel %vm5418, %v7736, %v7737
      %v7739 = vrot.slane %v7591, 5
      %v7740 = vrot.slane %v7739, 4
      %v7741 = vrot.slane %v7592, 5
      %v7742 = vsel %vm5418, %v7740, %v7741
      %v7743 = vrot.slane %v7741, 4
      %v7744 = vrot.slane %v7593, 5
      %v7745 = vsel %vm5418, %v7743, %v7744
      %v7746 = vrot.slane %v7594, 5
      %v7747 = vrot.slane %v7746, 4
      %v7748 = vrot.slane %v7595, 5
      %v7749 = vsel %vm5418, %v7747, %v7748
      %v7750 = vrot.slane %v7748, 4
      %v7751 = vrot.slane %v7596, 5
      %v7752 = vsel %vm5418, %v7750, %v7751
      %v7753 = vrot.slane %v7597, 5
      %v7754 = vrot.slane %v7753, 4
      %v7755 = vrot.slane %v7598, 5
      %v7756 = vsel %vm5418, %v7754, %v7755
      %v7757 = vrot.slane %v7755, 4
      %v7758 = vrot.slane %v7599, 5
      %v7759 = vsel %vm5418, %v7757, %v7758
      %v7760 = vunpack.c.l.b16 %v7651
      %v7761 = vunpack.c.l.b16 %v7654
      %v7762 = vunpack.c.l.b16 %v7658
      %v7763 = vunpack.c.l.b16 %v7661
      %v7764 = vunpack.c.l.b16 %v7665
      %v7765 = vunpack.c.l.b16 %v7668
      %v7766 = vunpack.c.l.b16 %v7672
      %v7767 = vunpack.c.l.b16 %v7675
      %v7768 = vunpack.c.l.b16 %v7679
      %v7769 = vunpack.c.l.b16 %v7682
      %v7770 = vunpack.c.l.b16 %v7686
      %v7771 = vunpack.c.l.b16 %v7689
      %v7772 = vunpack.c.l.b16 %v7693
      %v7773 = vunpack.c.l.b16 %v7696
      %v7774 = vunpack.c.l.b16 %v7700
      %v7775 = vunpack.c.l.b16 %v7703
      %v7776 = vunpack.c.l.b16 %v7707
      %v7777 = vunpack.c.l.b16 %v7710
      %v7778 = vunpack.c.l.b16 %v7714
      %v7779 = vunpack.c.l.b16 %v7717
      %v7780 = vunpack.c.l.b16 %v7721
      %v7781 = vunpack.c.l.b16 %v7724
      %v7782 = vunpack.c.l.b16 %v7728
      %v7783 = vunpack.c.l.b16 %v7731
      %v7784 = vunpack.c.l.b16 %v7735
      %v7785 = vunpack.c.l.b16 %v7738
      %v7786 = vunpack.c.l.b16 %v7742
      %v7787 = vunpack.c.l.b16 %v7745
      %v7788 = vunpack.c.l.b16 %v7749
      %v7789 = vunpack.c.l.b16 %v7752
      %v7790 = vunpack.c.l.b16 %v7756
      %v7791 = vunpack.c.l.b16 %v7759
      %v7792 = vpack.c.b16 %v7761, %v7760
      %v7793 = vpack.c.b16 %v7763, %v7762
      %v7794 = vpack.c.b16 %v7765, %v7764
      %v7795 = vpack.c.b16 %v7767, %v7766
      %v7796 = vpack.c.b16 %v7769, %v7768
      %v7797 = vpack.c.b16 %v7771, %v7770
      %v7798 = vpack.c.b16 %v7773, %v7772
      %v7799 = vpack.c.b16 %v7775, %v7774
      %v7800 = vpack.c.b16 %v7777, %v7776
      %v7801 = vpack.c.b16 %v7779, %v7778
      %v7802 = vpack.c.b16 %v7781, %v7780
      %v7803 = vpack.c.b16 %v7783, %v7782
      %v7804 = vpack.c.b16 %v7785, %v7784
      %v7805 = vpack.c.b16 %v7787, %v7786
      %v7806 = vpack.c.b16 %v7789, %v7788
      %v7807 = vpack.c.b16 %v7791, %v7790
      %v7810 = vsel %vm5900, %v7792, 0
      %v7813 = vsel %vm5900, %v7793, 0
      %v7816 = vsel %vm5900, %v7794, 0
      %v7819 = vsel %vm5900, %v7795, 0
      %v7822 = vsel %vm5900, %v7796, 0
      %v7825 = vsel %vm5900, %v7797, 0
      %v7828 = vsel %vm5900, %v7798, 0
      %v7831 = vsel %vm5900, %v7799, 0
      %v7834 = vsel %vm5900, %v7800, 0
      %v7837 = vsel %vm5900, %v7801, 0
      %v7840 = vsel %vm5900, %v7802, 0
      %v7843 = vsel %vm5900, %v7803, 0
      %v7846 = vsel %vm5900, %v7804, 0
      %v7849 = vsel %vm5900, %v7805, 0
      %v7852 = vsel %vm5900, %v7806, 0
      %v7855 = vsel %vm5900, %v7807, 0
      %7857 = vst [vmem:[#allocation3 + $0x10] sm:$0xff] %v7810
      %7858 = vst [vmem:[#allocation3 + $0x28] sm:$0xff] %v7813
      %7859 = vst [vmem:[#allocation3 + $0x40] sm:$0xff] %v7816
      %7860 = vst [vmem:[#allocation3 + $0x58] sm:$0xff] %v7819
      %7861 = vst [vmem:[#allocation3 + $0x70] sm:$0xff] %v7822
      %7862 = vst [vmem:[#allocation3 + $0x88] sm:$0xff] %v7825
      %7863 = vst [vmem:[#allocation3 + $0xa0] sm:$0xff] %v7828
      %7864 = vst [vmem:[#allocation3 + $0xb8] sm:$0xff] %v7831
      %7865 = vst [vmem:[#allocation3 + $0xd0] sm:$0xff] %v7834
      %7866 = vst [vmem:[#allocation3 + $0xe8] sm:$0xff] %v7837
      %7867 = vst [vmem:[#allocation3 + $0x100] sm:$0xff] %v7840
      %7868 = vst [vmem:[#allocation3 + $0x118] sm:$0xff] %v7843
      %7869 = vst [vmem:[#allocation3 + $0x130] sm:$0xff] %v7846
      %7870 = vst [vmem:[#allocation3 + $0x148] sm:$0xff] %v7849
      %7871 = vst [vmem:[#allocation3 + $0x160] sm:$0xff] %v7852
      %7872 = vst [vmem:[#allocation3 + $0x178] sm:$0xff] %v7855
      %v7873 = vld [vmem:[#allocation3] sm:$0xff]
      %v7874 = vld [vmem:[#allocation3 + $0x8] sm:$0xff]
      %v7875 = vld [vmem:[#allocation3 + $0x10] sm:$0xff]
      %v7876 = vld [vmem:[#allocation3 + $0x18] sm:$0xff]
      %v7877 = vld [vmem:[#allocation3 + $0x20] sm:$0xff]
      %v7878 = vld [vmem:[#allocation3 + $0x28] sm:$0xff]
      %v7879 = vld [vmem:[#allocation3 + $0x30] sm:$0xff]
      %v7880 = vld [vmem:[#allocation3 + $0x38] sm:$0xff]
      %v7881 = vld [vmem:[#allocation3 + $0x40] sm:$0xff]
      %v7882 = vld [vmem:[#allocation3 + $0x48] sm:$0xff]
      %v7883 = vld [vmem:[#allocation3 + $0x50] sm:$0xff]
      %v7884 = vld [vmem:[#allocation3 + $0x58] sm:$0xff]
      %v7885 = vld [vmem:[#allocation3 + $0x60] sm:$0xff]
      %v7886 = vld [vmem:[#allocation3 + $0x68] sm:$0xff]
      %v7887 = vld [vmem:[#allocation3 + $0x70] sm:$0xff]
      %v7888 = vld [vmem:[#allocation3 + $0x78] sm:$0xff]
      %v7889 = vld [vmem:[#allocation3 + $0x80] sm:$0xff]
      %v7890 = vld [vmem:[#allocation3 + $0x88] sm:$0xff]
      %v7891 = vld [vmem:[#allocation3 + $0x90] sm:$0xff]
      %v7892 = vld [vmem:[#allocation3 + $0x98] sm:$0xff]
      %v7893 = vld [vmem:[#allocation3 + $0xa0] sm:$0xff]
      %v7894 = vld [vmem:[#allocation3 + $0xa8] sm:$0xff]
      %v7895 = vld [vmem:[#allocation3 + $0xb0] sm:$0xff]
      %v7896 = vld [vmem:[#allocation3 + $0xb8] sm:$0xff]
      %v7897 = vld [vmem:[#allocation3 + $0xc0] sm:$0xff]
      %v7898 = vld [vmem:[#allocation3 + $0xc8] sm:$0xff]
      %v7899 = vld [vmem:[#allocation3 + $0xd0] sm:$0xff]
      %v7900 = vld [vmem:[#allocation3 + $0xd8] sm:$0xff]
      %v7901 = vld [vmem:[#allocation3 + $0xe0] sm:$0xff]
      %v7902 = vld [vmem:[#allocation3 + $0xe8] sm:$0xff]
      %v7903 = vld [vmem:[#allocation3 + $0xf0] sm:$0xff]
      %v7904 = vld [vmem:[#allocation3 + $0xf8] sm:$0xff]
      %v7905 = vld [vmem:[#allocation3 + $0x100] sm:$0xff]
      %v7906 = vld [vmem:[#allocation3 + $0x108] sm:$0xff]
      %v7907 = vld [vmem:[#allocation3 + $0x110] sm:$0xff]
      %v7908 = vld [vmem:[#allocation3 + $0x118] sm:$0xff]
      %v7909 = vld [vmem:[#allocation3 + $0x120] sm:$0xff]
      %v7910 = vld [vmem:[#allocation3 + $0x128] sm:$0xff]
      %v7911 = vld [vmem:[#allocation3 + $0x130] sm:$0xff]
      %v7912 = vld [vmem:[#allocation3 + $0x138] sm:$0xff]
      %v7913 = vld [vmem:[#allocation3 + $0x140] sm:$0xff]
      %v7914 = vld [vmem:[#allocation3 + $0x148] sm:$0xff]
      %v7915 = vld [vmem:[#allocation3 + $0x150] sm:$0xff]
      %v7916 = vld [vmem:[#allocation3 + $0x158] sm:$0xff]
      %v7917 = vld [vmem:[#allocation3 + $0x160] sm:$0xff]
      %v7918 = vld [vmem:[#allocation3 + $0x168] sm:$0xff]
      %v7919 = vld [vmem:[#allocation3 + $0x170] sm:$0xff]
      %v7920 = vld [vmem:[#allocation3 + $0x178] sm:$0xff]
      %v7921 = vld [vmem:[%s5] sm:$0xf]
      %v7922 = vld [vmem:[%s5 + $0x4] sm:$0xf]
      %v7923 = vld [vmem:[%s5 + $0x8] sm:$0xf]
      %v7924 = vld [vmem:[%s5 + $0xc] sm:$0xf]
      %v7925 = vld [vmem:[%s5 + $0x10] sm:$0xf]
      %v7926 = vld [vmem:[%s5 + $0x14] sm:$0xf]
      %v7927 = vld [vmem:[%s5 + $0x18] sm:$0xf]
      %v7928 = vld [vmem:[%s5 + $0x1c] sm:$0xf]
      %v7929 = vld [vmem:[%s5 + $0x20] sm:$0xf]
      %v7930 = vld [vmem:[%s5 + $0x24] sm:$0xf]
      %v7931 = vld [vmem:[%s5 + $0x28] sm:$0xf]
      %v7932 = vld [vmem:[%s5 + $0x2c] sm:$0xf]
      %v7933 = vld [vmem:[%s5 + $0x30] sm:$0xf]
      %v7934 = vld [vmem:[%s5 + $0x34] sm:$0xf]
      %v7935 = vld [vmem:[%s5 + $0x38] sm:$0xf]
      %v7936 = vld [vmem:[%s5 + $0x3c] sm:$0xf]
      %v7937 = vld [vmem:[%s5 + $0x40] sm:$0xf]
      %v7938 = vld [vmem:[%s5 + $0x44] sm:$0xf]
      %v7939 = vld [vmem:[%s5 + $0x48] sm:$0xf]
      %v7940 = vld [vmem:[%s5 + $0x4c] sm:$0xf]
      %v7941 = vld [vmem:[%s5 + $0x50] sm:$0xf]
      %v7942 = vld [vmem:[%s5 + $0x54] sm:$0xf]
      %v7943 = vld [vmem:[%s5 + $0x58] sm:$0xf]
      %v7944 = vld [vmem:[%s5 + $0x5c] sm:$0xf]
      %v7945 = vld [vmem:[%s5 + $0x60] sm:$0xf]
      %v7946 = vld [vmem:[%s5 + $0x64] sm:$0xf]
      %v7947 = vld [vmem:[%s5 + $0x68] sm:$0xf]
      %v7948 = vld [vmem:[%s5 + $0x6c] sm:$0xf]
      %v7949 = vld [vmem:[%s5 + $0x70] sm:$0xf]
      %v7950 = vld [vmem:[%s5 + $0x74] sm:$0xf]
      %v7951 = vld [vmem:[%s5 + $0x78] sm:$0xf]
      %v7952 = vld [vmem:[%s5 + $0x7c] sm:$0xf]
      %v7953 = vld [vmem:[%s5 + $0x80] sm:$0xf]
      %v7954 = vld [vmem:[%s5 + $0x84] sm:$0xf]
      %v7955 = vld [vmem:[%s5 + $0x88] sm:$0xf]
      %v7956 = vld [vmem:[%s5 + $0x8c] sm:$0xf]
      %v7957 = vld [vmem:[%s5 + $0x90] sm:$0xf]
      %v7958 = vld [vmem:[%s5 + $0x94] sm:$0xf]
      %v7959 = vld [vmem:[%s5 + $0x98] sm:$0xf]
      %v7960 = vld [vmem:[%s5 + $0x9c] sm:$0xf]
      %v7961 = vld [vmem:[%s5 + $0xa0] sm:$0xf]
      %v7962 = vld [vmem:[%s5 + $0xa4] sm:$0xf]
      %v7963 = vld [vmem:[%s5 + $0xa8] sm:$0xf]
      %v7964 = vld [vmem:[%s5 + $0xac] sm:$0xf]
      %v7965 = vld [vmem:[%s5 + $0xb0] sm:$0xf]
      %v7966 = vld [vmem:[%s5 + $0xb4] sm:$0xf]
      %v7967 = vld [vmem:[%s5 + $0xb8] sm:$0xf]
      %v7968 = vld [vmem:[%s5 + $0xbc] sm:$0xf]
      %v8017 = vunpack.c.l.b16 %v7921
      %v8018 = vunpack.c.l.b16 %v7922
      %v8019 = vunpack.c.l.b16 %v7923
      %v8020 = vunpack.c.l.b16 %v7924
      %v8021 = vunpack.c.l.b16 %v7925
      %v8022 = vunpack.c.l.b16 %v7926
      %v8023 = vunpack.c.l.b16 %v7927
      %v8024 = vunpack.c.l.b16 %v7928
      %v8025 = vunpack.c.l.b16 %v7929
      %v8026 = vunpack.c.l.b16 %v7930
      %v8027 = vunpack.c.l.b16 %v7931
      %v8028 = vunpack.c.l.b16 %v7932
      %v8029 = vunpack.c.l.b16 %v7933
      %v8030 = vunpack.c.l.b16 %v7934
      %v8031 = vunpack.c.l.b16 %v7935
      %v8032 = vunpack.c.l.b16 %v7936
      %v8033 = vunpack.c.l.b16 %v7937
      %v8034 = vunpack.c.l.b16 %v7938
      %v8035 = vunpack.c.l.b16 %v7939
      %v8036 = vunpack.c.l.b16 %v7940
      %v8037 = vunpack.c.l.b16 %v7941
      %v8038 = vunpack.c.l.b16 %v7942
      %v8039 = vunpack.c.l.b16 %v7943
      %v8040 = vunpack.c.l.b16 %v7944
      %v8041 = vunpack.c.l.b16 %v7945
      %v8042 = vunpack.c.l.b16 %v7946
      %v8043 = vunpack.c.l.b16 %v7947
      %v8044 = vunpack.c.l.b16 %v7948
      %v8045 = vunpack.c.l.b16 %v7949
      %v8046 = vunpack.c.l.b16 %v7950
      %v8047 = vunpack.c.l.b16 %v7951
      %v8048 = vunpack.c.l.b16 %v7952
      %v8049 = vunpack.c.l.b16 %v7953
      %v8050 = vunpack.c.l.b16 %v7954
      %v8051 = vunpack.c.l.b16 %v7955
      %v8052 = vunpack.c.l.b16 %v7956
      %v8053 = vunpack.c.l.b16 %v7957
      %v8054 = vunpack.c.l.b16 %v7958
      %v8055 = vunpack.c.l.b16 %v7959
      %v8056 = vunpack.c.l.b16 %v7960
      %v8057 = vunpack.c.l.b16 %v7961
      %v8058 = vunpack.c.l.b16 %v7962
      %v8059 = vunpack.c.l.b16 %v7963
      %v8060 = vunpack.c.l.b16 %v7964
      %v8061 = vunpack.c.l.b16 %v7965
      %v8062 = vunpack.c.l.b16 %v7966
      %v8063 = vunpack.c.l.b16 %v7967
      %v8064 = vunpack.c.l.b16 %v7968
      %v8065 = vpack.c.b16 %v8018, %v8017
      %v8066 = vpack.c.b16 %v8020, %v8019
      %v8067 = vpack.c.b16 %v8022, %v8021
      %v8068 = vpack.c.b16 %v8024, %v8023
      %v8069 = vpack.c.b16 %v8026, %v8025
      %v8070 = vpack.c.b16 %v8028, %v8027
      %v8071 = vpack.c.b16 %v8030, %v8029
      %v8072 = vpack.c.b16 %v8032, %v8031
      %v8073 = vpack.c.b16 %v8034, %v8033
      %v8074 = vpack.c.b16 %v8036, %v8035
      %v8075 = vpack.c.b16 %v8038, %v8037
      %v8076 = vpack.c.b16 %v8040, %v8039
      %v8077 = vpack.c.b16 %v8042, %v8041
      %v8078 = vpack.c.b16 %v8044, %v8043
      %v8079 = vpack.c.b16 %v8046, %v8045
      %v8080 = vpack.c.b16 %v8048, %v8047
      %v8081 = vpack.c.b16 %v8050, %v8049
      %v8082 = vpack.c.b16 %v8052, %v8051
      %v8083 = vpack.c.b16 %v8054, %v8053
      %v8084 = vpack.c.b16 %v8056, %v8055
      %v8085 = vpack.c.b16 %v8058, %v8057
      %v8086 = vpack.c.b16 %v8060, %v8059
      %v8087 = vpack.c.b16 %v8062, %v8061
      %v8088 = vpack.c.b16 %v8064, %v8063
      %8113 = vmatprep.subr.bf16.mxu0 0
      %8114 = vmatpush1.bf16.msra.mxu0 %v8065
      %8115 = vmatprep.subr.bf16.mxu0 0
      %8116 = vmatpush1.bf16.msra.mxu0 %v8066
      %8117 = vmatprep.subr.bf16.mxu0 0
      %8118 = vmatpush1.bf16.msra.mxu0 %v8067
      %8119 = vmatprep.subr.bf16.mxu0 0
      %8120 = vmatpush1.bf16.msra.mxu0 %v8068
      %8121 = vmatprep.subr.bf16.mxu0 0
      %8122 = vmatpush1.bf16.msra.mxu0 %v8069
      %8123 = vmatprep.subr.bf16.mxu0 0
      %8124 = vmatpush1.bf16.msra.mxu0 %v8070
      %8125 = vmatprep.subr.bf16.mxu0 0
      %8126 = vmatpush1.bf16.msra.mxu0 %v8071
      %8127 = vmatprep.subr.bf16.mxu0 0
      %8128 = vmatpush1.bf16.msra.mxu0 %v8072
      %8129 = vmatprep.subr.bf16.mxu0 0
      %8130 = vmatpush1.bf16.msra.mxu0 %v8073
      %8131 = vmatprep.subr.bf16.mxu0 0
      %8132 = vmatpush1.bf16.msra.mxu0 %v8074
      %8133 = vmatprep.subr.bf16.mxu0 0
      %8134 = vmatpush1.bf16.msra.mxu0 %v8075
      %8135 = vmatprep.subr.bf16.mxu0 0
      %8136 = vmatpush1.bf16.msra.mxu0 %v8076
      %8137 = vmatprep.subr.bf16.mxu0 0
      %8138 = vmatpush1.bf16.msra.mxu0 %v8077
      %8139 = vmatprep.subr.bf16.mxu0 0
      %8140 = vmatpush1.bf16.msra.mxu0 %v8078
      %8141 = vmatprep.subr.bf16.mxu0 0
      %8142 = vmatpush1.bf16.msra.mxu0 %v8079
      %8143 = vmatprep.subr.bf16.mxu0 0
      %8144 = vmatpush1.bf16.msra.mxu0 %v8080
      %8145 = vmatprep.mubr.bf16.mxu0 %v7874
      %8146 = vmatmul.mubr.bf16.gmra.mrb[0].mxu0 %v7873
      %v8147 = vpop.f32.mrb[0].mxu0
      %v8148 = vadd.f32 0.0, %v8147
      %v8149 = vpop.f32.mrb[0].mxu0
      %v8150 = vpop.f32.mrb[0].mxu0
      %v8151 = vadd.f32 0.0, %v8150
      %v8152 = vpop.f32.mrb[0].mxu0
      %8153 = vmatprep.mubr.bf16.mxu0 %v7877
      %8154 = vmatmul.mubr.bf16.gmra.mrb[0].mxu0 %v7876
      %v8155 = vpop.f32.mrb[0].mxu0
      %v8156 = vadd.f32 0.0, %v8155
      %v8157 = vpop.f32.mrb[0].mxu0
      %v8158 = vpop.f32.mrb[0].mxu0
      %v8159 = vadd.f32 0.0, %v8158
      %v8160 = vpop.f32.mrb[0].mxu0
      %8161 = vmatprep.mubr.bf16.mxu0 %v7880
      %8162 = vmatmul.mubr.bf16.gmra.mrb[0].mxu0 %v7879
      %v8163 = vpop.f32.mrb[0].mxu0
      %v8164 = vadd.f32 0.0, %v8163
      %v8165 = vpop.f32.mrb[0].mxu0
      %v8166 = vpop.f32.mrb[0].mxu0
      %v8167 = vadd.f32 0.0, %v8166
      %v8168 = vpop.f32.mrb[0].mxu0
      %8169 = vmatprep.mubr.bf16.mxu0 %v7883
      %8170 = vmatmul.mubr.bf16.gmra.mrb[0].mxu0 %v7882
      %v8171 = vpop.f32.mrb[0].mxu0
      %v8172 = vadd.f32 0.0, %v8171
      %v8173 = vpop.f32.mrb[0].mxu0
      %v8174 = vpop.f32.mrb[0].mxu0
      %v8175 = vadd.f32 0.0, %v8174
      %v8176 = vpop.f32.mrb[0].mxu0
      %8177 = vmatprep.mubr.bf16.mxu0 %v7886
      %8178 = vmatmul.mubr.bf16.gmra.mrb[0].mxu0 %v7885
      %v8179 = vpop.f32.mrb[0].mxu0
      %v8180 = vadd.f32 0.0, %v8179
      %v8181 = vpop.f32.mrb[0].mxu0
      %v8182 = vpop.f32.mrb[0].mxu0
      %v8183 = vadd.f32 0.0, %v8182
      %v8184 = vpop.f32.mrb[0].mxu0
      %8185 = vmatprep.mubr.bf16.mxu0 %v7889
      %8186 = vmatmul.mubr.bf16.gmra.mrb[0].mxu0 %v7888
      %v8187 = vpop.f32.mrb[0].mxu0
      %v8188 = vadd.f32 0.0, %v8187
      %v8189 = vpop.f32.mrb[0].mxu0
      %v8190 = vpop.f32.mrb[0].mxu0
      %v8191 = vadd.f32 0.0, %v8190
      %v8192 = vpop.f32.mrb[0].mxu0
      %8193 = vmatprep.mubr.bf16.mxu0 %v7892
      %8194 = vmatmul.mubr.bf16.gmra.mrb[0].mxu0 %v7891
      %v8195 = vpop.f32.mrb[0].mxu0
      %v8196 = vadd.f32 0.0, %v8195
      %v8197 = vpop.f32.mrb[0].mxu0
      %v8198 = vpop.f32.mrb[0].mxu0
      %v8199 = vadd.f32 0.0, %v8198
      %v8200 = vpop.f32.mrb[0].mxu0
      %8201 = vmatprep.mubr.bf16.mxu0 %v7895
      %8202 = vmatmul.mubr.bf16.gmra.mrb[0].mxu0 %v7894
      %v8203 = vpop.f32.mrb[0].mxu0
      %v8204 = vadd.f32 0.0, %v8203
      %v8205 = vpop.f32.mrb[0].mxu0
      %v8206 = vpop.f32.mrb[0].mxu0
      %v8207 = vadd.f32 0.0, %v8206
      %v8208 = vpop.f32.mrb[0].mxu0
      %8209 = vmatprep.mubr.bf16.mxu0 %v7898
      %8210 = vmatmul.mubr.bf16.gmra.mrb[0].mxu0 %v7897
      %v8211 = vpop.f32.mrb[0].mxu0
      %v8212 = vadd.f32 0.0, %v8211
      %v8213 = vpop.f32.mrb[0].mxu0
      %v8214 = vpop.f32.mrb[0].mxu0
      %v8215 = vadd.f32 0.0, %v8214
      %v8216 = vpop.f32.mrb[0].mxu0
      %8217 = vmatprep.mubr.bf16.mxu0 %v7901
      %8218 = vmatmul.mubr.bf16.gmra.mrb[0].mxu0 %v7900
      %v8219 = vpop.f32.mrb[0].mxu0
      %v8220 = vadd.f32 0.0, %v8219
      %v8221 = vpop.f32.mrb[0].mxu0
      %v8222 = vpop.f32.mrb[0].mxu0
      %v8223 = vadd.f32 0.0, %v8222
      %v8224 = vpop.f32.mrb[0].mxu0
      %8225 = vmatprep.mubr.bf16.mxu0 %v7904
      %8226 = vmatmul.mubr.bf16.gmra.mrb[0].mxu0 %v7903
      %v8227 = vpop.f32.mrb[0].mxu0
      %v8228 = vadd.f32 0.0, %v8227
      %v8229 = vpop.f32.mrb[0].mxu0
      %v8230 = vpop.f32.mrb[0].mxu0
      %v8231 = vadd.f32 0.0, %v8230
      %v8232 = vpop.f32.mrb[0].mxu0
      %8233 = vmatprep.mubr.bf16.mxu0 %v7907
      %8234 = vmatmul.mubr.bf16.gmra.mrb[0].mxu0 %v7906
      %v8235 = vpop.f32.mrb[0].mxu0
      %v8236 = vadd.f32 0.0, %v8235
      %v8237 = vpop.f32.mrb[0].mxu0
      %v8238 = vpop.f32.mrb[0].mxu0
      %v8239 = vadd.f32 0.0, %v8238
      %v8240 = vpop.f32.mrb[0].mxu0
      %8241 = vmatprep.mubr.bf16.mxu0 %v7910
      %8242 = vmatmul.mubr.bf16.gmra.mrb[0].mxu0 %v7909
      %v8243 = vpop.f32.mrb[0].mxu0
      %v8244 = vadd.f32 0.0, %v8243
      %v8245 = vpop.f32.mrb[0].mxu0
      %v8246 = vpop.f32.mrb[0].mxu0
      %v8247 = vadd.f32 0.0, %v8246
      %v8248 = vpop.f32.mrb[0].mxu0
      %8249 = vmatprep.mubr.bf16.mxu0 %v7913
      %8250 = vmatmul.mubr.bf16.gmra.mrb[0].mxu0 %v7912
      %v8251 = vpop.f32.mrb[0].mxu0
      %v8252 = vadd.f32 0.0, %v8251
      %v8253 = vpop.f32.mrb[0].mxu0
      %v8254 = vpop.f32.mrb[0].mxu0
      %v8255 = vadd.f32 0.0, %v8254
      %v8256 = vpop.f32.mrb[0].mxu0
      %8257 = vmatprep.mubr.bf16.mxu0 %v7916
      %8258 = vmatmul.mubr.bf16.gmra.mrb[0].mxu0 %v7915
      %v8259 = vpop.f32.mrb[0].mxu0
      %v8260 = vadd.f32 0.0, %v8259
      %v8261 = vpop.f32.mrb[0].mxu0
      %v8262 = vpop.f32.mrb[0].mxu0
      %v8263 = vadd.f32 0.0, %v8262
      %v8264 = vpop.f32.mrb[0].mxu0
      %8265 = vmatprep.mubr.bf16.mxu0 %v7919
      %8266 = vmatmul.mubr.bf16.gmra.mrb[0].mxu0 %v7918
      %v8267 = vpop.f32.mrb[0].mxu0
      %v8268 = vadd.f32 0.0, %v8267
      %v8269 = vpop.f32.mrb[0].mxu0
      %v8270 = vpop.f32.mrb[0].mxu0
      %v8271 = vadd.f32 0.0, %v8270
      %v8272 = vpop.f32.mrb[0].mxu0
      %8273 = vdwg.mxu0
      %8274 = vmatprep.subr.bf16.mxu0 0
      %8275 = vmatpush1.bf16.msra.mxu0 %v8081
      %8276 = vmatprep.subr.bf16.mxu0 0
      %8277 = vmatpush1.bf16.msra.mxu0 %v8082
      %8278 = vmatprep.subr.bf16.mxu0 0
      %8279 = vmatpush1.bf16.msra.mxu0 %v8083
      %8280 = vmatprep.subr.bf16.mxu0 0
      %8281 = vmatpush1.bf16.msra.mxu0 %v8084
      %8282 = vmatprep.subr.bf16.mxu0 0
      %8283 = vmatpush1.bf16.msra.mxu0 %v8085
      %8284 = vmatprep.subr.bf16.mxu0 0
      %8285 = vmatpush1.bf16.msra.mxu0 %v8086
      %8286 = vmatprep.subr.bf16.mxu0 0
      %8287 = vmatpush1.bf16.msra.mxu0 %v8087
      %8288 = vmatprep.subr.bf16.mxu0 0
      %8289 = vmatpush1.bf16.msra.mxu0 %v8088
      %8290 = vmatprep.subr.bf16.mxu0 0
      %8291 = vmatpush1.bf16.msra.mxu0 0
      %8292 = vmatprep.subr.bf16.mxu0 0
      %8293 = vmatpush1.bf16.msra.mxu0 0
      %8294 = vmatprep.subr.bf16.mxu0 0
      %8295 = vmatpush1.bf16.msra.mxu0 0
      %8296 = vmatprep.subr.bf16.mxu0 0
      %8297 = vmatpush1.bf16.msra.mxu0 0
      %8298 = vmatprep.subr.bf16.mxu0 0
      %8299 = vmatpush1.bf16.msra.mxu0 0
      %8300 = vmatprep.subr.bf16.mxu0 0
      %8301 = vmatpush1.bf16.msra.mxu0 0
      %8302 = vmatprep.subr.bf16.mxu0 0
      %8303 = vmatpush1.bf16.msra.mxu0 0
      %8304 = vmatprep.subr.bf16.mxu0 0
      %8305 = vmatpush1.bf16.msra.mxu0 0
      %8306 = vmatprep.mubr.bf16.mxu0 0
      %8307 = vmatmul.mubr.bf16.gmra.mrb[0].mxu0 %v7875
      %v8308 = vpop.f32.mrb[0].mxu0
      %v8309 = vadd.f32 %v8148, %v8308
      %v8310 = vpop.f32.mrb[0].mxu0
      %v8311 = vpop.f32.mrb[0].mxu0
      %v8312 = vadd.f32 %v8151, %v8311
      %v8313 = vpop.f32.mrb[0].mxu0
      %8314 = vmatprep.mubr.bf16.mxu0 0
      %8315 = vmatmul.mubr.bf16.gmra.mrb[0].mxu0 %v7878
      %v8316 = vpop.f32.mrb[0].mxu0
      %v8317 = vadd.f32 %v8156, %v8316
      %v8318 = vpop.f32.mrb[0].mxu0
      %v8319 = vpop.f32.mrb[0].mxu0
      %v8320 = vadd.f32 %v8159, %v8319
      %v8321 = vpop.f32.mrb[0].mxu0
      %8322 = vmatprep.mubr.bf16.mxu0 0
      %8323 = vmatmul.mubr.bf16.gmra.mrb[0].mxu0 %v7881
      %v8324 = vpop.f32.mrb[0].mxu0
      %v8325 = vadd.f32 %v8164, %v8324
      %v8326 = vpop.f32.mrb[0].mxu0
      %v8327 = vpop.f32.mrb[0].mxu0
      %v8328 = vadd.f32 %v8167, %v8327
      %v8329 = vpop.f32.mrb[0].mxu0
      %8330 = vmatprep.mubr.bf16.mxu0 0
      %8331 = vmatmul.mubr.bf16.gmra.mrb[0].mxu0 %v7884
      %v8332 = vpop.f32.mrb[0].mxu0
      %v8333 = vadd.f32 %v8172, %v8332
      %v8334 = vpop.f32.mrb[0].mxu0
      %v8335 = vpop.f32.mrb[0].mxu0
      %v8336 = vadd.f32 %v8175, %v8335
      %v8337 = vpop.f32.mrb[0].mxu0
      %8338 = vmatprep.mubr.bf16.mxu0 0
      %8339 = vmatmul.mubr.bf16.gmra.mrb[0].mxu0 %v7887
      %v8340 = vpop.f32.mrb[0].mxu0
      %v8341 = vadd.f32 %v8180, %v8340
      %v8342 = vpop.f32.mrb[0].mxu0
      %v8343 = vpop.f32.mrb[0].mxu0
      %v8344 = vadd.f32 %v8183, %v8343
      %v8345 = vpop.f32.mrb[0].mxu0
      %8346 = vmatprep.mubr.bf16.mxu0 0
      %8347 = vmatmul.mubr.bf16.gmra.mrb[0].mxu0 %v7890
      %v8348 = vpop.f32.mrb[0].mxu0
      %v8349 = vadd.f32 %v8188, %v8348
      %v8350 = vpop.f32.mrb[0].mxu0
      %v8351 = vpop.f32.mrb[0].mxu0
      %v8352 = vadd.f32 %v8191, %v8351
      %v8353 = vpop.f32.mrb[0].mxu0
      %8354 = vmatprep.mubr.bf16.mxu0 0
      %8355 = vmatmul.mubr.bf16.gmra.mrb[0].mxu0 %v7893
      %v8356 = vpop.f32.mrb[0].mxu0
      %v8357 = vadd.f32 %v8196, %v8356
      %v8358 = vpop.f32.mrb[0].mxu0
      %v8359 = vpop.f32.mrb[0].mxu0
      %v8360 = vadd.f32 %v8199, %v8359
      %v8361 = vpop.f32.mrb[0].mxu0
      %8362 = vmatprep.mubr.bf16.mxu0 0
      %8363 = vmatmul.mubr.bf16.gmra.mrb[0].mxu0 %v7896
      %v8364 = vpop.f32.mrb[0].mxu0
      %v8365 = vadd.f32 %v8204, %v8364
      %v8366 = vpop.f32.mrb[0].mxu0
      %v8367 = vpop.f32.mrb[0].mxu0
      %v8368 = vadd.f32 %v8207, %v8367
      %v8369 = vpop.f32.mrb[0].mxu0
      %8370 = vmatprep.mubr.bf16.mxu0 0
      %8371 = vmatmul.mubr.bf16.gmra.mrb[0].mxu0 %v7899
      %v8372 = vpop.f32.mrb[0].mxu0
      %v8373 = vadd.f32 %v8212, %v8372
      %v8374 = vpop.f32.mrb[0].mxu0
      %v8375 = vpop.f32.mrb[0].mxu0
      %v8376 = vadd.f32 %v8215, %v8375
      %v8377 = vpop.f32.mrb[0].mxu0
      %8378 = vmatprep.mubr.bf16.mxu0 0
      %8379 = vmatmul.mubr.bf16.gmra.mrb[0].mxu0 %v7902
      %v8380 = vpop.f32.mrb[0].mxu0
      %v8381 = vadd.f32 %v8220, %v8380
      %v8382 = vpop.f32.mrb[0].mxu0
      %v8383 = vpop.f32.mrb[0].mxu0
      %v8384 = vadd.f32 %v8223, %v8383
      %v8385 = vpop.f32.mrb[0].mxu0
      %8386 = vmatprep.mubr.bf16.mxu0 0
      %8387 = vmatmul.mubr.bf16.gmra.mrb[0].mxu0 %v7905
      %v8388 = vpop.f32.mrb[0].mxu0
      %v8389 = vadd.f32 %v8228, %v8388
      %v8390 = vpop.f32.mrb[0].mxu0
      %v8391 = vpop.f32.mrb[0].mxu0
      %v8392 = vadd.f32 %v8231, %v8391
      %v8393 = vpop.f32.mrb[0].mxu0
      %8394 = vmatprep.mubr.bf16.mxu0 0
      %8395 = vmatmul.mubr.bf16.gmra.mrb[0].mxu0 %v7908
      %v8396 = vpop.f32.mrb[0].mxu0
      %v8397 = vadd.f32 %v8236, %v8396
      %v8398 = vpop.f32.mrb[0].mxu0
      %v8399 = vpop.f32.mrb[0].mxu0
      %v8400 = vadd.f32 %v8239, %v8399
      %v8401 = vpop.f32.mrb[0].mxu0
      %8402 = vmatprep.mubr.bf16.mxu0 0
      %8403 = vmatmul.mubr.bf16.gmra.mrb[0].mxu0 %v7911
      %v8404 = vpop.f32.mrb[0].mxu0
      %v8405 = vadd.f32 %v8244, %v8404
      %v8406 = vpop.f32.mrb[0].mxu0
      %v8407 = vpop.f32.mrb[0].mxu0
      %v8408 = vadd.f32 %v8247, %v8407
      %v8409 = vpop.f32.mrb[0].mxu0
      %8410 = vmatprep.mubr.bf16.mxu0 0
      %8411 = vmatmul.mubr.bf16.gmra.mrb[0].mxu0 %v7914
      %v8412 = vpop.f32.mrb[0].mxu0
      %v8413 = vadd.f32 %v8252, %v8412
      %v8414 = vpop.f32.mrb[0].mxu0
      %v8415 = vpop.f32.mrb[0].mxu0
      %v8416 = vadd.f32 %v8255, %v8415
      %v8417 = vpop.f32.mrb[0].mxu0
      %8418 = vmatprep.mubr.bf16.mxu0 0
      %8419 = vmatmul.mubr.bf16.gmra.mrb[0].mxu0 %v7917
      %v8420 = vpop.f32.mrb[0].mxu0
      %v8421 = vadd.f32 %v8260, %v8420
      %v8422 = vpop.f32.mrb[0].mxu0
      %v8423 = vpop.f32.mrb[0].mxu0
      %v8424 = vadd.f32 %v8263, %v8423
      %v8425 = vpop.f32.mrb[0].mxu0
      %8426 = vmatprep.mubr.bf16.mxu0 0
      %8427 = vmatmul.mubr.bf16.gmra.mrb[0].mxu0 %v7920
      %v8428 = vpop.f32.mrb[0].mxu0
      %v8429 = vadd.f32 %v8268, %v8428
      %v8430 = vpop.f32.mrb[0].mxu0
      %v8431 = vpop.f32.mrb[0].mxu0
      %v8432 = vadd.f32 %v8271, %v8431
      %v8433 = vpop.f32.mrb[0].mxu0
      %8434 = vdwg.mxu0
      %vm8435 = vcmask 64512
      %8436 = vst.msk [vmem:[%s251] sm:$0xff] %vm8435, %v8309
      %8437 = vst.msk [vmem:[%s251 + $0x8] sm:$0xff] %vm8435, %v8312
      %8438 = vst.msk [vmem:[%s251 + $0x10] sm:$0xff] %vm8435, %v8317
      %8439 = vst.msk [vmem:[%s251 + $0x18] sm:$0xff] %vm8435, %v8320
      %8440 = vst.msk [vmem:[%s251 + $0x20] sm:$0xff] %vm8435, %v8325
      %8441 = vst.msk [vmem:[%s251 + $0x28] sm:$0xff] %vm8435, %v8328
      %8442 = vst.msk [vmem:[%s251 + $0x30] sm:$0xff] %vm8435, %v8333
      %8443 = vst.msk [vmem:[%s251 + $0x38] sm:$0xff] %vm8435, %v8336
      %8444 = vst.msk [vmem:[%s251 + $0x40] sm:$0xff] %vm8435, %v8341
      %8445 = vst.msk [vmem:[%s251 + $0x48] sm:$0xff] %vm8435, %v8344
      %8446 = vst.msk [vmem:[%s251 + $0x50] sm:$0xff] %vm8435, %v8349
      %8447 = vst.msk [vmem:[%s251 + $0x58] sm:$0xff] %vm8435, %v8352
      %8448 = vst.msk [vmem:[%s251 + $0x60] sm:$0xff] %vm8435, %v8357
      %8449 = vst.msk [vmem:[%s251 + $0x68] sm:$0xff] %vm8435, %v8360
      %8450 = vst.msk [vmem:[%s251 + $0x70] sm:$0xff] %vm8435, %v8365
      %8451 = vst.msk [vmem:[%s251 + $0x78] sm:$0xff] %vm8435, %v8368
      %8452 = vst.msk [vmem:[%s251 + $0x80] sm:$0xff] %vm8435, %v8373
      %8453 = vst.msk [vmem:[%s251 + $0x88] sm:$0xff] %vm8435, %v8376
      %8454 = vst.msk [vmem:[%s251 + $0x90] sm:$0xff] %vm8435, %v8381
      %8455 = vst.msk [vmem:[%s251 + $0x98] sm:$0xff] %vm8435, %v8384
      %8456 = vst.msk [vmem:[%s251 + $0xa0] sm:$0xff] %vm8435, %v8389
      %8457 = vst.msk [vmem:[%s251 + $0xa8] sm:$0xff] %vm8435, %v8392
      %8458 = vst.msk [vmem:[%s251 + $0xb0] sm:$0xff] %vm8435, %v8397
      %8459 = vst.msk [vmem:[%s251 + $0xb8] sm:$0xff] %vm8435, %v8400
      %8460 = vst.msk [vmem:[%s251 + $0xc0] sm:$0xff] %vm8435, %v8405
      %8461 = vst.msk [vmem:[%s251 + $0xc8] sm:$0xff] %vm8435, %v8408
      %8462 = vst.msk [vmem:[%s251 + $0xd0] sm:$0xff] %vm8435, %v8413
      %8463 = vst.msk [vmem:[%s251 + $0xd8] sm:$0xff] %vm8435, %v8416
      %8464 = vst.msk [vmem:[%s251 + $0xe0] sm:$0xff] %vm8435, %v8421
      %8465 = vst.msk [vmem:[%s251 + $0xe8] sm:$0xff] %vm8435, %v8424
      %8466 = vst.msk [vmem:[%s251 + $0xf0] sm:$0xff] %vm8435, %v8429
      %8467 = vst.msk [vmem:[%s251 + $0xf8] sm:$0xff] %vm8435, %v8432
      %p8468 = scmp.lt.s32.totalorder %s17, 1
      %s8469 = scalar_select %p8468, %s17, 1
      %s8470 = smul.addr %s8469, 32
      %s8471 = smul.addr %s8470, 8
      %s8472 = scalar_lea.vmem %s6, %s8471
      // Predicated region
      $region45: #{dense_layer_forward.1} parent=43 // pred_check
        %p8473 = pneg %p166
      $region46: #{dense_layer_forward.1} parent=43 // pred_check_branch
        %8475 = sbr.rel (%p8473) target = $region48
      $region47: #{dense_layer_forward.1} parent=43 // pred_region
        _
      $region48: #{dense_layer_forward.1} parent=43 // pred_fallthru
        _
    $region44: #{dense_layer_forward.1} parent=5 // pred_fallthru
      _
    %p8476 = scmp.le.s32.totalorder 2, %s12
    // Predicated region
    $region49: #{dense_layer_forward.1} parent=5 // pred_check
      %p8477 = pneg %p8476
    $region50: #{dense_layer_forward.1} parent=5 // pred_check_branch
      %8479 = sbr.rel (%p8477) target = $region52
    $region51: #{dense_layer_forward.1} parent=5 // pred_region
      %s8480 = ssub.s32 %s12, 2
      // Predicated region
      $region53: #{dense_layer_forward.1} parent=51 // pred_check
        %p8481 = pneg %p172
      $region54: #{dense_layer_forward.1} parent=51 // pred_check_branch
        %8483 = sbr.rel (%p8481) target = $region56
      $region55: #{dense_layer_forward.1} parent=51 // pred_region
        %p8484 = scmp.lt.s32.totalorder %s18, 1
        %s8485 = scalar_select %p8484, %s18, 1
        %s8486 = smul.addr %s8485, 32
        %s8487 = smul.addr %s8486, 8
        %s8488 = scalar_lea.vmem %s6, %s8487
      $region56: #{dense_layer_forward.1} parent=51 // pred_fallthru
        _
    $region52: #{dense_layer_forward.1} parent=5 // pred_fallthru
      _
  $region6: #{dense_layer_forward.1} parent=0 // loop_footer
    %s16 = sadd.s32 1, %s12
  $region7: #{dense_layer_forward.1} parent=0 // loop_footer_branch
    %11 = sbr.rel target = $region3
  $region8: #{dense_layer_forward.1} parent=0 // loop_exit
    _

</llo_original>
